<compile_context>
chip_gen: v5e
topology: v5e:2x2
jax: 0.10.0
libtpu: 0.0.40
codegen_flags: <defaults>
</compile_context>

<pallas_src>
import math
import numpy as np
import jax
import jax.numpy as jnp
from jax import lax
from jax.experimental import pallas as pl
from jax.experimental.pallas import tpu as pltpu

LN_EPS = 1e-5        # torch.nn.LayerNorm default
NEG_INF = -1e30


# --------------------------- positional encoding -----------------------------
def make_positional_encoding(max_len, d_model):
    pos = np.arange(max_len, dtype=np.float32)[:, None]
    div = np.exp(np.arange(0, d_model, 2, dtype=np.float32)
                 * (-math.log(10000.0) / d_model))
    pe = np.zeros((max_len, d_model), dtype=np.float32)
    pe[:, 0::2] = np.sin(pos * div)
    pe[:, 1::2] = np.cos(pos * div)
    return pe


# ------------------------------ fused kernel ---------------------------------
def _build_fused_kernel(cfg, B, S_enc, S_dec):
    D = cfg["d_model"]
    C = cfg["num_classes"]
    He = cfg["num_encoder_heads"]
    Hd = cfg["num_decoder_heads"]
    Le = cfg["num_encoder_layers"]
    Ld = cfg["num_decoder_layers"]
    skip_enc_pe = cfg["skip_encoder_pe"]
    skip_dec_pe = cfg["skip_decoder_pe"]
    assert D % He == 0 and D % Hd == 0

    def _ln(x, g, b):
        mu = jnp.mean(x, axis=-1, keepdims=True)
        xc = x - mu
        var = jnp.mean(xc * xc, axis=-1, keepdims=True)
        return xc * lax.rsqrt(var + LN_EPS) * g + b

    def _mha(xq, xkv, n_heads, Sq, Skv, wq, bq, wk, bk, wv, bv, wo, bo, bias):
        """Multi-head attention.  xq: (B*Sq, D), xkv: (B*Skv, D).
        bias is an additive mask broadcastable to (B, Sq, Skv)."""
        hd = D // n_heads
        scale = 1.0 / math.sqrt(hd)
        q = jnp.dot(xq, wq, preferred_element_type=jnp.float32) + bq
        k = jnp.dot(xkv, wk, preferred_element_type=jnp.float32) + bk
        v = jnp.dot(xkv, wv, preferred_element_type=jnp.float32) + bv
        q3 = q.reshape(B, Sq, D)
        k3 = k.reshape(B, Skv, D)
        v3 = v.reshape(B, Skv, D)
        out = jnp.zeros((B * Sq, D), jnp.float32) + bo
        for h in range(n_heads):                    # static unroll (tiny H)
            sl = slice(h * hd, (h + 1) * hd)
            s = jnp.einsum("bqd,bkd->bqk", q3[:, :, sl], k3[:, :, sl],
                           preferred_element_type=jnp.float32) * scale
            s = s + bias
            m = jnp.max(s, axis=-1, keepdims=True)
            e = jnp.exp(s - m)
            p = e * pl.reciprocal(jnp.sum(e, axis=-1, keepdims=True), approx=True)
            oh = jnp.einsum("bqk,bkd->bqd", p, v3[:, :, sl],
                            preferred_element_type=jnp.float32)
            # fold head output straight through its W_o row-slice (no lane concat)
            out = out + jnp.dot(oh.reshape(B * Sq, hd), wo[sl, :],
                                preferred_element_type=jnp.float32)
        return out

    def kernel(
        tok_ref, srcf_ref, srclen_ref, tgtlen_ref, pe_enc_ref, pe_dec_ref,
        src_w_ref, src_b_ref, tgt_emb_ref,
        enc_ln_ref, enc_w_ref, enc_b_ref,
        enc_w1_ref, enc_b1_ref, enc_w2_ref, enc_b2_ref,
        enc_norm_ref, ctc_w_ref, ctc_b_ref,
        dec_ln_ref, dec_sw_ref, dec_sb_ref, dec_cw_ref, dec_cb_ref,
        dec_w1_ref, dec_b1_ref, dec_w2_ref, dec_b2_ref,
        dec_norm_ref, fin_w_ref, fin_b_ref,
        seq_ref, ctc_ref,
    ):
        # ---------------- masks (built from per-batch lengths) ----------------
        key_pos_e = lax.broadcasted_iota(jnp.int32, (B, S_enc), 1)
        enc_bias = jnp.where(key_pos_e < srclen_ref[...], 0.0, NEG_INF)[:, None, :]
        key_pos_d = lax.broadcasted_iota(jnp.int32, (B, S_dec), 1)
        tgt_bias = jnp.where(key_pos_d < tgtlen_ref[...], 0.0, NEG_INF)[:, None, :]
        row = lax.broadcasted_iota(jnp.int32, (S_dec, S_dec), 0)
        col = lax.broadcasted_iota(jnp.int32, (S_dec, S_dec), 1)
        causal_bias = jnp.where(col <= row, 0.0, NEG_INF)[None, :, :]
        dec_self_bias = causal_bias + tgt_bias          # (B, S_dec, S_dec)

        # ---------------- encoder: speech embedding + PE ----------------------
        # TODO(synk): SpeechEmbedding internals ('lstm'/'conv'/'both') are not in
        # the spec; implemented here as conv-equivalent frame-stacking + linear.
        x_e = jnp.dot(srcf_ref[...], src_w_ref[...],
                      preferred_element_type=jnp.float32) + src_b_ref[...]
        if not skip_enc_pe:
            x_e = x_e + pe_enc_ref[...]

        for l in range(Le):                             # static unroll over layers
            xn = _ln(x_e, enc_ln_ref[l, 0], enc_ln_ref[l, 1])
            x_e = x_e + _mha(xn, xn, He, S_enc, S_enc,
                             enc_w_ref[l, 0], enc_b_ref[l, 0],
                             enc_w_ref[l, 1], enc_b_ref[l, 1],
                             enc_w_ref[l, 2], enc_b_ref[l, 2],
                             enc_w_ref[l, 3], enc_b_ref[l, 3],
                             enc_bias)
            xn2 = _ln(x_e, enc_ln_ref[l, 2], enc_ln_ref[l, 3])
            h1 = jnp.dot(xn2, enc_w1_ref[l],
                         preferred_element_type=jnp.float32) + enc_b1_ref[l]
            # TODO(synk): FFN activation assumed GELU(tanh); swap to ReLU if hw4lib uses ReLU.
            h1 = jax.nn.gelu(h1, approximate=True)
            x_e = x_e + jnp.dot(h1, enc_w2_ref[l],
                                preferred_element_type=jnp.float32) + enc_b2_ref[l]

        x_e = _ln(x_e, enc_norm_ref[0], enc_norm_ref[1])      # encoder_norm

        # ---------------- CTC head: linear + log-softmax ----------------------
        ctc_logits = jnp.dot(x_e, ctc_w_ref[...],
                             preferred_element_type=jnp.float32) + ctc_b_ref[...]
        m = jnp.max(ctc_logits, axis=-1, keepdims=True)
        lse = m + jnp.log(jnp.sum(jnp.exp(ctc_logits - m), axis=-1, keepdims=True))
        ctc_ref[...] = ctc_logits - lse

        # ---------------- decoder: token embedding (one-hot matmul) + PE ------
        onehot = (lax.broadcasted_iota(jnp.int32, (B * S_dec, C), 1)
                  == tok_ref[...]).astype(jnp.float32)
        x_d = jnp.dot(onehot, tgt_emb_ref[...], preferred_element_type=jnp.float32)
        if not skip_dec_pe:
            x_d = x_d + pe_dec_ref[...]

        for l in range(Ld):
            # self-attention (causal + target key-pad mask)
            xn = _ln(x_d, dec_ln_ref[l, 0], dec_ln_ref[l, 1])
            x_d = x_d + _mha(xn, xn, Hd, S_dec, S_dec,
                             dec_sw_ref[l, 0], dec_sb_ref[l, 0],
                             dec_sw_ref[l, 1], dec_sb_ref[l, 1],
                             dec_sw_ref[l, 2], dec_sb_ref[l, 2],
                             dec_sw_ref[l, 3], dec_sb_ref[l, 3],
                             dec_self_bias)
            # cross-attention (keys/values = encoder output, source key-pad mask)
            xn = _ln(x_d, dec_ln_ref[l, 2], dec_ln_ref[l, 3])
            x_d = x_d + _mha(xn, x_e, Hd, S_dec, S_enc,
                             dec_cw_ref[l, 0], dec_cb_ref[l, 0],
                             dec_cw_ref[l, 1], dec_cb_ref[l, 1],
                             dec_cw_ref[l, 2], dec_cb_ref[l, 2],
                             dec_cw_ref[l, 3], dec_cb_ref[l, 3],
                             enc_bias)
            # feed-forward
            xn = _ln(x_d, dec_ln_ref[l, 4], dec_ln_ref[l, 5])
            h1 = jnp.dot(xn, dec_w1_ref[l],
                         preferred_element_type=jnp.float32) + dec_b1_ref[l]
            h1 = jax.nn.gelu(h1, approximate=True)
            x_d = x_d + jnp.dot(h1, dec_w2_ref[l],
                                preferred_element_type=jnp.float32) + dec_b2_ref[l]

        x_d = _ln(x_d, dec_norm_ref[0], dec_norm_ref[1])      # decoder_norm
        seq_ref[...] = jnp.dot(x_d, fin_w_ref[...],
                               preferred_element_type=jnp.float32) + fin_b_ref[...]

    return kernel


# ------------------------------ parameters -----------------------------------
def init_params(key, cfg):
    D = cfg["d_model"]; C = cfg["num_classes"]
    Fe = cfg["d_ff_encoder"]; Fd = cfg["d_ff_decoder"]
    Le = cfg["num_encoder_layers"]; Ld = cfg["num_decoder_layers"]
    Fin = cfg["input_dim"] * cfg["time_reduction"]

    keys = jax.random.split(key, 11)
    def rnd(k, shape):
        return 0.02 * jax.random.normal(k, shape, jnp.float32)

    ln_e = np.zeros((Le, 4, 1, D), np.float32); ln_e[:, 0::2] = 1.0
    ln_d = np.zeros((Ld, 6, 1, D), np.float32); ln_d[:, 0::2] = 1.0
    norm = np.zeros((2, 1, D), np.float32); norm[0] = 1.0

    p = dict(
        src_w=rnd(keys[0], (Fin, D)), src_b=jnp.zeros((1, D), jnp.float32),
        tgt_emb=rnd(keys[1], (C, D)),
        enc_ln=jnp.asarray(ln_e),
        enc_w=rnd(keys[2], (Le, 4, D, D)),
        enc_b=jnp.zeros((Le, 4, 1, D), jnp.float32),
        enc_w1=rnd(keys[3], (Le, D, Fe)), enc_b1=jnp.zeros((Le, 1, Fe), jnp.float32),
        enc_w2=rnd(keys[4], (Le, Fe, D)), enc_b2=jnp.zeros((Le, 1, D), jnp.float32),
        enc_norm=jnp.asarray(norm),
        ctc_w=rnd(keys[5], (D, C)), ctc_b=jnp.zeros((1, C), jnp.float32),
        dec_ln=jnp.asarray(ln_d),
        dec_sw=rnd(keys[6], (Ld, 4, D, D)),
        dec_sb=jnp.zeros((Ld, 4, 1, D), jnp.float32),
        dec_cw=rnd(keys[7], (Ld, 4, D, D)),
        dec_cb=jnp.zeros((Ld, 4, 1, D), jnp.float32),
        dec_w1=rnd(keys[8], (Ld, D, Fd)), dec_b1=jnp.zeros((Ld, 1, Fd), jnp.float32),
        dec_w2=rnd(keys[9], (Ld, Fd, D)), dec_b2=jnp.zeros((Ld, 1, D), jnp.float32),
        dec_norm=jnp.asarray(norm.copy()),
        fin_w=rnd(keys[10], (D, C)), fin_b=jnp.zeros((1, C), jnp.float32),
    )
    if cfg.get("weight_tying", False):
        p["tgt_emb"] = p["fin_w"].T
    return p


def _flop_estimate(cfg, B, S_enc, S_dec):
    D = cfg["d_model"]; C = cfg["num_classes"]
    Fe = cfg["d_ff_encoder"]; Fd = cfg["d_ff_decoder"]
    Le = cfg["num_encoder_layers"]; Ld = cfg["num_decoder_layers"]
    Fin = cfg["input_dim"] * cfg["time_reduction"]
    Ne, Nd = B * S_enc, B * S_dec
    def mha(Nq, Sq, Skv):
        return 8 * Nq * D * D + 4 * B * Sq * Skv * D
    fl = 2 * Ne * Fin * D + 2 * Nd * C * D
    fl += Le * (mha(Ne, S_enc, S_enc) + 4 * Ne * D * Fe)
    fl += Ld * (mha(Nd, S_dec, S_dec) + mha(Nd, S_dec, S_enc) + 4 * Nd * D * Fd)
    fl += 2 * Ne * D * C + 2 * Nd * D * C
    trans = (Le * cfg["num_encoder_heads"] * B * S_enc * S_enc
             + Ld * cfg["num_decoder_heads"] * B * (S_dec * S_dec + S_dec * S_enc)
             + Ne * C)
    return int(fl), int(trans)


# ------------------------------ model wrapper --------------------------------
class EncoderDecoderTransformerPallas:
    """Eval-mode forward of EncoderDecoderTransformer, fully fused in one Pallas kernel."""

    def __init__(self, cfg, params):
        self.cfg = cfg
        self.params = params
        self._pe = make_positional_encoding(cfg["max_len"], cfg["d_model"])  # numpy

    def forward(self, padded_sources, padded_targets,
                source_lengths=None, target_lengths=None):
        cfg, p = self.cfg, self.params
        B, T, Fi = padded_sources.shape
        _, S_dec = padded_targets.shape
        tr = cfg["time_reduction"]
        S_enc = T // tr
        D, C = cfg["d_model"], cfg["num_classes"]
        assert S_enc <= cfg["max_len"] and S_dec <= cfg["max_len"]

        # conv-equivalent time reduction: stack `tr` consecutive frames
        srcf = padded_sources[:, :S_enc * tr, :].reshape(B * S_enc, tr * Fi)

        if source_lengths is None:
            source_lengths = jnp.full((B,), T, dtype=jnp.int32)
        enc_lens = jnp.maximum(source_lengths.astype(jnp.int32) // tr, 1)
        if target_lengths is None:
            tgt_lens = jnp.full((B,), S_dec, dtype=jnp.int32)
        else:
            tgt_lens = target_lengths.astype(jnp.int32)

        tokens = padded_targets.astype(jnp.int32).reshape(B * S_dec, 1)
        pe_enc = jnp.asarray(np.tile(self._pe[:S_enc], (B, 1)))   # (B*S_enc, D) constant
        pe_dec = jnp.asarray(np.tile(self._pe[:S_dec], (B, 1)))   # (B*S_dec, D) constant

        args = (
            tokens, srcf, enc_lens.reshape(B, 1), tgt_lens.reshape(B, 1),
            pe_enc, pe_dec,
            p["src_w"], p["src_b"], p["tgt_emb"],
            p["enc_ln"], p["enc_w"], p["enc_b"],
            p["enc_w1"], p["enc_b1"], p["enc_w2"], p["enc_b2"],
            p["enc_norm"], p["ctc_w"], p["ctc_b"],
            p["dec_ln"], p["dec_sw"], p["dec_sb"], p["dec_cw"], p["dec_cb"],
            p["dec_w1"], p["dec_b1"], p["dec_w2"], p["dec_b2"],
            p["dec_norm"], p["fin_w"], p["fin_b"],
        )

        flops, trans = _flop_estimate(cfg, B, S_enc, S_dec)
        bytes_accessed = sum(int(np.prod(a.shape)) * a.dtype.itemsize for a in args)
        bytes_accessed += 4 * (B * S_dec * C + B * S_enc * C)

        kernel = _build_fused_kernel(cfg, B, S_enc, S_dec)
        seq_flat, ctc_flat = pl.pallas_call(
            kernel,
            out_shape=(
                jax.ShapeDtypeStruct((B * S_dec, C), jnp.float32),
                jax.ShapeDtypeStruct((B * S_enc, C), jnp.float32),
            ),
            cost_estimate=pl.CostEstimate(
                flops=flops, transcendentals=trans, bytes_accessed=int(bytes_accessed)),
        )(*args)

        seq_out = seq_flat.reshape(B, S_dec, C)
        ctc_log_probs = ctc_flat.reshape(B, S_enc, C).transpose(1, 0, 2)  # (src_len, B, C)

        # TODO(synk): per-layer attention-weight maps are dropped from the fused
        # hot path per perf review (debug-only output); dict kept for API parity.
        running_att = {}
        ctc_inputs = {"log_probs": ctc_log_probs, "lengths": enc_lens}
        return seq_out, running_att, ctc_inputs


# ----------------------------------- main -------------------------------------
if __name__ == "__main__":
    CONFIG = dict(
        input_dim=16, time_reduction=2, reduction_method="conv",
        num_encoder_layers=2, num_encoder_heads=2, d_ff_encoder=64,
        num_decoder_layers=2, num_decoder_heads=2, d_ff_decoder=64,
        d_model=32, dropout=0.0, max_len=16, num_classes=16,
        weight_tying=False, layer_drop_rate=0.0,
        skip_encoder_pe=False, skip_decoder_pe=False,
    )
    B, T_src, S_dec = 2, 16, 8

    key = jax.random.PRNGKey(0)
    k_src, k_tok, k_par = jax.random.split(key, 3)
    padded_sources = jax.random.normal(k_src, (B, T_src, CONFIG["input_dim"]), jnp.float32)
    padded_targets = jax.random.randint(k_tok, (B, S_dec), 0, CONFIG["num_classes"],
                                        dtype=jnp.int32)
    source_lengths = jnp.array([16, 12], jnp.int32)
    target_lengths = jnp.array([8, 6], jnp.int32)

    model = EncoderDecoderTransformerPallas(CONFIG, init_params(k_par, CONFIG))
    seq_out, running_att, ctc_inputs = model.forward(
        padded_sources, padded_targets, source_lengths, target_lengths)

    jax.block_until_ready(seq_out)
    jax.block_until_ready(ctc_inputs["log_probs"])

    S_enc = T_src // CONFIG["time_reduction"]
    assert seq_out.shape == (B, S_dec, CONFIG["num_classes"])
    assert ctc_inputs["log_probs"].shape == (S_enc, B, CONFIG["num_classes"])
    assert ctc_inputs["lengths"].shape == (B,)
    assert bool(jnp.isfinite(seq_out).all())
    assert bool(jnp.isfinite(ctc_inputs["log_probs"]).all())
    # CTC head emits log-probs: rows must (approximately) sum to 1 in prob space
    prob_sums = np.asarray(jnp.exp(ctc_inputs["log_probs"]).sum(-1))
    assert np.allclose(prob_sums, 1.0, atol=1e-3)
    print("KERNEL_OK")
</pallas_src>

<mosaic_0001>
module attributes {stable_mosaic.version = 11 : i64} {
  func.func @kernel(%arg0: memref<16x1xi32, #tpu.memory_space<vmem>>, %arg1: memref<16x32xf32, #tpu.memory_space<vmem>>, %arg2: memref<2x1xi32, #tpu.memory_space<vmem>>, %arg3: memref<2x1xi32, #tpu.memory_space<vmem>>, %arg4: memref<16x32xf32, #tpu.memory_space<vmem>>, %arg5: memref<16x32xf32, #tpu.memory_space<vmem>>, %arg6: memref<32x32xf32, #tpu.memory_space<vmem>>, %arg7: memref<1x32xf32, #tpu.memory_space<vmem>>, %arg8: memref<16x32xf32, #tpu.memory_space<vmem>>, %arg9: memref<2x4x1x32xf32, #tpu.memory_space<vmem>>, %arg10: memref<2x4x32x32xf32, #tpu.memory_space<vmem>>, %arg11: memref<2x4x1x32xf32, #tpu.memory_space<vmem>>, %arg12: memref<2x32x64xf32, #tpu.memory_space<vmem>>, %arg13: memref<2x1x64xf32, #tpu.memory_space<vmem>>, %arg14: memref<2x64x32xf32, #tpu.memory_space<vmem>>, %arg15: memref<2x1x32xf32, #tpu.memory_space<vmem>>, %arg16: memref<2x1x32xf32, #tpu.memory_space<vmem>>, %arg17: memref<32x16xf32, #tpu.memory_space<vmem>>, %arg18: memref<1x16xf32, #tpu.memory_space<vmem>>, %arg19: memref<2x6x1x32xf32, #tpu.memory_space<vmem>>, %arg20: memref<2x4x32x32xf32, #tpu.memory_space<vmem>>, %arg21: memref<2x4x1x32xf32, #tpu.memory_space<vmem>>, %arg22: memref<2x4x32x32xf32, #tpu.memory_space<vmem>>, %arg23: memref<2x4x1x32xf32, #tpu.memory_space<vmem>>, %arg24: memref<2x32x64xf32, #tpu.memory_space<vmem>>, %arg25: memref<2x1x64xf32, #tpu.memory_space<vmem>>, %arg26: memref<2x64x32xf32, #tpu.memory_space<vmem>>, %arg27: memref<2x1x32xf32, #tpu.memory_space<vmem>>, %arg28: memref<2x1x32xf32, #tpu.memory_space<vmem>>, %arg29: memref<32x16xf32, #tpu.memory_space<vmem>>, %arg30: memref<1x16xf32, #tpu.memory_space<vmem>>, %arg31: memref<16x16xf32, #tpu.memory_space<vmem>>, %arg32: memref<16x16xf32, #tpu.memory_space<vmem>>) attributes {dimension_semantics = [], scalar_prefetch = 0 : i64, scratch_operands = 0 : i64, tpu.core_type = #tpu.core_type<tc>} {
    %0 = tpu.iota {dimensions = array<i32: 1>} : vector<2x8xi32>
    %c0 = arith.constant 0 : index
    %c0_0 = arith.constant 0 : index
    %1 = vector.load %arg2[%c0, %c0_0] : memref<2x1xi32, #tpu.memory_space<vmem>>, vector<2x1xi32>
    %2 = vector.broadcast %1 : vector<2x1xi32> to vector<2x8xi32>
    %3 = arith.cmpi slt, %0, %2 : vector<2x8xi32>
    %cst = arith.constant 0.000000e+00 : f32
    %cst_1 = arith.constant -1.000000e+30 : f32
    %4 = vector.broadcast %cst : f32 to vector<2x8xf32>
    %5 = vector.broadcast %cst_1 : f32 to vector<2x8xf32>
    %6 = arith.select %3, %4, %5 : vector<2x8xi1>, vector<2x8xf32>
    %7 = vector.shape_cast %6 : vector<2x8xf32> to vector<2x1x8xf32>
    %8 = tpu.iota {dimensions = array<i32: 1>} : vector<2x8xi32>
    %c0_2 = arith.constant 0 : index
    %c0_3 = arith.constant 0 : index
    %9 = vector.load %arg3[%c0_2, %c0_3] : memref<2x1xi32, #tpu.memory_space<vmem>>, vector<2x1xi32>
    %10 = vector.broadcast %9 : vector<2x1xi32> to vector<2x8xi32>
    %11 = arith.cmpi slt, %8, %10 : vector<2x8xi32>
    %cst_4 = arith.constant 0.000000e+00 : f32
    %cst_5 = arith.constant -1.000000e+30 : f32
    %12 = vector.broadcast %cst_4 : f32 to vector<2x8xf32>
    %13 = vector.broadcast %cst_5 : f32 to vector<2x8xf32>
    %14 = arith.select %11, %12, %13 : vector<2x8xi1>, vector<2x8xf32>
    %15 = vector.shape_cast %14 : vector<2x8xf32> to vector<2x1x8xf32>
    %16 = tpu.iota {dimensions = array<i32: 0>} : vector<8x8xi32>
    %17 = tpu.iota {dimensions = array<i32: 1>} : vector<8x8xi32>
    %18 = arith.cmpi sle, %17, %16 : vector<8x8xi32>
    %cst_6 = arith.constant 0.000000e+00 : f32
    %cst_7 = arith.constant -1.000000e+30 : f32
    %19 = vector.broadcast %cst_6 : f32 to vector<8x8xf32>
    %20 = vector.broadcast %cst_7 : f32 to vector<8x8xf32>
    %21 = arith.select %18, %19, %20 : vector<8x8xi1>, vector<8x8xf32>
    %22 = vector.shape_cast %21 : vector<8x8xf32> to vector<1x8x8xf32>
    %23 = vector.broadcast %22 : vector<1x8x8xf32> to vector<2x8x8xf32>
    %24 = vector.broadcast %15 : vector<2x1x8xf32> to vector<2x8x8xf32>
    %25 = arith.addf %23, %24 : vector<2x8x8xf32>
    %c0_8 = arith.constant 0 : index
    %c0_9 = arith.constant 0 : index
    %26 = vector.load %arg1[%c0_8, %c0_9] : memref<16x32xf32, #tpu.memory_space<vmem>>, vector<16x32xf32>
    %c0_10 = arith.constant 0 : index
    %c0_11 = arith.constant 0 : index
    %27 = vector.load %arg6[%c0_10, %c0_11] : memref<32x32xf32, #tpu.memory_space<vmem>>, vector<32x32xf32>
    %cst_12 = arith.constant dense<0.000000e+00> : vector<16x32xf32>
    %28 = tpu.matmul %26, %27, %cst_12 {dimension_numbers = #tpu.dot_dimension_numbers<[1], [0], [0], [1], [0, 0, 1, 1], [], []>} : vector<16x32xf32>, vector<32x32xf32>, vector<16x32xf32> -> vector<16x32xf32>
    %c0_13 = arith.constant 0 : index
    %c0_14 = arith.constant 0 : index
    %29 = vector.load %arg7[%c0_13, %c0_14] : memref<1x32xf32, #tpu.memory_space<vmem>>, vector<1x32xf32>
    %30 = vector.broadcast %29 : vector<1x32xf32> to vector<16x32xf32>
    %31 = arith.addf %28, %30 : vector<16x32xf32>
    %c0_15 = arith.constant 0 : index
    %c0_16 = arith.constant 0 : index
    %32 = vector.load %arg4[%c0_15, %c0_16] : memref<16x32xf32, #tpu.memory_space<vmem>>, vector<16x32xf32>
    %33 = arith.addf %31, %32 : vector<16x32xf32>
    %c0_17 = arith.constant 0 : index
    %c0_18 = arith.constant 0 : index
    %c0_19 = arith.constant 0 : index
    %c0_20 = arith.constant 0 : index
    %34 = vector.load %arg9[%c0_17, %c0_18, %c0_19, %c0_20] : memref<2x4x1x32xf32, #tpu.memory_space<vmem>>, vector<1x1x1x32xf32>
    %35 = vector.shape_cast %34 : vector<1x1x1x32xf32> to vector<1x32xf32>
    %c0_21 = arith.constant 0 : index
    %c1 = arith.constant 1 : index
    %c0_22 = arith.constant 0 : index
    %c0_23 = arith.constant 0 : index
    %36 = vector.load %arg9[%c0_21, %c1, %c0_22, %c0_23] : memref<2x4x1x32xf32, #tpu.memory_space<vmem>>, vector<1x1x1x32xf32>
    %37 = vector.shape_cast %36 : vector<1x1x1x32xf32> to vector<1x32xf32>
    %cst_24 = arith.constant dense<0.000000e+00> : vector<16xf32>
    %38 = vector.multi_reduction <add>, %33, %cst_24 [1] : vector<16x32xf32> to vector<16xf32>
    %39 = vector.shape_cast %38 : vector<16xf32> to vector<16x1xf32>
    %cst_25 = arith.constant 3.200000e+01 : f32
    %40 = vector.broadcast %cst_25 : f32 to vector<16x1xf32>
    %41 = arith.divf %39, %40 : vector<16x1xf32>
    %42 = vector.broadcast %41 : vector<16x1xf32> to vector<16x32xf32>
    %43 = arith.subf %33, %42 : vector<16x32xf32>
    %44 = arith.mulf %43, %43 : vector<16x32xf32>
    %cst_26 = arith.constant dense<0.000000e+00> : vector<16xf32>
    %45 = vector.multi_reduction <add>, %44, %cst_26 [1] : vector<16x32xf32> to vector<16xf32>
    %46 = vector.shape_cast %45 : vector<16xf32> to vector<16x1xf32>
    %cst_27 = arith.constant 3.200000e+01 : f32
    %47 = vector.broadcast %cst_27 : f32 to vector<16x1xf32>
    %48 = arith.divf %46, %47 : vector<16x1xf32>
    %cst_28 = arith.constant 9.99999974E-6 : f32
    %49 = vector.broadcast %cst_28 : f32 to vector<16x1xf32>
    %50 = arith.addf %48, %49 : vector<16x1xf32>
    %51 = math.rsqrt %50 : vector<16x1xf32>
    %52 = vector.broadcast %51 : vector<16x1xf32> to vector<16x32xf32>
    %53 = arith.mulf %43, %52 : vector<16x32xf32>
    %54 = vector.broadcast %35 : vector<1x32xf32> to vector<16x32xf32>
    %55 = arith.mulf %53, %54 : vector<16x32xf32>
    %56 = vector.broadcast %37 : vector<1x32xf32> to vector<16x32xf32>
    %57 = arith.addf %55, %56 : vector<16x32xf32>
    %c0_29 = arith.constant 0 : index
    %c0_30 = arith.constant 0 : index
    %c0_31 = arith.constant 0 : index
    %c0_32 = arith.constant 0 : index
    %58 = vector.load %arg10[%c0_29, %c0_30, %c0_31, %c0_32] : memref<2x4x32x32xf32, #tpu.memory_space<vmem>>, vector<1x1x32x32xf32>
    %59 = vector.shape_cast %58 : vector<1x1x32x32xf32> to vector<32x32xf32>
    %c0_33 = arith.constant 0 : index
    %c0_34 = arith.constant 0 : index
    %c0_35 = arith.constant 0 : index
    %c0_36 = arith.constant 0 : index
    %60 = vector.load %arg11[%c0_33, %c0_34, %c0_35, %c0_36] : memref<2x4x1x32xf32, #tpu.memory_space<vmem>>, vector<1x1x1x32xf32>
    %61 = vector.shape_cast %60 : vector<1x1x1x32xf32> to vector<1x32xf32>
    %c0_37 = arith.constant 0 : index
    %c1_38 = arith.constant 1 : index
    %c0_39 = arith.constant 0 : index
    %c0_40 = arith.constant 0 : index
    %62 = vector.load %arg10[%c0_37, %c1_38, %c0_39, %c0_40] : memref<2x4x32x32xf32, #tpu.memory_space<vmem>>, vector<1x1x32x32xf32>
    %63 = vector.shape_cast %62 : vector<1x1x32x32xf32> to vector<32x32xf32>
    %c0_41 = arith.constant 0 : index
    %c1_42 = arith.constant 1 : index
    %c0_43 = arith.constant 0 : index
    %c0_44 = arith.constant 0 : index
    %64 = vector.load %arg11[%c0_41, %c1_42, %c0_43, %c0_44] : memref<2x4x1x32xf32, #tpu.memory_space<vmem>>, vector<1x1x1x32xf32>
    %65 = vector.shape_cast %64 : vector<1x1x1x32xf32> to vector<1x32xf32>
    %c0_45 = arith.constant 0 : index
    %c2 = arith.constant 2 : index
    %c0_46 = arith.constant 0 : index
    %c0_47 = arith.constant 0 : index
    %66 = vector.load %arg10[%c0_45, %c2, %c0_46, %c0_47] : memref<2x4x32x32xf32, #tpu.memory_space<vmem>>, vector<1x1x32x32xf32>
    %67 = vector.shape_cast %66 : vector<1x1x32x32xf32> to vector<32x32xf32>
    %c0_48 = arith.constant 0 : index
    %c2_49 = arith.constant 2 : index
    %c0_50 = arith.constant 0 : index
    %c0_51 = arith.constant 0 : index
    %68 = vector.load %arg11[%c0_48, %c2_49, %c0_50, %c0_51] : memref<2x4x1x32xf32, #tpu.memory_space<vmem>>, vector<1x1x1x32xf32>
    %69 = vector.shape_cast %68 : vector<1x1x1x32xf32> to vector<1x32xf32>
    %c0_52 = arith.constant 0 : index
    %c3 = arith.constant 3 : index
    %c0_53 = arith.constant 0 : index
    %c0_54 = arith.constant 0 : index
    %70 = vector.load %arg10[%c0_52, %c3, %c0_53, %c0_54] : memref<2x4x32x32xf32, #tpu.memory_space<vmem>>, vector<1x1x32x32xf32>
    %71 = vector.shape_cast %70 : vector<1x1x32x32xf32> to vector<32x32xf32>
    %c0_55 = arith.constant 0 : index
    %c3_56 = arith.constant 3 : index
    %c0_57 = arith.constant 0 : index
    %c0_58 = arith.constant 0 : index
    %72 = vector.load %arg11[%c0_55, %c3_56, %c0_57, %c0_58] : memref<2x4x1x32xf32, #tpu.memory_space<vmem>>, vector<1x1x1x32xf32>
    %73 = vector.shape_cast %72 : vector<1x1x1x32xf32> to vector<1x32xf32>
    %cst_59 = arith.constant dense<0.000000e+00> : vector<16x32xf32>
    %74 = tpu.matmul %57, %59, %cst_59 {dimension_numbers = #tpu.dot_dimension_numbers<[1], [0], [0], [1], [0, 0, 1, 1], [], []>} : vector<16x32xf32>, vector<32x32xf32>, vector<16x32xf32> -> vector<16x32xf32>
    %75 = vector.broadcast %61 : vector<1x32xf32> to vector<16x32xf32>
    %76 = arith.addf %74, %75 : vector<16x32xf32>
    %cst_60 = arith.constant dense<0.000000e+00> : vector<16x32xf32>
    %77 = tpu.matmul %57, %63, %cst_60 {dimension_numbers = #tpu.dot_dimension_numbers<[1], [0], [0], [1], [0, 0, 1, 1], [], []>} : vector<16x32xf32>, vector<32x32xf32>, vector<16x32xf32> -> vector<16x32xf32>
    %78 = vector.broadcast %65 : vector<1x32xf32> to vector<16x32xf32>
    %79 = arith.addf %77, %78 : vector<16x32xf32>
    %cst_61 = arith.constant dense<0.000000e+00> : vector<16x32xf32>
    %80 = tpu.matmul %57, %67, %cst_61 {dimension_numbers = #tpu.dot_dimension_numbers<[1], [0], [0], [1], [0, 0, 1, 1], [], []>} : vector<16x32xf32>, vector<32x32xf32>, vector<16x32xf32> -> vector<16x32xf32>
    %81 = vector.broadcast %69 : vector<1x32xf32> to vector<16x32xf32>
    %82 = arith.addf %80, %81 : vector<16x32xf32>
    %83 = vector.shape_cast %76 : vector<16x32xf32> to vector<2x8x32xf32>
    %84 = vector.shape_cast %79 : vector<16x32xf32> to vector<2x8x32xf32>
    %85 = vector.shape_cast %82 : vector<16x32xf32> to vector<2x8x32xf32>
    %cst_62 = arith.constant 0.000000e+00 : f32
    %86 = vector.broadcast %cst_62 : f32 to vector<16x32xf32>
    %87 = vector.broadcast %73 : vector<1x32xf32> to vector<16x32xf32>
    %88 = arith.addf %86, %87 : vector<16x32xf32>
    %89 = vector.extract_strided_slice %83 {offsets = [0, 0, 0], sizes = [2, 8, 16], strides = [1, 1, 1]} : vector<2x8x32xf32> to vector<2x8x16xf32>
    %90 = vector.extract_strided_slice %84 {offsets = [0, 0, 0], sizes = [2, 8, 16], strides = [1, 1, 1]} : vector<2x8x32xf32> to vector<2x8x16xf32>
    "tpu.trace_start"() <{level = 10 : i32, message = "bqd,bkd->bqk"}> : () -> ()
    %cst_63 = arith.constant dense<0.000000e+00> : vector<2x8x8xf32>
    %91 = tpu.matmul %89, %90, %cst_63 {dimension_numbers = #tpu.dot_dimension_numbers<[2], [2], [1], [1], [0, 0, 0, 1, 1, 1], [0], [0]>} : vector<2x8x16xf32>, vector<2x8x16xf32>, vector<2x8x8xf32> -> vector<2x8x8xf32>
    "tpu.trace_stop"() : () -> ()
    %cst_64 = arith.constant 2.500000e-01 : f32
    %92 = vector.broadcast %cst_64 : f32 to vector<2x8x8xf32>
    %93 = arith.mulf %91, %92 : vector<2x8x8xf32>
    %94 = vector.broadcast %7 : vector<2x1x8xf32> to vector<2x8x8xf32>
    %95 = arith.addf %93, %94 : vector<2x8x8xf32>
    %cst_65 = arith.constant dense<0xFF800000> : vector<2x8xf32>
    %96 = vector.multi_reduction <maximumf>, %95, %cst_65 [2] : vector<2x8x8xf32> to vector<2x8xf32>
    %97 = vector.shape_cast %96 : vector<2x8xf32> to vector<2x8x1xf32>
    %98 = vector.broadcast %97 : vector<2x8x1xf32> to vector<2x8x8xf32>
    %99 = arith.subf %95, %98 : vector<2x8x8xf32>
    %100 = math.exp %99 : vector<2x8x8xf32>
    %cst_66 = arith.constant dense<0.000000e+00> : vector<2x8xf32>
    %101 = vector.multi_reduction <add>, %100, %cst_66 [2] : vector<2x8x8xf32> to vector<2x8xf32>
    %102 = vector.shape_cast %101 : vector<2x8xf32> to vector<2x8x1xf32>
    %103 = tpu.reciprocal %102 {approx = true} : vector<2x8x1xf32> -> vector<2x8x1xf32>
    %104 = vector.broadcast %103 : vector<2x8x1xf32> to vector<2x8x8xf32>
    %105 = arith.mulf %100, %104 : vector<2x8x8xf32>
    %106 = vector.extract_strided_slice %85 {offsets = [0, 0, 0], sizes = [2, 8, 16], strides = [1, 1, 1]} : vector<2x8x32xf32> to vector<2x8x16xf32>
    "tpu.trace_start"() <{level = 10 : i32, message = "bqk,bkd->bqd"}> : () -> ()
    %cst_67 = arith.constant dense<0.000000e+00> : vector<2x8x16xf32>
    %107 = tpu.matmul %105, %106, %cst_67 {dimension_numbers = #tpu.dot_dimension_numbers<[2], [1], [1], [2], [0, 0, 0, 1, 1, 2], [0], [0]>} : vector<2x8x8xf32>, vector<2x8x16xf32>, vector<2x8x16xf32> -> vector<2x8x16xf32>
    "tpu.trace_stop"() : () -> ()
    %108 = vector.shape_cast %107 : vector<2x8x16xf32> to vector<16x16xf32>
    %109 = vector.extract_strided_slice %71 {offsets = [0, 0], sizes = [16, 32], strides = [1, 1]} : vector<32x32xf32> to vector<16x32xf32>
    %cst_68 = arith.constant dense<0.000000e+00> : vector<16x32xf32>
    %110 = tpu.matmul %108, %109, %cst_68 {dimension_numbers = #tpu.dot_dimension_numbers<[1], [0], [0], [1], [0, 0, 1, 1], [], []>} : vector<16x16xf32>, vector<16x32xf32>, vector<16x32xf32> -> vector<16x32xf32>
    %111 = arith.addf %88, %110 : vector<16x32xf32>
    %112 = vector.extract_strided_slice %83 {offsets = [0, 0, 16], sizes = [2, 8, 16], strides = [1, 1, 1]} : vector<2x8x32xf32> to vector<2x8x16xf32>
    %113 = vector.extract_strided_slice %84 {offsets = [0, 0, 16], sizes = [2, 8, 16], strides = [1, 1, 1]} : vector<2x8x32xf32> to vector<2x8x16xf32>
    "tpu.trace_start"() <{level = 10 : i32, message = "bqd,bkd->bqk"}> : () -> ()
    %cst_69 = arith.constant dense<0.000000e+00> : vector<2x8x8xf32>
    %114 = tpu.matmul %112, %113, %cst_69 {dimension_numbers = #tpu.dot_dimension_numbers<[2], [2], [1], [1], [0, 0, 0, 1, 1, 1], [0], [0]>} : vector<2x8x16xf32>, vector<2x8x16xf32>, vector<2x8x8xf32> -> vector<2x8x8xf32>
    "tpu.trace_stop"() : () -> ()
    %cst_70 = arith.constant 2.500000e-01 : f32
    %115 = vector.broadcast %cst_70 : f32 to vector<2x8x8xf32>
    %116 = arith.mulf %114, %115 : vector<2x8x8xf32>
    %117 = vector.broadcast %7 : vector<2x1x8xf32> to vector<2x8x8xf32>
    %118 = arith.addf %116, %117 : vector<2x8x8xf32>
    %cst_71 = arith.constant dense<0xFF800000> : vector<2x8xf32>
    %119 = vector.multi_reduction <maximumf>, %118, %cst_71 [2] : vector<2x8x8xf32> to vector<2x8xf32>
    %120 = vector.shape_cast %119 : vector<2x8xf32> to vector<2x8x1xf32>
    %121 = vector.broadcast %120 : vector<2x8x1xf32> to vector<2x8x8xf32>
    %122 = arith.subf %118, %121 : vector<2x8x8xf32>
    %123 = math.exp %122 : vector<2x8x8xf32>
    %cst_72 = arith.constant dense<0.000000e+00> : vector<2x8xf32>
    %124 = vector.multi_reduction <add>, %123, %cst_72 [2] : vector<2x8x8xf32> to vector<2x8xf32>
    %125 = vector.shape_cast %124 : vector<2x8xf32> to vector<2x8x1xf32>
    %126 = tpu.reciprocal %125 {approx = true} : vector<2x8x1xf32> -> vector<2x8x1xf32>
    %127 = vector.broadcast %126 : vector<2x8x1xf32> to vector<2x8x8xf32>
    %128 = arith.mulf %123, %127 : vector<2x8x8xf32>
    %129 = vector.extract_strided_slice %85 {offsets = [0, 0, 16], sizes = [2, 8, 16], strides = [1, 1, 1]} : vector<2x8x32xf32> to vector<2x8x16xf32>
    "tpu.trace_start"() <{level = 10 : i32, message = "bqk,bkd->bqd"}> : () -> ()
    %cst_73 = arith.constant dense<0.000000e+00> : vector<2x8x16xf32>
    %130 = tpu.matmul %128, %129, %cst_73 {dimension_numbers = #tpu.dot_dimension_numbers<[2], [1], [1], [2], [0, 0, 0, 1, 1, 2], [0], [0]>} : vector<2x8x8xf32>, vector<2x8x16xf32>, vector<2x8x16xf32> -> vector<2x8x16xf32>
    "tpu.trace_stop"() : () -> ()
    %131 = vector.shape_cast %130 : vector<2x8x16xf32> to vector<16x16xf32>
    %132 = vector.extract_strided_slice %71 {offsets = [16, 0], sizes = [16, 32], strides = [1, 1]} : vector<32x32xf32> to vector<16x32xf32>
    %cst_74 = arith.constant dense<0.000000e+00> : vector<16x32xf32>
    %133 = tpu.matmul %131, %132, %cst_74 {dimension_numbers = #tpu.dot_dimension_numbers<[1], [0], [0], [1], [0, 0, 1, 1], [], []>} : vector<16x16xf32>, vector<16x32xf32>, vector<16x32xf32> -> vector<16x32xf32>
    %134 = arith.addf %111, %133 : vector<16x32xf32>
    %135 = arith.addf %33, %134 : vector<16x32xf32>
    %c0_75 = arith.constant 0 : index
    %c2_76 = arith.constant 2 : index
    %c0_77 = arith.constant 0 : index
    %c0_78 = arith.constant 0 : index
    %136 = vector.load %arg9[%c0_75, %c2_76, %c0_77, %c0_78] : memref<2x4x1x32xf32, #tpu.memory_space<vmem>>, vector<1x1x1x32xf32>
    %137 = vector.shape_cast %136 : vector<1x1x1x32xf32> to vector<1x32xf32>
    %c0_79 = arith.constant 0 : index
    %c3_80 = arith.constant 3 : index
    %c0_81 = arith.constant 0 : index
    %c0_82 = arith.constant 0 : index
    %138 = vector.load %arg9[%c0_79, %c3_80, %c0_81, %c0_82] : memref<2x4x1x32xf32, #tpu.memory_space<vmem>>, vector<1x1x1x32xf32>
    %139 = vector.shape_cast %138 : vector<1x1x1x32xf32> to vector<1x32xf32>
    %cst_83 = arith.constant dense<0.000000e+00> : vector<16xf32>
    %140 = vector.multi_reduction <add>, %135, %cst_83 [1] : vector<16x32xf32> to vector<16xf32>
    %141 = vector.shape_cast %140 : vector<16xf32> to vector<16x1xf32>
    %cst_84 = arith.constant 3.200000e+01 : f32
    %142 = vector.broadcast %cst_84 : f32 to vector<16x1xf32>
    %143 = arith.divf %141, %142 : vector<16x1xf32>
    %144 = vector.broadcast %143 : vector<16x1xf32> to vector<16x32xf32>
    %145 = arith.subf %135, %144 : vector<16x32xf32>
    %146 = arith.mulf %145, %145 : vector<16x32xf32>
    %cst_85 = arith.constant dense<0.000000e+00> : vector<16xf32>
    %147 = vector.multi_reduction <add>, %146, %cst_85 [1] : vector<16x32xf32> to vector<16xf32>
    %148 = vector.shape_cast %147 : vector<16xf32> to vector<16x1xf32>
    %cst_86 = arith.constant 3.200000e+01 : f32
    %149 = vector.broadcast %cst_86 : f32 to vector<16x1xf32>
    %150 = arith.divf %148, %149 : vector<16x1xf32>
    %cst_87 = arith.constant 9.99999974E-6 : f32
    %151 = vector.broadcast %cst_87 : f32 to vector<16x1xf32>
    %152 = arith.addf %150, %151 : vector<16x1xf32>
    %153 = math.rsqrt %152 : vector<16x1xf32>
    %154 = vector.broadcast %153 : vector<16x1xf32> to vector<16x32xf32>
    %155 = arith.mulf %145, %154 : vector<16x32xf32>
    %156 = vector.broadcast %137 : vector<1x32xf32> to vector<16x32xf32>
    %157 = arith.mulf %155, %156 : vector<16x32xf32>
    %158 = vector.broadcast %139 : vector<1x32xf32> to vector<16x32xf32>
    %159 = arith.addf %157, %158 : vector<16x32xf32>
    %c0_88 = arith.constant 0 : index
    %c0_89 = arith.constant 0 : index
    %c0_90 = arith.constant 0 : index
    %160 = vector.load %arg12[%c0_88, %c0_89, %c0_90] : memref<2x32x64xf32, #tpu.memory_space<vmem>>, vector<1x32x64xf32>
    %161 = vector.shape_cast %160 : vector<1x32x64xf32> to vector<32x64xf32>
    %cst_91 = arith.constant dense<0.000000e+00> : vector<16x64xf32>
    %162 = tpu.matmul %159, %161, %cst_91 {dimension_numbers = #tpu.dot_dimension_numbers<[1], [0], [0], [1], [0, 0, 1, 1], [], []>} : vector<16x32xf32>, vector<32x64xf32>, vector<16x64xf32> -> vector<16x64xf32>
    %c0_92 = arith.constant 0 : index
    %c0_93 = arith.constant 0 : index
    %c0_94 = arith.constant 0 : index
    %163 = vector.load %arg13[%c0_92, %c0_93, %c0_94] : memref<2x1x64xf32, #tpu.memory_space<vmem>>, vector<1x1x64xf32>
    %164 = vector.shape_cast %163 : vector<1x1x64xf32> to vector<1x64xf32>
    %165 = vector.broadcast %164 : vector<1x64xf32> to vector<16x64xf32>
    %166 = arith.addf %162, %165 : vector<16x64xf32>
    %167 = arith.mulf %166, %166 : vector<16x64xf32>
    %168 = arith.mulf %166, %167 : vector<16x64xf32>
    %cst_95 = arith.constant 4.471500e-02 : f32
    %169 = vector.broadcast %cst_95 : f32 to vector<16x64xf32>
    %170 = arith.mulf %169, %168 : vector<16x64xf32>
    %171 = arith.addf %166, %170 : vector<16x64xf32>
    %cst_96 = arith.constant 0.797884583 : f32
    %172 = vector.broadcast %cst_96 : f32 to vector<16x64xf32>
    %173 = arith.mulf %172, %171 : vector<16x64xf32>
    %174 = math.tanh %173 : vector<16x64xf32>
    %cst_97 = arith.constant 1.000000e+00 : f32
    %175 = vector.broadcast %cst_97 : f32 to vector<16x64xf32>
    %176 = arith.addf %175, %174 : vector<16x64xf32>
    %cst_98 = arith.constant 5.000000e-01 : f32
    %177 = vector.broadcast %cst_98 : f32 to vector<16x64xf32>
    %178 = arith.mulf %177, %176 : vector<16x64xf32>
    %179 = arith.mulf %166, %178 : vector<16x64xf32>
    %c0_99 = arith.constant 0 : index
    %c0_100 = arith.constant 0 : index
    %c0_101 = arith.constant 0 : index
    %180 = vector.load %arg14[%c0_99, %c0_100, %c0_101] : memref<2x64x32xf32, #tpu.memory_space<vmem>>, vector<1x64x32xf32>
    %181 = vector.shape_cast %180 : vector<1x64x32xf32> to vector<64x32xf32>
    %cst_102 = arith.constant dense<0.000000e+00> : vector<16x32xf32>
    %182 = tpu.matmul %179, %181, %cst_102 {dimension_numbers = #tpu.dot_dimension_numbers<[1], [0], [0], [1], [0, 0, 1, 1], [], []>} : vector<16x64xf32>, vector<64x32xf32>, vector<16x32xf32> -> vector<16x32xf32>
    %183 = arith.addf %135, %182 : vector<16x32xf32>
    %c0_103 = arith.constant 0 : index
    %c0_104 = arith.constant 0 : index
    %c0_105 = arith.constant 0 : index
    %184 = vector.load %arg15[%c0_103, %c0_104, %c0_105] : memref<2x1x32xf32, #tpu.memory_space<vmem>>, vector<1x1x32xf32>
    %185 = vector.shape_cast %184 : vector<1x1x32xf32> to vector<1x32xf32>
    %186 = vector.broadcast %185 : vector<1x32xf32> to vector<16x32xf32>
    %187 = arith.addf %183, %186 : vector<16x32xf32>
    %c1_106 = arith.constant 1 : index
    %c0_107 = arith.constant 0 : index
    %c0_108 = arith.constant 0 : index
    %c0_109 = arith.constant 0 : index
    %188 = vector.load %arg9[%c1_106, %c0_107, %c0_108, %c0_109] : memref<2x4x1x32xf32, #tpu.memory_space<vmem>>, vector<1x1x1x32xf32>
    %189 = vector.shape_cast %188 : vector<1x1x1x32xf32> to vector<1x32xf32>
    %c1_110 = arith.constant 1 : index
    %c1_111 = arith.constant 1 : index
    %c0_112 = arith.constant 0 : index
    %c0_113 = arith.constant 0 : index
    %190 = vector.load %arg9[%c1_110, %c1_111, %c0_112, %c0_113] : memref<2x4x1x32xf32, #tpu.memory_space<vmem>>, vector<1x1x1x32xf32>
    %191 = vector.shape_cast %190 : vector<1x1x1x32xf32> to vector<1x32xf32>
    %cst_114 = arith.constant dense<0.000000e+00> : vector<16xf32>
    %192 = vector.multi_reduction <add>, %187, %cst_114 [1] : vector<16x32xf32> to vector<16xf32>
    %193 = vector.shape_cast %192 : vector<16xf32> to vector<16x1xf32>
    %cst_115 = arith.constant 3.200000e+01 : f32
    %194 = vector.broadcast %cst_115 : f32 to vector<16x1xf32>
    %195 = arith.divf %193, %194 : vector<16x1xf32>
    %196 = vector.broadcast %195 : vector<16x1xf32> to vector<16x32xf32>
    %197 = arith.subf %187, %196 : vector<16x32xf32>
    %198 = arith.mulf %197, %197 : vector<16x32xf32>
    %cst_116 = arith.constant dense<0.000000e+00> : vector<16xf32>
    %199 = vector.multi_reduction <add>, %198, %cst_116 [1] : vector<16x32xf32> to vector<16xf32>
    %200 = vector.shape_cast %199 : vector<16xf32> to vector<16x1xf32>
    %cst_117 = arith.constant 3.200000e+01 : f32
    %201 = vector.broadcast %cst_117 : f32 to vector<16x1xf32>
    %202 = arith.divf %200, %201 : vector<16x1xf32>
    %cst_118 = arith.constant 9.99999974E-6 : f32
    %203 = vector.broadcast %cst_118 : f32 to vector<16x1xf32>
    %204 = arith.addf %202, %203 : vector<16x1xf32>
    %205 = math.rsqrt %204 : vector<16x1xf32>
    %206 = vector.broadcast %205 : vector<16x1xf32> to vector<16x32xf32>
    %207 = arith.mulf %197, %206 : vector<16x32xf32>
    %208 = vector.broadcast %189 : vector<1x32xf32> to vector<16x32xf32>
    %209 = arith.mulf %207, %208 : vector<16x32xf32>
    %210 = vector.broadcast %191 : vector<1x32xf32> to vector<16x32xf32>
    %211 = arith.addf %209, %210 : vector<16x32xf32>
    %c1_119 = arith.constant 1 : index
    %c0_120 = arith.constant 0 : index
    %c0_121 = arith.constant 0 : index
    %c0_122 = arith.constant 0 : index
    %212 = vector.load %arg10[%c1_119, %c0_120, %c0_121, %c0_122] : memref<2x4x32x32xf32, #tpu.memory_space<vmem>>, vector<1x1x32x32xf32>
    %213 = vector.shape_cast %212 : vector<1x1x32x32xf32> to vector<32x32xf32>
    %c1_123 = arith.constant 1 : index
    %c0_124 = arith.constant 0 : index
    %c0_125 = arith.constant 0 : index
    %c0_126 = arith.constant 0 : index
    %214 = vector.load %arg11[%c1_123, %c0_124, %c0_125, %c0_126] : memref<2x4x1x32xf32, #tpu.memory_space<vmem>>, vector<1x1x1x32xf32>
    %215 = vector.shape_cast %214 : vector<1x1x1x32xf32> to vector<1x32xf32>
    %c1_127 = arith.constant 1 : index
    %c1_128 = arith.constant 1 : index
    %c0_129 = arith.constant 0 : index
    %c0_130 = arith.constant 0 : index
    %216 = vector.load %arg10[%c1_127, %c1_128, %c0_129, %c0_130] : memref<2x4x32x32xf32, #tpu.memory_space<vmem>>, vector<1x1x32x32xf32>
    %217 = vector.shape_cast %216 : vector<1x1x32x32xf32> to vector<32x32xf32>
    %c1_131 = arith.constant 1 : index
    %c1_132 = arith.constant 1 : index
    %c0_133 = arith.constant 0 : index
    %c0_134 = arith.constant 0 : index
    %218 = vector.load %arg11[%c1_131, %c1_132, %c0_133, %c0_134] : memref<2x4x1x32xf32, #tpu.memory_space<vmem>>, vector<1x1x1x32xf32>
    %219 = vector.shape_cast %218 : vector<1x1x1x32xf32> to vector<1x32xf32>
    %c1_135 = arith.constant 1 : index
    %c2_136 = arith.constant 2 : index
    %c0_137 = arith.constant 0 : index
    %c0_138 = arith.constant 0 : index
    %220 = vector.load %arg10[%c1_135, %c2_136, %c0_137, %c0_138] : memref<2x4x32x32xf32, #tpu.memory_space<vmem>>, vector<1x1x32x32xf32>
    %221 = vector.shape_cast %220 : vector<1x1x32x32xf32> to vector<32x32xf32>
    %c1_139 = arith.constant 1 : index
    %c2_140 = arith.constant 2 : index
    %c0_141 = arith.constant 0 : index
    %c0_142 = arith.constant 0 : index
    %222 = vector.load %arg11[%c1_139, %c2_140, %c0_141, %c0_142] : memref<2x4x1x32xf32, #tpu.memory_space<vmem>>, vector<1x1x1x32xf32>
    %223 = vector.shape_cast %222 : vector<1x1x1x32xf32> to vector<1x32xf32>
    %c1_143 = arith.constant 1 : index
    %c3_144 = arith.constant 3 : index
    %c0_145 = arith.constant 0 : index
    %c0_146 = arith.constant 0 : index
    %224 = vector.load %arg10[%c1_143, %c3_144, %c0_145, %c0_146] : memref<2x4x32x32xf32, #tpu.memory_space<vmem>>, vector<1x1x32x32xf32>
    %225 = vector.shape_cast %224 : vector<1x1x32x32xf32> to vector<32x32xf32>
    %c1_147 = arith.constant 1 : index
    %c3_148 = arith.constant 3 : index
    %c0_149 = arith.constant 0 : index
    %c0_150 = arith.constant 0 : index
    %226 = vector.load %arg11[%c1_147, %c3_148, %c0_149, %c0_150] : memref<2x4x1x32xf32, #tpu.memory_space<vmem>>, vector<1x1x1x32xf32>
    %227 = vector.shape_cast %226 : vector<1x1x1x32xf32> to vector<1x32xf32>
    %cst_151 = arith.constant dense<0.000000e+00> : vector<16x32xf32>
    %228 = tpu.matmul %211, %213, %cst_151 {dimension_numbers = #tpu.dot_dimension_numbers<[1], [0], [0], [1], [0, 0, 1, 1], [], []>} : vector<16x32xf32>, vector<32x32xf32>, vector<16x32xf32> -> vector<16x32xf32>
    %229 = vector.broadcast %215 : vector<1x32xf32> to vector<16x32xf32>
    %230 = arith.addf %228, %229 : vector<16x32xf32>
    %cst_152 = arith.constant dense<0.000000e+00> : vector<16x32xf32>
    %231 = tpu.matmul %211, %217, %cst_152 {dimension_numbers = #tpu.dot_dimension_numbers<[1], [0], [0], [1], [0, 0, 1, 1], [], []>} : vector<16x32xf32>, vector<32x32xf32>, vector<16x32xf32> -> vector<16x32xf32>
    %232 = vector.broadcast %219 : vector<1x32xf32> to vector<16x32xf32>
    %233 = arith.addf %231, %232 : vector<16x32xf32>
    %cst_153 = arith.constant dense<0.000000e+00> : vector<16x32xf32>
    %234 = tpu.matmul %211, %221, %cst_153 {dimension_numbers = #tpu.dot_dimension_numbers<[1], [0], [0], [1], [0, 0, 1, 1], [], []>} : vector<16x32xf32>, vector<32x32xf32>, vector<16x32xf32> -> vector<16x32xf32>
    %235 = vector.broadcast %223 : vector<1x32xf32> to vector<16x32xf32>
    %236 = arith.addf %234, %235 : vector<16x32xf32>
    %237 = vector.shape_cast %230 : vector<16x32xf32> to vector<2x8x32xf32>
    %238 = vector.shape_cast %233 : vector<16x32xf32> to vector<2x8x32xf32>
    %239 = vector.shape_cast %236 : vector<16x32xf32> to vector<2x8x32xf32>
    %cst_154 = arith.constant 0.000000e+00 : f32
    %240 = vector.broadcast %cst_154 : f32 to vector<16x32xf32>
    %241 = vector.broadcast %227 : vector<1x32xf32> to vector<16x32xf32>
    %242 = arith.addf %240, %241 : vector<16x32xf32>
    %243 = vector.extract_strided_slice %237 {offsets = [0, 0, 0], sizes = [2, 8, 16], strides = [1, 1, 1]} : vector<2x8x32xf32> to vector<2x8x16xf32>
    %244 = vector.extract_strided_slice %238 {offsets = [0, 0, 0], sizes = [2, 8, 16], strides = [1, 1, 1]} : vector<2x8x32xf32> to vector<2x8x16xf32>
    "tpu.trace_start"() <{level = 10 : i32, message = "bqd,bkd->bqk"}> : () -> ()
    %cst_155 = arith.constant dense<0.000000e+00> : vector<2x8x8xf32>
    %245 = tpu.matmul %243, %244, %cst_155 {dimension_numbers = #tpu.dot_dimension_numbers<[2], [2], [1], [1], [0, 0, 0, 1, 1, 1], [0], [0]>} : vector<2x8x16xf32>, vector<2x8x16xf32>, vector<2x8x8xf32> -> vector<2x8x8xf32>
    "tpu.trace_stop"() : () -> ()
    %cst_156 = arith.constant 2.500000e-01 : f32
    %246 = vector.broadcast %cst_156 : f32 to vector<2x8x8xf32>
    %247 = arith.mulf %245, %246 : vector<2x8x8xf32>
    %248 = vector.broadcast %7 : vector<2x1x8xf32> to vector<2x8x8xf32>
    %249 = arith.addf %247, %248 : vector<2x8x8xf32>
    %cst_157 = arith.constant dense<0xFF800000> : vector<2x8xf32>
    %250 = vector.multi_reduction <maximumf>, %249, %cst_157 [2] : vector<2x8x8xf32> to vector<2x8xf32>
    %251 = vector.shape_cast %250 : vector<2x8xf32> to vector<2x8x1xf32>
    %252 = vector.broadcast %251 : vector<2x8x1xf32> to vector<2x8x8xf32>
    %253 = arith.subf %249, %252 : vector<2x8x8xf32>
    %254 = math.exp %253 : vector<2x8x8xf32>
    %cst_158 = arith.constant dense<0.000000e+00> : vector<2x8xf32>
    %255 = vector.multi_reduction <add>, %254, %cst_158 [2] : vector<2x8x8xf32> to vector<2x8xf32>
    %256 = vector.shape_cast %255 : vector<2x8xf32> to vector<2x8x1xf32>
    %257 = tpu.reciprocal %256 {approx = true} : vector<2x8x1xf32> -> vector<2x8x1xf32>
    %258 = vector.broadcast %257 : vector<2x8x1xf32> to vector<2x8x8xf32>
    %259 = arith.mulf %254, %258 : vector<2x8x8xf32>
    %260 = vector.extract_strided_slice %239 {offsets = [0, 0, 0], sizes = [2, 8, 16], strides = [1, 1, 1]} : vector<2x8x32xf32> to vector<2x8x16xf32>
    "tpu.trace_start"() <{level = 10 : i32, message = "bqk,bkd->bqd"}> : () -> ()
    %cst_159 = arith.constant dense<0.000000e+00> : vector<2x8x16xf32>
    %261 = tpu.matmul %259, %260, %cst_159 {dimension_numbers = #tpu.dot_dimension_numbers<[2], [1], [1], [2], [0, 0, 0, 1, 1, 2], [0], [0]>} : vector<2x8x8xf32>, vector<2x8x16xf32>, vector<2x8x16xf32> -> vector<2x8x16xf32>
    "tpu.trace_stop"() : () -> ()
    %262 = vector.shape_cast %261 : vector<2x8x16xf32> to vector<16x16xf32>
    %263 = vector.extract_strided_slice %225 {offsets = [0, 0], sizes = [16, 32], strides = [1, 1]} : vector<32x32xf32> to vector<16x32xf32>
    %cst_160 = arith.constant dense<0.000000e+00> : vector<16x32xf32>
    %264 = tpu.matmul %262, %263, %cst_160 {dimension_numbers = #tpu.dot_dimension_numbers<[1], [0], [0], [1], [0, 0, 1, 1], [], []>} : vector<16x16xf32>, vector<16x32xf32>, vector<16x32xf32> -> vector<16x32xf32>
    %265 = arith.addf %242, %264 : vector<16x32xf32>
    %266 = vector.extract_strided_slice %237 {offsets = [0, 0, 16], sizes = [2, 8, 16], strides = [1, 1, 1]} : vector<2x8x32xf32> to vector<2x8x16xf32>
    %267 = vector.extract_strided_slice %238 {offsets = [0, 0, 16], sizes = [2, 8, 16], strides = [1, 1, 1]} : vector<2x8x32xf32> to vector<2x8x16xf32>
    "tpu.trace_start"() <{level = 10 : i32, message = "bqd,bkd->bqk"}> : () -> ()
    %cst_161 = arith.constant dense<0.000000e+00> : vector<2x8x8xf32>
    %268 = tpu.matmul %266, %267, %cst_161 {dimension_numbers = #tpu.dot_dimension_numbers<[2], [2], [1], [1], [0, 0, 0, 1, 1, 1], [0], [0]>} : vector<2x8x16xf32>, vector<2x8x16xf32>, vector<2x8x8xf32> -> vector<2x8x8xf32>
    "tpu.trace_stop"() : () -> ()
    %cst_162 = arith.constant 2.500000e-01 : f32
    %269 = vector.broadcast %cst_162 : f32 to vector<2x8x8xf32>
    %270 = arith.mulf %268, %269 : vector<2x8x8xf32>
    %271 = vector.broadcast %7 : vector<2x1x8xf32> to vector<2x8x8xf32>
    %272 = arith.addf %270, %271 : vector<2x8x8xf32>
    %cst_163 = arith.constant dense<0xFF800000> : vector<2x8xf32>
    %273 = vector.multi_reduction <maximumf>, %272, %cst_163 [2] : vector<2x8x8xf32> to vector<2x8xf32>
    %274 = vector.shape_cast %273 : vector<2x8xf32> to vector<2x8x1xf32>
    %275 = vector.broadcast %274 : vector<2x8x1xf32> to vector<2x8x8xf32>
    %276 = arith.subf %272, %275 : vector<2x8x8xf32>
    %277 = math.exp %276 : vector<2x8x8xf32>
    %cst_164 = arith.constant dense<0.000000e+00> : vector<2x8xf32>
    %278 = vector.multi_reduction <add>, %277, %cst_164 [2] : vector<2x8x8xf32> to vector<2x8xf32>
    %279 = vector.shape_cast %278 : vector<2x8xf32> to vector<2x8x1xf32>
    %280 = tpu.reciprocal %279 {approx = true} : vector<2x8x1xf32> -> vector<2x8x1xf32>
    %281 = vector.broadcast %280 : vector<2x8x1xf32> to vector<2x8x8xf32>
    %282 = arith.mulf %277, %281 : vector<2x8x8xf32>
    %283 = vector.extract_strided_slice %239 {offsets = [0, 0, 16], sizes = [2, 8, 16], strides = [1, 1, 1]} : vector<2x8x32xf32> to vector<2x8x16xf32>
    "tpu.trace_start"() <{level = 10 : i32, message = "bqk,bkd->bqd"}> : () -> ()
    %cst_165 = arith.constant dense<0.000000e+00> : vector<2x8x16xf32>
    %284 = tpu.matmul %282, %283, %cst_165 {dimension_numbers = #tpu.dot_dimension_numbers<[2], [1], [1], [2], [0, 0, 0, 1, 1, 2], [0], [0]>} : vector<2x8x8xf32>, vector<2x8x16xf32>, vector<2x8x16xf32> -> vector<2x8x16xf32>
    "tpu.trace_stop"() : () -> ()
    %285 = vector.shape_cast %284 : vector<2x8x16xf32> to vector<16x16xf32>
    %286 = vector.extract_strided_slice %225 {offsets = [16, 0], sizes = [16, 32], strides = [1, 1]} : vector<32x32xf32> to vector<16x32xf32>
    %cst_166 = arith.constant dense<0.000000e+00> : vector<16x32xf32>
    %287 = tpu.matmul %285, %286, %cst_166 {dimension_numbers = #tpu.dot_dimension_numbers<[1], [0], [0], [1], [0, 0, 1, 1], [], []>} : vector<16x16xf32>, vector<16x32xf32>, vector<16x32xf32> -> vector<16x32xf32>
    %288 = arith.addf %265, %287 : vector<16x32xf32>
    %289 = arith.addf %187, %288 : vector<16x32xf32>
    %c1_167 = arith.constant 1 : index
    %c2_168 = arith.constant 2 : index
    %c0_169 = arith.constant 0 : index
    %c0_170 = arith.constant 0 : index
    %290 = vector.load %arg9[%c1_167, %c2_168, %c0_169, %c0_170] : memref<2x4x1x32xf32, #tpu.memory_space<vmem>>, vector<1x1x1x32xf32>
    %291 = vector.shape_cast %290 : vector<1x1x1x32xf32> to vector<1x32xf32>
    %c1_171 = arith.constant 1 : index
    %c3_172 = arith.constant 3 : index
    %c0_173 = arith.constant 0 : index
    %c0_174 = arith.constant 0 : index
    %292 = vector.load %arg9[%c1_171, %c3_172, %c0_173, %c0_174] : memref<2x4x1x32xf32, #tpu.memory_space<vmem>>, vector<1x1x1x32xf32>
    %293 = vector.shape_cast %292 : vector<1x1x1x32xf32> to vector<1x32xf32>
    %cst_175 = arith.constant dense<0.000000e+00> : vector<16xf32>
    %294 = vector.multi_reduction <add>, %289, %cst_175 [1] : vector<16x32xf32> to vector<16xf32>
    %295 = vector.shape_cast %294 : vector<16xf32> to vector<16x1xf32>
    %cst_176 = arith.constant 3.200000e+01 : f32
    %296 = vector.broadcast %cst_176 : f32 to vector<16x1xf32>
    %297 = arith.divf %295, %296 : vector<16x1xf32>
    %298 = vector.broadcast %297 : vector<16x1xf32> to vector<16x32xf32>
    %299 = arith.subf %289, %298 : vector<16x32xf32>
    %300 = arith.mulf %299, %299 : vector<16x32xf32>
    %cst_177 = arith.constant dense<0.000000e+00> : vector<16xf32>
    %301 = vector.multi_reduction <add>, %300, %cst_177 [1] : vector<16x32xf32> to vector<16xf32>
    %302 = vector.shape_cast %301 : vector<16xf32> to vector<16x1xf32>
    %cst_178 = arith.constant 3.200000e+01 : f32
    %303 = vector.broadcast %cst_178 : f32 to vector<16x1xf32>
    %304 = arith.divf %302, %303 : vector<16x1xf32>
    %cst_179 = arith.constant 9.99999974E-6 : f32
    %305 = vector.broadcast %cst_179 : f32 to vector<16x1xf32>
    %306 = arith.addf %304, %305 : vector<16x1xf32>
    %307 = math.rsqrt %306 : vector<16x1xf32>
    %308 = vector.broadcast %307 : vector<16x1xf32> to vector<16x32xf32>
    %309 = arith.mulf %299, %308 : vector<16x32xf32>
    %310 = vector.broadcast %291 : vector<1x32xf32> to vector<16x32xf32>
    %311 = arith.mulf %309, %310 : vector<16x32xf32>
    %312 = vector.broadcast %293 : vector<1x32xf32> to vector<16x32xf32>
    %313 = arith.addf %311, %312 : vector<16x32xf32>
    %c1_180 = arith.constant 1 : index
    %c0_181 = arith.constant 0 : index
    %c0_182 = arith.constant 0 : index
    %314 = vector.load %arg12[%c1_180, %c0_181, %c0_182] : memref<2x32x64xf32, #tpu.memory_space<vmem>>, vector<1x32x64xf32>
    %315 = vector.shape_cast %314 : vector<1x32x64xf32> to vector<32x64xf32>
    %cst_183 = arith.constant dense<0.000000e+00> : vector<16x64xf32>
    %316 = tpu.matmul %313, %315, %cst_183 {dimension_numbers = #tpu.dot_dimension_numbers<[1], [0], [0], [1], [0, 0, 1, 1], [], []>} : vector<16x32xf32>, vector<32x64xf32>, vector<16x64xf32> -> vector<16x64xf32>
    %c1_184 = arith.constant 1 : index
    %c0_185 = arith.constant 0 : index
    %c0_186 = arith.constant 0 : index
    %317 = vector.load %arg13[%c1_184, %c0_185, %c0_186] : memref<2x1x64xf32, #tpu.memory_space<vmem>>, vector<1x1x64xf32>
    %318 = vector.shape_cast %317 : vector<1x1x64xf32> to vector<1x64xf32>
    %319 = vector.broadcast %318 : vector<1x64xf32> to vector<16x64xf32>
    %320 = arith.addf %316, %319 : vector<16x64xf32>
    %321 = arith.mulf %320, %320 : vector<16x64xf32>
    %322 = arith.mulf %320, %321 : vector<16x64xf32>
    %cst_187 = arith.constant 4.471500e-02 : f32
    %323 = vector.broadcast %cst_187 : f32 to vector<16x64xf32>
    %324 = arith.mulf %323, %322 : vector<16x64xf32>
    %325 = arith.addf %320, %324 : vector<16x64xf32>
    %cst_188 = arith.constant 0.797884583 : f32
    %326 = vector.broadcast %cst_188 : f32 to vector<16x64xf32>
    %327 = arith.mulf %326, %325 : vector<16x64xf32>
    %328 = math.tanh %327 : vector<16x64xf32>
    %cst_189 = arith.constant 1.000000e+00 : f32
    %329 = vector.broadcast %cst_189 : f32 to vector<16x64xf32>
    %330 = arith.addf %329, %328 : vector<16x64xf32>
    %cst_190 = arith.constant 5.000000e-01 : f32
    %331 = vector.broadcast %cst_190 : f32 to vector<16x64xf32>
    %332 = arith.mulf %331, %330 : vector<16x64xf32>
    %333 = arith.mulf %320, %332 : vector<16x64xf32>
    %c1_191 = arith.constant 1 : index
    %c0_192 = arith.constant 0 : index
    %c0_193 = arith.constant 0 : index
    %334 = vector.load %arg14[%c1_191, %c0_192, %c0_193] : memref<2x64x32xf32, #tpu.memory_space<vmem>>, vector<1x64x32xf32>
    %335 = vector.shape_cast %334 : vector<1x64x32xf32> to vector<64x32xf32>
    %cst_194 = arith.constant dense<0.000000e+00> : vector<16x32xf32>
    %336 = tpu.matmul %333, %335, %cst_194 {dimension_numbers = #tpu.dot_dimension_numbers<[1], [0], [0], [1], [0, 0, 1, 1], [], []>} : vector<16x64xf32>, vector<64x32xf32>, vector<16x32xf32> -> vector<16x32xf32>
    %337 = arith.addf %289, %336 : vector<16x32xf32>
    %c1_195 = arith.constant 1 : index
    %c0_196 = arith.constant 0 : index
    %c0_197 = arith.constant 0 : index
    %338 = vector.load %arg15[%c1_195, %c0_196, %c0_197] : memref<2x1x32xf32, #tpu.memory_space<vmem>>, vector<1x1x32xf32>
    %339 = vector.shape_cast %338 : vector<1x1x32xf32> to vector<1x32xf32>
    %340 = vector.broadcast %339 : vector<1x32xf32> to vector<16x32xf32>
    %341 = arith.addf %337, %340 : vector<16x32xf32>
    %c0_198 = arith.constant 0 : index
    %c0_199 = arith.constant 0 : index
    %c0_200 = arith.constant 0 : index
    %342 = vector.load %arg16[%c0_198, %c0_199, %c0_200] : memref<2x1x32xf32, #tpu.memory_space<vmem>>, vector<1x1x32xf32>
    %343 = vector.shape_cast %342 : vector<1x1x32xf32> to vector<1x32xf32>
    %c1_201 = arith.constant 1 : index
    %c0_202 = arith.constant 0 : index
    %c0_203 = arith.constant 0 : index
    %344 = vector.load %arg16[%c1_201, %c0_202, %c0_203] : memref<2x1x32xf32, #tpu.memory_space<vmem>>, vector<1x1x32xf32>
    %345 = vector.shape_cast %344 : vector<1x1x32xf32> to vector<1x32xf32>
    %cst_204 = arith.constant dense<0.000000e+00> : vector<16xf32>
    %346 = vector.multi_reduction <add>, %341, %cst_204 [1] : vector<16x32xf32> to vector<16xf32>
    %347 = vector.shape_cast %346 : vector<16xf32> to vector<16x1xf32>
    %cst_205 = arith.constant 3.200000e+01 : f32
    %348 = vector.broadcast %cst_205 : f32 to vector<16x1xf32>
    %349 = arith.divf %347, %348 : vector<16x1xf32>
    %350 = vector.broadcast %349 : vector<16x1xf32> to vector<16x32xf32>
    %351 = arith.subf %341, %350 : vector<16x32xf32>
    %352 = arith.mulf %351, %351 : vector<16x32xf32>
    %cst_206 = arith.constant dense<0.000000e+00> : vector<16xf32>
    %353 = vector.multi_reduction <add>, %352, %cst_206 [1] : vector<16x32xf32> to vector<16xf32>
    %354 = vector.shape_cast %353 : vector<16xf32> to vector<16x1xf32>
    %cst_207 = arith.constant 3.200000e+01 : f32
    %355 = vector.broadcast %cst_207 : f32 to vector<16x1xf32>
    %356 = arith.divf %354, %355 : vector<16x1xf32>
    %cst_208 = arith.constant 9.99999974E-6 : f32
    %357 = vector.broadcast %cst_208 : f32 to vector<16x1xf32>
    %358 = arith.addf %356, %357 : vector<16x1xf32>
    %359 = math.rsqrt %358 : vector<16x1xf32>
    %360 = vector.broadcast %359 : vector<16x1xf32> to vector<16x32xf32>
    %361 = arith.mulf %351, %360 : vector<16x32xf32>
    %362 = vector.broadcast %343 : vector<1x32xf32> to vector<16x32xf32>
    %363 = arith.mulf %361, %362 : vector<16x32xf32>
    %364 = vector.broadcast %345 : vector<1x32xf32> to vector<16x32xf32>
    %365 = arith.addf %363, %364 : vector<16x32xf32>
    %c0_209 = arith.constant 0 : index
    %c0_210 = arith.constant 0 : index
    %366 = vector.load %arg17[%c0_209, %c0_210] : memref<32x16xf32, #tpu.memory_space<vmem>>, vector<32x16xf32>
    %cst_211 = arith.constant dense<0.000000e+00> : vector<16x16xf32>
    %367 = tpu.matmul %365, %366, %cst_211 {dimension_numbers = #tpu.dot_dimension_numbers<[1], [0], [0], [1], [0, 0, 1, 1], [], []>} : vector<16x32xf32>, vector<32x16xf32>, vector<16x16xf32> -> vector<16x16xf32>
    %c0_212 = arith.constant 0 : index
    %c0_213 = arith.constant 0 : index
    %368 = vector.load %arg18[%c0_212, %c0_213] : memref<1x16xf32, #tpu.memory_space<vmem>>, vector<1x16xf32>
    %369 = vector.broadcast %368 : vector<1x16xf32> to vector<16x16xf32>
    %370 = arith.addf %367, %369 : vector<16x16xf32>
    %cst_214 = arith.constant dense<0xFF800000> : vector<16xf32>
    %371 = vector.multi_reduction <maximumf>, %370, %cst_214 [1] : vector<16x16xf32> to vector<16xf32>
    %372 = vector.shape_cast %371 : vector<16xf32> to vector<16x1xf32>
    %373 = vector.broadcast %372 : vector<16x1xf32> to vector<16x16xf32>
    %374 = arith.subf %370, %373 : vector<16x16xf32>
    %375 = math.exp %374 : vector<16x16xf32>
    %cst_215 = arith.constant dense<0.000000e+00> : vector<16xf32>
    %376 = vector.multi_reduction <add>, %375, %cst_215 [1] : vector<16x16xf32> to vector<16xf32>
    %377 = vector.shape_cast %376 : vector<16xf32> to vector<16x1xf32>
    %378 = math.log %377 : vector<16x1xf32>
    %379 = arith.addf %372, %378 : vector<16x1xf32>
    %380 = vector.broadcast %379 : vector<16x1xf32> to vector<16x16xf32>
    %381 = arith.subf %370, %380 : vector<16x16xf32>
    %c0_216 = arith.constant 0 : index
    %c0_217 = arith.constant 0 : index
    %382 = vector.load %arg32[%c0_216, %c0_217] : memref<16x16xf32, #tpu.memory_space<vmem>>, vector<16x16xf32>
    tpu.vector_store %arg32[%c0_216, %c0_217], %381 {strides = array<i32>} : memref<16x16xf32, #tpu.memory_space<vmem>>, vector<16x16xf32>,
    %383 = tpu.iota {dimensions = array<i32: 1>} : vector<16x16xi32>
    %c0_218 = arith.constant 0 : index
    %c0_219 = arith.constant 0 : index
    %384 = vector.load %arg0[%c0_218, %c0_219] : memref<16x1xi32, #tpu.memory_space<vmem>>, vector<16x1xi32>
    %385 = vector.broadcast %384 : vector<16x1xi32> to vector<16x16xi32>
    %386 = arith.cmpi eq, %383, %385 : vector<16x16xi32>
    %387 = arith.extui %386 : vector<16x16xi1> to vector<16x16xi32>
    %388 = arith.sitofp %387 : vector<16x16xi32> to vector<16x16xf32>
    %c0_220 = arith.constant 0 : index
    %c0_221 = arith.constant 0 : index
    %389 = vector.load %arg8[%c0_220, %c0_221] : memref<16x32xf32, #tpu.memory_space<vmem>>, vector<16x32xf32>
    %cst_222 = arith.constant dense<0.000000e+00> : vector<16x32xf32>
    %390 = tpu.matmul %388, %389, %cst_222 {dimension_numbers = #tpu.dot_dimension_numbers<[1], [0], [0], [1], [0, 0, 1, 1], [], []>} : vector<16x16xf32>, vector<16x32xf32>, vector<16x32xf32> -> vector<16x32xf32>
    %c0_223 = arith.constant 0 : index
    %c0_224 = arith.constant 0 : index
    %391 = vector.load %arg5[%c0_223, %c0_224] : memref<16x32xf32, #tpu.memory_space<vmem>>, vector<16x32xf32>
    %392 = arith.addf %390, %391 : vector<16x32xf32>
    %c0_225 = arith.constant 0 : index
    %c0_226 = arith.constant 0 : index
    %c0_227 = arith.constant 0 : index
    %c0_228 = arith.constant 0 : index
    %393 = vector.load %arg19[%c0_225, %c0_226, %c0_227, %c0_228] : memref<2x6x1x32xf32, #tpu.memory_space<vmem>>, vector<1x1x1x32xf32>
    %394 = vector.shape_cast %393 : vector<1x1x1x32xf32> to vector<1x32xf32>
    %c0_229 = arith.constant 0 : index
    %c1_230 = arith.constant 1 : index
    %c0_231 = arith.constant 0 : index
    %c0_232 = arith.constant 0 : index
    %395 = vector.load %arg19[%c0_229, %c1_230, %c0_231, %c0_232] : memref<2x6x1x32xf32, #tpu.memory_space<vmem>>, vector<1x1x1x32xf32>
    %396 = vector.shape_cast %395 : vector<1x1x1x32xf32> to vector<1x32xf32>
    %cst_233 = arith.constant dense<0.000000e+00> : vector<16xf32>
    %397 = vector.multi_reduction <add>, %392, %cst_233 [1] : vector<16x32xf32> to vector<16xf32>
    %398 = vector.shape_cast %397 : vector<16xf32> to vector<16x1xf32>
    %cst_234 = arith.constant 3.200000e+01 : f32
    %399 = vector.broadcast %cst_234 : f32 to vector<16x1xf32>
    %400 = arith.divf %398, %399 : vector<16x1xf32>
    %401 = vector.broadcast %400 : vector<16x1xf32> to vector<16x32xf32>
    %402 = arith.subf %392, %401 : vector<16x32xf32>
    %403 = arith.mulf %402, %402 : vector<16x32xf32>
    %cst_235 = arith.constant dense<0.000000e+00> : vector<16xf32>
    %404 = vector.multi_reduction <add>, %403, %cst_235 [1] : vector<16x32xf32> to vector<16xf32>
    %405 = vector.shape_cast %404 : vector<16xf32> to vector<16x1xf32>
    %cst_236 = arith.constant 3.200000e+01 : f32
    %406 = vector.broadcast %cst_236 : f32 to vector<16x1xf32>
    %407 = arith.divf %405, %406 : vector<16x1xf32>
    %cst_237 = arith.constant 9.99999974E-6 : f32
    %408 = vector.broadcast %cst_237 : f32 to vector<16x1xf32>
    %409 = arith.addf %407, %408 : vector<16x1xf32>
    %410 = math.rsqrt %409 : vector<16x1xf32>
    %411 = vector.broadcast %410 : vector<16x1xf32> to vector<16x32xf32>
    %412 = arith.mulf %402, %411 : vector<16x32xf32>
    %413 = vector.broadcast %394 : vector<1x32xf32> to vector<16x32xf32>
    %414 = arith.mulf %412, %413 : vector<16x32xf32>
    %415 = vector.broadcast %396 : vector<1x32xf32> to vector<16x32xf32>
    %416 = arith.addf %414, %415 : vector<16x32xf32>
    %c0_238 = arith.constant 0 : index
    %c0_239 = arith.constant 0 : index
    %c0_240 = arith.constant 0 : index
    %c0_241 = arith.constant 0 : index
    %417 = vector.load %arg20[%c0_238, %c0_239, %c0_240, %c0_241] : memref<2x4x32x32xf32, #tpu.memory_space<vmem>>, vector<1x1x32x32xf32>
    %418 = vector.shape_cast %417 : vector<1x1x32x32xf32> to vector<32x32xf32>
    %c0_242 = arith.constant 0 : index
    %c0_243 = arith.constant 0 : index
    %c0_244 = arith.constant 0 : index
    %c0_245 = arith.constant 0 : index
    %419 = vector.load %arg21[%c0_242, %c0_243, %c0_244, %c0_245] : memref<2x4x1x32xf32, #tpu.memory_space<vmem>>, vector<1x1x1x32xf32>
    %420 = vector.shape_cast %419 : vector<1x1x1x32xf32> to vector<1x32xf32>
    %c0_246 = arith.constant 0 : index
    %c1_247 = arith.constant 1 : index
    %c0_248 = arith.constant 0 : index
    %c0_249 = arith.constant 0 : index
    %421 = vector.load %arg20[%c0_246, %c1_247, %c0_248, %c0_249] : memref<2x4x32x32xf32, #tpu.memory_space<vmem>>, vector<1x1x32x32xf32>
    %422 = vector.shape_cast %421 : vector<1x1x32x32xf32> to vector<32x32xf32>
    %c0_250 = arith.constant 0 : index
    %c1_251 = arith.constant 1 : index
    %c0_252 = arith.constant 0 : index
    %c0_253 = arith.constant 0 : index
    %423 = vector.load %arg21[%c0_250, %c1_251, %c0_252, %c0_253] : memref<2x4x1x32xf32, #tpu.memory_space<vmem>>, vector<1x1x1x32xf32>
    %424 = vector.shape_cast %423 : vector<1x1x1x32xf32> to vector<1x32xf32>
    %c0_254 = arith.constant 0 : index
    %c2_255 = arith.constant 2 : index
    %c0_256 = arith.constant 0 : index
    %c0_257 = arith.constant 0 : index
    %425 = vector.load %arg20[%c0_254, %c2_255, %c0_256, %c0_257] : memref<2x4x32x32xf32, #tpu.memory_space<vmem>>, vector<1x1x32x32xf32>
    %426 = vector.shape_cast %425 : vector<1x1x32x32xf32> to vector<32x32xf32>
    %c0_258 = arith.constant 0 : index
    %c2_259 = arith.constant 2 : index
    %c0_260 = arith.constant 0 : index
    %c0_261 = arith.constant 0 : index
    %427 = vector.load %arg21[%c0_258, %c2_259, %c0_260, %c0_261] : memref<2x4x1x32xf32, #tpu.memory_space<vmem>>, vector<1x1x1x32xf32>
    %428 = vector.shape_cast %427 : vector<1x1x1x32xf32> to vector<1x32xf32>
    %c0_262 = arith.constant 0 : index
    %c3_263 = arith.constant 3 : index
    %c0_264 = arith.constant 0 : index
    %c0_265 = arith.constant 0 : index
    %429 = vector.load %arg20[%c0_262, %c3_263, %c0_264, %c0_265] : memref<2x4x32x32xf32, #tpu.memory_space<vmem>>, vector<1x1x32x32xf32>
    %430 = vector.shape_cast %429 : vector<1x1x32x32xf32> to vector<32x32xf32>
    %c0_266 = arith.constant 0 : index
    %c3_267 = arith.constant 3 : index
    %c0_268 = arith.constant 0 : index
    %c0_269 = arith.constant 0 : index
    %431 = vector.load %arg21[%c0_266, %c3_267, %c0_268, %c0_269] : memref<2x4x1x32xf32, #tpu.memory_space<vmem>>, vector<1x1x1x32xf32>
    %432 = vector.shape_cast %431 : vector<1x1x1x32xf32> to vector<1x32xf32>
    %cst_270 = arith.constant dense<0.000000e+00> : vector<16x32xf32>
    %433 = tpu.matmul %416, %418, %cst_270 {dimension_numbers = #tpu.dot_dimension_numbers<[1], [0], [0], [1], [0, 0, 1, 1], [], []>} : vector<16x32xf32>, vector<32x32xf32>, vector<16x32xf32> -> vector<16x32xf32>
    %434 = vector.broadcast %420 : vector<1x32xf32> to vector<16x32xf32>
    %435 = arith.addf %433, %434 : vector<16x32xf32>
    %cst_271 = arith.constant dense<0.000000e+00> : vector<16x32xf32>
    %436 = tpu.matmul %416, %422, %cst_271 {dimension_numbers = #tpu.dot_dimension_numbers<[1], [0], [0], [1], [0, 0, 1, 1], [], []>} : vector<16x32xf32>, vector<32x32xf32>, vector<16x32xf32> -> vector<16x32xf32>
    %437 = vector.broadcast %424 : vector<1x32xf32> to vector<16x32xf32>
    %438 = arith.addf %436, %437 : vector<16x32xf32>
    %cst_272 = arith.constant dense<0.000000e+00> : vector<16x32xf32>
    %439 = tpu.matmul %416, %426, %cst_272 {dimension_numbers = #tpu.dot_dimension_numbers<[1], [0], [0], [1], [0, 0, 1, 1], [], []>} : vector<16x32xf32>, vector<32x32xf32>, vector<16x32xf32> -> vector<16x32xf32>
    %440 = vector.broadcast %428 : vector<1x32xf32> to vector<16x32xf32>
    %441 = arith.addf %439, %440 : vector<16x32xf32>
    %442 = vector.shape_cast %435 : vector<16x32xf32> to vector<2x8x32xf32>
    %443 = vector.shape_cast %438 : vector<16x32xf32> to vector<2x8x32xf32>
    %444 = vector.shape_cast %441 : vector<16x32xf32> to vector<2x8x32xf32>
    %cst_273 = arith.constant 0.000000e+00 : f32
    %445 = vector.broadcast %cst_273 : f32 to vector<16x32xf32>
    %446 = vector.broadcast %432 : vector<1x32xf32> to vector<16x32xf32>
    %447 = arith.addf %445, %446 : vector<16x32xf32>
    %448 = vector.extract_strided_slice %442 {offsets = [0, 0, 0], sizes = [2, 8, 16], strides = [1, 1, 1]} : vector<2x8x32xf32> to vector<2x8x16xf32>
    %449 = vector.extract_strided_slice %443 {offsets = [0, 0, 0], sizes = [2, 8, 16], strides = [1, 1, 1]} : vector<2x8x32xf32> to vector<2x8x16xf32>
    "tpu.trace_start"() <{level = 10 : i32, message = "bqd,bkd->bqk"}> : () -> ()
    %cst_274 = arith.constant dense<0.000000e+00> : vector<2x8x8xf32>
    %450 = tpu.matmul %448, %449, %cst_274 {dimension_numbers = #tpu.dot_dimension_numbers<[2], [2], [1], [1], [0, 0, 0, 1, 1, 1], [0], [0]>} : vector<2x8x16xf32>, vector<2x8x16xf32>, vector<2x8x8xf32> -> vector<2x8x8xf32>
    "tpu.trace_stop"() : () -> ()
    %cst_275 = arith.constant 2.500000e-01 : f32
    %451 = vector.broadcast %cst_275 : f32 to vector<2x8x8xf32>
    %452 = arith.mulf %450, %451 : vector<2x8x8xf32>
    %453 = arith.addf %452, %25 : vector<2x8x8xf32>
    %cst_276 = arith.constant dense<0xFF800000> : vector<2x8xf32>
    %454 = vector.multi_reduction <maximumf>, %453, %cst_276 [2] : vector<2x8x8xf32> to vector<2x8xf32>
    %455 = vector.shape_cast %454 : vector<2x8xf32> to vector<2x8x1xf32>
    %456 = vector.broadcast %455 : vector<2x8x1xf32> to vector<2x8x8xf32>
    %457 = arith.subf %453, %456 : vector<2x8x8xf32>
    %458 = math.exp %457 : vector<2x8x8xf32>
    %cst_277 = arith.constant dense<0.000000e+00> : vector<2x8xf32>
    %459 = vector.multi_reduction <add>, %458, %cst_277 [2] : vector<2x8x8xf32> to vector<2x8xf32>
    %460 = vector.shape_cast %459 : vector<2x8xf32> to vector<2x8x1xf32>
    %461 = tpu.reciprocal %460 {approx = true} : vector<2x8x1xf32> -> vector<2x8x1xf32>
    %462 = vector.broadcast %461 : vector<2x8x1xf32> to vector<2x8x8xf32>
    %463 = arith.mulf %458, %462 : vector<2x8x8xf32>
    %464 = vector.extract_strided_slice %444 {offsets = [0, 0, 0], sizes = [2, 8, 16], strides = [1, 1, 1]} : vector<2x8x32xf32> to vector<2x8x16xf32>
    "tpu.trace_start"() <{level = 10 : i32, message = "bqk,bkd->bqd"}> : () -> ()
    %cst_278 = arith.constant dense<0.000000e+00> : vector<2x8x16xf32>
    %465 = tpu.matmul %463, %464, %cst_278 {dimension_numbers = #tpu.dot_dimension_numbers<[2], [1], [1], [2], [0, 0, 0, 1, 1, 2], [0], [0]>} : vector<2x8x8xf32>, vector<2x8x16xf32>, vector<2x8x16xf32> -> vector<2x8x16xf32>
    "tpu.trace_stop"() : () -> ()
    %466 = vector.shape_cast %465 : vector<2x8x16xf32> to vector<16x16xf32>
    %467 = vector.extract_strided_slice %430 {offsets = [0, 0], sizes = [16, 32], strides = [1, 1]} : vector<32x32xf32> to vector<16x32xf32>
    %cst_279 = arith.constant dense<0.000000e+00> : vector<16x32xf32>
    %468 = tpu.matmul %466, %467, %cst_279 {dimension_numbers = #tpu.dot_dimension_numbers<[1], [0], [0], [1], [0, 0, 1, 1], [], []>} : vector<16x16xf32>, vector<16x32xf32>, vector<16x32xf32> -> vector<16x32xf32>
    %469 = arith.addf %447, %468 : vector<16x32xf32>
    %470 = vector.extract_strided_slice %442 {offsets = [0, 0, 16], sizes = [2, 8, 16], strides = [1, 1, 1]} : vector<2x8x32xf32> to vector<2x8x16xf32>
    %471 = vector.extract_strided_slice %443 {offsets = [0, 0, 16], sizes = [2, 8, 16], strides = [1, 1, 1]} : vector<2x8x32xf32> to vector<2x8x16xf32>
    "tpu.trace_start"() <{level = 10 : i32, message = "bqd,bkd->bqk"}> : () -> ()
    %cst_280 = arith.constant dense<0.000000e+00> : vector<2x8x8xf32>
    %472 = tpu.matmul %470, %471, %cst_280 {dimension_numbers = #tpu.dot_dimension_numbers<[2], [2], [1], [1], [0, 0, 0, 1, 1, 1], [0], [0]>} : vector<2x8x16xf32>, vector<2x8x16xf32>, vector<2x8x8xf32> -> vector<2x8x8xf32>
    "tpu.trace_stop"() : () -> ()
    %cst_281 = arith.constant 2.500000e-01 : f32
    %473 = vector.broadcast %cst_281 : f32 to vector<2x8x8xf32>
    %474 = arith.mulf %472, %473 : vector<2x8x8xf32>
    %475 = arith.addf %474, %25 : vector<2x8x8xf32>
    %cst_282 = arith.constant dense<0xFF800000> : vector<2x8xf32>
    %476 = vector.multi_reduction <maximumf>, %475, %cst_282 [2] : vector<2x8x8xf32> to vector<2x8xf32>
    %477 = vector.shape_cast %476 : vector<2x8xf32> to vector<2x8x1xf32>
    %478 = vector.broadcast %477 : vector<2x8x1xf32> to vector<2x8x8xf32>
    %479 = arith.subf %475, %478 : vector<2x8x8xf32>
    %480 = math.exp %479 : vector<2x8x8xf32>
    %cst_283 = arith.constant dense<0.000000e+00> : vector<2x8xf32>
    %481 = vector.multi_reduction <add>, %480, %cst_283 [2] : vector<2x8x8xf32> to vector<2x8xf32>
    %482 = vector.shape_cast %481 : vector<2x8xf32> to vector<2x8x1xf32>
    %483 = tpu.reciprocal %482 {approx = true} : vector<2x8x1xf32> -> vector<2x8x1xf32>
    %484 = vector.broadcast %483 : vector<2x8x1xf32> to vector<2x8x8xf32>
    %485 = arith.mulf %480, %484 : vector<2x8x8xf32>
    %486 = vector.extract_strided_slice %444 {offsets = [0, 0, 16], sizes = [2, 8, 16], strides = [1, 1, 1]} : vector<2x8x32xf32> to vector<2x8x16xf32>
    "tpu.trace_start"() <{level = 10 : i32, message = "bqk,bkd->bqd"}> : () -> ()
    %cst_284 = arith.constant dense<0.000000e+00> : vector<2x8x16xf32>
    %487 = tpu.matmul %485, %486, %cst_284 {dimension_numbers = #tpu.dot_dimension_numbers<[2], [1], [1], [2], [0, 0, 0, 1, 1, 2], [0], [0]>} : vector<2x8x8xf32>, vector<2x8x16xf32>, vector<2x8x16xf32> -> vector<2x8x16xf32>
    "tpu.trace_stop"() : () -> ()
    %488 = vector.shape_cast %487 : vector<2x8x16xf32> to vector<16x16xf32>
    %489 = vector.extract_strided_slice %430 {offsets = [16, 0], sizes = [16, 32], strides = [1, 1]} : vector<32x32xf32> to vector<16x32xf32>
    %cst_285 = arith.constant dense<0.000000e+00> : vector<16x32xf32>
    %490 = tpu.matmul %488, %489, %cst_285 {dimension_numbers = #tpu.dot_dimension_numbers<[1], [0], [0], [1], [0, 0, 1, 1], [], []>} : vector<16x16xf32>, vector<16x32xf32>, vector<16x32xf32> -> vector<16x32xf32>
    %491 = arith.addf %469, %490 : vector<16x32xf32>
    %492 = arith.addf %392, %491 : vector<16x32xf32>
    %c0_286 = arith.constant 0 : index
    %c2_287 = arith.constant 2 : index
    %c0_288 = arith.constant 0 : index
    %c0_289 = arith.constant 0 : index
    %493 = vector.load %arg19[%c0_286, %c2_287, %c0_288, %c0_289] : memref<2x6x1x32xf32, #tpu.memory_space<vmem>>, vector<1x1x1x32xf32>
    %494 = vector.shape_cast %493 : vector<1x1x1x32xf32> to vector<1x32xf32>
    %c0_290 = arith.constant 0 : index
    %c3_291 = arith.constant 3 : index
    %c0_292 = arith.constant 0 : index
    %c0_293 = arith.constant 0 : index
    %495 = vector.load %arg19[%c0_290, %c3_291, %c0_292, %c0_293] : memref<2x6x1x32xf32, #tpu.memory_space<vmem>>, vector<1x1x1x32xf32>
    %496 = vector.shape_cast %495 : vector<1x1x1x32xf32> to vector<1x32xf32>
    %cst_294 = arith.constant dense<0.000000e+00> : vector<16xf32>
    %497 = vector.multi_reduction <add>, %492, %cst_294 [1] : vector<16x32xf32> to vector<16xf32>
    %498 = vector.shape_cast %497 : vector<16xf32> to vector<16x1xf32>
    %cst_295 = arith.constant 3.200000e+01 : f32
    %499 = vector.broadcast %cst_295 : f32 to vector<16x1xf32>
    %500 = arith.divf %498, %499 : vector<16x1xf32>
    %501 = vector.broadcast %500 : vector<16x1xf32> to vector<16x32xf32>
    %502 = arith.subf %492, %501 : vector<16x32xf32>
    %503 = arith.mulf %502, %502 : vector<16x32xf32>
    %cst_296 = arith.constant dense<0.000000e+00> : vector<16xf32>
    %504 = vector.multi_reduction <add>, %503, %cst_296 [1] : vector<16x32xf32> to vector<16xf32>
    %505 = vector.shape_cast %504 : vector<16xf32> to vector<16x1xf32>
    %cst_297 = arith.constant 3.200000e+01 : f32
    %506 = vector.broadcast %cst_297 : f32 to vector<16x1xf32>
    %507 = arith.divf %505, %506 : vector<16x1xf32>
    %cst_298 = arith.constant 9.99999974E-6 : f32
    %508 = vector.broadcast %cst_298 : f32 to vector<16x1xf32>
    %509 = arith.addf %507, %508 : vector<16x1xf32>
    %510 = math.rsqrt %509 : vector<16x1xf32>
    %511 = vector.broadcast %510 : vector<16x1xf32> to vector<16x32xf32>
    %512 = arith.mulf %502, %511 : vector<16x32xf32>
    %513 = vector.broadcast %494 : vector<1x32xf32> to vector<16x32xf32>
    %514 = arith.mulf %512, %513 : vector<16x32xf32>
    %515 = vector.broadcast %496 : vector<1x32xf32> to vector<16x32xf32>
    %516 = arith.addf %514, %515 : vector<16x32xf32>
    %c0_299 = arith.constant 0 : index
    %c0_300 = arith.constant 0 : index
    %c0_301 = arith.constant 0 : index
    %c0_302 = arith.constant 0 : index
    %517 = vector.load %arg22[%c0_299, %c0_300, %c0_301, %c0_302] : memref<2x4x32x32xf32, #tpu.memory_space<vmem>>, vector<1x1x32x32xf32>
    %518 = vector.shape_cast %517 : vector<1x1x32x32xf32> to vector<32x32xf32>
    %c0_303 = arith.constant 0 : index
    %c0_304 = arith.constant 0 : index
    %c0_305 = arith.constant 0 : index
    %c0_306 = arith.constant 0 : index
    %519 = vector.load %arg23[%c0_303, %c0_304, %c0_305, %c0_306] : memref<2x4x1x32xf32, #tpu.memory_space<vmem>>, vector<1x1x1x32xf32>
    %520 = vector.shape_cast %519 : vector<1x1x1x32xf32> to vector<1x32xf32>
    %c0_307 = arith.constant 0 : index
    %c1_308 = arith.constant 1 : index
    %c0_309 = arith.constant 0 : index
    %c0_310 = arith.constant 0 : index
    %521 = vector.load %arg22[%c0_307, %c1_308, %c0_309, %c0_310] : memref<2x4x32x32xf32, #tpu.memory_space<vmem>>, vector<1x1x32x32xf32>
    %522 = vector.shape_cast %521 : vector<1x1x32x32xf32> to vector<32x32xf32>
    %c0_311 = arith.constant 0 : index
    %c1_312 = arith.constant 1 : index
    %c0_313 = arith.constant 0 : index
    %c0_314 = arith.constant 0 : index
    %523 = vector.load %arg23[%c0_311, %c1_312, %c0_313, %c0_314] : memref<2x4x1x32xf32, #tpu.memory_space<vmem>>, vector<1x1x1x32xf32>
    %524 = vector.shape_cast %523 : vector<1x1x1x32xf32> to vector<1x32xf32>
    %c0_315 = arith.constant 0 : index
    %c2_316 = arith.constant 2 : index
    %c0_317 = arith.constant 0 : index
    %c0_318 = arith.constant 0 : index
    %525 = vector.load %arg22[%c0_315, %c2_316, %c0_317, %c0_318] : memref<2x4x32x32xf32, #tpu.memory_space<vmem>>, vector<1x1x32x32xf32>
    %526 = vector.shape_cast %525 : vector<1x1x32x32xf32> to vector<32x32xf32>
    %c0_319 = arith.constant 0 : index
    %c2_320 = arith.constant 2 : index
    %c0_321 = arith.constant 0 : index
    %c0_322 = arith.constant 0 : index
    %527 = vector.load %arg23[%c0_319, %c2_320, %c0_321, %c0_322] : memref<2x4x1x32xf32, #tpu.memory_space<vmem>>, vector<1x1x1x32xf32>
    %528 = vector.shape_cast %527 : vector<1x1x1x32xf32> to vector<1x32xf32>
    %c0_323 = arith.constant 0 : index
    %c3_324 = arith.constant 3 : index
    %c0_325 = arith.constant 0 : index
    %c0_326 = arith.constant 0 : index
    %529 = vector.load %arg22[%c0_323, %c3_324, %c0_325, %c0_326] : memref<2x4x32x32xf32, #tpu.memory_space<vmem>>, vector<1x1x32x32xf32>
    %530 = vector.shape_cast %529 : vector<1x1x32x32xf32> to vector<32x32xf32>
    %c0_327 = arith.constant 0 : index
    %c3_328 = arith.constant 3 : index
    %c0_329 = arith.constant 0 : index
    %c0_330 = arith.constant 0 : index
    %531 = vector.load %arg23[%c0_327, %c3_328, %c0_329, %c0_330] : memref<2x4x1x32xf32, #tpu.memory_space<vmem>>, vector<1x1x1x32xf32>
    %532 = vector.shape_cast %531 : vector<1x1x1x32xf32> to vector<1x32xf32>
    %cst_331 = arith.constant dense<0.000000e+00> : vector<16x32xf32>
    %533 = tpu.matmul %516, %518, %cst_331 {dimension_numbers = #tpu.dot_dimension_numbers<[1], [0], [0], [1], [0, 0, 1, 1], [], []>} : vector<16x32xf32>, vector<32x32xf32>, vector<16x32xf32> -> vector<16x32xf32>
    %534 = vector.broadcast %520 : vector<1x32xf32> to vector<16x32xf32>
    %535 = arith.addf %533, %534 : vector<16x32xf32>
    %cst_332 = arith.constant dense<0.000000e+00> : vector<16x32xf32>
    %536 = tpu.matmul %365, %522, %cst_332 {dimension_numbers = #tpu.dot_dimension_numbers<[1], [0], [0], [1], [0, 0, 1, 1], [], []>} : vector<16x32xf32>, vector<32x32xf32>, vector<16x32xf32> -> vector<16x32xf32>
    %537 = vector.broadcast %524 : vector<1x32xf32> to vector<16x32xf32>
    %538 = arith.addf %536, %537 : vector<16x32xf32>
    %cst_333 = arith.constant dense<0.000000e+00> : vector<16x32xf32>
    %539 = tpu.matmul %365, %526, %cst_333 {dimension_numbers = #tpu.dot_dimension_numbers<[1], [0], [0], [1], [0, 0, 1, 1], [], []>} : vector<16x32xf32>, vector<32x32xf32>, vector<16x32xf32> -> vector<16x32xf32>
    %540 = vector.broadcast %528 : vector<1x32xf32> to vector<16x32xf32>
    %541 = arith.addf %539, %540 : vector<16x32xf32>
    %542 = vector.shape_cast %535 : vector<16x32xf32> to vector<2x8x32xf32>
    %543 = vector.shape_cast %538 : vector<16x32xf32> to vector<2x8x32xf32>
    %544 = vector.shape_cast %541 : vector<16x32xf32> to vector<2x8x32xf32>
    %cst_334 = arith.constant 0.000000e+00 : f32
    %545 = vector.broadcast %cst_334 : f32 to vector<16x32xf32>
    %546 = vector.broadcast %532 : vector<1x32xf32> to vector<16x32xf32>
    %547 = arith.addf %545, %546 : vector<16x32xf32>
    %548 = vector.extract_strided_slice %542 {offsets = [0, 0, 0], sizes = [2, 8, 16], strides = [1, 1, 1]} : vector<2x8x32xf32> to vector<2x8x16xf32>
    %549 = vector.extract_strided_slice %543 {offsets = [0, 0, 0], sizes = [2, 8, 16], strides = [1, 1, 1]} : vector<2x8x32xf32> to vector<2x8x16xf32>
    "tpu.trace_start"() <{level = 10 : i32, message = "bqd,bkd->bqk"}> : () -> ()
    %cst_335 = arith.constant dense<0.000000e+00> : vector<2x8x8xf32>
    %550 = tpu.matmul %548, %549, %cst_335 {dimension_numbers = #tpu.dot_dimension_numbers<[2], [2], [1], [1], [0, 0, 0, 1, 1, 1], [0], [0]>} : vector<2x8x16xf32>, vector<2x8x16xf32>, vector<2x8x8xf32> -> vector<2x8x8xf32>
    "tpu.trace_stop"() : () -> ()
    %cst_336 = arith.constant 2.500000e-01 : f32
    %551 = vector.broadcast %cst_336 : f32 to vector<2x8x8xf32>
    %552 = arith.mulf %550, %551 : vector<2x8x8xf32>
    %553 = vector.broadcast %7 : vector<2x1x8xf32> to vector<2x8x8xf32>
    %554 = arith.addf %552, %553 : vector<2x8x8xf32>
    %cst_337 = arith.constant dense<0xFF800000> : vector<2x8xf32>
    %555 = vector.multi_reduction <maximumf>, %554, %cst_337 [2] : vector<2x8x8xf32> to vector<2x8xf32>
    %556 = vector.shape_cast %555 : vector<2x8xf32> to vector<2x8x1xf32>
    %557 = vector.broadcast %556 : vector<2x8x1xf32> to vector<2x8x8xf32>
    %558 = arith.subf %554, %557 : vector<2x8x8xf32>
    %559 = math.exp %558 : vector<2x8x8xf32>
    %cst_338 = arith.constant dense<0.000000e+00> : vector<2x8xf32>
    %560 = vector.multi_reduction <add>, %559, %cst_338 [2] : vector<2x8x8xf32> to vector<2x8xf32>
    %561 = vector.shape_cast %560 : vector<2x8xf32> to vector<2x8x1xf32>
    %562 = tpu.reciprocal %561 {approx = true} : vector<2x8x1xf32> -> vector<2x8x1xf32>
    %563 = vector.broadcast %562 : vector<2x8x1xf32> to vector<2x8x8xf32>
    %564 = arith.mulf %559, %563 : vector<2x8x8xf32>
    %565 = vector.extract_strided_slice %544 {offsets = [0, 0, 0], sizes = [2, 8, 16], strides = [1, 1, 1]} : vector<2x8x32xf32> to vector<2x8x16xf32>
    "tpu.trace_start"() <{level = 10 : i32, message = "bqk,bkd->bqd"}> : () -> ()
    %cst_339 = arith.constant dense<0.000000e+00> : vector<2x8x16xf32>
    %566 = tpu.matmul %564, %565, %cst_339 {dimension_numbers = #tpu.dot_dimension_numbers<[2], [1], [1], [2], [0, 0, 0, 1, 1, 2], [0], [0]>} : vector<2x8x8xf32>, vector<2x8x16xf32>, vector<2x8x16xf32> -> vector<2x8x16xf32>
    "tpu.trace_stop"() : () -> ()
    %567 = vector.shape_cast %566 : vector<2x8x16xf32> to vector<16x16xf32>
    %568 = vector.extract_strided_slice %530 {offsets = [0, 0], sizes = [16, 32], strides = [1, 1]} : vector<32x32xf32> to vector<16x32xf32>
    %cst_340 = arith.constant dense<0.000000e+00> : vector<16x32xf32>
    %569 = tpu.matmul %567, %568, %cst_340 {dimension_numbers = #tpu.dot_dimension_numbers<[1], [0], [0], [1], [0, 0, 1, 1], [], []>} : vector<16x16xf32>, vector<16x32xf32>, vector<16x32xf32> -> vector<16x32xf32>
    %570 = arith.addf %547, %569 : vector<16x32xf32>
    %571 = vector.extract_strided_slice %542 {offsets = [0, 0, 16], sizes = [2, 8, 16], strides = [1, 1, 1]} : vector<2x8x32xf32> to vector<2x8x16xf32>
    %572 = vector.extract_strided_slice %543 {offsets = [0, 0, 16], sizes = [2, 8, 16], strides = [1, 1, 1]} : vector<2x8x32xf32> to vector<2x8x16xf32>
    "tpu.trace_start"() <{level = 10 : i32, message = "bqd,bkd->bqk"}> : () -> ()
    %cst_341 = arith.constant dense<0.000000e+00> : vector<2x8x8xf32>
    %573 = tpu.matmul %571, %572, %cst_341 {dimension_numbers = #tpu.dot_dimension_numbers<[2], [2], [1], [1], [0, 0, 0, 1, 1, 1], [0], [0]>} : vector<2x8x16xf32>, vector<2x8x16xf32>, vector<2x8x8xf32> -> vector<2x8x8xf32>
    "tpu.trace_stop"() : () -> ()
    %cst_342 = arith.constant 2.500000e-01 : f32
    %574 = vector.broadcast %cst_342 : f32 to vector<2x8x8xf32>
    %575 = arith.mulf %573, %574 : vector<2x8x8xf32>
    %576 = vector.broadcast %7 : vector<2x1x8xf32> to vector<2x8x8xf32>
    %577 = arith.addf %575, %576 : vector<2x8x8xf32>
    %cst_343 = arith.constant dense<0xFF800000> : vector<2x8xf32>
    %578 = vector.multi_reduction <maximumf>, %577, %cst_343 [2] : vector<2x8x8xf32> to vector<2x8xf32>
    %579 = vector.shape_cast %578 : vector<2x8xf32> to vector<2x8x1xf32>
    %580 = vector.broadcast %579 : vector<2x8x1xf32> to vector<2x8x8xf32>
    %581 = arith.subf %577, %580 : vector<2x8x8xf32>
    %582 = math.exp %581 : vector<2x8x8xf32>
    %cst_344 = arith.constant dense<0.000000e+00> : vector<2x8xf32>
    %583 = vector.multi_reduction <add>, %582, %cst_344 [2] : vector<2x8x8xf32> to vector<2x8xf32>
    %584 = vector.shape_cast %583 : vector<2x8xf32> to vector<2x8x1xf32>
    %585 = tpu.reciprocal %584 {approx = true} : vector<2x8x1xf32> -> vector<2x8x1xf32>
    %586 = vector.broadcast %585 : vector<2x8x1xf32> to vector<2x8x8xf32>
    %587 = arith.mulf %582, %586 : vector<2x8x8xf32>
    %588 = vector.extract_strided_slice %544 {offsets = [0, 0, 16], sizes = [2, 8, 16], strides = [1, 1, 1]} : vector<2x8x32xf32> to vector<2x8x16xf32>
    "tpu.trace_start"() <{level = 10 : i32, message = "bqk,bkd->bqd"}> : () -> ()
    %cst_345 = arith.constant dense<0.000000e+00> : vector<2x8x16xf32>
    %589 = tpu.matmul %587, %588, %cst_345 {dimension_numbers = #tpu.dot_dimension_numbers<[2], [1], [1], [2], [0, 0, 0, 1, 1, 2], [0], [0]>} : vector<2x8x8xf32>, vector<2x8x16xf32>, vector<2x8x16xf32> -> vector<2x8x16xf32>
    "tpu.trace_stop"() : () -> ()
    %590 = vector.shape_cast %589 : vector<2x8x16xf32> to vector<16x16xf32>
    %591 = vector.extract_strided_slice %530 {offsets = [16, 0], sizes = [16, 32], strides = [1, 1]} : vector<32x32xf32> to vector<16x32xf32>
    %cst_346 = arith.constant dense<0.000000e+00> : vector<16x32xf32>
    %592 = tpu.matmul %590, %591, %cst_346 {dimension_numbers = #tpu.dot_dimension_numbers<[1], [0], [0], [1], [0, 0, 1, 1], [], []>} : vector<16x16xf32>, vector<16x32xf32>, vector<16x32xf32> -> vector<16x32xf32>
    %593 = arith.addf %570, %592 : vector<16x32xf32>
    %594 = arith.addf %492, %593 : vector<16x32xf32>
    %c0_347 = arith.constant 0 : index
    %c4 = arith.constant 4 : index
    %c0_348 = arith.constant 0 : index
    %c0_349 = arith.constant 0 : index
    %595 = vector.load %arg19[%c0_347, %c4, %c0_348, %c0_349] : memref<2x6x1x32xf32, #tpu.memory_space<vmem>>, vector<1x1x1x32xf32>
    %596 = vector.shape_cast %595 : vector<1x1x1x32xf32> to vector<1x32xf32>
    %c0_350 = arith.constant 0 : index
    %c5 = arith.constant 5 : index
    %c0_351 = arith.constant 0 : index
    %c0_352 = arith.constant 0 : index
    %597 = vector.load %arg19[%c0_350, %c5, %c0_351, %c0_352] : memref<2x6x1x32xf32, #tpu.memory_space<vmem>>, vector<1x1x1x32xf32>
    %598 = vector.shape_cast %597 : vector<1x1x1x32xf32> to vector<1x32xf32>
    %cst_353 = arith.constant dense<0.000000e+00> : vector<16xf32>
    %599 = vector.multi_reduction <add>, %594, %cst_353 [1] : vector<16x32xf32> to vector<16xf32>
    %600 = vector.shape_cast %599 : vector<16xf32> to vector<16x1xf32>
    %cst_354 = arith.constant 3.200000e+01 : f32
    %601 = vector.broadcast %cst_354 : f32 to vector<16x1xf32>
    %602 = arith.divf %600, %601 : vector<16x1xf32>
    %603 = vector.broadcast %602 : vector<16x1xf32> to vector<16x32xf32>
    %604 = arith.subf %594, %603 : vector<16x32xf32>
    %605 = arith.mulf %604, %604 : vector<16x32xf32>
    %cst_355 = arith.constant dense<0.000000e+00> : vector<16xf32>
    %606 = vector.multi_reduction <add>, %605, %cst_355 [1] : vector<16x32xf32> to vector<16xf32>
    %607 = vector.shape_cast %606 : vector<16xf32> to vector<16x1xf32>
    %cst_356 = arith.constant 3.200000e+01 : f32
    %608 = vector.broadcast %cst_356 : f32 to vector<16x1xf32>
    %609 = arith.divf %607, %608 : vector<16x1xf32>
    %cst_357 = arith.constant 9.99999974E-6 : f32
    %610 = vector.broadcast %cst_357 : f32 to vector<16x1xf32>
    %611 = arith.addf %609, %610 : vector<16x1xf32>
    %612 = math.rsqrt %611 : vector<16x1xf32>
    %613 = vector.broadcast %612 : vector<16x1xf32> to vector<16x32xf32>
    %614 = arith.mulf %604, %613 : vector<16x32xf32>
    %615 = vector.broadcast %596 : vector<1x32xf32> to vector<16x32xf32>
    %616 = arith.mulf %614, %615 : vector<16x32xf32>
    %617 = vector.broadcast %598 : vector<1x32xf32> to vector<16x32xf32>
    %618 = arith.addf %616, %617 : vector<16x32xf32>
    %c0_358 = arith.constant 0 : index
    %c0_359 = arith.constant 0 : index
    %c0_360 = arith.constant 0 : index
    %619 = vector.load %arg24[%c0_358, %c0_359, %c0_360] : memref<2x32x64xf32, #tpu.memory_space<vmem>>, vector<1x32x64xf32>
    %620 = vector.shape_cast %619 : vector<1x32x64xf32> to vector<32x64xf32>
    %cst_361 = arith.constant dense<0.000000e+00> : vector<16x64xf32>
    %621 = tpu.matmul %618, %620, %cst_361 {dimension_numbers = #tpu.dot_dimension_numbers<[1], [0], [0], [1], [0, 0, 1, 1], [], []>} : vector<16x32xf32>, vector<32x64xf32>, vector<16x64xf32> -> vector<16x64xf32>
    %c0_362 = arith.constant 0 : index
    %c0_363 = arith.constant 0 : index
    %c0_364 = arith.constant 0 : index
    %622 = vector.load %arg25[%c0_362, %c0_363, %c0_364] : memref<2x1x64xf32, #tpu.memory_space<vmem>>, vector<1x1x64xf32>
    %623 = vector.shape_cast %622 : vector<1x1x64xf32> to vector<1x64xf32>
    %624 = vector.broadcast %623 : vector<1x64xf32> to vector<16x64xf32>
    %625 = arith.addf %621, %624 : vector<16x64xf32>
    %626 = arith.mulf %625, %625 : vector<16x64xf32>
    %627 = arith.mulf %625, %626 : vector<16x64xf32>
    %cst_365 = arith.constant 4.471500e-02 : f32
    %628 = vector.broadcast %cst_365 : f32 to vector<16x64xf32>
    %629 = arith.mulf %628, %627 : vector<16x64xf32>
    %630 = arith.addf %625, %629 : vector<16x64xf32>
    %cst_366 = arith.constant 0.797884583 : f32
    %631 = vector.broadcast %cst_366 : f32 to vector<16x64xf32>
    %632 = arith.mulf %631, %630 : vector<16x64xf32>
    %633 = math.tanh %632 : vector<16x64xf32>
    %cst_367 = arith.constant 1.000000e+00 : f32
    %634 = vector.broadcast %cst_367 : f32 to vector<16x64xf32>
    %635 = arith.addf %634, %633 : vector<16x64xf32>
    %cst_368 = arith.constant 5.000000e-01 : f32
    %636 = vector.broadcast %cst_368 : f32 to vector<16x64xf32>
    %637 = arith.mulf %636, %635 : vector<16x64xf32>
    %638 = arith.mulf %625, %637 : vector<16x64xf32>
    %c0_369 = arith.constant 0 : index
    %c0_370 = arith.constant 0 : index
    %c0_371 = arith.constant 0 : index
    %639 = vector.load %arg26[%c0_369, %c0_370, %c0_371] : memref<2x64x32xf32, #tpu.memory_space<vmem>>, vector<1x64x32xf32>
    %640 = vector.shape_cast %639 : vector<1x64x32xf32> to vector<64x32xf32>
    %cst_372 = arith.constant dense<0.000000e+00> : vector<16x32xf32>
    %641 = tpu.matmul %638, %640, %cst_372 {dimension_numbers = #tpu.dot_dimension_numbers<[1], [0], [0], [1], [0, 0, 1, 1], [], []>} : vector<16x64xf32>, vector<64x32xf32>, vector<16x32xf32> -> vector<16x32xf32>
    %642 = arith.addf %594, %641 : vector<16x32xf32>
    %c0_373 = arith.constant 0 : index
    %c0_374 = arith.constant 0 : index
    %c0_375 = arith.constant 0 : index
    %643 = vector.load %arg27[%c0_373, %c0_374, %c0_375] : memref<2x1x32xf32, #tpu.memory_space<vmem>>, vector<1x1x32xf32>
    %644 = vector.shape_cast %643 : vector<1x1x32xf32> to vector<1x32xf32>
    %645 = vector.broadcast %644 : vector<1x32xf32> to vector<16x32xf32>
    %646 = arith.addf %642, %645 : vector<16x32xf32>
    %c1_376 = arith.constant 1 : index
    %c0_377 = arith.constant 0 : index
    %c0_378 = arith.constant 0 : index
    %c0_379 = arith.constant 0 : index
    %647 = vector.load %arg19[%c1_376, %c0_377, %c0_378, %c0_379] : memref<2x6x1x32xf32, #tpu.memory_space<vmem>>, vector<1x1x1x32xf32>
    %648 = vector.shape_cast %647 : vector<1x1x1x32xf32> to vector<1x32xf32>
    %c1_380 = arith.constant 1 : index
    %c1_381 = arith.constant 1 : index
    %c0_382 = arith.constant 0 : index
    %c0_383 = arith.constant 0 : index
    %649 = vector.load %arg19[%c1_380, %c1_381, %c0_382, %c0_383] : memref<2x6x1x32xf32, #tpu.memory_space<vmem>>, vector<1x1x1x32xf32>
    %650 = vector.shape_cast %649 : vector<1x1x1x32xf32> to vector<1x32xf32>
    %cst_384 = arith.constant dense<0.000000e+00> : vector<16xf32>
    %651 = vector.multi_reduction <add>, %646, %cst_384 [1] : vector<16x32xf32> to vector<16xf32>
    %652 = vector.shape_cast %651 : vector<16xf32> to vector<16x1xf32>
    %cst_385 = arith.constant 3.200000e+01 : f32
    %653 = vector.broadcast %cst_385 : f32 to vector<16x1xf32>
    %654 = arith.divf %652, %653 : vector<16x1xf32>
    %655 = vector.broadcast %654 : vector<16x1xf32> to vector<16x32xf32>
    %656 = arith.subf %646, %655 : vector<16x32xf32>
    %657 = arith.mulf %656, %656 : vector<16x32xf32>
    %cst_386 = arith.constant dense<0.000000e+00> : vector<16xf32>
    %658 = vector.multi_reduction <add>, %657, %cst_386 [1] : vector<16x32xf32> to vector<16xf32>
    %659 = vector.shape_cast %658 : vector<16xf32> to vector<16x1xf32>
    %cst_387 = arith.constant 3.200000e+01 : f32
    %660 = vector.broadcast %cst_387 : f32 to vector<16x1xf32>
    %661 = arith.divf %659, %660 : vector<16x1xf32>
    %cst_388 = arith.constant 9.99999974E-6 : f32
    %662 = vector.broadcast %cst_388 : f32 to vector<16x1xf32>
    %663 = arith.addf %661, %662 : vector<16x1xf32>
    %664 = math.rsqrt %663 : vector<16x1xf32>
    %665 = vector.broadcast %664 : vector<16x1xf32> to vector<16x32xf32>
    %666 = arith.mulf %656, %665 : vector<16x32xf32>
    %667 = vector.broadcast %648 : vector<1x32xf32> to vector<16x32xf32>
    %668 = arith.mulf %666, %667 : vector<16x32xf32>
    %669 = vector.broadcast %650 : vector<1x32xf32> to vector<16x32xf32>
    %670 = arith.addf %668, %669 : vector<16x32xf32>
    %c1_389 = arith.constant 1 : index
    %c0_390 = arith.constant 0 : index
    %c0_391 = arith.constant 0 : index
    %c0_392 = arith.constant 0 : index
    %671 = vector.load %arg20[%c1_389, %c0_390, %c0_391, %c0_392] : memref<2x4x32x32xf32, #tpu.memory_space<vmem>>, vector<1x1x32x32xf32>
    %672 = vector.shape_cast %671 : vector<1x1x32x32xf32> to vector<32x32xf32>
    %c1_393 = arith.constant 1 : index
    %c0_394 = arith.constant 0 : index
    %c0_395 = arith.constant 0 : index
    %c0_396 = arith.constant 0 : index
    %673 = vector.load %arg21[%c1_393, %c0_394, %c0_395, %c0_396] : memref<2x4x1x32xf32, #tpu.memory_space<vmem>>, vector<1x1x1x32xf32>
    %674 = vector.shape_cast %673 : vector<1x1x1x32xf32> to vector<1x32xf32>
    %c1_397 = arith.constant 1 : index
    %c1_398 = arith.constant 1 : index
    %c0_399 = arith.constant 0 : index
    %c0_400 = arith.constant 0 : index
    %675 = vector.load %arg20[%c1_397, %c1_398, %c0_399, %c0_400] : memref<2x4x32x32xf32, #tpu.memory_space<vmem>>, vector<1x1x32x32xf32>
    %676 = vector.shape_cast %675 : vector<1x1x32x32xf32> to vector<32x32xf32>
    %c1_401 = arith.constant 1 : index
    %c1_402 = arith.constant 1 : index
    %c0_403 = arith.constant 0 : index
    %c0_404 = arith.constant 0 : index
    %677 = vector.load %arg21[%c1_401, %c1_402, %c0_403, %c0_404] : memref<2x4x1x32xf32, #tpu.memory_space<vmem>>, vector<1x1x1x32xf32>
    %678 = vector.shape_cast %677 : vector<1x1x1x32xf32> to vector<1x32xf32>
    %c1_405 = arith.constant 1 : index
    %c2_406 = arith.constant 2 : index
    %c0_407 = arith.constant 0 : index
    %c0_408 = arith.constant 0 : index
    %679 = vector.load %arg20[%c1_405, %c2_406, %c0_407, %c0_408] : memref<2x4x32x32xf32, #tpu.memory_space<vmem>>, vector<1x1x32x32xf32>
    %680 = vector.shape_cast %679 : vector<1x1x32x32xf32> to vector<32x32xf32>
    %c1_409 = arith.constant 1 : index
    %c2_410 = arith.constant 2 : index
    %c0_411 = arith.constant 0 : index
    %c0_412 = arith.constant 0 : index
    %681 = vector.load %arg21[%c1_409, %c2_410, %c0_411, %c0_412] : memref<2x4x1x32xf32, #tpu.memory_space<vmem>>, vector<1x1x1x32xf32>
    %682 = vector.shape_cast %681 : vector<1x1x1x32xf32> to vector<1x32xf32>
    %c1_413 = arith.constant 1 : index
    %c3_414 = arith.constant 3 : index
    %c0_415 = arith.constant 0 : index
    %c0_416 = arith.constant 0 : index
    %683 = vector.load %arg20[%c1_413, %c3_414, %c0_415, %c0_416] : memref<2x4x32x32xf32, #tpu.memory_space<vmem>>, vector<1x1x32x32xf32>
    %684 = vector.shape_cast %683 : vector<1x1x32x32xf32> to vector<32x32xf32>
    %c1_417 = arith.constant 1 : index
    %c3_418 = arith.constant 3 : index
    %c0_419 = arith.constant 0 : index
    %c0_420 = arith.constant 0 : index
    %685 = vector.load %arg21[%c1_417, %c3_418, %c0_419, %c0_420] : memref<2x4x1x32xf32, #tpu.memory_space<vmem>>, vector<1x1x1x32xf32>
    %686 = vector.shape_cast %685 : vector<1x1x1x32xf32> to vector<1x32xf32>
    %cst_421 = arith.constant dense<0.000000e+00> : vector<16x32xf32>
    %687 = tpu.matmul %670, %672, %cst_421 {dimension_numbers = #tpu.dot_dimension_numbers<[1], [0], [0], [1], [0, 0, 1, 1], [], []>} : vector<16x32xf32>, vector<32x32xf32>, vector<16x32xf32> -> vector<16x32xf32>
    %688 = vector.broadcast %674 : vector<1x32xf32> to vector<16x32xf32>
    %689 = arith.addf %687, %688 : vector<16x32xf32>
    %cst_422 = arith.constant dense<0.000000e+00> : vector<16x32xf32>
    %690 = tpu.matmul %670, %676, %cst_422 {dimension_numbers = #tpu.dot_dimension_numbers<[1], [0], [0], [1], [0, 0, 1, 1], [], []>} : vector<16x32xf32>, vector<32x32xf32>, vector<16x32xf32> -> vector<16x32xf32>
    %691 = vector.broadcast %678 : vector<1x32xf32> to vector<16x32xf32>
    %692 = arith.addf %690, %691 : vector<16x32xf32>
    %cst_423 = arith.constant dense<0.000000e+00> : vector<16x32xf32>
    %693 = tpu.matmul %670, %680, %cst_423 {dimension_numbers = #tpu.dot_dimension_numbers<[1], [0], [0], [1], [0, 0, 1, 1], [], []>} : vector<16x32xf32>, vector<32x32xf32>, vector<16x32xf32> -> vector<16x32xf32>
    %694 = vector.broadcast %682 : vector<1x32xf32> to vector<16x32xf32>
    %695 = arith.addf %693, %694 : vector<16x32xf32>
    %696 = vector.shape_cast %689 : vector<16x32xf32> to vector<2x8x32xf32>
    %697 = vector.shape_cast %692 : vector<16x32xf32> to vector<2x8x32xf32>
    %698 = vector.shape_cast %695 : vector<16x32xf32> to vector<2x8x32xf32>
    %cst_424 = arith.constant 0.000000e+00 : f32
    %699 = vector.broadcast %cst_424 : f32 to vector<16x32xf32>
    %700 = vector.broadcast %686 : vector<1x32xf32> to vector<16x32xf32>
    %701 = arith.addf %699, %700 : vector<16x32xf32>
    %702 = vector.extract_strided_slice %696 {offsets = [0, 0, 0], sizes = [2, 8, 16], strides = [1, 1, 1]} : vector<2x8x32xf32> to vector<2x8x16xf32>
    %703 = vector.extract_strided_slice %697 {offsets = [0, 0, 0], sizes = [2, 8, 16], strides = [1, 1, 1]} : vector<2x8x32xf32> to vector<2x8x16xf32>
    "tpu.trace_start"() <{level = 10 : i32, message = "bqd,bkd->bqk"}> : () -> ()
    %cst_425 = arith.constant dense<0.000000e+00> : vector<2x8x8xf32>
    %704 = tpu.matmul %702, %703, %cst_425 {dimension_numbers = #tpu.dot_dimension_numbers<[2], [2], [1], [1], [0, 0, 0, 1, 1, 1], [0], [0]>} : vector<2x8x16xf32>, vector<2x8x16xf32>, vector<2x8x8xf32> -> vector<2x8x8xf32>
    "tpu.trace_stop"() : () -> ()
    %cst_426 = arith.constant 2.500000e-01 : f32
    %705 = vector.broadcast %cst_426 : f32 to vector<2x8x8xf32>
    %706 = arith.mulf %704, %705 : vector<2x8x8xf32>
    %707 = arith.addf %706, %25 : vector<2x8x8xf32>
    %cst_427 = arith.constant dense<0xFF800000> : vector<2x8xf32>
    %708 = vector.multi_reduction <maximumf>, %707, %cst_427 [2] : vector<2x8x8xf32> to vector<2x8xf32>
    %709 = vector.shape_cast %708 : vector<2x8xf32> to vector<2x8x1xf32>
    %710 = vector.broadcast %709 : vector<2x8x1xf32> to vector<2x8x8xf32>
    %711 = arith.subf %707, %710 : vector<2x8x8xf32>
    %712 = math.exp %711 : vector<2x8x8xf32>
    %cst_428 = arith.constant dense<0.000000e+00> : vector<2x8xf32>
    %713 = vector.multi_reduction <add>, %712, %cst_428 [2] : vector<2x8x8xf32> to vector<2x8xf32>
    %714 = vector.shape_cast %713 : vector<2x8xf32> to vector<2x8x1xf32>
    %715 = tpu.reciprocal %714 {approx = true} : vector<2x8x1xf32> -> vector<2x8x1xf32>
    %716 = vector.broadcast %715 : vector<2x8x1xf32> to vector<2x8x8xf32>
    %717 = arith.mulf %712, %716 : vector<2x8x8xf32>
    %718 = vector.extract_strided_slice %698 {offsets = [0, 0, 0], sizes = [2, 8, 16], strides = [1, 1, 1]} : vector<2x8x32xf32> to vector<2x8x16xf32>
    "tpu.trace_start"() <{level = 10 : i32, message = "bqk,bkd->bqd"}> : () -> ()
    %cst_429 = arith.constant dense<0.000000e+00> : vector<2x8x16xf32>
    %719 = tpu.matmul %717, %718, %cst_429 {dimension_numbers = #tpu.dot_dimension_numbers<[2], [1], [1], [2], [0, 0, 0, 1, 1, 2], [0], [0]>} : vector<2x8x8xf32>, vector<2x8x16xf32>, vector<2x8x16xf32> -> vector<2x8x16xf32>
    "tpu.trace_stop"() : () -> ()
    %720 = vector.shape_cast %719 : vector<2x8x16xf32> to vector<16x16xf32>
    %721 = vector.extract_strided_slice %684 {offsets = [0, 0], sizes = [16, 32], strides = [1, 1]} : vector<32x32xf32> to vector<16x32xf32>
    %cst_430 = arith.constant dense<0.000000e+00> : vector<16x32xf32>
    %722 = tpu.matmul %720, %721, %cst_430 {dimension_numbers = #tpu.dot_dimension_numbers<[1], [0], [0], [1], [0, 0, 1, 1], [], []>} : vector<16x16xf32>, vector<16x32xf32>, vector<16x32xf32> -> vector<16x32xf32>
    %723 = arith.addf %701, %722 : vector<16x32xf32>
    %724 = vector.extract_strided_slice %696 {offsets = [0, 0, 16], sizes = [2, 8, 16], strides = [1, 1, 1]} : vector<2x8x32xf32> to vector<2x8x16xf32>
    %725 = vector.extract_strided_slice %697 {offsets = [0, 0, 16], sizes = [2, 8, 16], strides = [1, 1, 1]} : vector<2x8x32xf32> to vector<2x8x16xf32>
    "tpu.trace_start"() <{level = 10 : i32, message = "bqd,bkd->bqk"}> : () -> ()
    %cst_431 = arith.constant dense<0.000000e+00> : vector<2x8x8xf32>
    %726 = tpu.matmul %724, %725, %cst_431 {dimension_numbers = #tpu.dot_dimension_numbers<[2], [2], [1], [1], [0, 0, 0, 1, 1, 1], [0], [0]>} : vector<2x8x16xf32>, vector<2x8x16xf32>, vector<2x8x8xf32> -> vector<2x8x8xf32>
    "tpu.trace_stop"() : () -> ()
    %cst_432 = arith.constant 2.500000e-01 : f32
    %727 = vector.broadcast %cst_432 : f32 to vector<2x8x8xf32>
    %728 = arith.mulf %726, %727 : vector<2x8x8xf32>
    %729 = arith.addf %728, %25 : vector<2x8x8xf32>
    %cst_433 = arith.constant dense<0xFF800000> : vector<2x8xf32>
    %730 = vector.multi_reduction <maximumf>, %729, %cst_433 [2] : vector<2x8x8xf32> to vector<2x8xf32>
    %731 = vector.shape_cast %730 : vector<2x8xf32> to vector<2x8x1xf32>
    %732 = vector.broadcast %731 : vector<2x8x1xf32> to vector<2x8x8xf32>
    %733 = arith.subf %729, %732 : vector<2x8x8xf32>
    %734 = math.exp %733 : vector<2x8x8xf32>
    %cst_434 = arith.constant dense<0.000000e+00> : vector<2x8xf32>
    %735 = vector.multi_reduction <add>, %734, %cst_434 [2] : vector<2x8x8xf32> to vector<2x8xf32>
    %736 = vector.shape_cast %735 : vector<2x8xf32> to vector<2x8x1xf32>
    %737 = tpu.reciprocal %736 {approx = true} : vector<2x8x1xf32> -> vector<2x8x1xf32>
    %738 = vector.broadcast %737 : vector<2x8x1xf32> to vector<2x8x8xf32>
    %739 = arith.mulf %734, %738 : vector<2x8x8xf32>
    %740 = vector.extract_strided_slice %698 {offsets = [0, 0, 16], sizes = [2, 8, 16], strides = [1, 1, 1]} : vector<2x8x32xf32> to vector<2x8x16xf32>
    "tpu.trace_start"() <{level = 10 : i32, message = "bqk,bkd->bqd"}> : () -> ()
    %cst_435 = arith.constant dense<0.000000e+00> : vector<2x8x16xf32>
    %741 = tpu.matmul %739, %740, %cst_435 {dimension_numbers = #tpu.dot_dimension_numbers<[2], [1], [1], [2], [0, 0, 0, 1, 1, 2], [0], [0]>} : vector<2x8x8xf32>, vector<2x8x16xf32>, vector<2x8x16xf32> -> vector<2x8x16xf32>
    "tpu.trace_stop"() : () -> ()
    %742 = vector.shape_cast %741 : vector<2x8x16xf32> to vector<16x16xf32>
    %743 = vector.extract_strided_slice %684 {offsets = [16, 0], sizes = [16, 32], strides = [1, 1]} : vector<32x32xf32> to vector<16x32xf32>
    %cst_436 = arith.constant dense<0.000000e+00> : vector<16x32xf32>
    %744 = tpu.matmul %742, %743, %cst_436 {dimension_numbers = #tpu.dot_dimension_numbers<[1], [0], [0], [1], [0, 0, 1, 1], [], []>} : vector<16x16xf32>, vector<16x32xf32>, vector<16x32xf32> -> vector<16x32xf32>
    %745 = arith.addf %723, %744 : vector<16x32xf32>
    %746 = arith.addf %646, %745 : vector<16x32xf32>
    %c1_437 = arith.constant 1 : index
    %c2_438 = arith.constant 2 : index
    %c0_439 = arith.constant 0 : index
    %c0_440 = arith.constant 0 : index
    %747 = vector.load %arg19[%c1_437, %c2_438, %c0_439, %c0_440] : memref<2x6x1x32xf32, #tpu.memory_space<vmem>>, vector<1x1x1x32xf32>
    %748 = vector.shape_cast %747 : vector<1x1x1x32xf32> to vector<1x32xf32>
    %c1_441 = arith.constant 1 : index
    %c3_442 = arith.constant 3 : index
    %c0_443 = arith.constant 0 : index
    %c0_444 = arith.constant 0 : index
    %749 = vector.load %arg19[%c1_441, %c3_442, %c0_443, %c0_444] : memref<2x6x1x32xf32, #tpu.memory_space<vmem>>, vector<1x1x1x32xf32>
    %750 = vector.shape_cast %749 : vector<1x1x1x32xf32> to vector<1x32xf32>
    %cst_445 = arith.constant dense<0.000000e+00> : vector<16xf32>
    %751 = vector.multi_reduction <add>, %746, %cst_445 [1] : vector<16x32xf32> to vector<16xf32>
    %752 = vector.shape_cast %751 : vector<16xf32> to vector<16x1xf32>
    %cst_446 = arith.constant 3.200000e+01 : f32
    %753 = vector.broadcast %cst_446 : f32 to vector<16x1xf32>
    %754 = arith.divf %752, %753 : vector<16x1xf32>
    %755 = vector.broadcast %754 : vector<16x1xf32> to vector<16x32xf32>
    %756 = arith.subf %746, %755 : vector<16x32xf32>
    %757 = arith.mulf %756, %756 : vector<16x32xf32>
    %cst_447 = arith.constant dense<0.000000e+00> : vector<16xf32>
    %758 = vector.multi_reduction <add>, %757, %cst_447 [1] : vector<16x32xf32> to vector<16xf32>
    %759 = vector.shape_cast %758 : vector<16xf32> to vector<16x1xf32>
    %cst_448 = arith.constant 3.200000e+01 : f32
    %760 = vector.broadcast %cst_448 : f32 to vector<16x1xf32>
    %761 = arith.divf %759, %760 : vector<16x1xf32>
    %cst_449 = arith.constant 9.99999974E-6 : f32
    %762 = vector.broadcast %cst_449 : f32 to vector<16x1xf32>
    %763 = arith.addf %761, %762 : vector<16x1xf32>
    %764 = math.rsqrt %763 : vector<16x1xf32>
    %765 = vector.broadcast %764 : vector<16x1xf32> to vector<16x32xf32>
    %766 = arith.mulf %756, %765 : vector<16x32xf32>
    %767 = vector.broadcast %748 : vector<1x32xf32> to vector<16x32xf32>
    %768 = arith.mulf %766, %767 : vector<16x32xf32>
    %769 = vector.broadcast %750 : vector<1x32xf32> to vector<16x32xf32>
    %770 = arith.addf %768, %769 : vector<16x32xf32>
    %c1_450 = arith.constant 1 : index
    %c0_451 = arith.constant 0 : index
    %c0_452 = arith.constant 0 : index
    %c0_453 = arith.constant 0 : index
    %771 = vector.load %arg22[%c1_450, %c0_451, %c0_452, %c0_453] : memref<2x4x32x32xf32, #tpu.memory_space<vmem>>, vector<1x1x32x32xf32>
    %772 = vector.shape_cast %771 : vector<1x1x32x32xf32> to vector<32x32xf32>
    %c1_454 = arith.constant 1 : index
    %c0_455 = arith.constant 0 : index
    %c0_456 = arith.constant 0 : index
    %c0_457 = arith.constant 0 : index
    %773 = vector.load %arg23[%c1_454, %c0_455, %c0_456, %c0_457] : memref<2x4x1x32xf32, #tpu.memory_space<vmem>>, vector<1x1x1x32xf32>
    %774 = vector.shape_cast %773 : vector<1x1x1x32xf32> to vector<1x32xf32>
    %c1_458 = arith.constant 1 : index
    %c1_459 = arith.constant 1 : index
    %c0_460 = arith.constant 0 : index
    %c0_461 = arith.constant 0 : index
    %775 = vector.load %arg22[%c1_458, %c1_459, %c0_460, %c0_461] : memref<2x4x32x32xf32, #tpu.memory_space<vmem>>, vector<1x1x32x32xf32>
    %776 = vector.shape_cast %775 : vector<1x1x32x32xf32> to vector<32x32xf32>
    %c1_462 = arith.constant 1 : index
    %c1_463 = arith.constant 1 : index
    %c0_464 = arith.constant 0 : index
    %c0_465 = arith.constant 0 : index
    %777 = vector.load %arg23[%c1_462, %c1_463, %c0_464, %c0_465] : memref<2x4x1x32xf32, #tpu.memory_space<vmem>>, vector<1x1x1x32xf32>
    %778 = vector.shape_cast %777 : vector<1x1x1x32xf32> to vector<1x32xf32>
    %c1_466 = arith.constant 1 : index
    %c2_467 = arith.constant 2 : index
    %c0_468 = arith.constant 0 : index
    %c0_469 = arith.constant 0 : index
    %779 = vector.load %arg22[%c1_466, %c2_467, %c0_468, %c0_469] : memref<2x4x32x32xf32, #tpu.memory_space<vmem>>, vector<1x1x32x32xf32>
    %780 = vector.shape_cast %779 : vector<1x1x32x32xf32> to vector<32x32xf32>
    %c1_470 = arith.constant 1 : index
    %c2_471 = arith.constant 2 : index
    %c0_472 = arith.constant 0 : index
    %c0_473 = arith.constant 0 : index
    %781 = vector.load %arg23[%c1_470, %c2_471, %c0_472, %c0_473] : memref<2x4x1x32xf32, #tpu.memory_space<vmem>>, vector<1x1x1x32xf32>
    %782 = vector.shape_cast %781 : vector<1x1x1x32xf32> to vector<1x32xf32>
    %c1_474 = arith.constant 1 : index
    %c3_475 = arith.constant 3 : index
    %c0_476 = arith.constant 0 : index
    %c0_477 = arith.constant 0 : index
    %783 = vector.load %arg22[%c1_474, %c3_475, %c0_476, %c0_477] : memref<2x4x32x32xf32, #tpu.memory_space<vmem>>, vector<1x1x32x32xf32>
    %784 = vector.shape_cast %783 : vector<1x1x32x32xf32> to vector<32x32xf32>
    %c1_478 = arith.constant 1 : index
    %c3_479 = arith.constant 3 : index
    %c0_480 = arith.constant 0 : index
    %c0_481 = arith.constant 0 : index
    %785 = vector.load %arg23[%c1_478, %c3_479, %c0_480, %c0_481] : memref<2x4x1x32xf32, #tpu.memory_space<vmem>>, vector<1x1x1x32xf32>
    %786 = vector.shape_cast %785 : vector<1x1x1x32xf32> to vector<1x32xf32>
    %cst_482 = arith.constant dense<0.000000e+00> : vector<16x32xf32>
    %787 = tpu.matmul %770, %772, %cst_482 {dimension_numbers = #tpu.dot_dimension_numbers<[1], [0], [0], [1], [0, 0, 1, 1], [], []>} : vector<16x32xf32>, vector<32x32xf32>, vector<16x32xf32> -> vector<16x32xf32>
    %788 = vector.broadcast %774 : vector<1x32xf32> to vector<16x32xf32>
    %789 = arith.addf %787, %788 : vector<16x32xf32>
    %cst_483 = arith.constant dense<0.000000e+00> : vector<16x32xf32>
    %790 = tpu.matmul %365, %776, %cst_483 {dimension_numbers = #tpu.dot_dimension_numbers<[1], [0], [0], [1], [0, 0, 1, 1], [], []>} : vector<16x32xf32>, vector<32x32xf32>, vector<16x32xf32> -> vector<16x32xf32>
    %791 = vector.broadcast %778 : vector<1x32xf32> to vector<16x32xf32>
    %792 = arith.addf %790, %791 : vector<16x32xf32>
    %cst_484 = arith.constant dense<0.000000e+00> : vector<16x32xf32>
    %793 = tpu.matmul %365, %780, %cst_484 {dimension_numbers = #tpu.dot_dimension_numbers<[1], [0], [0], [1], [0, 0, 1, 1], [], []>} : vector<16x32xf32>, vector<32x32xf32>, vector<16x32xf32> -> vector<16x32xf32>
    %794 = vector.broadcast %782 : vector<1x32xf32> to vector<16x32xf32>
    %795 = arith.addf %793, %794 : vector<16x32xf32>
    %796 = vector.shape_cast %789 : vector<16x32xf32> to vector<2x8x32xf32>
    %797 = vector.shape_cast %792 : vector<16x32xf32> to vector<2x8x32xf32>
    %798 = vector.shape_cast %795 : vector<16x32xf32> to vector<2x8x32xf32>
    %cst_485 = arith.constant 0.000000e+00 : f32
    %799 = vector.broadcast %cst_485 : f32 to vector<16x32xf32>
    %800 = vector.broadcast %786 : vector<1x32xf32> to vector<16x32xf32>
    %801 = arith.addf %799, %800 : vector<16x32xf32>
    %802 = vector.extract_strided_slice %796 {offsets = [0, 0, 0], sizes = [2, 8, 16], strides = [1, 1, 1]} : vector<2x8x32xf32> to vector<2x8x16xf32>
    %803 = vector.extract_strided_slice %797 {offsets = [0, 0, 0], sizes = [2, 8, 16], strides = [1, 1, 1]} : vector<2x8x32xf32> to vector<2x8x16xf32>
    "tpu.trace_start"() <{level = 10 : i32, message = "bqd,bkd->bqk"}> : () -> ()
    %cst_486 = arith.constant dense<0.000000e+00> : vector<2x8x8xf32>
    %804 = tpu.matmul %802, %803, %cst_486 {dimension_numbers = #tpu.dot_dimension_numbers<[2], [2], [1], [1], [0, 0, 0, 1, 1, 1], [0], [0]>} : vector<2x8x16xf32>, vector<2x8x16xf32>, vector<2x8x8xf32> -> vector<2x8x8xf32>
    "tpu.trace_stop"() : () -> ()
    %cst_487 = arith.constant 2.500000e-01 : f32
    %805 = vector.broadcast %cst_487 : f32 to vector<2x8x8xf32>
    %806 = arith.mulf %804, %805 : vector<2x8x8xf32>
    %807 = vector.broadcast %7 : vector<2x1x8xf32> to vector<2x8x8xf32>
    %808 = arith.addf %806, %807 : vector<2x8x8xf32>
    %cst_488 = arith.constant dense<0xFF800000> : vector<2x8xf32>
    %809 = vector.multi_reduction <maximumf>, %808, %cst_488 [2] : vector<2x8x8xf32> to vector<2x8xf32>
    %810 = vector.shape_cast %809 : vector<2x8xf32> to vector<2x8x1xf32>
    %811 = vector.broadcast %810 : vector<2x8x1xf32> to vector<2x8x8xf32>
    %812 = arith.subf %808, %811 : vector<2x8x8xf32>
    %813 = math.exp %812 : vector<2x8x8xf32>
    %cst_489 = arith.constant dense<0.000000e+00> : vector<2x8xf32>
    %814 = vector.multi_reduction <add>, %813, %cst_489 [2] : vector<2x8x8xf32> to vector<2x8xf32>
    %815 = vector.shape_cast %814 : vector<2x8xf32> to vector<2x8x1xf32>
    %816 = tpu.reciprocal %815 {approx = true} : vector<2x8x1xf32> -> vector<2x8x1xf32>
    %817 = vector.broadcast %816 : vector<2x8x1xf32> to vector<2x8x8xf32>
    %818 = arith.mulf %813, %817 : vector<2x8x8xf32>
    %819 = vector.extract_strided_slice %798 {offsets = [0, 0, 0], sizes = [2, 8, 16], strides = [1, 1, 1]} : vector<2x8x32xf32> to vector<2x8x16xf32>
    "tpu.trace_start"() <{level = 10 : i32, message = "bqk,bkd->bqd"}> : () -> ()
    %cst_490 = arith.constant dense<0.000000e+00> : vector<2x8x16xf32>
    %820 = tpu.matmul %818, %819, %cst_490 {dimension_numbers = #tpu.dot_dimension_numbers<[2], [1], [1], [2], [0, 0, 0, 1, 1, 2], [0], [0]>} : vector<2x8x8xf32>, vector<2x8x16xf32>, vector<2x8x16xf32> -> vector<2x8x16xf32>
    "tpu.trace_stop"() : () -> ()
    %821 = vector.shape_cast %820 : vector<2x8x16xf32> to vector<16x16xf32>
    %822 = vector.extract_strided_slice %784 {offsets = [0, 0], sizes = [16, 32], strides = [1, 1]} : vector<32x32xf32> to vector<16x32xf32>
    %cst_491 = arith.constant dense<0.000000e+00> : vector<16x32xf32>
    %823 = tpu.matmul %821, %822, %cst_491 {dimension_numbers = #tpu.dot_dimension_numbers<[1], [0], [0], [1], [0, 0, 1, 1], [], []>} : vector<16x16xf32>, vector<16x32xf32>, vector<16x32xf32> -> vector<16x32xf32>
    %824 = arith.addf %801, %823 : vector<16x32xf32>
    %825 = vector.extract_strided_slice %796 {offsets = [0, 0, 16], sizes = [2, 8, 16], strides = [1, 1, 1]} : vector<2x8x32xf32> to vector<2x8x16xf32>
    %826 = vector.extract_strided_slice %797 {offsets = [0, 0, 16], sizes = [2, 8, 16], strides = [1, 1, 1]} : vector<2x8x32xf32> to vector<2x8x16xf32>
    "tpu.trace_start"() <{level = 10 : i32, message = "bqd,bkd->bqk"}> : () -> ()
    %cst_492 = arith.constant dense<0.000000e+00> : vector<2x8x8xf32>
    %827 = tpu.matmul %825, %826, %cst_492 {dimension_numbers = #tpu.dot_dimension_numbers<[2], [2], [1], [1], [0, 0, 0, 1, 1, 1], [0], [0]>} : vector<2x8x16xf32>, vector<2x8x16xf32>, vector<2x8x8xf32> -> vector<2x8x8xf32>
    "tpu.trace_stop"() : () -> ()
    %cst_493 = arith.constant 2.500000e-01 : f32
    %828 = vector.broadcast %cst_493 : f32 to vector<2x8x8xf32>
    %829 = arith.mulf %827, %828 : vector<2x8x8xf32>
    %830 = vector.broadcast %7 : vector<2x1x8xf32> to vector<2x8x8xf32>
    %831 = arith.addf %829, %830 : vector<2x8x8xf32>
    %cst_494 = arith.constant dense<0xFF800000> : vector<2x8xf32>
    %832 = vector.multi_reduction <maximumf>, %831, %cst_494 [2] : vector<2x8x8xf32> to vector<2x8xf32>
    %833 = vector.shape_cast %832 : vector<2x8xf32> to vector<2x8x1xf32>
    %834 = vector.broadcast %833 : vector<2x8x1xf32> to vector<2x8x8xf32>
    %835 = arith.subf %831, %834 : vector<2x8x8xf32>
    %836 = math.exp %835 : vector<2x8x8xf32>
    %cst_495 = arith.constant dense<0.000000e+00> : vector<2x8xf32>
    %837 = vector.multi_reduction <add>, %836, %cst_495 [2] : vector<2x8x8xf32> to vector<2x8xf32>
    %838 = vector.shape_cast %837 : vector<2x8xf32> to vector<2x8x1xf32>
    %839 = tpu.reciprocal %838 {approx = true} : vector<2x8x1xf32> -> vector<2x8x1xf32>
    %840 = vector.broadcast %839 : vector<2x8x1xf32> to vector<2x8x8xf32>
    %841 = arith.mulf %836, %840 : vector<2x8x8xf32>
    %842 = vector.extract_strided_slice %798 {offsets = [0, 0, 16], sizes = [2, 8, 16], strides = [1, 1, 1]} : vector<2x8x32xf32> to vector<2x8x16xf32>
    "tpu.trace_start"() <{level = 10 : i32, message = "bqk,bkd->bqd"}> : () -> ()
    %cst_496 = arith.constant dense<0.000000e+00> : vector<2x8x16xf32>
    %843 = tpu.matmul %841, %842, %cst_496 {dimension_numbers = #tpu.dot_dimension_numbers<[2], [1], [1], [2], [0, 0, 0, 1, 1, 2], [0], [0]>} : vector<2x8x8xf32>, vector<2x8x16xf32>, vector<2x8x16xf32> -> vector<2x8x16xf32>
    "tpu.trace_stop"() : () -> ()
    %844 = vector.shape_cast %843 : vector<2x8x16xf32> to vector<16x16xf32>
    %845 = vector.extract_strided_slice %784 {offsets = [16, 0], sizes = [16, 32], strides = [1, 1]} : vector<32x32xf32> to vector<16x32xf32>
    %cst_497 = arith.constant dense<0.000000e+00> : vector<16x32xf32>
    %846 = tpu.matmul %844, %845, %cst_497 {dimension_numbers = #tpu.dot_dimension_numbers<[1], [0], [0], [1], [0, 0, 1, 1], [], []>} : vector<16x16xf32>, vector<16x32xf32>, vector<16x32xf32> -> vector<16x32xf32>
    %847 = arith.addf %824, %846 : vector<16x32xf32>
    %848 = arith.addf %746, %847 : vector<16x32xf32>
    %c1_498 = arith.constant 1 : index
    %c4_499 = arith.constant 4 : index
    %c0_500 = arith.constant 0 : index
    %c0_501 = arith.constant 0 : index
    %849 = vector.load %arg19[%c1_498, %c4_499, %c0_500, %c0_501] : memref<2x6x1x32xf32, #tpu.memory_space<vmem>>, vector<1x1x1x32xf32>
    %850 = vector.shape_cast %849 : vector<1x1x1x32xf32> to vector<1x32xf32>
    %c1_502 = arith.constant 1 : index
    %c5_503 = arith.constant 5 : index
    %c0_504 = arith.constant 0 : index
    %c0_505 = arith.constant 0 : index
    %851 = vector.load %arg19[%c1_502, %c5_503, %c0_504, %c0_505] : memref<2x6x1x32xf32, #tpu.memory_space<vmem>>, vector<1x1x1x32xf32>
    %852 = vector.shape_cast %851 : vector<1x1x1x32xf32> to vector<1x32xf32>
    %cst_506 = arith.constant dense<0.000000e+00> : vector<16xf32>
    %853 = vector.multi_reduction <add>, %848, %cst_506 [1] : vector<16x32xf32> to vector<16xf32>
    %854 = vector.shape_cast %853 : vector<16xf32> to vector<16x1xf32>
    %cst_507 = arith.constant 3.200000e+01 : f32
    %855 = vector.broadcast %cst_507 : f32 to vector<16x1xf32>
    %856 = arith.divf %854, %855 : vector<16x1xf32>
    %857 = vector.broadcast %856 : vector<16x1xf32> to vector<16x32xf32>
    %858 = arith.subf %848, %857 : vector<16x32xf32>
    %859 = arith.mulf %858, %858 : vector<16x32xf32>
    %cst_508 = arith.constant dense<0.000000e+00> : vector<16xf32>
    %860 = vector.multi_reduction <add>, %859, %cst_508 [1] : vector<16x32xf32> to vector<16xf32>
    %861 = vector.shape_cast %860 : vector<16xf32> to vector<16x1xf32>
    %cst_509 = arith.constant 3.200000e+01 : f32
    %862 = vector.broadcast %cst_509 : f32 to vector<16x1xf32>
    %863 = arith.divf %861, %862 : vector<16x1xf32>
    %cst_510 = arith.constant 9.99999974E-6 : f32
    %864 = vector.broadcast %cst_510 : f32 to vector<16x1xf32>
    %865 = arith.addf %863, %864 : vector<16x1xf32>
    %866 = math.rsqrt %865 : vector<16x1xf32>
    %867 = vector.broadcast %866 : vector<16x1xf32> to vector<16x32xf32>
    %868 = arith.mulf %858, %867 : vector<16x32xf32>
    %869 = vector.broadcast %850 : vector<1x32xf32> to vector<16x32xf32>
    %870 = arith.mulf %868, %869 : vector<16x32xf32>
    %871 = vector.broadcast %852 : vector<1x32xf32> to vector<16x32xf32>
    %872 = arith.addf %870, %871 : vector<16x32xf32>
    %c1_511 = arith.constant 1 : index
    %c0_512 = arith.constant 0 : index
    %c0_513 = arith.constant 0 : index
    %873 = vector.load %arg24[%c1_511, %c0_512, %c0_513] : memref<2x32x64xf32, #tpu.memory_space<vmem>>, vector<1x32x64xf32>
    %874 = vector.shape_cast %873 : vector<1x32x64xf32> to vector<32x64xf32>
    %cst_514 = arith.constant dense<0.000000e+00> : vector<16x64xf32>
    %875 = tpu.matmul %872, %874, %cst_514 {dimension_numbers = #tpu.dot_dimension_numbers<[1], [0], [0], [1], [0, 0, 1, 1], [], []>} : vector<16x32xf32>, vector<32x64xf32>, vector<16x64xf32> -> vector<16x64xf32>
    %c1_515 = arith.constant 1 : index
    %c0_516 = arith.constant 0 : index
    %c0_517 = arith.constant 0 : index
    %876 = vector.load %arg25[%c1_515, %c0_516, %c0_517] : memref<2x1x64xf32, #tpu.memory_space<vmem>>, vector<1x1x64xf32>
    %877 = vector.shape_cast %876 : vector<1x1x64xf32> to vector<1x64xf32>
    %878 = vector.broadcast %877 : vector<1x64xf32> to vector<16x64xf32>
    %879 = arith.addf %875, %878 : vector<16x64xf32>
    %880 = arith.mulf %879, %879 : vector<16x64xf32>
    %881 = arith.mulf %879, %880 : vector<16x64xf32>
    %cst_518 = arith.constant 4.471500e-02 : f32
    %882 = vector.broadcast %cst_518 : f32 to vector<16x64xf32>
    %883 = arith.mulf %882, %881 : vector<16x64xf32>
    %884 = arith.addf %879, %883 : vector<16x64xf32>
    %cst_519 = arith.constant 0.797884583 : f32
    %885 = vector.broadcast %cst_519 : f32 to vector<16x64xf32>
    %886 = arith.mulf %885, %884 : vector<16x64xf32>
    %887 = math.tanh %886 : vector<16x64xf32>
    %cst_520 = arith.constant 1.000000e+00 : f32
    %888 = vector.broadcast %cst_520 : f32 to vector<16x64xf32>
    %889 = arith.addf %888, %887 : vector<16x64xf32>
    %cst_521 = arith.constant 5.000000e-01 : f32
    %890 = vector.broadcast %cst_521 : f32 to vector<16x64xf32>
    %891 = arith.mulf %890, %889 : vector<16x64xf32>
    %892 = arith.mulf %879, %891 : vector<16x64xf32>
    %c1_522 = arith.constant 1 : index
    %c0_523 = arith.constant 0 : index
    %c0_524 = arith.constant 0 : index
    %893 = vector.load %arg26[%c1_522, %c0_523, %c0_524] : memref<2x64x32xf32, #tpu.memory_space<vmem>>, vector<1x64x32xf32>
    %894 = vector.shape_cast %893 : vector<1x64x32xf32> to vector<64x32xf32>
    %cst_525 = arith.constant dense<0.000000e+00> : vector<16x32xf32>
    %895 = tpu.matmul %892, %894, %cst_525 {dimension_numbers = #tpu.dot_dimension_numbers<[1], [0], [0], [1], [0, 0, 1, 1], [], []>} : vector<16x64xf32>, vector<64x32xf32>, vector<16x32xf32> -> vector<16x32xf32>
    %896 = arith.addf %848, %895 : vector<16x32xf32>
    %c1_526 = arith.constant 1 : index
    %c0_527 = arith.constant 0 : index
    %c0_528 = arith.constant 0 : index
    %897 = vector.load %arg27[%c1_526, %c0_527, %c0_528] : memref<2x1x32xf32, #tpu.memory_space<vmem>>, vector<1x1x32xf32>
    %898 = vector.shape_cast %897 : vector<1x1x32xf32> to vector<1x32xf32>
    %899 = vector.broadcast %898 : vector<1x32xf32> to vector<16x32xf32>
    %900 = arith.addf %896, %899 : vector<16x32xf32>
    %c0_529 = arith.constant 0 : index
    %c0_530 = arith.constant 0 : index
    %c0_531 = arith.constant 0 : index
    %901 = vector.load %arg28[%c0_529, %c0_530, %c0_531] : memref<2x1x32xf32, #tpu.memory_space<vmem>>, vector<1x1x32xf32>
    %902 = vector.shape_cast %901 : vector<1x1x32xf32> to vector<1x32xf32>
    %c1_532 = arith.constant 1 : index
    %c0_533 = arith.constant 0 : index
    %c0_534 = arith.constant 0 : index
    %903 = vector.load %arg28[%c1_532, %c0_533, %c0_534] : memref<2x1x32xf32, #tpu.memory_space<vmem>>, vector<1x1x32xf32>
    %904 = vector.shape_cast %903 : vector<1x1x32xf32> to vector<1x32xf32>
    %cst_535 = arith.constant dense<0.000000e+00> : vector<16xf32>
    %905 = vector.multi_reduction <add>, %900, %cst_535 [1] : vector<16x32xf32> to vector<16xf32>
    %906 = vector.shape_cast %905 : vector<16xf32> to vector<16x1xf32>
    %cst_536 = arith.constant 3.200000e+01 : f32
    %907 = vector.broadcast %cst_536 : f32 to vector<16x1xf32>
    %908 = arith.divf %906, %907 : vector<16x1xf32>
    %909 = vector.broadcast %908 : vector<16x1xf32> to vector<16x32xf32>
    %910 = arith.subf %900, %909 : vector<16x32xf32>
    %911 = arith.mulf %910, %910 : vector<16x32xf32>
    %cst_537 = arith.constant dense<0.000000e+00> : vector<16xf32>
    %912 = vector.multi_reduction <add>, %911, %cst_537 [1] : vector<16x32xf32> to vector<16xf32>
    %913 = vector.shape_cast %912 : vector<16xf32> to vector<16x1xf32>
    %cst_538 = arith.constant 3.200000e+01 : f32
    %914 = vector.broadcast %cst_538 : f32 to vector<16x1xf32>
    %915 = arith.divf %913, %914 : vector<16x1xf32>
    %cst_539 = arith.constant 9.99999974E-6 : f32
    %916 = vector.broadcast %cst_539 : f32 to vector<16x1xf32>
    %917 = arith.addf %915, %916 : vector<16x1xf32>
    %918 = math.rsqrt %917 : vector<16x1xf32>
    %919 = vector.broadcast %918 : vector<16x1xf32> to vector<16x32xf32>
    %920 = arith.mulf %910, %919 : vector<16x32xf32>
    %921 = vector.broadcast %902 : vector<1x32xf32> to vector<16x32xf32>
    %922 = arith.mulf %920, %921 : vector<16x32xf32>
    %923 = vector.broadcast %904 : vector<1x32xf32> to vector<16x32xf32>
    %924 = arith.addf %922, %923 : vector<16x32xf32>
    %c0_540 = arith.constant 0 : index
    %c0_541 = arith.constant 0 : index
    %925 = vector.load %arg29[%c0_540, %c0_541] : memref<32x16xf32, #tpu.memory_space<vmem>>, vector<32x16xf32>
    %cst_542 = arith.constant dense<0.000000e+00> : vector<16x16xf32>
    %926 = tpu.matmul %924, %925, %cst_542 {dimension_numbers = #tpu.dot_dimension_numbers<[1], [0], [0], [1], [0, 0, 1, 1], [], []>} : vector<16x32xf32>, vector<32x16xf32>, vector<16x16xf32> -> vector<16x16xf32>
    %c0_543 = arith.constant 0 : index
    %c0_544 = arith.constant 0 : index
    %927 = vector.load %arg30[%c0_543, %c0_544] : memref<1x16xf32, #tpu.memory_space<vmem>>, vector<1x16xf32>
    %928 = vector.broadcast %927 : vector<1x16xf32> to vector<16x16xf32>
    %929 = arith.addf %926, %928 : vector<16x16xf32>
    %c0_545 = arith.constant 0 : index
    %c0_546 = arith.constant 0 : index
    %930 = vector.load %arg31[%c0_545, %c0_546] : memref<16x16xf32, #tpu.memory_space<vmem>>, vector<16x16xf32>
    tpu.vector_store %arg31[%c0_545, %c0_546], %929 {strides = array<i32>} : memref<16x16xf32, #tpu.memory_space<vmem>>, vector<16x16xf32>,
    return
  }
}

</mosaic_0001>

<llo_original>
// kernel: tpu_custom_call.1
$region0: #{tpu_custom_call.1}
  #allocation0 [shape = 'u32[]', space=smem, size = 0x4, offset = 0x4, fixed_abs, tag = 'smem constant byte address 0x4 - core index']
  #allocation1 [shape = 'u32[72,128]{1,0:T(1,128)}', space=vmem, size = 0x9000, scoped, tag = 'internal scratch']
  %s0 = inlined_call_operand.smem [shape: u32[33], index: -1, kind: input, shape index: {}]
  %s1 = sld [smem:[%s0]]
  %s2 = scalar_lea.smem %s0, 1
  %s3 = sld [smem:[%s2]]
  %s4 = scalar_lea.smem %s0, 2
  %s5 = sld [smem:[%s4]]
  %s6 = scalar_lea.smem %s0, 3
  %s7 = sld [smem:[%s6]]
  %s8 = scalar_lea.smem %s0, 4
  %s9 = sld [smem:[%s8]]
  %s10 = scalar_lea.smem %s0, 5
  %s11 = sld [smem:[%s10]]
  %s12 = scalar_lea.smem %s0, 6
  %s13 = sld [smem:[%s12]]
  %s14 = scalar_lea.smem %s0, 7
  %s15 = sld [smem:[%s14]]
  %s16 = scalar_lea.smem %s0, 8
  %s17 = sld [smem:[%s16]]
  %s18 = scalar_lea.smem %s0, 9
  %s19 = sld [smem:[%s18]]
  %s20 = scalar_lea.smem %s0, 10
  %s21 = sld [smem:[%s20]]
  %s22 = scalar_lea.smem %s0, 11
  %s23 = sld [smem:[%s22]]
  %s24 = scalar_lea.smem %s0, 12
  %s25 = sld [smem:[%s24]]
  %s26 = scalar_lea.smem %s0, 13
  %s27 = sld [smem:[%s26]]
  %s28 = scalar_lea.smem %s0, 14
  %s29 = sld [smem:[%s28]]
  %s30 = scalar_lea.smem %s0, 15
  %s31 = sld [smem:[%s30]]
  %s32 = scalar_lea.smem %s0, 16
  %s33 = sld [smem:[%s32]]
  %s34 = scalar_lea.smem %s0, 17
  %s35 = sld [smem:[%s34]]
  %s36 = scalar_lea.smem %s0, 18
  %s37 = sld [smem:[%s36]]
  %s38 = scalar_lea.smem %s0, 19
  %s39 = sld [smem:[%s38]]
  %s40 = scalar_lea.smem %s0, 20
  %s41 = sld [smem:[%s40]]
  %s42 = scalar_lea.smem %s0, 21
  %s43 = sld [smem:[%s42]]
  %s44 = scalar_lea.smem %s0, 22
  %s45 = sld [smem:[%s44]]
  %s46 = scalar_lea.smem %s0, 23
  %s47 = sld [smem:[%s46]]
  %s48 = scalar_lea.smem %s0, 24
  %s49 = sld [smem:[%s48]]
  %s50 = scalar_lea.smem %s0, 25
  %s51 = sld [smem:[%s50]]
  %s52 = scalar_lea.smem %s0, 26
  %s53 = sld [smem:[%s52]]
  %s54 = scalar_lea.smem %s0, 27
  %s55 = sld [smem:[%s54]]
  %s56 = scalar_lea.smem %s0, 28
  %s57 = sld [smem:[%s56]]
  %s58 = scalar_lea.smem %s0, 29
  %s59 = sld [smem:[%s58]]
  %s60 = scalar_lea.smem %s0, 30
  %s61 = sld [smem:[%s60]]
  %s62 = scalar_lea.smem %s0, 31
  %s63 = sld [smem:[%s62]]
  %s64 = scalar_lea.smem %s0, 32
  %s65 = sld [smem:[%s64]]
  %66 = xla_tuple %s63, %s65
  %s67 = sld [smem:[#allocation0]]
  $region222: #{tpu_custom_call.1} parent=0
    _
  %s69 = ssub.s32 1, %s67
  %s70 = scalar_select 0, %s69, %s67
  $region1: #{tpu_custom_call.1} parent=0
    #allocation2 [shape = 'u8[8192]{0}', space=vmem, size = 0x2000, scoped, tag = 'input window, operand 1, single buffered']
    #allocation3 [shape = 's32[1]{0}', space=sflag, size = 0x4, scoped, tag = 'scoped memory for tpu_custom_call.1']
    #allocation4 [shape = 's32[1]{0}', space=sflag, size = 0x4, scoped, tag = 'scoped memory for tpu_custom_call.1']
    #allocation5 [shape = 'u8[8192]{0}', space=vmem, size = 0x2000, scoped, tag = 'input window, operand 4, single buffered']
    #allocation6 [shape = 's32[1]{0}', space=sflag, size = 0x4, scoped, tag = 'scoped memory for tpu_custom_call.1']
    #allocation7 [shape = 'u8[8192]{0}', space=vmem, size = 0x2000, scoped, tag = 'input window, operand 5, single buffered']
    #allocation8 [shape = 'u8[16384]{0}', space=vmem, size = 0x4000, scoped, tag = 'input window, operand 6, single buffered']
    #allocation9 [shape = 's32[1]{0}', space=sflag, size = 0x4, scoped, tag = 'scoped memory for tpu_custom_call.1']
    #allocation10 [shape = 'u8[512]{0}', space=vmem, size = 0x400, scoped, tag = 'input window, operand 7, single buffered']
    #allocation11 [shape = 'u8[8192]{0}', space=vmem, size = 0x2000, scoped, tag = 'input window, operand 8, single buffered']
    #allocation12 [shape = 's32[1]{0}', space=sflag, size = 0x4, scoped, tag = 'scoped memory for tpu_custom_call.1']
    #allocation13 [shape = 'u8[4096]{0}', space=vmem, size = 0x1000, scoped, tag = 'input window, operand 9, single buffered']
    #allocation14 [shape = 'u8[4096]{0}', space=vmem, size = 0x1000, scoped, tag = 'input window, operand 11, single buffered']
    #allocation15 [shape = 's32[1]{0}', space=sflag, size = 0x4, scoped, tag = 'scoped memory for tpu_custom_call.1']
    #allocation16 [shape = 'u8[32768]{0}', space=vmem, size = 0x8000, scoped, tag = 'input window, operand 12, single buffered']
    #allocation17 [shape = 'u8[1024]{0}', space=vmem, size = 0x400, scoped, tag = 'input window, operand 13, single buffered']
    #allocation18 [shape = 's32[1]{0}', space=sflag, size = 0x4, scoped, tag = 'scoped memory for tpu_custom_call.1']
    #allocation19 [shape = 'u8[1024]{0}', space=vmem, size = 0x400, scoped, tag = 'input window, operand 15, single buffered']
    #allocation20 [shape = 'u8[1024]{0}', space=vmem, size = 0x400, scoped, tag = 'input window, operand 16, single buffered']
    #allocation21 [shape = 's32[1]{0}', space=sflag, size = 0x4, scoped, tag = 'scoped memory for tpu_custom_call.1']
    #allocation22 [shape = 'u8[6144]{0}', space=vmem, size = 0x1800, scoped, tag = 'input window, operand 19, single buffered']
    #allocation23 [shape = 'u8[4096]{0}', space=vmem, size = 0x1000, scoped, tag = 'input window, operand 21, single buffered']
    #allocation24 [shape = 's32[1]{0}', space=sflag, size = 0x4, scoped, tag = 'scoped memory for tpu_custom_call.1']
    #allocation25 [shape = 'u8[131072]{0}', space=vmem, size = 0x20000, scoped, tag = 'input window, operand 22, single buffered']
    #allocation26 [shape = 'u8[4096]{0}', space=vmem, size = 0x1000, scoped, tag = 'input window, operand 23, single buffered']
    #allocation27 [shape = 's32[1]{0}', space=sflag, size = 0x4, scoped, tag = 'scoped memory for tpu_custom_call.1']
    #allocation28 [shape = 'u8[32768]{0}', space=vmem, size = 0x8000, scoped, tag = 'input window, operand 24, single buffered']
    #allocation29 [shape = 'u8[1024]{0}', space=vmem, size = 0x400, scoped, tag = 'input window, operand 25, single buffered']
    #allocation30 [shape = 's32[1]{0}', space=sflag, size = 0x4, scoped, tag = 'scoped memory for tpu_custom_call.1']
    #allocation31 [shape = 'u8[1024]{0}', space=vmem, size = 0x400, scoped, tag = 'input window, operand 27, single buffered']
    #allocation32 [shape = 'u8[1024]{0}', space=vmem, size = 0x400, scoped, tag = 'input window, operand 28, single buffered']
    #allocation33 [shape = 's32[1]{0}', space=sflag, size = 0x4, scoped, tag = 'scoped memory for tpu_custom_call.1']
    #allocation34 [shape = 'u8[8192]{0}', space=vmem, size = 0x2000, scoped, tag = 'output window, operand 0, single buffered']
    #allocation35 [shape = 'u8[8192]{0}', space=vmem, size = 0x2000, scoped, tag = 'output window, operand 1, single buffered']
    #allocation36 [shape = 's32[1]{0}', space=sflag, size = 0x4, scoped, tag = 'scoped memory for tpu_custom_call.1']
    %71 = vsyncpa [#allocation3], 0
    %72 = vsyncpa [#allocation6], 0
    %73 = vsyncpa [#allocation9], 0
    %74 = vsyncpa [#allocation12], 0
    %75 = vsyncpa [#allocation15], 0
    %76 = vsyncpa [#allocation18], 0
    %77 = vsyncpa [#allocation21], 0
    %78 = vsyncpa [#allocation24], 0
    %79 = vsyncpa [#allocation27], 0
    %80 = vsyncpa [#allocation30], 0
    %81 = vsyncpa [#allocation33], 0
    %82 = vsyncpa [#allocation4], 0
    %83 = vsyncpa [#allocation36], 0
    // Predicated region
    $region2: #{tpu_custom_call.1} parent=1 // pred_check
      _
    $region3: #{tpu_custom_call.1} parent=1 // pred_check_branch
      %85 = sbr.rel (0) target = $region5
    $region4: #{tpu_custom_call.1} parent=1 // pred_region
      _
    $region5: #{tpu_custom_call.1} parent=1 // pred_fallthru
      _
    // Predicated region
    $region6: #{tpu_custom_call.1} parent=1 // pred_check
      _
    $region7: #{tpu_custom_call.1} parent=1 // pred_check_branch
      %87 = sbr.rel (0) target = $region9
    $region8: #{tpu_custom_call.1} parent=1 // pred_region
      %89 = vsyncadd [#allocation3], 0
      %s90 = sshll.u32 %s3, 4
      %s91 = int_to_ptr.hbm [resolvable:$true] %s90
      %s92 = sshll.u32 [#allocation2], 4
      %s93 = int_to_ptr.vmem [resolvable:$true] %s92
      %98 = dma.hbm_to_vmem [thread:$0]  %s91, 256, %s93, [#allocation3], 128, 128, 8
    $region9: #{tpu_custom_call.1} parent=1 // pred_fallthru
      _
    // Predicated region
    $region10: #{tpu_custom_call.1} parent=1 // pred_check
      _
    $region11: #{tpu_custom_call.1} parent=1 // pred_check_branch
      %100 = sbr.rel (0) target = $region13
    $region12: #{tpu_custom_call.1} parent=1 // pred_region
      _
    $region13: #{tpu_custom_call.1} parent=1 // pred_fallthru
      _
    // Predicated region
    $region14: #{tpu_custom_call.1} parent=1 // pred_check
      _
    $region15: #{tpu_custom_call.1} parent=1 // pred_check_branch
      %102 = sbr.rel (0) target = $region17
    $region16: #{tpu_custom_call.1} parent=1 // pred_region
      _
    $region17: #{tpu_custom_call.1} parent=1 // pred_fallthru
      _
    // Predicated region
    $region18: #{tpu_custom_call.1} parent=1 // pred_check
      _
    $region19: #{tpu_custom_call.1} parent=1 // pred_check_branch
      %104 = sbr.rel (0) target = $region21
    $region20: #{tpu_custom_call.1} parent=1 // pred_region
      %106 = vsyncadd [#allocation6], 0
      %s107 = sshll.u32 %s9, 4
      %s108 = int_to_ptr.hbm [resolvable:$true] %s107
      %s109 = sshll.u32 [#allocation5], 4
      %s110 = int_to_ptr.vmem [resolvable:$true] %s109
      %115 = dma.hbm_to_vmem [thread:$0]  %s108, 256, %s110, [#allocation6], 128, 128, 8
    $region21: #{tpu_custom_call.1} parent=1 // pred_fallthru
      _
    // Predicated region
    $region22: #{tpu_custom_call.1} parent=1 // pred_check
      _
    $region23: #{tpu_custom_call.1} parent=1 // pred_check_branch
      %117 = sbr.rel (0) target = $region25
    $region24: #{tpu_custom_call.1} parent=1 // pred_region
      %119 = vsyncadd [#allocation6], 0
      %s120 = sshll.u32 %s11, 4
      %s121 = int_to_ptr.hbm [resolvable:$true] %s120
      %s122 = sshll.u32 [#allocation7], 4
      %s123 = int_to_ptr.vmem [resolvable:$true] %s122
      %128 = dma.hbm_to_vmem [thread:$0]  %s121, 256, %s123, [#allocation6], 128, 128, 8
    $region25: #{tpu_custom_call.1} parent=1 // pred_fallthru
      _
    // Predicated region
    $region26: #{tpu_custom_call.1} parent=1 // pred_check
      _
    $region27: #{tpu_custom_call.1} parent=1 // pred_check_branch
      %130 = sbr.rel (0) target = $region29
    $region28: #{tpu_custom_call.1} parent=1 // pred_region
      %132 = vsyncadd [#allocation9], 0
      %s133 = sshll.u32 %s13, 4
      %s134 = int_to_ptr.hbm [resolvable:$true] %s133
      %s135 = sshll.u32 [#allocation8], 4
      %s136 = int_to_ptr.vmem [resolvable:$true] %s135
      %141 = dma.hbm_to_vmem [thread:$0]  %s134, 512, %s136, [#allocation9], 128, 128, 8
    $region29: #{tpu_custom_call.1} parent=1 // pred_fallthru
      _
    // Predicated region
    $region30: #{tpu_custom_call.1} parent=1 // pred_check
      _
    $region31: #{tpu_custom_call.1} parent=1 // pred_check_branch
      %143 = sbr.rel (0) target = $region33
    $region32: #{tpu_custom_call.1} parent=1 // pred_region
      %145 = vsyncadd [#allocation9], 0
      %s147 = sshll.u32 %s15, 4
      %s148 = int_to_ptr.hbm [resolvable:$true] %s147
      %s149 = sshll.u32 [#allocation10], 4
      %s150 = int_to_ptr.vmem [resolvable:$true] %s149
      %152 = dma.hbm_to_vmem [thread:$0]  %s148, 16, %s150, [#allocation9]
    $region33: #{tpu_custom_call.1} parent=1 // pred_fallthru
      _
    // Predicated region
    $region34: #{tpu_custom_call.1} parent=1 // pred_check
      _
    $region35: #{tpu_custom_call.1} parent=1 // pred_check_branch
      %154 = sbr.rel (0) target = $region37
    $region36: #{tpu_custom_call.1} parent=1 // pred_region
      %156 = vsyncadd [#allocation12], 0
      %s157 = sshll.u32 %s17, 4
      %s158 = int_to_ptr.hbm [resolvable:$true] %s157
      %s159 = sshll.u32 [#allocation11], 4
      %s160 = int_to_ptr.vmem [resolvable:$true] %s159
      %165 = dma.hbm_to_vmem [thread:$0]  %s158, 256, %s160, [#allocation12], 128, 128, 8
    $region37: #{tpu_custom_call.1} parent=1 // pred_fallthru
      _
    // Predicated region
    $region38: #{tpu_custom_call.1} parent=1 // pred_check
      _
    $region39: #{tpu_custom_call.1} parent=1 // pred_check_branch
      %167 = sbr.rel (0) target = $region41
    $region40: #{tpu_custom_call.1} parent=1 // pred_region
      %169 = vsyncadd [#allocation12], 0
      %s170 = sshll.u32 %s19, 4
      %s171 = int_to_ptr.hbm [resolvable:$true] %s170
      %s172 = sshll.u32 [#allocation13], 4
      %s173 = int_to_ptr.vmem [resolvable:$true] %s172
      %178 = dma.hbm_to_vmem [thread:$0]  %s171, 128, %s173, [#allocation12], 16, 16, 1
    $region41: #{tpu_custom_call.1} parent=1 // pred_fallthru
      _
    // Predicated region
    $region42: #{tpu_custom_call.1} parent=1 // pred_check
      _
    $region43: #{tpu_custom_call.1} parent=1 // pred_check_branch
      %180 = sbr.rel (0) target = $region45
    $region44: #{tpu_custom_call.1} parent=1 // pred_region
      _
    $region45: #{tpu_custom_call.1} parent=1 // pred_fallthru
      _
    // Predicated region
    $region46: #{tpu_custom_call.1} parent=1 // pred_check
      _
    $region47: #{tpu_custom_call.1} parent=1 // pred_check_branch
      %182 = sbr.rel (0) target = $region49
    $region48: #{tpu_custom_call.1} parent=1 // pred_region
      %184 = vsyncadd [#allocation15], 0
      %s185 = sshll.u32 %s23, 4
      %s186 = int_to_ptr.hbm [resolvable:$true] %s185
      %s187 = sshll.u32 [#allocation14], 4
      %s188 = int_to_ptr.vmem [resolvable:$true] %s187
      %193 = dma.hbm_to_vmem [thread:$0]  %s186, 128, %s188, [#allocation15], 16, 16, 1
    $region49: #{tpu_custom_call.1} parent=1 // pred_fallthru
      _
    // Predicated region
    $region50: #{tpu_custom_call.1} parent=1 // pred_check
      _
    $region51: #{tpu_custom_call.1} parent=1 // pred_check_branch
      %195 = sbr.rel (0) target = $region53
    $region52: #{tpu_custom_call.1} parent=1 // pred_region
      %197 = vsyncadd [#allocation15], 0
      %s198 = sshll.u32 %s25, 4
      %s199 = int_to_ptr.hbm [resolvable:$true] %s198
      %s200 = sshll.u32 [#allocation16], 4
      %s201 = int_to_ptr.vmem [resolvable:$true] %s200
      %206 = dma.hbm_to_vmem [thread:$0]  %s199, 1024, %s201, [#allocation15], 128, 128, 8
    $region53: #{tpu_custom_call.1} parent=1 // pred_fallthru
      _
    // Predicated region
    $region54: #{tpu_custom_call.1} parent=1 // pred_check
      _
    $region55: #{tpu_custom_call.1} parent=1 // pred_check_branch
      %208 = sbr.rel (0) target = $region57
    $region56: #{tpu_custom_call.1} parent=1 // pred_region
      %210 = vsyncadd [#allocation18], 0
      %s211 = sshll.u32 %s27, 4
      %s212 = int_to_ptr.hbm [resolvable:$true] %s211
      %s213 = sshll.u32 [#allocation17], 4
      %s214 = int_to_ptr.vmem [resolvable:$true] %s213
      %219 = dma.hbm_to_vmem [thread:$0]  %s212, 32, %s214, [#allocation18], 16, 16, 1
    $region57: #{tpu_custom_call.1} parent=1 // pred_fallthru
      _
    // Predicated region
    $region58: #{tpu_custom_call.1} parent=1 // pred_check
      _
    $region59: #{tpu_custom_call.1} parent=1 // pred_check_branch
      %221 = sbr.rel (0) target = $region61
    $region60: #{tpu_custom_call.1} parent=1 // pred_region
      _
    $region61: #{tpu_custom_call.1} parent=1 // pred_fallthru
      _
    // Predicated region
    $region62: #{tpu_custom_call.1} parent=1 // pred_check
      _
    $region63: #{tpu_custom_call.1} parent=1 // pred_check_branch
      %223 = sbr.rel (0) target = $region65
    $region64: #{tpu_custom_call.1} parent=1 // pred_region
      %225 = vsyncadd [#allocation18], 0
      %s226 = sshll.u32 %s31, 4
      %s227 = int_to_ptr.hbm [resolvable:$true] %s226
      %s228 = sshll.u32 [#allocation19], 4
      %s229 = int_to_ptr.vmem [resolvable:$true] %s228
      %234 = dma.hbm_to_vmem [thread:$0]  %s227, 32, %s229, [#allocation18], 16, 16, 1
    $region65: #{tpu_custom_call.1} parent=1 // pred_fallthru
      _
    // Predicated region
    $region66: #{tpu_custom_call.1} parent=1 // pred_check
      _
    $region67: #{tpu_custom_call.1} parent=1 // pred_check_branch
      %236 = sbr.rel (0) target = $region69
    $region68: #{tpu_custom_call.1} parent=1 // pred_region
      %238 = vsyncadd [#allocation21], 0
      %s239 = sshll.u32 %s33, 4
      %s240 = int_to_ptr.hbm [resolvable:$true] %s239
      %s241 = sshll.u32 [#allocation20], 4
      %s242 = int_to_ptr.vmem [resolvable:$true] %s241
      %247 = dma.hbm_to_vmem [thread:$0]  %s240, 32, %s242, [#allocation21], 16, 16, 1
    $region69: #{tpu_custom_call.1} parent=1 // pred_fallthru
      _
    // Predicated region
    $region70: #{tpu_custom_call.1} parent=1 // pred_check
      _
    $region71: #{tpu_custom_call.1} parent=1 // pred_check_branch
      %249 = sbr.rel (0) target = $region73
    $region72: #{tpu_custom_call.1} parent=1 // pred_region
      _
    $region73: #{tpu_custom_call.1} parent=1 // pred_fallthru
      _
    // Predicated region
    $region74: #{tpu_custom_call.1} parent=1 // pred_check
      _
    $region75: #{tpu_custom_call.1} parent=1 // pred_check_branch
      %251 = sbr.rel (0) target = $region77
    $region76: #{tpu_custom_call.1} parent=1 // pred_region
      _
    $region77: #{tpu_custom_call.1} parent=1 // pred_fallthru
      _
    // Predicated region
    $region78: #{tpu_custom_call.1} parent=1 // pred_check
      _
    $region79: #{tpu_custom_call.1} parent=1 // pred_check_branch
      %253 = sbr.rel (0) target = $region81
    $region80: #{tpu_custom_call.1} parent=1 // pred_region
      %255 = vsyncadd [#allocation21], 0
      %s256 = sshll.u32 %s39, 4
      %s257 = int_to_ptr.hbm [resolvable:$true] %s256
      %s258 = sshll.u32 [#allocation22], 4
      %s259 = int_to_ptr.vmem [resolvable:$true] %s258
      %264 = dma.hbm_to_vmem [thread:$0]  %s257, 192, %s259, [#allocation21], 16, 16, 1
    $region81: #{tpu_custom_call.1} parent=1 // pred_fallthru
      _
    // Predicated region
    $region82: #{tpu_custom_call.1} parent=1 // pred_check
      _
    $region83: #{tpu_custom_call.1} parent=1 // pred_check_branch
      %266 = sbr.rel (0) target = $region85
    $region84: #{tpu_custom_call.1} parent=1 // pred_region
      _
    $region85: #{tpu_custom_call.1} parent=1 // pred_fallthru
      _
    // Predicated region
    $region86: #{tpu_custom_call.1} parent=1 // pred_check
      _
    $region87: #{tpu_custom_call.1} parent=1 // pred_check_branch
      %268 = sbr.rel (0) target = $region89
    $region88: #{tpu_custom_call.1} parent=1 // pred_region
      %270 = vsyncadd [#allocation24], 0
      %s271 = sshll.u32 %s43, 4
      %s272 = int_to_ptr.hbm [resolvable:$true] %s271
      %s273 = sshll.u32 [#allocation23], 4
      %s274 = int_to_ptr.vmem [resolvable:$true] %s273
      %279 = dma.hbm_to_vmem [thread:$0]  %s272, 128, %s274, [#allocation24], 16, 16, 1
    $region89: #{tpu_custom_call.1} parent=1 // pred_fallthru
      _
    // Predicated region
    $region90: #{tpu_custom_call.1} parent=1 // pred_check
      _
    $region91: #{tpu_custom_call.1} parent=1 // pred_check_branch
      %281 = sbr.rel (0) target = $region93
    $region92: #{tpu_custom_call.1} parent=1 // pred_region
      %283 = vsyncadd [#allocation24], 0
      %s284 = sshll.u32 %s45, 4
      %s285 = int_to_ptr.hbm [resolvable:$true] %s284
      %s286 = sshll.u32 [#allocation25], 4
      %s287 = int_to_ptr.vmem [resolvable:$true] %s286
      %292 = dma.hbm_to_vmem [thread:$0]  %s285, 4096, %s287, [#allocation24], 128, 128, 8
    $region93: #{tpu_custom_call.1} parent=1 // pred_fallthru
      _
    // Predicated region
    $region94: #{tpu_custom_call.1} parent=1 // pred_check
      _
    $region95: #{tpu_custom_call.1} parent=1 // pred_check_branch
      %294 = sbr.rel (0) target = $region97
    $region96: #{tpu_custom_call.1} parent=1 // pred_region
      %296 = vsyncadd [#allocation27], 0
      %s297 = sshll.u32 %s47, 4
      %s298 = int_to_ptr.hbm [resolvable:$true] %s297
      %s299 = sshll.u32 [#allocation26], 4
      %s300 = int_to_ptr.vmem [resolvable:$true] %s299
      %305 = dma.hbm_to_vmem [thread:$0]  %s298, 128, %s300, [#allocation27], 16, 16, 1
    $region97: #{tpu_custom_call.1} parent=1 // pred_fallthru
      _
    // Predicated region
    $region98: #{tpu_custom_call.1} parent=1 // pred_check
      _
    $region99: #{tpu_custom_call.1} parent=1 // pred_check_branch
      %307 = sbr.rel (0) target = $region101
    $region100: #{tpu_custom_call.1} parent=1 // pred_region
      %309 = vsyncadd [#allocation27], 0
      %s310 = sshll.u32 %s49, 4
      %s311 = int_to_ptr.hbm [resolvable:$true] %s310
      %s312 = sshll.u32 [#allocation28], 4
      %s313 = int_to_ptr.vmem [resolvable:$true] %s312
      %318 = dma.hbm_to_vmem [thread:$0]  %s311, 1024, %s313, [#allocation27], 128, 128, 8
    $region101: #{tpu_custom_call.1} parent=1 // pred_fallthru
      _
    // Predicated region
    $region102: #{tpu_custom_call.1} parent=1 // pred_check
      _
    $region103: #{tpu_custom_call.1} parent=1 // pred_check_branch
      %320 = sbr.rel (0) target = $region105
    $region104: #{tpu_custom_call.1} parent=1 // pred_region
      %322 = vsyncadd [#allocation30], 0
      %s323 = sshll.u32 %s51, 4
      %s324 = int_to_ptr.hbm [resolvable:$true] %s323
      %s325 = sshll.u32 [#allocation29], 4
      %s326 = int_to_ptr.vmem [resolvable:$true] %s325
      %331 = dma.hbm_to_vmem [thread:$0]  %s324, 32, %s326, [#allocation30], 16, 16, 1
    $region105: #{tpu_custom_call.1} parent=1 // pred_fallthru
      _
    // Predicated region
    $region106: #{tpu_custom_call.1} parent=1 // pred_check
      _
    $region107: #{tpu_custom_call.1} parent=1 // pred_check_branch
      %333 = sbr.rel (0) target = $region109
    $region108: #{tpu_custom_call.1} parent=1 // pred_region
      _
    $region109: #{tpu_custom_call.1} parent=1 // pred_fallthru
      _
    // Predicated region
    $region110: #{tpu_custom_call.1} parent=1 // pred_check
      _
    $region111: #{tpu_custom_call.1} parent=1 // pred_check_branch
      %335 = sbr.rel (0) target = $region113
    $region112: #{tpu_custom_call.1} parent=1 // pred_region
      %337 = vsyncadd [#allocation30], 0
      %s338 = sshll.u32 %s55, 4
      %s339 = int_to_ptr.hbm [resolvable:$true] %s338
      %s340 = sshll.u32 [#allocation31], 4
      %s341 = int_to_ptr.vmem [resolvable:$true] %s340
      %346 = dma.hbm_to_vmem [thread:$0]  %s339, 32, %s341, [#allocation30], 16, 16, 1
    $region113: #{tpu_custom_call.1} parent=1 // pred_fallthru
      _
    // Predicated region
    $region114: #{tpu_custom_call.1} parent=1 // pred_check
      _
    $region115: #{tpu_custom_call.1} parent=1 // pred_check_branch
      %348 = sbr.rel (0) target = $region117
    $region116: #{tpu_custom_call.1} parent=1 // pred_region
      %350 = vsyncadd [#allocation33], 0
      %s351 = sshll.u32 %s57, 4
      %s352 = int_to_ptr.hbm [resolvable:$true] %s351
      %s353 = sshll.u32 [#allocation32], 4
      %s354 = int_to_ptr.vmem [resolvable:$true] %s353
      %359 = dma.hbm_to_vmem [thread:$0]  %s352, 32, %s354, [#allocation33], 16, 16, 1
    $region117: #{tpu_custom_call.1} parent=1 // pred_fallthru
      _
    // Predicated region
    $region118: #{tpu_custom_call.1} parent=1 // pred_check
      _
    $region119: #{tpu_custom_call.1} parent=1 // pred_check_branch
      %361 = sbr.rel (0) target = $region121
    $region120: #{tpu_custom_call.1} parent=1 // pred_region
      _
    $region121: #{tpu_custom_call.1} parent=1 // pred_fallthru
      _
    // Predicated region
    $region122: #{tpu_custom_call.1} parent=1 // pred_check
      _
    $region123: #{tpu_custom_call.1} parent=1 // pred_check_branch
      %363 = sbr.rel (0) target = $region125
    $region124: #{tpu_custom_call.1} parent=1 // pred_region
      _
    $region125: #{tpu_custom_call.1} parent=1 // pred_fallthru
      _
    // Predicated region
    $region126: #{tpu_custom_call.1} parent=1 // pred_check
      _
    $region127: #{tpu_custom_call.1} parent=1 // pred_check_branch
      %365 = sbr.rel (0) target = $region129
    $region128: #{tpu_custom_call.1} parent=1 // pred_region
      %367 = dma.done [#allocation3], 256
    $region129: #{tpu_custom_call.1} parent=1 // pred_fallthru
      _
    // Predicated region
    $region130: #{tpu_custom_call.1} parent=1 // pred_check
      _
    $region131: #{tpu_custom_call.1} parent=1 // pred_check_branch
      %369 = sbr.rel (0) target = $region133
    $region132: #{tpu_custom_call.1} parent=1 // pred_region
      %371 = dma.done [#allocation6], 256
    $region133: #{tpu_custom_call.1} parent=1 // pred_fallthru
      _
    // Predicated region
    $region134: #{tpu_custom_call.1} parent=1 // pred_check
      _
    $region135: #{tpu_custom_call.1} parent=1 // pred_check_branch
      %373 = sbr.rel (0) target = $region137
    $region136: #{tpu_custom_call.1} parent=1 // pred_region
      %375 = dma.done [#allocation6], 256
    $region137: #{tpu_custom_call.1} parent=1 // pred_fallthru
      _
    // Predicated region
    $region138: #{tpu_custom_call.1} parent=1 // pred_check
      _
    $region139: #{tpu_custom_call.1} parent=1 // pred_check_branch
      %377 = sbr.rel (0) target = $region141
    $region140: #{tpu_custom_call.1} parent=1 // pred_region
      %379 = dma.done [#allocation9], 512
    $region141: #{tpu_custom_call.1} parent=1 // pred_fallthru
      _
    // Predicated region
    $region142: #{tpu_custom_call.1} parent=1 // pred_check
      _
    $region143: #{tpu_custom_call.1} parent=1 // pred_check_branch
      %381 = sbr.rel (0) target = $region145
    $region144: #{tpu_custom_call.1} parent=1 // pred_region
      %383 = dma.done [#allocation9], 16
    $region145: #{tpu_custom_call.1} parent=1 // pred_fallthru
      _
    // Predicated region
    $region146: #{tpu_custom_call.1} parent=1 // pred_check
      _
    $region147: #{tpu_custom_call.1} parent=1 // pred_check_branch
      %385 = sbr.rel (0) target = $region149
    $region148: #{tpu_custom_call.1} parent=1 // pred_region
      %387 = dma.done [#allocation12], 256
    $region149: #{tpu_custom_call.1} parent=1 // pred_fallthru
      _
    // Predicated region
    $region150: #{tpu_custom_call.1} parent=1 // pred_check
      _
    $region151: #{tpu_custom_call.1} parent=1 // pred_check_branch
      %389 = sbr.rel (0) target = $region153
    $region152: #{tpu_custom_call.1} parent=1 // pred_region
      %391 = dma.done [#allocation12], 128
    $region153: #{tpu_custom_call.1} parent=1 // pred_fallthru
      _
    // Predicated region
    $region154: #{tpu_custom_call.1} parent=1 // pred_check
      _
    $region155: #{tpu_custom_call.1} parent=1 // pred_check_branch
      %393 = sbr.rel (0) target = $region157
    $region156: #{tpu_custom_call.1} parent=1 // pred_region
      %395 = dma.done [#allocation15], 128
    $region157: #{tpu_custom_call.1} parent=1 // pred_fallthru
      _
    // Predicated region
    $region158: #{tpu_custom_call.1} parent=1 // pred_check
      _
    $region159: #{tpu_custom_call.1} parent=1 // pred_check_branch
      %397 = sbr.rel (0) target = $region161
    $region160: #{tpu_custom_call.1} parent=1 // pred_region
      %399 = dma.done [#allocation15], 1024
    $region161: #{tpu_custom_call.1} parent=1 // pred_fallthru
      _
    // Predicated region
    $region162: #{tpu_custom_call.1} parent=1 // pred_check
      _
    $region163: #{tpu_custom_call.1} parent=1 // pred_check_branch
      %401 = sbr.rel (0) target = $region165
    $region164: #{tpu_custom_call.1} parent=1 // pred_region
      %403 = dma.done [#allocation18], 32
    $region165: #{tpu_custom_call.1} parent=1 // pred_fallthru
      _
    // Predicated region
    $region166: #{tpu_custom_call.1} parent=1 // pred_check
      _
    $region167: #{tpu_custom_call.1} parent=1 // pred_check_branch
      %405 = sbr.rel (0) target = $region169
    $region168: #{tpu_custom_call.1} parent=1 // pred_region
      %407 = dma.done [#allocation18], 32
    $region169: #{tpu_custom_call.1} parent=1 // pred_fallthru
      _
    // Predicated region
    $region170: #{tpu_custom_call.1} parent=1 // pred_check
      _
    $region171: #{tpu_custom_call.1} parent=1 // pred_check_branch
      %409 = sbr.rel (0) target = $region173
    $region172: #{tpu_custom_call.1} parent=1 // pred_region
      %411 = dma.done [#allocation21], 32
    $region173: #{tpu_custom_call.1} parent=1 // pred_fallthru
      _
    // Predicated region
    $region174: #{tpu_custom_call.1} parent=1 // pred_check
      _
    $region175: #{tpu_custom_call.1} parent=1 // pred_check_branch
      %413 = sbr.rel (0) target = $region177
    $region176: #{tpu_custom_call.1} parent=1 // pred_region
      %415 = dma.done [#allocation21], 192
    $region177: #{tpu_custom_call.1} parent=1 // pred_fallthru
      _
    // Predicated region
    $region178: #{tpu_custom_call.1} parent=1 // pred_check
      _
    $region179: #{tpu_custom_call.1} parent=1 // pred_check_branch
      %417 = sbr.rel (0) target = $region181
    $region180: #{tpu_custom_call.1} parent=1 // pred_region
      %419 = dma.done [#allocation24], 128
    $region181: #{tpu_custom_call.1} parent=1 // pred_fallthru
      _
    // Predicated region
    $region182: #{tpu_custom_call.1} parent=1 // pred_check
      _
    $region183: #{tpu_custom_call.1} parent=1 // pred_check_branch
      %421 = sbr.rel (0) target = $region185
    $region184: #{tpu_custom_call.1} parent=1 // pred_region
      %423 = dma.done [#allocation24], 4096
    $region185: #{tpu_custom_call.1} parent=1 // pred_fallthru
      _
    // Predicated region
    $region186: #{tpu_custom_call.1} parent=1 // pred_check
      _
    $region187: #{tpu_custom_call.1} parent=1 // pred_check_branch
      %425 = sbr.rel (0) target = $region189
    $region188: #{tpu_custom_call.1} parent=1 // pred_region
      %427 = dma.done [#allocation27], 128
    $region189: #{tpu_custom_call.1} parent=1 // pred_fallthru
      _
    // Predicated region
    $region190: #{tpu_custom_call.1} parent=1 // pred_check
      _
    $region191: #{tpu_custom_call.1} parent=1 // pred_check_branch
      %429 = sbr.rel (0) target = $region193
    $region192: #{tpu_custom_call.1} parent=1 // pred_region
      %431 = dma.done [#allocation27], 1024
    $region193: #{tpu_custom_call.1} parent=1 // pred_fallthru
      _
    // Predicated region
    $region194: #{tpu_custom_call.1} parent=1 // pred_check
      _
    $region195: #{tpu_custom_call.1} parent=1 // pred_check_branch
      %433 = sbr.rel (0) target = $region197
    $region196: #{tpu_custom_call.1} parent=1 // pred_region
      %435 = dma.done [#allocation30], 32
    $region197: #{tpu_custom_call.1} parent=1 // pred_fallthru
      _
    // Predicated region
    $region198: #{tpu_custom_call.1} parent=1 // pred_check
      _
    $region199: #{tpu_custom_call.1} parent=1 // pred_check_branch
      %437 = sbr.rel (0) target = $region201
    $region200: #{tpu_custom_call.1} parent=1 // pred_region
      %439 = dma.done [#allocation30], 32
    $region201: #{tpu_custom_call.1} parent=1 // pred_fallthru
      _
    // Predicated region
    $region202: #{tpu_custom_call.1} parent=1 // pred_check
      _
    $region203: #{tpu_custom_call.1} parent=1 // pred_check_branch
      %441 = sbr.rel (0) target = $region205
    $region204: #{tpu_custom_call.1} parent=1 // pred_region
      %443 = dma.done [#allocation33], 32
    $region205: #{tpu_custom_call.1} parent=1 // pred_fallthru
      _
    %v444 = vlaneseq
    %v445 = vand.u32 %v444, 127
    %v446 = vld [vmem:[%s5] sm:$0x3]
    %447 = vset.pattern.permute.xlu0 0
    %448 = vperm.xlu0 %447, %v446
    %v449 = vpop.permute.xlu0 %448
    %vm450 = vcmp.lt.s32.totalorder %v445, %v449
    %v451 = vsel %vm450, 0.0, -1e+30
    %v453 = vrot.slane %v451, 1
    %v454 = vld [vmem:[%s7] sm:$0x3]
    %455 = vset.pattern.permute.xlu0 0
    %456 = vperm.xlu0 %455, %v454
    %v457 = vpop.permute.xlu0 %456
    %vm458 = vcmp.lt.s32.totalorder %v445, %v457
    %v459 = vsel %vm458, 0.0, -1e+30
    %v461 = vrot.slane %v459, 1
    %v462 = vlaneseq
    %v463 = vshrl.u32 %v462, 7
    %vm464 = vcmp.le.s32.totalorder %v445, %v463
    %v465 = vsel %vm464, 0.0, -1e+30
    %v466 = vperm.slane %v459, 0
    %v467 = vperm.slane %v461, 0
    %v470 = vadd.f32 %v465, %v466
    %v471 = vadd.f32 %v465, %v467
    %v472 = vld [vmem:[#allocation2] sm:$0xff]
    %v473 = vld [vmem:[#allocation2 + $0x8] sm:$0xff]
    %v474 = vld [vmem:[#allocation8] sm:$0xff]
    %v475 = vld [vmem:[#allocation8 + $0x8] sm:$0xff]
    %v476 = vld [vmem:[#allocation8 + $0x10] sm:$0xff]
    %v477 = vld [vmem:[#allocation8 + $0x18] sm:$0xff]
    %v478 = vld [vmem:[#allocation10] sm:$0x1]
    %v480 = vperm.slane %v478, 0
    %vm482 = vcmask 261120
    %v484 = vsel %vm482, %v472, 0
    %v487 = vsel %vm482, %v473, 0
    %489 = vmatpush.msra.mxu0 0.0
    %490 = vmatpush.msra.mxu0 0.0
    %491 = vmatpush.msra.mxu0 0.0
    %492 = vmatpush.msra.mxu0 0.0
    %493 = vmatpush.msra.mxu0 0.0
    %494 = vmatpush.msra.mxu0 0.0
    %495 = vmatpush.msra.mxu0 0.0
    %496 = vmatpush.msra.mxu0 0.0
    %497 = vmatpush.msra.mxu0 0.0
    %498 = vmatpush.msra.mxu0 0.0
    %499 = vmatpush.msra.mxu0 0.0
    %500 = vmatpush.msra.mxu0 0.0
    %501 = vmatpush.msra.mxu0 %v477
    %502 = vmatpush.msra.mxu0 %v476
    %503 = vmatpush.msra.mxu0 %v475
    %504 = vmatpush.msra.mxu0 %v474
    %505 = vmatmul.f32.gmra.mxu0 %v484
    %v506 = vpop.f32.mrf.mxu0
    %v507 = vadd.f32 %v480, %v506
    %508 = vmatmul.f32.gmra.mxu0 %v487
    %v509 = vpop.f32.mrf.mxu0
    %v510 = vadd.f32 %v480, %v509
    %511 = vdwg.mxu0
    %v512 = vld [vmem:[#allocation5] sm:$0xff]
    %v513 = vld [vmem:[#allocation5 + $0x8] sm:$0xff]
    %v514 = vadd.f32 %v507, %v512
    %v515 = vadd.f32 %v510, %v513
    %v516 = vld [vmem:[#allocation13] sm:$0x1]
    %s517 = scalar_lea.vmem [#allocation13], 1
    %v518 = vld [vmem:[%s517] sm:$0x1]
    %v519 = vsel %vm482, %v514, 0.0
    %520 = vadd.xlane.f32.xlu0 %v519
    %v521 = vpop.xlane.xlu0 %520
    %v522 = vsel %vm482, %v515, 0.0
    %523 = vadd.xlane.f32.xlu0 %v522
    %v524 = vpop.xlane.xlu0 %523
    %v525 = vrcp.pop 32.0
    %v526 = vmul.f32 32.0, %v525
    %v527 = vsub.f32 1.0, %v526
    %v528 = vmul.f32 %v525, %v527
    %v529 = vadd.f32 %v525, %v528
    %vm530 = vweird.f32 %v525
    %v531 = vsel %vm530, %v525, %v529
    %v532 = vmul.f32 %v521, %v531
    %v533 = vmul.f32 %v524, %v531
    %v534 = vsub.f32 %v514, %v532
    %v535 = vsub.f32 %v515, %v533
    %v536 = vmul.f32 %v534, %v534
    %v537 = vmul.f32 %v535, %v535
    %v538 = vsel %vm482, %v536, 0.0
    %539 = vadd.xlane.f32.xlu0 %v538
    %v540 = vpop.xlane.xlu0 %539
    %v541 = vsel %vm482, %v537, 0.0
    %542 = vadd.xlane.f32.xlu0 %v541
    %v543 = vpop.xlane.xlu0 %542
    %v544 = vmul.f32 %v540, %v531
    %v545 = vmul.f32 %v543, %v531
    %v546 = vadd.f32 %v544, 1e-05
    %v547 = vadd.f32 %v545, 1e-05
    %v548 = vrsqrt.pop %v546
    %v549 = vmul.f32 %v548, %v546
    %v550 = vmul.f32 %v549, %v548
    %v551 = vmul.f32 0.5, %v550
    %v552 = vsub.f32 1.5, %v551
    %v553 = vmul.f32 %v548, %v552
    %vm554 = vweird.f32 %v546
    %vm555 = vweird.f32 %v548
    %vm556 = vmor %vm554, %vm555
    %v557 = vsel %vm556, %v548, %v553
    %v558 = vrsqrt.pop %v547
    %v559 = vmul.f32 %v558, %v547
    %v560 = vmul.f32 %v559, %v558
    %v561 = vmul.f32 0.5, %v560
    %v562 = vsub.f32 1.5, %v561
    %v563 = vmul.f32 %v558, %v562
    %vm564 = vweird.f32 %v547
    %vm565 = vweird.f32 %v558
    %vm566 = vmor %vm564, %vm565
    %v567 = vsel %vm566, %v558, %v563
    %v568 = vmul.f32 %v534, %v557
    %v569 = vmul.f32 %v535, %v567
    %v571 = vperm.slane %v516, 0
    %v573 = vmul.f32 %v568, %v571
    %v574 = vmul.f32 %v569, %v571
    %v576 = vperm.slane %v518, 0
    %v578 = vadd.f32 %v573, %v576
    %v579 = vadd.f32 %v574, %v576
    %v580 = vld [vmem:[%s21] sm:$0xff]
    %v581 = vld [vmem:[%s21 + $0x8] sm:$0xff]
    %v582 = vld [vmem:[%s21 + $0x10] sm:$0xff]
    %v583 = vld [vmem:[%s21 + $0x18] sm:$0xff]
    %v584 = vld [vmem:[#allocation14] sm:$0x1]
    %s585 = scalar_lea.vmem %s21, 32
    %v586 = vld [vmem:[%s585] sm:$0xff]
    %v587 = vld [vmem:[%s585 + $0x8] sm:$0xff]
    %v588 = vld [vmem:[%s585 + $0x10] sm:$0xff]
    %v589 = vld [vmem:[%s585 + $0x18] sm:$0xff]
    %s590 = scalar_lea.vmem [#allocation14], 1
    %v591 = vld [vmem:[%s590] sm:$0x1]
    %s592 = scalar_lea.vmem %s21, 64
    %v593 = vld [vmem:[%s592] sm:$0xff]
    %v594 = vld [vmem:[%s592 + $0x8] sm:$0xff]
    %v595 = vld [vmem:[%s592 + $0x10] sm:$0xff]
    %v596 = vld [vmem:[%s592 + $0x18] sm:$0xff]
    %s597 = scalar_lea.vmem [#allocation14], 2
    %v598 = vld [vmem:[%s597] sm:$0x1]
    %s599 = scalar_lea.vmem %s21, 96
    %v600 = vld [vmem:[%s599] sm:$0xff]
    %v601 = vld [vmem:[%s599 + $0x8] sm:$0xff]
    %v602 = vld [vmem:[%s599 + $0x10] sm:$0xff]
    %v603 = vld [vmem:[%s599 + $0x18] sm:$0xff]
    %s604 = scalar_lea.vmem [#allocation14], 3
    %v605 = vld [vmem:[%s604] sm:$0x1]
    %v607 = vperm.slane %v584, 0
    %v610 = vsel %vm482, %v578, 0
    %v613 = vsel %vm482, %v579, 0
    %615 = vmatpush.msra.mxu0 0.0
    %616 = vmatpush.msra.mxu0 0.0
    %617 = vmatpush.msra.mxu0 0.0
    %618 = vmatpush.msra.mxu0 0.0
    %619 = vmatpush.msra.mxu0 0.0
    %620 = vmatpush.msra.mxu0 0.0
    %621 = vmatpush.msra.mxu0 0.0
    %622 = vmatpush.msra.mxu0 0.0
    %623 = vmatpush.msra.mxu0 0.0
    %624 = vmatpush.msra.mxu0 0.0
    %625 = vmatpush.msra.mxu0 0.0
    %626 = vmatpush.msra.mxu0 0.0
    %627 = vmatpush.msra.mxu0 %v583
    %628 = vmatpush.msra.mxu0 %v582
    %629 = vmatpush.msra.mxu0 %v581
    %630 = vmatpush.msra.mxu0 %v580
    %631 = vmatmul.f32.gmra.mxu0 %v610
    %v632 = vpop.f32.mrf.mxu0
    %v633 = vadd.f32 %v607, %v632
    %634 = vmatmul.f32.gmra.mxu0 %v613
    %v635 = vpop.f32.mrf.mxu0
    %v636 = vadd.f32 %v607, %v635
    %637 = vdwg.mxu0
    %v639 = vperm.slane %v591, 0
    %641 = vmatpush.msra.mxu0 0.0
    %642 = vmatpush.msra.mxu0 0.0
    %643 = vmatpush.msra.mxu0 0.0
    %644 = vmatpush.msra.mxu0 0.0
    %645 = vmatpush.msra.mxu0 0.0
    %646 = vmatpush.msra.mxu0 0.0
    %647 = vmatpush.msra.mxu0 0.0
    %648 = vmatpush.msra.mxu0 0.0
    %649 = vmatpush.msra.mxu0 0.0
    %650 = vmatpush.msra.mxu0 0.0
    %651 = vmatpush.msra.mxu0 0.0
    %652 = vmatpush.msra.mxu0 0.0
    %653 = vmatpush.msra.mxu0 %v589
    %654 = vmatpush.msra.mxu0 %v588
    %655 = vmatpush.msra.mxu0 %v587
    %656 = vmatpush.msra.mxu0 %v586
    %657 = vmatmul.f32.gmra.mxu0 %v610
    %v658 = vpop.f32.mrf.mxu0
    %v659 = vadd.f32 %v639, %v658
    %660 = vmatmul.f32.gmra.mxu0 %v613
    %v661 = vpop.f32.mrf.mxu0
    %v662 = vadd.f32 %v639, %v661
    %663 = vdwg.mxu0
    %v665 = vperm.slane %v598, 0
    %667 = vmatpush.msra.mxu0 0.0
    %668 = vmatpush.msra.mxu0 0.0
    %669 = vmatpush.msra.mxu0 0.0
    %670 = vmatpush.msra.mxu0 0.0
    %671 = vmatpush.msra.mxu0 0.0
    %672 = vmatpush.msra.mxu0 0.0
    %673 = vmatpush.msra.mxu0 0.0
    %674 = vmatpush.msra.mxu0 0.0
    %675 = vmatpush.msra.mxu0 0.0
    %676 = vmatpush.msra.mxu0 0.0
    %677 = vmatpush.msra.mxu0 0.0
    %678 = vmatpush.msra.mxu0 0.0
    %679 = vmatpush.msra.mxu0 %v596
    %680 = vmatpush.msra.mxu0 %v595
    %681 = vmatpush.msra.mxu0 %v594
    %682 = vmatpush.msra.mxu0 %v593
    %683 = vmatmul.f32.gmra.mxu0 %v610
    %v684 = vpop.f32.mrf.mxu0
    %v685 = vadd.f32 %v665, %v684
    %686 = vmatmul.f32.gmra.mxu0 %v613
    %v687 = vpop.f32.mrf.mxu0
    %v688 = vadd.f32 %v665, %v687
    %689 = vdwg.mxu0
    %v691 = vperm.slane %v605, 0
    %v693 = vadd.f32 %v691, 0.0
    %vm694 = vcmask 130048
    %v696 = vsel %vm694, %v633, 0
    %v699 = vsel %vm694, %v659, 0
    %701 = vmatpush.xpose.msra.mxu0 0.0
    %702 = vmatpush.xpose.msra.mxu0 0.0
    %703 = vmatpush.xpose.msra.mxu0 0.0
    %704 = vmatpush.xpose.msra.mxu0 0.0
    %705 = vmatpush.xpose.msra.mxu0 0.0
    %706 = vmatpush.xpose.msra.mxu0 0.0
    %707 = vmatpush.xpose.msra.mxu0 0.0
    %708 = vmatpush.xpose.msra.mxu0 0.0
    %709 = vmatpush.xpose.msra.mxu0 0.0
    %710 = vmatpush.xpose.msra.mxu0 0.0
    %711 = vmatpush.xpose.msra.mxu0 0.0
    %712 = vmatpush.xpose.msra.mxu0 0.0
    %713 = vmatpush.xpose.msra.mxu0 0.0
    %714 = vmatpush.xpose.msra.mxu0 0.0
    %715 = vmatpush.xpose.msra.mxu0 0.0
    %716 = vmatpush.xpose.msra.mxu0 %v699
    %717 = vmatmul.f32.gmra.mxu0 %v696
    %v718 = vpop.f32.mrf.mxu0
    %v719 = vadd.f32 0.0, %v718
    %720 = vdwg.mxu0
    %v722 = vsel %vm694, %v636, 0
    %v725 = vsel %vm694, %v662, 0
    %727 = vmatpush.xpose.msra.mxu0 0.0
    %728 = vmatpush.xpose.msra.mxu0 0.0
    %729 = vmatpush.xpose.msra.mxu0 0.0
    %730 = vmatpush.xpose.msra.mxu0 0.0
    %731 = vmatpush.xpose.msra.mxu0 0.0
    %732 = vmatpush.xpose.msra.mxu0 0.0
    %733 = vmatpush.xpose.msra.mxu0 0.0
    %734 = vmatpush.xpose.msra.mxu0 0.0
    %735 = vmatpush.xpose.msra.mxu0 0.0
    %736 = vmatpush.xpose.msra.mxu0 0.0
    %737 = vmatpush.xpose.msra.mxu0 0.0
    %738 = vmatpush.xpose.msra.mxu0 0.0
    %739 = vmatpush.xpose.msra.mxu0 0.0
    %740 = vmatpush.xpose.msra.mxu0 0.0
    %741 = vmatpush.xpose.msra.mxu0 0.0
    %742 = vmatpush.xpose.msra.mxu0 %v725
    %743 = vmatmul.f32.gmra.mxu0 %v722
    %v744 = vpop.f32.mrf.mxu0
    %v745 = vadd.f32 0.0, %v744
    %746 = vdwg.mxu0
    %v747 = vmul.f32 %v719, 0.25
    %v748 = vmul.f32 %v745, 0.25
    %v749 = vperm.slane %v451, 0
    %v750 = vperm.slane %v453, 0
    %v753 = vadd.f32 %v747, %v749
    %v754 = vadd.f32 %v748, %v750
    %vm755 = vcmask 64512
    %v756 = vsel %vm755, %v753, -inf
    %757 = vmax.xlane.f32.xlu0 %v756
    %v758 = vpop.xlane.xlu0 %757
    %v759 = vsel %vm755, %v754, -inf
    %760 = vmax.xlane.f32.xlu0 %v759
    %v761 = vpop.xlane.xlu0 %760
    %v762 = vsub.f32 %v753, %v758
    %v763 = vsub.f32 %v754, %v761
    %v764 = vmul.f32 %v762, 1.442695
    %v765 = vpow.pop %v764
    %v766 = vmul.f32 %v763, 1.442695
    %v767 = vpow.pop %v766
    %v768 = vsel %vm755, %v765, 0.0
    %769 = vadd.xlane.f32.xlu0 %v768
    %v770 = vpop.xlane.xlu0 %769
    %v771 = vsel %vm755, %v767, 0.0
    %772 = vadd.xlane.f32.xlu0 %v771
    %v773 = vpop.xlane.xlu0 %772
    %v774 = vrcp.pop %v770
    %v775 = vrcp.pop %v773
    %v776 = vmul.f32 %v765, %v774
    %v777 = vmul.f32 %v767, %v775
    %v779 = vsel %vm755, %v776, 0
    %781 = vmatpush.msra.mxu0 0.0
    %782 = vmatpush.msra.mxu0 0.0
    %783 = vmatpush.msra.mxu0 0.0
    %784 = vmatpush.msra.mxu0 0.0
    %785 = vmatpush.msra.mxu0 0.0
    %786 = vmatpush.msra.mxu0 0.0
    %787 = vmatpush.msra.mxu0 0.0
    %788 = vmatpush.msra.mxu0 0.0
    %789 = vmatpush.msra.mxu0 0.0
    %790 = vmatpush.msra.mxu0 0.0
    %791 = vmatpush.msra.mxu0 0.0
    %792 = vmatpush.msra.mxu0 0.0
    %793 = vmatpush.msra.mxu0 0.0
    %794 = vmatpush.msra.mxu0 0.0
    %795 = vmatpush.msra.mxu0 0.0
    %796 = vmatpush.msra.mxu0 %v685
    %797 = vmatmul.f32.gmra.mxu0 %v779
    %v798 = vpop.f32.mrf.mxu0
    %v799 = vadd.f32 0.0, %v798
    %800 = vdwg.mxu0
    %v802 = vsel %vm755, %v777, 0
    %804 = vmatpush.msra.mxu0 0.0
    %805 = vmatpush.msra.mxu0 0.0
    %806 = vmatpush.msra.mxu0 0.0
    %807 = vmatpush.msra.mxu0 0.0
    %808 = vmatpush.msra.mxu0 0.0
    %809 = vmatpush.msra.mxu0 0.0
    %810 = vmatpush.msra.mxu0 0.0
    %811 = vmatpush.msra.mxu0 0.0
    %812 = vmatpush.msra.mxu0 0.0
    %813 = vmatpush.msra.mxu0 0.0
    %814 = vmatpush.msra.mxu0 0.0
    %815 = vmatpush.msra.mxu0 0.0
    %816 = vmatpush.msra.mxu0 0.0
    %817 = vmatpush.msra.mxu0 0.0
    %818 = vmatpush.msra.mxu0 0.0
    %819 = vmatpush.msra.mxu0 %v688
    %820 = vmatmul.f32.gmra.mxu0 %v802
    %v821 = vpop.f32.mrf.mxu0
    %v822 = vadd.f32 0.0, %v821
    %823 = vdwg.mxu0
    %v825 = vsel %vm694, %v799, 0
    %v828 = vsel %vm694, %v822, 0
    %830 = vmatpush.msra.mxu0 0.0
    %831 = vmatpush.msra.mxu0 0.0
    %832 = vmatpush.msra.mxu0 0.0
    %833 = vmatpush.msra.mxu0 0.0
    %834 = vmatpush.msra.mxu0 0.0
    %835 = vmatpush.msra.mxu0 0.0
    %836 = vmatpush.msra.mxu0 0.0
    %837 = vmatpush.msra.mxu0 0.0
    %838 = vmatpush.msra.mxu0 0.0
    %839 = vmatpush.msra.mxu0 0.0
    %840 = vmatpush.msra.mxu0 0.0
    %841 = vmatpush.msra.mxu0 0.0
    %842 = vmatpush.msra.mxu0 0.0
    %843 = vmatpush.msra.mxu0 0.0
    %844 = vmatpush.msra.mxu0 %v601
    %845 = vmatpush.msra.mxu0 %v600
    %846 = vmatmul.f32.gmra.mxu0 %v825
    %v847 = vpop.f32.mrf.mxu0
    %v848 = vadd.f32 0.0, %v847
    %849 = vmatmul.f32.gmra.mxu0 %v828
    %v850 = vpop.f32.mrf.mxu0
    %v851 = vadd.f32 0.0, %v850
    %852 = vdwg.mxu0
    %v853 = vadd.f32 %v693, %v848
    %v854 = vadd.f32 %v693, %v851
    %855 = vrot.lane.b32.xlu0 %v633, 112
    %v856 = vpop.permute.xlu0 %855
    %857 = vrot.lane.b32.xlu0 %v659, 112
    %v858 = vpop.permute.xlu0 %857
    %v859 = vsel %vm694, %v856, 0
    %v861 = vsel %vm694, %v858, 0
    %863 = vmatpush.xpose.msra.mxu0 0.0
    %864 = vmatpush.xpose.msra.mxu0 0.0
    %865 = vmatpush.xpose.msra.mxu0 0.0
    %866 = vmatpush.xpose.msra.mxu0 0.0
    %867 = vmatpush.xpose.msra.mxu0 0.0
    %868 = vmatpush.xpose.msra.mxu0 0.0
    %869 = vmatpush.xpose.msra.mxu0 0.0
    %870 = vmatpush.xpose.msra.mxu0 0.0
    %871 = vmatpush.xpose.msra.mxu0 0.0
    %872 = vmatpush.xpose.msra.mxu0 0.0
    %873 = vmatpush.xpose.msra.mxu0 0.0
    %874 = vmatpush.xpose.msra.mxu0 0.0
    %875 = vmatpush.xpose.msra.mxu0 0.0
    %876 = vmatpush.xpose.msra.mxu0 0.0
    %877 = vmatpush.xpose.msra.mxu0 0.0
    %878 = vmatpush.xpose.msra.mxu0 %v861
    %879 = vmatmul.f32.gmra.mxu0 %v859
    %v880 = vpop.f32.mrf.mxu0
    %v881 = vadd.f32 0.0, %v880
    %882 = vdwg.mxu0
    %883 = vrot.lane.b32.xlu0 %v636, 112
    %v884 = vpop.permute.xlu0 %883
    %885 = vrot.lane.b32.xlu0 %v662, 112
    %v886 = vpop.permute.xlu0 %885
    %v887 = vsel %vm694, %v884, 0
    %v889 = vsel %vm694, %v886, 0
    %891 = vmatpush.xpose.msra.mxu0 0.0
    %892 = vmatpush.xpose.msra.mxu0 0.0
    %893 = vmatpush.xpose.msra.mxu0 0.0
    %894 = vmatpush.xpose.msra.mxu0 0.0
    %895 = vmatpush.xpose.msra.mxu0 0.0
    %896 = vmatpush.xpose.msra.mxu0 0.0
    %897 = vmatpush.xpose.msra.mxu0 0.0
    %898 = vmatpush.xpose.msra.mxu0 0.0
    %899 = vmatpush.xpose.msra.mxu0 0.0
    %900 = vmatpush.xpose.msra.mxu0 0.0
    %901 = vmatpush.xpose.msra.mxu0 0.0
    %902 = vmatpush.xpose.msra.mxu0 0.0
    %903 = vmatpush.xpose.msra.mxu0 0.0
    %904 = vmatpush.xpose.msra.mxu0 0.0
    %905 = vmatpush.xpose.msra.mxu0 0.0
    %906 = vmatpush.xpose.msra.mxu0 %v889
    %907 = vmatmul.f32.gmra.mxu0 %v887
    %v908 = vpop.f32.mrf.mxu0
    %v909 = vadd.f32 0.0, %v908
    %910 = vdwg.mxu0
    %v911 = vmul.f32 %v881, 0.25
    %v912 = vmul.f32 %v909, 0.25
    %v913 = vadd.f32 %v911, %v749
    %v914 = vadd.f32 %v912, %v750
    %v915 = vsel %vm755, %v913, -inf
    %916 = vmax.xlane.f32.xlu0 %v915
    %v917 = vpop.xlane.xlu0 %916
    %v918 = vsel %vm755, %v914, -inf
    %919 = vmax.xlane.f32.xlu0 %v918
    %v920 = vpop.xlane.xlu0 %919
    %v921 = vsub.f32 %v913, %v917
    %v922 = vsub.f32 %v914, %v920
    %v923 = vmul.f32 %v921, 1.442695
    %v924 = vpow.pop %v923
    %v925 = vmul.f32 %v922, 1.442695
    %v926 = vpow.pop %v925
    %v927 = vsel %vm755, %v924, 0.0
    %928 = vadd.xlane.f32.xlu0 %v927
    %v929 = vpop.xlane.xlu0 %928
    %v930 = vsel %vm755, %v926, 0.0
    %931 = vadd.xlane.f32.xlu0 %v930
    %v932 = vpop.xlane.xlu0 %931
    %v933 = vrcp.pop %v929
    %v934 = vrcp.pop %v932
    %v935 = vmul.f32 %v924, %v933
    %v936 = vmul.f32 %v926, %v934
    %938 = vrot.lane.b32.xlu0 %v685, 112
    %v939 = vpop.permute.xlu0 %938
    %v942 = vsel %vm755, %v935, 0
    %944 = vmatpush.msra.mxu0 0.0
    %945 = vmatpush.msra.mxu0 0.0
    %946 = vmatpush.msra.mxu0 0.0
    %947 = vmatpush.msra.mxu0 0.0
    %948 = vmatpush.msra.mxu0 0.0
    %949 = vmatpush.msra.mxu0 0.0
    %950 = vmatpush.msra.mxu0 0.0
    %951 = vmatpush.msra.mxu0 0.0
    %952 = vmatpush.msra.mxu0 0.0
    %953 = vmatpush.msra.mxu0 0.0
    %954 = vmatpush.msra.mxu0 0.0
    %955 = vmatpush.msra.mxu0 0.0
    %956 = vmatpush.msra.mxu0 0.0
    %957 = vmatpush.msra.mxu0 0.0
    %958 = vmatpush.msra.mxu0 0.0
    %959 = vmatpush.msra.mxu0 %v939
    %960 = vmatmul.f32.gmra.mxu0 %v942
    %v961 = vpop.f32.mrf.mxu0
    %v962 = vadd.f32 0.0, %v961
    %963 = vdwg.mxu0
    %965 = vrot.lane.b32.xlu0 %v688, 112
    %v966 = vpop.permute.xlu0 %965
    %v969 = vsel %vm755, %v936, 0
    %971 = vmatpush.msra.mxu0 0.0
    %972 = vmatpush.msra.mxu0 0.0
    %973 = vmatpush.msra.mxu0 0.0
    %974 = vmatpush.msra.mxu0 0.0
    %975 = vmatpush.msra.mxu0 0.0
    %976 = vmatpush.msra.mxu0 0.0
    %977 = vmatpush.msra.mxu0 0.0
    %978 = vmatpush.msra.mxu0 0.0
    %979 = vmatpush.msra.mxu0 0.0
    %980 = vmatpush.msra.mxu0 0.0
    %981 = vmatpush.msra.mxu0 0.0
    %982 = vmatpush.msra.mxu0 0.0
    %983 = vmatpush.msra.mxu0 0.0
    %984 = vmatpush.msra.mxu0 0.0
    %985 = vmatpush.msra.mxu0 0.0
    %986 = vmatpush.msra.mxu0 %v966
    %987 = vmatmul.f32.gmra.mxu0 %v969
    %v988 = vpop.f32.mrf.mxu0
    %v989 = vadd.f32 0.0, %v988
    %990 = vdwg.mxu0
    %v992 = vsel %vm694, %v962, 0
    %v995 = vsel %vm694, %v989, 0
    %997 = vmatpush.msra.mxu0 0.0
    %998 = vmatpush.msra.mxu0 0.0
    %999 = vmatpush.msra.mxu0 0.0
    %1000 = vmatpush.msra.mxu0 0.0
    %1001 = vmatpush.msra.mxu0 0.0
    %1002 = vmatpush.msra.mxu0 0.0
    %1003 = vmatpush.msra.mxu0 0.0
    %1004 = vmatpush.msra.mxu0 0.0
    %1005 = vmatpush.msra.mxu0 0.0
    %1006 = vmatpush.msra.mxu0 0.0
    %1007 = vmatpush.msra.mxu0 0.0
    %1008 = vmatpush.msra.mxu0 0.0
    %1009 = vmatpush.msra.mxu0 0.0
    %1010 = vmatpush.msra.mxu0 0.0
    %1011 = vmatpush.msra.mxu0 %v603
    %1012 = vmatpush.msra.mxu0 %v602
    %1013 = vmatmul.f32.gmra.mxu0 %v992
    %v1014 = vpop.f32.mrf.mxu0
    %v1015 = vadd.f32 0.0, %v1014
    %1016 = vmatmul.f32.gmra.mxu0 %v995
    %v1017 = vpop.f32.mrf.mxu0
    %v1018 = vadd.f32 0.0, %v1017
    %1019 = vdwg.mxu0
    %v1020 = vadd.f32 %v853, %v1015
    %v1021 = vadd.f32 %v854, %v1018
    %v1022 = vadd.f32 %v514, %v1020
    %v1023 = vadd.f32 %v515, %v1021
    %s1024 = scalar_lea.vmem [#allocation13], 2
    %v1025 = vld [vmem:[%s1024] sm:$0x1]
    %s1026 = scalar_lea.vmem [#allocation13], 3
    %v1027 = vld [vmem:[%s1026] sm:$0x1]
    %v1028 = vsel %vm482, %v1022, 0.0
    %1029 = vadd.xlane.f32.xlu0 %v1028
    %v1030 = vpop.xlane.xlu0 %1029
    %v1031 = vsel %vm482, %v1023, 0.0
    %1032 = vadd.xlane.f32.xlu0 %v1031
    %v1033 = vpop.xlane.xlu0 %1032
    %v1034 = vmul.f32 %v1030, %v531
    %v1035 = vmul.f32 %v1033, %v531
    %v1036 = vsub.f32 %v1022, %v1034
    %v1037 = vsub.f32 %v1023, %v1035
    %v1038 = vmul.f32 %v1036, %v1036
    %v1039 = vmul.f32 %v1037, %v1037
    %v1040 = vsel %vm482, %v1038, 0.0
    %1041 = vadd.xlane.f32.xlu0 %v1040
    %v1042 = vpop.xlane.xlu0 %1041
    %v1043 = vsel %vm482, %v1039, 0.0
    %1044 = vadd.xlane.f32.xlu0 %v1043
    %v1045 = vpop.xlane.xlu0 %1044
    %v1046 = vmul.f32 %v1042, %v531
    %v1047 = vmul.f32 %v1045, %v531
    %v1048 = vadd.f32 %v1046, 1e-05
    %v1049 = vadd.f32 %v1047, 1e-05
    %v1050 = vrsqrt.pop %v1048
    %v1051 = vmul.f32 %v1050, %v1048
    %v1052 = vmul.f32 %v1051, %v1050
    %v1053 = vmul.f32 0.5, %v1052
    %v1054 = vsub.f32 1.5, %v1053
    %v1055 = vmul.f32 %v1050, %v1054
    %vm1056 = vweird.f32 %v1048
    %vm1057 = vweird.f32 %v1050
    %vm1058 = vmor %vm1056, %vm1057
    %v1059 = vsel %vm1058, %v1050, %v1055
    %v1060 = vrsqrt.pop %v1049
    %v1061 = vmul.f32 %v1060, %v1049
    %v1062 = vmul.f32 %v1061, %v1060
    %v1063 = vmul.f32 0.5, %v1062
    %v1064 = vsub.f32 1.5, %v1063
    %v1065 = vmul.f32 %v1060, %v1064
    %vm1066 = vweird.f32 %v1049
    %vm1067 = vweird.f32 %v1060
    %vm1068 = vmor %vm1066, %vm1067
    %v1069 = vsel %vm1068, %v1060, %v1065
    %v1070 = vmul.f32 %v1036, %v1059
    %v1071 = vmul.f32 %v1037, %v1069
    %v1073 = vperm.slane %v1025, 0
    %v1075 = vmul.f32 %v1070, %v1073
    %v1076 = vmul.f32 %v1071, %v1073
    %v1078 = vperm.slane %v1027, 0
    %v1080 = vadd.f32 %v1075, %v1078
    %v1081 = vadd.f32 %v1076, %v1078
    %v1082 = vld [vmem:[#allocation16] sm:$0xff]
    %v1083 = vld [vmem:[#allocation16 + $0x8] sm:$0xff]
    %v1084 = vld [vmem:[#allocation16 + $0x10] sm:$0xff]
    %v1085 = vld [vmem:[#allocation16 + $0x18] sm:$0xff]
    %v1086 = vld [vmem:[#allocation17] sm:$0x1]
    %v1088 = vperm.slane %v1086, 0
    %v1091 = vsel %vm482, %v1080, 0
    %v1094 = vsel %vm482, %v1081, 0
    %1096 = vmatpush.msra.mxu0 0.0
    %1097 = vmatpush.msra.mxu0 0.0
    %1098 = vmatpush.msra.mxu0 0.0
    %1099 = vmatpush.msra.mxu0 0.0
    %1100 = vmatpush.msra.mxu0 0.0
    %1101 = vmatpush.msra.mxu0 0.0
    %1102 = vmatpush.msra.mxu0 0.0
    %1103 = vmatpush.msra.mxu0 0.0
    %1104 = vmatpush.msra.mxu0 0.0
    %1105 = vmatpush.msra.mxu0 0.0
    %1106 = vmatpush.msra.mxu0 0.0
    %1107 = vmatpush.msra.mxu0 0.0
    %1108 = vmatpush.msra.mxu0 %v1085
    %1109 = vmatpush.msra.mxu0 %v1084
    %1110 = vmatpush.msra.mxu0 %v1083
    %1111 = vmatpush.msra.mxu0 %v1082
    %1112 = vmatmul.f32.gmra.mxu0 %v1091
    %v1113 = vpop.f32.mrf.mxu0
    %v1114 = vadd.f32 %v1088, %v1113
    %1115 = vmatmul.f32.gmra.mxu0 %v1094
    %v1116 = vpop.f32.mrf.mxu0
    %v1117 = vadd.f32 %v1088, %v1116
    %1118 = vdwg.mxu0
    %v1119 = vmul.f32 %v1114, %v1114
    %v1120 = vmul.f32 %v1117, %v1117
    %v1121 = vmul.f32 %v1114, %v1119
    %v1122 = vmul.f32 %v1117, %v1120
    %v1123 = vmul.f32 %v1121, 0.044715
    %v1124 = vmul.f32 %v1122, 0.044715
    %v1125 = vadd.f32 %v1114, %v1123
    %v1126 = vadd.f32 %v1117, %v1124
    %v1127 = vmul.f32 %v1125, 0.7978846
    %v1128 = vmul.f32 %v1126, 0.7978846
    %v1129 = vtanh.pop %v1127
    %v1130 = vtanh.pop %v1128
    %v1131 = vadd.f32 %v1129, 1.0
    %v1132 = vadd.f32 %v1130, 1.0
    %v1133 = vmul.f32 %v1131, 0.5
    %v1134 = vmul.f32 %v1132, 0.5
    %v1135 = vmul.f32 %v1114, %v1133
    %v1136 = vmul.f32 %v1117, %v1134
    %v1137 = vld [vmem:[%s29] sm:$0xff]
    %v1138 = vld [vmem:[%s29 + $0x8] sm:$0xff]
    %v1139 = vld [vmem:[%s29 + $0x10] sm:$0xff]
    %v1140 = vld [vmem:[%s29 + $0x18] sm:$0xff]
    %v1141 = vld [vmem:[%s29 + $0x20] sm:$0xff]
    %v1142 = vld [vmem:[%s29 + $0x28] sm:$0xff]
    %v1143 = vld [vmem:[%s29 + $0x30] sm:$0xff]
    %v1144 = vld [vmem:[%s29 + $0x38] sm:$0xff]
    %vm1145 = vcmask 523264
    %v1147 = vsel %vm1145, %v1135, 0
    %v1150 = vsel %vm1145, %v1136, 0
    %1152 = vmatpush.msra.mxu0 0.0
    %1153 = vmatpush.msra.mxu0 0.0
    %1154 = vmatpush.msra.mxu0 0.0
    %1155 = vmatpush.msra.mxu0 0.0
    %1156 = vmatpush.msra.mxu0 0.0
    %1157 = vmatpush.msra.mxu0 0.0
    %1158 = vmatpush.msra.mxu0 0.0
    %1159 = vmatpush.msra.mxu0 0.0
    %1160 = vmatpush.msra.mxu0 %v1144
    %1161 = vmatpush.msra.mxu0 %v1143
    %1162 = vmatpush.msra.mxu0 %v1142
    %1163 = vmatpush.msra.mxu0 %v1141
    %1164 = vmatpush.msra.mxu0 %v1140
    %1165 = vmatpush.msra.mxu0 %v1139
    %1166 = vmatpush.msra.mxu0 %v1138
    %1167 = vmatpush.msra.mxu0 %v1137
    %1168 = vmatmul.f32.gmra.mxu0 %v1147
    %v1169 = vpop.f32.mrf.mxu0
    %v1170 = vadd.f32 0.0, %v1169
    %1171 = vmatmul.f32.gmra.mxu0 %v1150
    %v1172 = vpop.f32.mrf.mxu0
    %v1173 = vadd.f32 0.0, %v1172
    %1174 = vdwg.mxu0
    %v1175 = vadd.f32 %v1022, %v1170
    %v1176 = vadd.f32 %v1023, %v1173
    %v1177 = vld [vmem:[#allocation19] sm:$0x1]
    %v1179 = vperm.slane %v1177, 0
    %v1181 = vadd.f32 %v1175, %v1179
    %v1182 = vadd.f32 %v1176, %v1179
    %s1183 = scalar_lea.vmem [#allocation13], 4
    %v1184 = vld [vmem:[%s1183] sm:$0x1]
    %s1185 = scalar_lea.vmem [#allocation13], 5
    %v1186 = vld [vmem:[%s1185] sm:$0x1]
    %v1187 = vsel %vm482, %v1181, 0.0
    %1188 = vadd.xlane.f32.xlu0 %v1187
    %v1189 = vpop.xlane.xlu0 %1188
    %v1190 = vsel %vm482, %v1182, 0.0
    %1191 = vadd.xlane.f32.xlu0 %v1190
    %v1192 = vpop.xlane.xlu0 %1191
    %v1193 = vmul.f32 %v1189, %v531
    %v1194 = vmul.f32 %v1192, %v531
    %v1195 = vsub.f32 %v1181, %v1193
    %v1196 = vsub.f32 %v1182, %v1194
    %v1197 = vmul.f32 %v1195, %v1195
    %v1198 = vmul.f32 %v1196, %v1196
    %v1199 = vsel %vm482, %v1197, 0.0
    %1200 = vadd.xlane.f32.xlu0 %v1199
    %v1201 = vpop.xlane.xlu0 %1200
    %v1202 = vsel %vm482, %v1198, 0.0
    %1203 = vadd.xlane.f32.xlu0 %v1202
    %v1204 = vpop.xlane.xlu0 %1203
    %v1205 = vmul.f32 %v1201, %v531
    %v1206 = vmul.f32 %v1204, %v531
    %v1207 = vadd.f32 %v1205, 1e-05
    %v1208 = vadd.f32 %v1206, 1e-05
    %v1209 = vrsqrt.pop %v1207
    %v1210 = vmul.f32 %v1209, %v1207
    %v1211 = vmul.f32 %v1210, %v1209
    %v1212 = vmul.f32 0.5, %v1211
    %v1213 = vsub.f32 1.5, %v1212
    %v1214 = vmul.f32 %v1209, %v1213
    %vm1215 = vweird.f32 %v1207
    %vm1216 = vweird.f32 %v1209
    %vm1217 = vmor %vm1215, %vm1216
    %v1218 = vsel %vm1217, %v1209, %v1214
    %v1219 = vrsqrt.pop %v1208
    %v1220 = vmul.f32 %v1219, %v1208
    %v1221 = vmul.f32 %v1220, %v1219
    %v1222 = vmul.f32 0.5, %v1221
    %v1223 = vsub.f32 1.5, %v1222
    %v1224 = vmul.f32 %v1219, %v1223
    %vm1225 = vweird.f32 %v1208
    %vm1226 = vweird.f32 %v1219
    %vm1227 = vmor %vm1225, %vm1226
    %v1228 = vsel %vm1227, %v1219, %v1224
    %v1229 = vmul.f32 %v1195, %v1218
    %v1230 = vmul.f32 %v1196, %v1228
    %v1232 = vperm.slane %v1184, 0
    %v1234 = vmul.f32 %v1229, %v1232
    %v1235 = vmul.f32 %v1230, %v1232
    %v1237 = vperm.slane %v1186, 0
    %v1239 = vadd.f32 %v1234, %v1237
    %v1240 = vadd.f32 %v1235, %v1237
    %s1241 = scalar_lea.vmem %s21, 128
    %v1242 = vld [vmem:[%s1241] sm:$0xff]
    %v1243 = vld [vmem:[%s1241 + $0x8] sm:$0xff]
    %v1244 = vld [vmem:[%s1241 + $0x10] sm:$0xff]
    %v1245 = vld [vmem:[%s1241 + $0x18] sm:$0xff]
    %s1246 = scalar_lea.vmem [#allocation14], 4
    %v1247 = vld [vmem:[%s1246] sm:$0x1]
    %s1248 = scalar_lea.vmem %s21, 160
    %v1249 = vld [vmem:[%s1248] sm:$0xff]
    %v1250 = vld [vmem:[%s1248 + $0x8] sm:$0xff]
    %v1251 = vld [vmem:[%s1248 + $0x10] sm:$0xff]
    %v1252 = vld [vmem:[%s1248 + $0x18] sm:$0xff]
    %s1253 = scalar_lea.vmem [#allocation14], 5
    %v1254 = vld [vmem:[%s1253] sm:$0x1]
    %s1255 = scalar_lea.vmem %s21, 192
    %v1256 = vld [vmem:[%s1255] sm:$0xff]
    %v1257 = vld [vmem:[%s1255 + $0x8] sm:$0xff]
    %v1258 = vld [vmem:[%s1255 + $0x10] sm:$0xff]
    %v1259 = vld [vmem:[%s1255 + $0x18] sm:$0xff]
    %s1260 = scalar_lea.vmem [#allocation14], 6
    %v1261 = vld [vmem:[%s1260] sm:$0x1]
    %s1262 = scalar_lea.vmem %s21, 224
    %v1263 = vld [vmem:[%s1262] sm:$0xff]
    %v1264 = vld [vmem:[%s1262 + $0x8] sm:$0xff]
    %v1265 = vld [vmem:[%s1262 + $0x10] sm:$0xff]
    %v1266 = vld [vmem:[%s1262 + $0x18] sm:$0xff]
    %s1267 = scalar_lea.vmem [#allocation14], 7
    %v1268 = vld [vmem:[%s1267] sm:$0x1]
    %v1270 = vperm.slane %v1247, 0
    %v1273 = vsel %vm482, %v1239, 0
    %v1276 = vsel %vm482, %v1240, 0
    %1278 = vmatpush.msra.mxu0 0.0
    %1279 = vmatpush.msra.mxu0 0.0
    %1280 = vmatpush.msra.mxu0 0.0
    %1281 = vmatpush.msra.mxu0 0.0
    %1282 = vmatpush.msra.mxu0 0.0
    %1283 = vmatpush.msra.mxu0 0.0
    %1284 = vmatpush.msra.mxu0 0.0
    %1285 = vmatpush.msra.mxu0 0.0
    %1286 = vmatpush.msra.mxu0 0.0
    %1287 = vmatpush.msra.mxu0 0.0
    %1288 = vmatpush.msra.mxu0 0.0
    %1289 = vmatpush.msra.mxu0 0.0
    %1290 = vmatpush.msra.mxu0 %v1245
    %1291 = vmatpush.msra.mxu0 %v1244
    %1292 = vmatpush.msra.mxu0 %v1243
    %1293 = vmatpush.msra.mxu0 %v1242
    %1294 = vmatmul.f32.gmra.mxu0 %v1273
    %v1295 = vpop.f32.mrf.mxu0
    %v1296 = vadd.f32 %v1270, %v1295
    %1297 = vmatmul.f32.gmra.mxu0 %v1276
    %v1298 = vpop.f32.mrf.mxu0
    %v1299 = vadd.f32 %v1270, %v1298
    %1300 = vdwg.mxu0
    %v1302 = vperm.slane %v1254, 0
    %1304 = vmatpush.msra.mxu0 0.0
    %1305 = vmatpush.msra.mxu0 0.0
    %1306 = vmatpush.msra.mxu0 0.0
    %1307 = vmatpush.msra.mxu0 0.0
    %1308 = vmatpush.msra.mxu0 0.0
    %1309 = vmatpush.msra.mxu0 0.0
    %1310 = vmatpush.msra.mxu0 0.0
    %1311 = vmatpush.msra.mxu0 0.0
    %1312 = vmatpush.msra.mxu0 0.0
    %1313 = vmatpush.msra.mxu0 0.0
    %1314 = vmatpush.msra.mxu0 0.0
    %1315 = vmatpush.msra.mxu0 0.0
    %1316 = vmatpush.msra.mxu0 %v1252
    %1317 = vmatpush.msra.mxu0 %v1251
    %1318 = vmatpush.msra.mxu0 %v1250
    %1319 = vmatpush.msra.mxu0 %v1249
    %1320 = vmatmul.f32.gmra.mxu0 %v1273
    %v1321 = vpop.f32.mrf.mxu0
    %v1322 = vadd.f32 %v1302, %v1321
    %1323 = vmatmul.f32.gmra.mxu0 %v1276
    %v1324 = vpop.f32.mrf.mxu0
    %v1325 = vadd.f32 %v1302, %v1324
    %1326 = vdwg.mxu0
    %v1328 = vperm.slane %v1261, 0
    %1330 = vmatpush.msra.mxu0 0.0
    %1331 = vmatpush.msra.mxu0 0.0
    %1332 = vmatpush.msra.mxu0 0.0
    %1333 = vmatpush.msra.mxu0 0.0
    %1334 = vmatpush.msra.mxu0 0.0
    %1335 = vmatpush.msra.mxu0 0.0
    %1336 = vmatpush.msra.mxu0 0.0
    %1337 = vmatpush.msra.mxu0 0.0
    %1338 = vmatpush.msra.mxu0 0.0
    %1339 = vmatpush.msra.mxu0 0.0
    %1340 = vmatpush.msra.mxu0 0.0
    %1341 = vmatpush.msra.mxu0 0.0
    %1342 = vmatpush.msra.mxu0 %v1259
    %1343 = vmatpush.msra.mxu0 %v1258
    %1344 = vmatpush.msra.mxu0 %v1257
    %1345 = vmatpush.msra.mxu0 %v1256
    %1346 = vmatmul.f32.gmra.mxu0 %v1273
    %v1347 = vpop.f32.mrf.mxu0
    %v1348 = vadd.f32 %v1328, %v1347
    %1349 = vmatmul.f32.gmra.mxu0 %v1276
    %v1350 = vpop.f32.mrf.mxu0
    %v1351 = vadd.f32 %v1328, %v1350
    %1352 = vdwg.mxu0
    %v1354 = vperm.slane %v1268, 0
    %v1356 = vadd.f32 %v1354, 0.0
    %v1358 = vsel %vm694, %v1296, 0
    %v1361 = vsel %vm694, %v1322, 0
    %1363 = vmatpush.xpose.msra.mxu0 0.0
    %1364 = vmatpush.xpose.msra.mxu0 0.0
    %1365 = vmatpush.xpose.msra.mxu0 0.0
    %1366 = vmatpush.xpose.msra.mxu0 0.0
    %1367 = vmatpush.xpose.msra.mxu0 0.0
    %1368 = vmatpush.xpose.msra.mxu0 0.0
    %1369 = vmatpush.xpose.msra.mxu0 0.0
    %1370 = vmatpush.xpose.msra.mxu0 0.0
    %1371 = vmatpush.xpose.msra.mxu0 0.0
    %1372 = vmatpush.xpose.msra.mxu0 0.0
    %1373 = vmatpush.xpose.msra.mxu0 0.0
    %1374 = vmatpush.xpose.msra.mxu0 0.0
    %1375 = vmatpush.xpose.msra.mxu0 0.0
    %1376 = vmatpush.xpose.msra.mxu0 0.0
    %1377 = vmatpush.xpose.msra.mxu0 0.0
    %1378 = vmatpush.xpose.msra.mxu0 %v1361
    %1379 = vmatmul.f32.gmra.mxu0 %v1358
    %v1380 = vpop.f32.mrf.mxu0
    %v1381 = vadd.f32 0.0, %v1380
    %1382 = vdwg.mxu0
    %v1384 = vsel %vm694, %v1299, 0
    %v1387 = vsel %vm694, %v1325, 0
    %1389 = vmatpush.xpose.msra.mxu0 0.0
    %1390 = vmatpush.xpose.msra.mxu0 0.0
    %1391 = vmatpush.xpose.msra.mxu0 0.0
    %1392 = vmatpush.xpose.msra.mxu0 0.0
    %1393 = vmatpush.xpose.msra.mxu0 0.0
    %1394 = vmatpush.xpose.msra.mxu0 0.0
    %1395 = vmatpush.xpose.msra.mxu0 0.0
    %1396 = vmatpush.xpose.msra.mxu0 0.0
    %1397 = vmatpush.xpose.msra.mxu0 0.0
    %1398 = vmatpush.xpose.msra.mxu0 0.0
    %1399 = vmatpush.xpose.msra.mxu0 0.0
    %1400 = vmatpush.xpose.msra.mxu0 0.0
    %1401 = vmatpush.xpose.msra.mxu0 0.0
    %1402 = vmatpush.xpose.msra.mxu0 0.0
    %1403 = vmatpush.xpose.msra.mxu0 0.0
    %1404 = vmatpush.xpose.msra.mxu0 %v1387
    %1405 = vmatmul.f32.gmra.mxu0 %v1384
    %v1406 = vpop.f32.mrf.mxu0
    %v1407 = vadd.f32 0.0, %v1406
    %1408 = vdwg.mxu0
    %v1409 = vmul.f32 %v1381, 0.25
    %v1410 = vmul.f32 %v1407, 0.25
    %v1411 = vadd.f32 %v1409, %v749
    %v1412 = vadd.f32 %v1410, %v750
    %v1413 = vsel %vm755, %v1411, -inf
    %1414 = vmax.xlane.f32.xlu0 %v1413
    %v1415 = vpop.xlane.xlu0 %1414
    %v1416 = vsel %vm755, %v1412, -inf
    %1417 = vmax.xlane.f32.xlu0 %v1416
    %v1418 = vpop.xlane.xlu0 %1417
    %v1419 = vsub.f32 %v1411, %v1415
    %v1420 = vsub.f32 %v1412, %v1418
    %v1421 = vmul.f32 %v1419, 1.442695
    %v1422 = vpow.pop %v1421
    %v1423 = vmul.f32 %v1420, 1.442695
    %v1424 = vpow.pop %v1423
    %v1425 = vsel %vm755, %v1422, 0.0
    %1426 = vadd.xlane.f32.xlu0 %v1425
    %v1427 = vpop.xlane.xlu0 %1426
    %v1428 = vsel %vm755, %v1424, 0.0
    %1429 = vadd.xlane.f32.xlu0 %v1428
    %v1430 = vpop.xlane.xlu0 %1429
    %v1431 = vrcp.pop %v1427
    %v1432 = vrcp.pop %v1430
    %v1433 = vmul.f32 %v1422, %v1431
    %v1434 = vmul.f32 %v1424, %v1432
    %v1436 = vsel %vm755, %v1433, 0
    %1438 = vmatpush.msra.mxu0 0.0
    %1439 = vmatpush.msra.mxu0 0.0
    %1440 = vmatpush.msra.mxu0 0.0
    %1441 = vmatpush.msra.mxu0 0.0
    %1442 = vmatpush.msra.mxu0 0.0
    %1443 = vmatpush.msra.mxu0 0.0
    %1444 = vmatpush.msra.mxu0 0.0
    %1445 = vmatpush.msra.mxu0 0.0
    %1446 = vmatpush.msra.mxu0 0.0
    %1447 = vmatpush.msra.mxu0 0.0
    %1448 = vmatpush.msra.mxu0 0.0
    %1449 = vmatpush.msra.mxu0 0.0
    %1450 = vmatpush.msra.mxu0 0.0
    %1451 = vmatpush.msra.mxu0 0.0
    %1452 = vmatpush.msra.mxu0 0.0
    %1453 = vmatpush.msra.mxu0 %v1348
    %1454 = vmatmul.f32.gmra.mxu0 %v1436
    %v1455 = vpop.f32.mrf.mxu0
    %v1456 = vadd.f32 0.0, %v1455
    %1457 = vdwg.mxu0
    %v1459 = vsel %vm755, %v1434, 0
    %1461 = vmatpush.msra.mxu0 0.0
    %1462 = vmatpush.msra.mxu0 0.0
    %1463 = vmatpush.msra.mxu0 0.0
    %1464 = vmatpush.msra.mxu0 0.0
    %1465 = vmatpush.msra.mxu0 0.0
    %1466 = vmatpush.msra.mxu0 0.0
    %1467 = vmatpush.msra.mxu0 0.0
    %1468 = vmatpush.msra.mxu0 0.0
    %1469 = vmatpush.msra.mxu0 0.0
    %1470 = vmatpush.msra.mxu0 0.0
    %1471 = vmatpush.msra.mxu0 0.0
    %1472 = vmatpush.msra.mxu0 0.0
    %1473 = vmatpush.msra.mxu0 0.0
    %1474 = vmatpush.msra.mxu0 0.0
    %1475 = vmatpush.msra.mxu0 0.0
    %1476 = vmatpush.msra.mxu0 %v1351
    %1477 = vmatmul.f32.gmra.mxu0 %v1459
    %v1478 = vpop.f32.mrf.mxu0
    %v1479 = vadd.f32 0.0, %v1478
    %1480 = vdwg.mxu0
    %v1482 = vsel %vm694, %v1456, 0
    %v1485 = vsel %vm694, %v1479, 0
    %1487 = vmatpush.msra.mxu0 0.0
    %1488 = vmatpush.msra.mxu0 0.0
    %1489 = vmatpush.msra.mxu0 0.0
    %1490 = vmatpush.msra.mxu0 0.0
    %1491 = vmatpush.msra.mxu0 0.0
    %1492 = vmatpush.msra.mxu0 0.0
    %1493 = vmatpush.msra.mxu0 0.0
    %1494 = vmatpush.msra.mxu0 0.0
    %1495 = vmatpush.msra.mxu0 0.0
    %1496 = vmatpush.msra.mxu0 0.0
    %1497 = vmatpush.msra.mxu0 0.0
    %1498 = vmatpush.msra.mxu0 0.0
    %1499 = vmatpush.msra.mxu0 0.0
    %1500 = vmatpush.msra.mxu0 0.0
    %1501 = vmatpush.msra.mxu0 %v1264
    %1502 = vmatpush.msra.mxu0 %v1263
    %1503 = vmatmul.f32.gmra.mxu0 %v1482
    %v1504 = vpop.f32.mrf.mxu0
    %v1505 = vadd.f32 0.0, %v1504
    %1506 = vmatmul.f32.gmra.mxu0 %v1485
    %v1507 = vpop.f32.mrf.mxu0
    %v1508 = vadd.f32 0.0, %v1507
    %1509 = vdwg.mxu0
    %v1510 = vadd.f32 %v1356, %v1505
    %v1511 = vadd.f32 %v1356, %v1508
    %1512 = vrot.lane.b32.xlu0 %v1296, 112
    %v1513 = vpop.permute.xlu0 %1512
    %1514 = vrot.lane.b32.xlu0 %v1322, 112
    %v1515 = vpop.permute.xlu0 %1514
    %v1516 = vsel %vm694, %v1513, 0
    %v1518 = vsel %vm694, %v1515, 0
    %1520 = vmatpush.xpose.msra.mxu0 0.0
    %1521 = vmatpush.xpose.msra.mxu0 0.0
    %1522 = vmatpush.xpose.msra.mxu0 0.0
    %1523 = vmatpush.xpose.msra.mxu0 0.0
    %1524 = vmatpush.xpose.msra.mxu0 0.0
    %1525 = vmatpush.xpose.msra.mxu0 0.0
    %1526 = vmatpush.xpose.msra.mxu0 0.0
    %1527 = vmatpush.xpose.msra.mxu0 0.0
    %1528 = vmatpush.xpose.msra.mxu0 0.0
    %1529 = vmatpush.xpose.msra.mxu0 0.0
    %1530 = vmatpush.xpose.msra.mxu0 0.0
    %1531 = vmatpush.xpose.msra.mxu0 0.0
    %1532 = vmatpush.xpose.msra.mxu0 0.0
    %1533 = vmatpush.xpose.msra.mxu0 0.0
    %1534 = vmatpush.xpose.msra.mxu0 0.0
    %1535 = vmatpush.xpose.msra.mxu0 %v1518
    %1536 = vmatmul.f32.gmra.mxu0 %v1516
    %v1537 = vpop.f32.mrf.mxu0
    %v1538 = vadd.f32 0.0, %v1537
    %1539 = vdwg.mxu0
    %1540 = vrot.lane.b32.xlu0 %v1299, 112
    %v1541 = vpop.permute.xlu0 %1540
    %1542 = vrot.lane.b32.xlu0 %v1325, 112
    %v1543 = vpop.permute.xlu0 %1542
    %v1544 = vsel %vm694, %v1541, 0
    %v1546 = vsel %vm694, %v1543, 0
    %1548 = vmatpush.xpose.msra.mxu0 0.0
    %1549 = vmatpush.xpose.msra.mxu0 0.0
    %1550 = vmatpush.xpose.msra.mxu0 0.0
    %1551 = vmatpush.xpose.msra.mxu0 0.0
    %1552 = vmatpush.xpose.msra.mxu0 0.0
    %1553 = vmatpush.xpose.msra.mxu0 0.0
    %1554 = vmatpush.xpose.msra.mxu0 0.0
    %1555 = vmatpush.xpose.msra.mxu0 0.0
    %1556 = vmatpush.xpose.msra.mxu0 0.0
    %1557 = vmatpush.xpose.msra.mxu0 0.0
    %1558 = vmatpush.xpose.msra.mxu0 0.0
    %1559 = vmatpush.xpose.msra.mxu0 0.0
    %1560 = vmatpush.xpose.msra.mxu0 0.0
    %1561 = vmatpush.xpose.msra.mxu0 0.0
    %1562 = vmatpush.xpose.msra.mxu0 0.0
    %1563 = vmatpush.xpose.msra.mxu0 %v1546
    %1564 = vmatmul.f32.gmra.mxu0 %v1544
    %v1565 = vpop.f32.mrf.mxu0
    %v1566 = vadd.f32 0.0, %v1565
    %1567 = vdwg.mxu0
    %v1568 = vmul.f32 %v1538, 0.25
    %v1569 = vmul.f32 %v1566, 0.25
    %v1570 = vadd.f32 %v1568, %v749
    %v1571 = vadd.f32 %v1569, %v750
    %v1572 = vsel %vm755, %v1570, -inf
    %1573 = vmax.xlane.f32.xlu0 %v1572
    %v1574 = vpop.xlane.xlu0 %1573
    %v1575 = vsel %vm755, %v1571, -inf
    %1576 = vmax.xlane.f32.xlu0 %v1575
    %v1577 = vpop.xlane.xlu0 %1576
    %v1578 = vsub.f32 %v1570, %v1574
    %v1579 = vsub.f32 %v1571, %v1577
    %v1580 = vmul.f32 %v1578, 1.442695
    %v1581 = vpow.pop %v1580
    %v1582 = vmul.f32 %v1579, 1.442695
    %v1583 = vpow.pop %v1582
    %v1584 = vsel %vm755, %v1581, 0.0
    %1585 = vadd.xlane.f32.xlu0 %v1584
    %v1586 = vpop.xlane.xlu0 %1585
    %v1587 = vsel %vm755, %v1583, 0.0
    %1588 = vadd.xlane.f32.xlu0 %v1587
    %v1589 = vpop.xlane.xlu0 %1588
    %v1590 = vrcp.pop %v1586
    %v1591 = vrcp.pop %v1589
    %v1592 = vmul.f32 %v1581, %v1590
    %v1593 = vmul.f32 %v1583, %v1591
    %1595 = vrot.lane.b32.xlu0 %v1348, 112
    %v1596 = vpop.permute.xlu0 %1595
    %v1599 = vsel %vm755, %v1592, 0
    %1601 = vmatpush.msra.mxu0 0.0
    %1602 = vmatpush.msra.mxu0 0.0
    %1603 = vmatpush.msra.mxu0 0.0
    %1604 = vmatpush.msra.mxu0 0.0
    %1605 = vmatpush.msra.mxu0 0.0
    %1606 = vmatpush.msra.mxu0 0.0
    %1607 = vmatpush.msra.mxu0 0.0
    %1608 = vmatpush.msra.mxu0 0.0
    %1609 = vmatpush.msra.mxu0 0.0
    %1610 = vmatpush.msra.mxu0 0.0
    %1611 = vmatpush.msra.mxu0 0.0
    %1612 = vmatpush.msra.mxu0 0.0
    %1613 = vmatpush.msra.mxu0 0.0
    %1614 = vmatpush.msra.mxu0 0.0
    %1615 = vmatpush.msra.mxu0 0.0
    %1616 = vmatpush.msra.mxu0 %v1596
    %1617 = vmatmul.f32.gmra.mxu0 %v1599
    %v1618 = vpop.f32.mrf.mxu0
    %v1619 = vadd.f32 0.0, %v1618
    %1620 = vdwg.mxu0
    %1622 = vrot.lane.b32.xlu0 %v1351, 112
    %v1623 = vpop.permute.xlu0 %1622
    %v1626 = vsel %vm755, %v1593, 0
    %1628 = vmatpush.msra.mxu0 0.0
    %1629 = vmatpush.msra.mxu0 0.0
    %1630 = vmatpush.msra.mxu0 0.0
    %1631 = vmatpush.msra.mxu0 0.0
    %1632 = vmatpush.msra.mxu0 0.0
    %1633 = vmatpush.msra.mxu0 0.0
    %1634 = vmatpush.msra.mxu0 0.0
    %1635 = vmatpush.msra.mxu0 0.0
    %1636 = vmatpush.msra.mxu0 0.0
    %1637 = vmatpush.msra.mxu0 0.0
    %1638 = vmatpush.msra.mxu0 0.0
    %1639 = vmatpush.msra.mxu0 0.0
    %1640 = vmatpush.msra.mxu0 0.0
    %1641 = vmatpush.msra.mxu0 0.0
    %1642 = vmatpush.msra.mxu0 0.0
    %1643 = vmatpush.msra.mxu0 %v1623
    %1644 = vmatmul.f32.gmra.mxu0 %v1626
    %v1645 = vpop.f32.mrf.mxu0
    %v1646 = vadd.f32 0.0, %v1645
    %1647 = vdwg.mxu0
    %v1649 = vsel %vm694, %v1619, 0
    %v1652 = vsel %vm694, %v1646, 0
    %1654 = vmatpush.msra.mxu0 0.0
    %1655 = vmatpush.msra.mxu0 0.0
    %1656 = vmatpush.msra.mxu0 0.0
    %1657 = vmatpush.msra.mxu0 0.0
    %1658 = vmatpush.msra.mxu0 0.0
    %1659 = vmatpush.msra.mxu0 0.0
    %1660 = vmatpush.msra.mxu0 0.0
    %1661 = vmatpush.msra.mxu0 0.0
    %1662 = vmatpush.msra.mxu0 0.0
    %1663 = vmatpush.msra.mxu0 0.0
    %1664 = vmatpush.msra.mxu0 0.0
    %1665 = vmatpush.msra.mxu0 0.0
    %1666 = vmatpush.msra.mxu0 0.0
    %1667 = vmatpush.msra.mxu0 0.0
    %1668 = vmatpush.msra.mxu0 %v1266
    %1669 = vmatpush.msra.mxu0 %v1265
    %1670 = vmatmul.f32.gmra.mxu0 %v1649
    %v1671 = vpop.f32.mrf.mxu0
    %v1672 = vadd.f32 0.0, %v1671
    %1673 = vmatmul.f32.gmra.mxu0 %v1652
    %v1674 = vpop.f32.mrf.mxu0
    %v1675 = vadd.f32 0.0, %v1674
    %1676 = vdwg.mxu0
    %v1677 = vadd.f32 %v1510, %v1672
    %v1678 = vadd.f32 %v1511, %v1675
    %v1679 = vadd.f32 %v1181, %v1677
    %v1680 = vadd.f32 %v1182, %v1678
    %s1681 = scalar_lea.vmem [#allocation13], 6
    %v1682 = vld [vmem:[%s1681] sm:$0x1]
    %s1683 = scalar_lea.vmem [#allocation13], 7
    %v1684 = vld [vmem:[%s1683] sm:$0x1]
    %v1685 = vsel %vm482, %v1679, 0.0
    %1686 = vadd.xlane.f32.xlu0 %v1685
    %v1687 = vpop.xlane.xlu0 %1686
    %v1688 = vsel %vm482, %v1680, 0.0
    %1689 = vadd.xlane.f32.xlu0 %v1688
    %v1690 = vpop.xlane.xlu0 %1689
    %v1691 = vmul.f32 %v1687, %v531
    %v1692 = vmul.f32 %v1690, %v531
    %v1693 = vsub.f32 %v1679, %v1691
    %v1694 = vsub.f32 %v1680, %v1692
    %v1695 = vmul.f32 %v1693, %v1693
    %v1696 = vmul.f32 %v1694, %v1694
    %v1697 = vsel %vm482, %v1695, 0.0
    %1698 = vadd.xlane.f32.xlu0 %v1697
    %v1699 = vpop.xlane.xlu0 %1698
    %v1700 = vsel %vm482, %v1696, 0.0
    %1701 = vadd.xlane.f32.xlu0 %v1700
    %v1702 = vpop.xlane.xlu0 %1701
    %v1703 = vmul.f32 %v1699, %v531
    %v1704 = vmul.f32 %v1702, %v531
    %v1705 = vadd.f32 %v1703, 1e-05
    %v1706 = vadd.f32 %v1704, 1e-05
    %v1707 = vrsqrt.pop %v1705
    %v1708 = vmul.f32 %v1707, %v1705
    %v1709 = vmul.f32 %v1708, %v1707
    %v1710 = vmul.f32 0.5, %v1709
    %v1711 = vsub.f32 1.5, %v1710
    %v1712 = vmul.f32 %v1707, %v1711
    %vm1713 = vweird.f32 %v1705
    %vm1714 = vweird.f32 %v1707
    %vm1715 = vmor %vm1713, %vm1714
    %v1716 = vsel %vm1715, %v1707, %v1712
    %v1717 = vrsqrt.pop %v1706
    %v1718 = vmul.f32 %v1717, %v1706
    %v1719 = vmul.f32 %v1718, %v1717
    %v1720 = vmul.f32 0.5, %v1719
    %v1721 = vsub.f32 1.5, %v1720
    %v1722 = vmul.f32 %v1717, %v1721
    %vm1723 = vweird.f32 %v1706
    %vm1724 = vweird.f32 %v1717
    %vm1725 = vmor %vm1723, %vm1724
    %v1726 = vsel %vm1725, %v1717, %v1722
    %v1727 = vmul.f32 %v1693, %v1716
    %v1728 = vmul.f32 %v1694, %v1726
    %v1730 = vperm.slane %v1682, 0
    %v1732 = vmul.f32 %v1727, %v1730
    %v1733 = vmul.f32 %v1728, %v1730
    %v1735 = vperm.slane %v1684, 0
    %v1737 = vadd.f32 %v1732, %v1735
    %v1738 = vadd.f32 %v1733, %v1735
    %s1739 = scalar_lea.vmem [#allocation16], 32
    %v1740 = vld [vmem:[%s1739] sm:$0xff]
    %v1741 = vld [vmem:[%s1739 + $0x8] sm:$0xff]
    %v1742 = vld [vmem:[%s1739 + $0x10] sm:$0xff]
    %v1743 = vld [vmem:[%s1739 + $0x18] sm:$0xff]
    %s1744 = scalar_lea.vmem [#allocation17], 1
    %v1745 = vld [vmem:[%s1744] sm:$0x1]
    %v1747 = vperm.slane %v1745, 0
    %v1750 = vsel %vm482, %v1737, 0
    %v1753 = vsel %vm482, %v1738, 0
    %1755 = vmatpush.msra.mxu0 0.0
    %1756 = vmatpush.msra.mxu0 0.0
    %1757 = vmatpush.msra.mxu0 0.0
    %1758 = vmatpush.msra.mxu0 0.0
    %1759 = vmatpush.msra.mxu0 0.0
    %1760 = vmatpush.msra.mxu0 0.0
    %1761 = vmatpush.msra.mxu0 0.0
    %1762 = vmatpush.msra.mxu0 0.0
    %1763 = vmatpush.msra.mxu0 0.0
    %1764 = vmatpush.msra.mxu0 0.0
    %1765 = vmatpush.msra.mxu0 0.0
    %1766 = vmatpush.msra.mxu0 0.0
    %1767 = vmatpush.msra.mxu0 %v1743
    %1768 = vmatpush.msra.mxu0 %v1742
    %1769 = vmatpush.msra.mxu0 %v1741
    %1770 = vmatpush.msra.mxu0 %v1740
    %1771 = vmatmul.f32.gmra.mxu0 %v1750
    %v1772 = vpop.f32.mrf.mxu0
    %v1773 = vadd.f32 %v1747, %v1772
    %1774 = vmatmul.f32.gmra.mxu0 %v1753
    %v1775 = vpop.f32.mrf.mxu0
    %v1776 = vadd.f32 %v1747, %v1775
    %1777 = vdwg.mxu0
    %v1778 = vmul.f32 %v1773, %v1773
    %v1779 = vmul.f32 %v1776, %v1776
    %v1780 = vmul.f32 %v1773, %v1778
    %v1781 = vmul.f32 %v1776, %v1779
    %v1782 = vmul.f32 %v1780, 0.044715
    %v1783 = vmul.f32 %v1781, 0.044715
    %v1784 = vadd.f32 %v1773, %v1782
    %v1785 = vadd.f32 %v1776, %v1783
    %v1786 = vmul.f32 %v1784, 0.7978846
    %v1787 = vmul.f32 %v1785, 0.7978846
    %v1788 = vtanh.pop %v1786
    %v1789 = vtanh.pop %v1787
    %v1790 = vadd.f32 %v1788, 1.0
    %v1791 = vadd.f32 %v1789, 1.0
    %v1792 = vmul.f32 %v1790, 0.5
    %v1793 = vmul.f32 %v1791, 0.5
    %v1794 = vmul.f32 %v1773, %v1792
    %v1795 = vmul.f32 %v1776, %v1793
    %s1796 = scalar_lea.vmem %s29, 64
    %v1797 = vld [vmem:[%s1796] sm:$0xff]
    %v1798 = vld [vmem:[%s1796 + $0x8] sm:$0xff]
    %v1799 = vld [vmem:[%s1796 + $0x10] sm:$0xff]
    %v1800 = vld [vmem:[%s1796 + $0x18] sm:$0xff]
    %v1801 = vld [vmem:[%s1796 + $0x20] sm:$0xff]
    %v1802 = vld [vmem:[%s1796 + $0x28] sm:$0xff]
    %v1803 = vld [vmem:[%s1796 + $0x30] sm:$0xff]
    %v1804 = vld [vmem:[%s1796 + $0x38] sm:$0xff]
    %v1806 = vsel %vm1145, %v1794, 0
    %v1809 = vsel %vm1145, %v1795, 0
    %1811 = vmatpush.msra.mxu0 0.0
    %1812 = vmatpush.msra.mxu0 0.0
    %1813 = vmatpush.msra.mxu0 0.0
    %1814 = vmatpush.msra.mxu0 0.0
    %1815 = vmatpush.msra.mxu0 0.0
    %1816 = vmatpush.msra.mxu0 0.0
    %1817 = vmatpush.msra.mxu0 0.0
    %1818 = vmatpush.msra.mxu0 0.0
    %1819 = vmatpush.msra.mxu0 %v1804
    %1820 = vmatpush.msra.mxu0 %v1803
    %1821 = vmatpush.msra.mxu0 %v1802
    %1822 = vmatpush.msra.mxu0 %v1801
    %1823 = vmatpush.msra.mxu0 %v1800
    %1824 = vmatpush.msra.mxu0 %v1799
    %1825 = vmatpush.msra.mxu0 %v1798
    %1826 = vmatpush.msra.mxu0 %v1797
    %1827 = vmatmul.f32.gmra.mxu0 %v1806
    %v1828 = vpop.f32.mrf.mxu0
    %v1829 = vadd.f32 0.0, %v1828
    %1830 = vmatmul.f32.gmra.mxu0 %v1809
    %v1831 = vpop.f32.mrf.mxu0
    %v1832 = vadd.f32 0.0, %v1831
    %1833 = vdwg.mxu0
    %v1834 = vadd.f32 %v1679, %v1829
    %v1835 = vadd.f32 %v1680, %v1832
    %s1836 = scalar_lea.vmem [#allocation19], 1
    %v1837 = vld [vmem:[%s1836] sm:$0x1]
    %v1839 = vperm.slane %v1837, 0
    %v1841 = vadd.f32 %v1834, %v1839
    %v1842 = vadd.f32 %v1835, %v1839
    %v1843 = vld [vmem:[#allocation20] sm:$0x1]
    %s1844 = scalar_lea.vmem [#allocation20], 1
    %v1845 = vld [vmem:[%s1844] sm:$0x1]
    %v1846 = vsel %vm482, %v1841, 0.0
    %1847 = vadd.xlane.f32.xlu0 %v1846
    %v1848 = vpop.xlane.xlu0 %1847
    %v1849 = vsel %vm482, %v1842, 0.0
    %1850 = vadd.xlane.f32.xlu0 %v1849
    %v1851 = vpop.xlane.xlu0 %1850
    %v1852 = vmul.f32 %v1848, %v531
    %v1853 = vmul.f32 %v1851, %v531
    %v1854 = vsub.f32 %v1841, %v1852
    %v1855 = vsub.f32 %v1842, %v1853
    %v1856 = vmul.f32 %v1854, %v1854
    %v1857 = vmul.f32 %v1855, %v1855
    %v1858 = vsel %vm482, %v1856, 0.0
    %1859 = vadd.xlane.f32.xlu0 %v1858
    %v1860 = vpop.xlane.xlu0 %1859
    %v1861 = vsel %vm482, %v1857, 0.0
    %1862 = vadd.xlane.f32.xlu0 %v1861
    %v1863 = vpop.xlane.xlu0 %1862
    %v1864 = vmul.f32 %v1860, %v531
    %v1865 = vmul.f32 %v1863, %v531
    %v1866 = vadd.f32 %v1864, 1e-05
    %v1867 = vadd.f32 %v1865, 1e-05
    %v1868 = vrsqrt.pop %v1866
    %v1869 = vmul.f32 %v1868, %v1866
    %v1870 = vmul.f32 %v1869, %v1868
    %v1871 = vmul.f32 0.5, %v1870
    %v1872 = vsub.f32 1.5, %v1871
    %v1873 = vmul.f32 %v1868, %v1872
    %vm1874 = vweird.f32 %v1866
    %vm1875 = vweird.f32 %v1868
    %vm1876 = vmor %vm1874, %vm1875
    %v1877 = vsel %vm1876, %v1868, %v1873
    %v1878 = vrsqrt.pop %v1867
    %v1879 = vmul.f32 %v1878, %v1867
    %v1880 = vmul.f32 %v1879, %v1878
    %v1881 = vmul.f32 0.5, %v1880
    %v1882 = vsub.f32 1.5, %v1881
    %v1883 = vmul.f32 %v1878, %v1882
    %vm1884 = vweird.f32 %v1867
    %vm1885 = vweird.f32 %v1878
    %vm1886 = vmor %vm1884, %vm1885
    %v1887 = vsel %vm1886, %v1878, %v1883
    %v1888 = vmul.f32 %v1854, %v1877
    %v1889 = vmul.f32 %v1855, %v1887
    %v1891 = vperm.slane %v1843, 0
    %v1893 = vmul.f32 %v1888, %v1891
    %v1894 = vmul.f32 %v1889, %v1891
    %v1896 = vperm.slane %v1845, 0
    %v1898 = vadd.f32 %v1893, %v1896
    %v1899 = vadd.f32 %v1894, %v1896
    %v1900 = vld [vmem:[%s35] sm:$0xff]
    %v1901 = vld [vmem:[%s35 + $0x8] sm:$0xff]
    %v1902 = vld [vmem:[%s35 + $0x10] sm:$0xff]
    %v1903 = vld [vmem:[%s35 + $0x18] sm:$0xff]
    %v1904 = vld [vmem:[%s37] sm:$0x1]
    %v1906 = vperm.slane %v1904, 0
    %v1909 = vsel %vm482, %v1898, 0
    %v1912 = vsel %vm482, %v1899, 0
    %1914 = vmatpush.msra.mxu0 0.0
    %1915 = vmatpush.msra.mxu0 0.0
    %1916 = vmatpush.msra.mxu0 0.0
    %1917 = vmatpush.msra.mxu0 0.0
    %1918 = vmatpush.msra.mxu0 0.0
    %1919 = vmatpush.msra.mxu0 0.0
    %1920 = vmatpush.msra.mxu0 0.0
    %1921 = vmatpush.msra.mxu0 0.0
    %1922 = vmatpush.msra.mxu0 0.0
    %1923 = vmatpush.msra.mxu0 0.0
    %1924 = vmatpush.msra.mxu0 0.0
    %1925 = vmatpush.msra.mxu0 0.0
    %1926 = vmatpush.msra.mxu0 %v1903
    %1927 = vmatpush.msra.mxu0 %v1902
    %1928 = vmatpush.msra.mxu0 %v1901
    %1929 = vmatpush.msra.mxu0 %v1900
    %1930 = vmatmul.f32.gmra.mxu0 %v1909
    %v1931 = vpop.f32.mrf.mxu0
    %v1932 = vadd.f32 %v1906, %v1931
    %1933 = vmatmul.f32.gmra.mxu0 %v1912
    %v1934 = vpop.f32.mrf.mxu0
    %v1935 = vadd.f32 %v1906, %v1934
    %1936 = vdwg.mxu0
    %v1937 = vsel %vm694, %v1932, -inf
    %1938 = vmax.xlane.f32.xlu0 %v1937
    %v1939 = vpop.xlane.xlu0 %1938
    %v1940 = vsel %vm694, %v1935, -inf
    %1941 = vmax.xlane.f32.xlu0 %v1940
    %v1942 = vpop.xlane.xlu0 %1941
    %v1943 = vsub.f32 %v1932, %v1939
    %v1944 = vsub.f32 %v1935, %v1942
    %v1945 = vmul.f32 %v1943, 1.442695
    %v1946 = vpow.pop %v1945
    %v1947 = vmul.f32 %v1944, 1.442695
    %v1948 = vpow.pop %v1947
    %v1949 = vsel %vm694, %v1946, 0.0
    %1950 = vadd.xlane.f32.xlu0 %v1949
    %v1951 = vpop.xlane.xlu0 %1950
    %v1952 = vsel %vm694, %v1948, 0.0
    %1953 = vadd.xlane.f32.xlu0 %v1952
    %v1954 = vpop.xlane.xlu0 %1953
    %v1955 = vlog2.pop %v1951
    %v1956 = vmul.f32 %v1955, 0.6931472
    %v1957 = vlog2.pop %v1954
    %v1958 = vmul.f32 %v1957, 0.6931472
    %v1959 = vadd.f32 %v1939, %v1956
    %v1960 = vadd.f32 %v1942, %v1958
    %v1961 = vsub.f32 %v1932, %v1959
    %v1962 = vsub.f32 %v1935, %v1960
    %1963 = vst.msk [vmem:[#allocation35] sm:$0xff] %vm694, %v1961
    %1964 = vst.msk [vmem:[#allocation35 + $0x8] sm:$0xff] %vm694, %v1962
    %v1965 = vld [vmem:[%s1] sm:$0xff]
    %v1966 = vld [vmem:[%s1 + $0x8] sm:$0xff]
    %1967 = vset.pattern.permute.xlu0 0
    %1968 = vperm.xlu0 %1967, %v1965
    %v1969 = vpop.permute.xlu0 %1968
    %1970 = vset.pattern.permute.xlu0 0
    %1971 = vperm.xlu0 %1970, %v1966
    %v1972 = vpop.permute.xlu0 %1971
    %vm1973 = vcmp.eq.s32.totalorder %v445, %v1969
    %vm1974 = vcmp.eq.s32.totalorder %v445, %v1972
    %v1975 = vsel %vm1973, 1, 0
    %v1976 = vsel %vm1974, 1, 0
    %v1977 = vcvt.s32.f32 %v1975
    %v1978 = vcvt.s32.f32 %v1976
    %v1979 = vld [vmem:[#allocation11] sm:$0xff]
    %v1980 = vld [vmem:[#allocation11 + $0x8] sm:$0xff]
    %v1981 = vld [vmem:[#allocation7] sm:$0xff]
    %v1982 = vld [vmem:[#allocation7 + $0x8] sm:$0xff]
    %v1984 = vsel %vm694, %v1977, 0
    %v1987 = vsel %vm694, %v1978, 0
    %1989 = vmatpush.msra.mxu0 0.0
    %1990 = vmatpush.msra.mxu0 0.0
    %1991 = vmatpush.msra.mxu0 0.0
    %1992 = vmatpush.msra.mxu0 0.0
    %1993 = vmatpush.msra.mxu0 0.0
    %1994 = vmatpush.msra.mxu0 0.0
    %1995 = vmatpush.msra.mxu0 0.0
    %1996 = vmatpush.msra.mxu0 0.0
    %1997 = vmatpush.msra.mxu0 0.0
    %1998 = vmatpush.msra.mxu0 0.0
    %1999 = vmatpush.msra.mxu0 0.0
    %2000 = vmatpush.msra.mxu0 0.0
    %2001 = vmatpush.msra.mxu0 0.0
    %2002 = vmatpush.msra.mxu0 0.0
    %2003 = vmatpush.msra.mxu0 %v1980
    %2004 = vmatpush.msra.mxu0 %v1979
    %2005 = vmatmul.f32.gmra.mxu0 %v1984
    %v2006 = vpop.f32.mrf.mxu0
    %v2007 = vadd.f32 %v1981, %v2006
    %2008 = vmatmul.f32.gmra.mxu0 %v1987
    %v2009 = vpop.f32.mrf.mxu0
    %v2010 = vadd.f32 %v1982, %v2009
    %2011 = vdwg.mxu0
    %v2012 = vld [vmem:[#allocation22] sm:$0x1]
    %s2013 = scalar_lea.vmem [#allocation22], 1
    %v2014 = vld [vmem:[%s2013] sm:$0x1]
    %v2015 = vsel %vm482, %v2007, 0.0
    %2016 = vadd.xlane.f32.xlu0 %v2015
    %v2017 = vpop.xlane.xlu0 %2016
    %v2018 = vsel %vm482, %v2010, 0.0
    %2019 = vadd.xlane.f32.xlu0 %v2018
    %v2020 = vpop.xlane.xlu0 %2019
    %v2021 = vmul.f32 %v2017, %v531
    %v2022 = vmul.f32 %v2020, %v531
    %v2023 = vsub.f32 %v2007, %v2021
    %v2024 = vsub.f32 %v2010, %v2022
    %v2025 = vmul.f32 %v2023, %v2023
    %v2026 = vmul.f32 %v2024, %v2024
    %v2027 = vsel %vm482, %v2025, 0.0
    %2028 = vadd.xlane.f32.xlu0 %v2027
    %v2029 = vpop.xlane.xlu0 %2028
    %v2030 = vsel %vm482, %v2026, 0.0
    %2031 = vadd.xlane.f32.xlu0 %v2030
    %v2032 = vpop.xlane.xlu0 %2031
    %v2033 = vmul.f32 %v2029, %v531
    %v2034 = vmul.f32 %v2032, %v531
    %v2035 = vadd.f32 %v2033, 1e-05
    %v2036 = vadd.f32 %v2034, 1e-05
    %v2037 = vrsqrt.pop %v2035
    %v2038 = vmul.f32 %v2037, %v2035
    %v2039 = vmul.f32 %v2038, %v2037
    %v2040 = vmul.f32 0.5, %v2039
    %v2041 = vsub.f32 1.5, %v2040
    %v2042 = vmul.f32 %v2037, %v2041
    %vm2043 = vweird.f32 %v2035
    %vm2044 = vweird.f32 %v2037
    %vm2045 = vmor %vm2043, %vm2044
    %v2046 = vsel %vm2045, %v2037, %v2042
    %v2047 = vrsqrt.pop %v2036
    %v2048 = vmul.f32 %v2047, %v2036
    %v2049 = vmul.f32 %v2048, %v2047
    %v2050 = vmul.f32 0.5, %v2049
    %v2051 = vsub.f32 1.5, %v2050
    %v2052 = vmul.f32 %v2047, %v2051
    %vm2053 = vweird.f32 %v2036
    %vm2054 = vweird.f32 %v2047
    %vm2055 = vmor %vm2053, %vm2054
    %v2056 = vsel %vm2055, %v2047, %v2052
    %v2057 = vmul.f32 %v2023, %v2046
    %v2058 = vmul.f32 %v2024, %v2056
    %v2060 = vperm.slane %v2012, 0
    %v2062 = vmul.f32 %v2057, %v2060
    %v2063 = vmul.f32 %v2058, %v2060
    %v2065 = vperm.slane %v2014, 0
    %v2067 = vadd.f32 %v2062, %v2065
    %v2068 = vadd.f32 %v2063, %v2065
    %v2069 = vld [vmem:[%s41] sm:$0xff]
    %v2070 = vld [vmem:[%s41 + $0x8] sm:$0xff]
    %v2071 = vld [vmem:[%s41 + $0x10] sm:$0xff]
    %v2072 = vld [vmem:[%s41 + $0x18] sm:$0xff]
    %v2073 = vld [vmem:[#allocation23] sm:$0x1]
    %s2074 = scalar_lea.vmem %s41, 32
    %v2075 = vld [vmem:[%s2074] sm:$0xff]
    %v2076 = vld [vmem:[%s2074 + $0x8] sm:$0xff]
    %v2077 = vld [vmem:[%s2074 + $0x10] sm:$0xff]
    %v2078 = vld [vmem:[%s2074 + $0x18] sm:$0xff]
    %s2079 = scalar_lea.vmem [#allocation23], 1
    %v2080 = vld [vmem:[%s2079] sm:$0x1]
    %s2081 = scalar_lea.vmem %s41, 64
    %v2082 = vld [vmem:[%s2081] sm:$0xff]
    %v2083 = vld [vmem:[%s2081 + $0x8] sm:$0xff]
    %v2084 = vld [vmem:[%s2081 + $0x10] sm:$0xff]
    %v2085 = vld [vmem:[%s2081 + $0x18] sm:$0xff]
    %s2086 = scalar_lea.vmem [#allocation23], 2
    %v2087 = vld [vmem:[%s2086] sm:$0x1]
    %s2088 = scalar_lea.vmem %s41, 96
    %v2089 = vld [vmem:[%s2088] sm:$0xff]
    %v2090 = vld [vmem:[%s2088 + $0x8] sm:$0xff]
    %v2091 = vld [vmem:[%s2088 + $0x10] sm:$0xff]
    %v2092 = vld [vmem:[%s2088 + $0x18] sm:$0xff]
    %s2093 = scalar_lea.vmem [#allocation23], 3
    %v2094 = vld [vmem:[%s2093] sm:$0x1]
    %v2096 = vperm.slane %v2073, 0
    %v2099 = vsel %vm482, %v2067, 0
    %v2102 = vsel %vm482, %v2068, 0
    %2104 = vmatpush.msra.mxu0 0.0
    %2105 = vmatpush.msra.mxu0 0.0
    %2106 = vmatpush.msra.mxu0 0.0
    %2107 = vmatpush.msra.mxu0 0.0
    %2108 = vmatpush.msra.mxu0 0.0
    %2109 = vmatpush.msra.mxu0 0.0
    %2110 = vmatpush.msra.mxu0 0.0
    %2111 = vmatpush.msra.mxu0 0.0
    %2112 = vmatpush.msra.mxu0 0.0
    %2113 = vmatpush.msra.mxu0 0.0
    %2114 = vmatpush.msra.mxu0 0.0
    %2115 = vmatpush.msra.mxu0 0.0
    %2116 = vmatpush.msra.mxu0 %v2072
    %2117 = vmatpush.msra.mxu0 %v2071
    %2118 = vmatpush.msra.mxu0 %v2070
    %2119 = vmatpush.msra.mxu0 %v2069
    %2120 = vmatmul.f32.gmra.mxu0 %v2099
    %v2121 = vpop.f32.mrf.mxu0
    %v2122 = vadd.f32 %v2096, %v2121
    %2123 = vmatmul.f32.gmra.mxu0 %v2102
    %v2124 = vpop.f32.mrf.mxu0
    %v2125 = vadd.f32 %v2096, %v2124
    %2126 = vdwg.mxu0
    %v2128 = vperm.slane %v2080, 0
    %2130 = vmatpush.msra.mxu0 0.0
    %2131 = vmatpush.msra.mxu0 0.0
    %2132 = vmatpush.msra.mxu0 0.0
    %2133 = vmatpush.msra.mxu0 0.0
    %2134 = vmatpush.msra.mxu0 0.0
    %2135 = vmatpush.msra.mxu0 0.0
    %2136 = vmatpush.msra.mxu0 0.0
    %2137 = vmatpush.msra.mxu0 0.0
    %2138 = vmatpush.msra.mxu0 0.0
    %2139 = vmatpush.msra.mxu0 0.0
    %2140 = vmatpush.msra.mxu0 0.0
    %2141 = vmatpush.msra.mxu0 0.0
    %2142 = vmatpush.msra.mxu0 %v2078
    %2143 = vmatpush.msra.mxu0 %v2077
    %2144 = vmatpush.msra.mxu0 %v2076
    %2145 = vmatpush.msra.mxu0 %v2075
    %2146 = vmatmul.f32.gmra.mxu0 %v2099
    %v2147 = vpop.f32.mrf.mxu0
    %v2148 = vadd.f32 %v2128, %v2147
    %2149 = vmatmul.f32.gmra.mxu0 %v2102
    %v2150 = vpop.f32.mrf.mxu0
    %v2151 = vadd.f32 %v2128, %v2150
    %2152 = vdwg.mxu0
    %v2154 = vperm.slane %v2087, 0
    %2156 = vmatpush.msra.mxu0 0.0
    %2157 = vmatpush.msra.mxu0 0.0
    %2158 = vmatpush.msra.mxu0 0.0
    %2159 = vmatpush.msra.mxu0 0.0
    %2160 = vmatpush.msra.mxu0 0.0
    %2161 = vmatpush.msra.mxu0 0.0
    %2162 = vmatpush.msra.mxu0 0.0
    %2163 = vmatpush.msra.mxu0 0.0
    %2164 = vmatpush.msra.mxu0 0.0
    %2165 = vmatpush.msra.mxu0 0.0
    %2166 = vmatpush.msra.mxu0 0.0
    %2167 = vmatpush.msra.mxu0 0.0
    %2168 = vmatpush.msra.mxu0 %v2085
    %2169 = vmatpush.msra.mxu0 %v2084
    %2170 = vmatpush.msra.mxu0 %v2083
    %2171 = vmatpush.msra.mxu0 %v2082
    %2172 = vmatmul.f32.gmra.mxu0 %v2099
    %v2173 = vpop.f32.mrf.mxu0
    %v2174 = vadd.f32 %v2154, %v2173
    %2175 = vmatmul.f32.gmra.mxu0 %v2102
    %v2176 = vpop.f32.mrf.mxu0
    %v2177 = vadd.f32 %v2154, %v2176
    %2178 = vdwg.mxu0
    %v2180 = vperm.slane %v2094, 0
    %v2182 = vadd.f32 %v2180, 0.0
    %v2184 = vsel %vm694, %v2122, 0
    %v2187 = vsel %vm694, %v2148, 0
    %2189 = vmatpush.xpose.msra.mxu0 0.0
    %2190 = vmatpush.xpose.msra.mxu0 0.0
    %2191 = vmatpush.xpose.msra.mxu0 0.0
    %2192 = vmatpush.xpose.msra.mxu0 0.0
    %2193 = vmatpush.xpose.msra.mxu0 0.0
    %2194 = vmatpush.xpose.msra.mxu0 0.0
    %2195 = vmatpush.xpose.msra.mxu0 0.0
    %2196 = vmatpush.xpose.msra.mxu0 0.0
    %2197 = vmatpush.xpose.msra.mxu0 0.0
    %2198 = vmatpush.xpose.msra.mxu0 0.0
    %2199 = vmatpush.xpose.msra.mxu0 0.0
    %2200 = vmatpush.xpose.msra.mxu0 0.0
    %2201 = vmatpush.xpose.msra.mxu0 0.0
    %2202 = vmatpush.xpose.msra.mxu0 0.0
    %2203 = vmatpush.xpose.msra.mxu0 0.0
    %2204 = vmatpush.xpose.msra.mxu0 %v2187
    %2205 = vmatmul.f32.gmra.mxu0 %v2184
    %v2206 = vpop.f32.mrf.mxu0
    %v2207 = vadd.f32 0.0, %v2206
    %2208 = vdwg.mxu0
    %v2210 = vsel %vm694, %v2125, 0
    %v2213 = vsel %vm694, %v2151, 0
    %2215 = vmatpush.xpose.msra.mxu0 0.0
    %2216 = vmatpush.xpose.msra.mxu0 0.0
    %2217 = vmatpush.xpose.msra.mxu0 0.0
    %2218 = vmatpush.xpose.msra.mxu0 0.0
    %2219 = vmatpush.xpose.msra.mxu0 0.0
    %2220 = vmatpush.xpose.msra.mxu0 0.0
    %2221 = vmatpush.xpose.msra.mxu0 0.0
    %2222 = vmatpush.xpose.msra.mxu0 0.0
    %2223 = vmatpush.xpose.msra.mxu0 0.0
    %2224 = vmatpush.xpose.msra.mxu0 0.0
    %2225 = vmatpush.xpose.msra.mxu0 0.0
    %2226 = vmatpush.xpose.msra.mxu0 0.0
    %2227 = vmatpush.xpose.msra.mxu0 0.0
    %2228 = vmatpush.xpose.msra.mxu0 0.0
    %2229 = vmatpush.xpose.msra.mxu0 0.0
    %2230 = vmatpush.xpose.msra.mxu0 %v2213
    %2231 = vmatmul.f32.gmra.mxu0 %v2210
    %v2232 = vpop.f32.mrf.mxu0
    %v2233 = vadd.f32 0.0, %v2232
    %2234 = vdwg.mxu0
    %v2235 = vmul.f32 %v2207, 0.25
    %v2236 = vmul.f32 %v2233, 0.25
    %v2237 = vadd.f32 %v2235, %v470
    %v2238 = vadd.f32 %v2236, %v471
    %v2239 = vsel %vm755, %v2237, -inf
    %2240 = vmax.xlane.f32.xlu0 %v2239
    %v2241 = vpop.xlane.xlu0 %2240
    %v2242 = vsel %vm755, %v2238, -inf
    %2243 = vmax.xlane.f32.xlu0 %v2242
    %v2244 = vpop.xlane.xlu0 %2243
    %v2245 = vsub.f32 %v2237, %v2241
    %v2246 = vsub.f32 %v2238, %v2244
    %v2247 = vmul.f32 %v2245, 1.442695
    %v2248 = vpow.pop %v2247
    %v2249 = vmul.f32 %v2246, 1.442695
    %v2250 = vpow.pop %v2249
    %v2251 = vsel %vm755, %v2248, 0.0
    %2252 = vadd.xlane.f32.xlu0 %v2251
    %v2253 = vpop.xlane.xlu0 %2252
    %v2254 = vsel %vm755, %v2250, 0.0
    %2255 = vadd.xlane.f32.xlu0 %v2254
    %v2256 = vpop.xlane.xlu0 %2255
    %v2257 = vrcp.pop %v2253
    %v2258 = vrcp.pop %v2256
    %v2259 = vmul.f32 %v2248, %v2257
    %v2260 = vmul.f32 %v2250, %v2258
    %v2262 = vsel %vm755, %v2259, 0
    %2264 = vmatpush.msra.mxu0 0.0
    %2265 = vmatpush.msra.mxu0 0.0
    %2266 = vmatpush.msra.mxu0 0.0
    %2267 = vmatpush.msra.mxu0 0.0
    %2268 = vmatpush.msra.mxu0 0.0
    %2269 = vmatpush.msra.mxu0 0.0
    %2270 = vmatpush.msra.mxu0 0.0
    %2271 = vmatpush.msra.mxu0 0.0
    %2272 = vmatpush.msra.mxu0 0.0
    %2273 = vmatpush.msra.mxu0 0.0
    %2274 = vmatpush.msra.mxu0 0.0
    %2275 = vmatpush.msra.mxu0 0.0
    %2276 = vmatpush.msra.mxu0 0.0
    %2277 = vmatpush.msra.mxu0 0.0
    %2278 = vmatpush.msra.mxu0 0.0
    %2279 = vmatpush.msra.mxu0 %v2174
    %2280 = vmatmul.f32.gmra.mxu0 %v2262
    %v2281 = vpop.f32.mrf.mxu0
    %v2282 = vadd.f32 0.0, %v2281
    %2283 = vdwg.mxu0
    %v2285 = vsel %vm755, %v2260, 0
    %2287 = vmatpush.msra.mxu0 0.0
    %2288 = vmatpush.msra.mxu0 0.0
    %2289 = vmatpush.msra.mxu0 0.0
    %2290 = vmatpush.msra.mxu0 0.0
    %2291 = vmatpush.msra.mxu0 0.0
    %2292 = vmatpush.msra.mxu0 0.0
    %2293 = vmatpush.msra.mxu0 0.0
    %2294 = vmatpush.msra.mxu0 0.0
    %2295 = vmatpush.msra.mxu0 0.0
    %2296 = vmatpush.msra.mxu0 0.0
    %2297 = vmatpush.msra.mxu0 0.0
    %2298 = vmatpush.msra.mxu0 0.0
    %2299 = vmatpush.msra.mxu0 0.0
    %2300 = vmatpush.msra.mxu0 0.0
    %2301 = vmatpush.msra.mxu0 0.0
    %2302 = vmatpush.msra.mxu0 %v2177
    %2303 = vmatmul.f32.gmra.mxu0 %v2285
    %v2304 = vpop.f32.mrf.mxu0
    %v2305 = vadd.f32 0.0, %v2304
    %2306 = vdwg.mxu0
    %v2308 = vsel %vm694, %v2282, 0
    %v2311 = vsel %vm694, %v2305, 0
    %2313 = vmatpush.msra.mxu0 0.0
    %2314 = vmatpush.msra.mxu0 0.0
    %2315 = vmatpush.msra.mxu0 0.0
    %2316 = vmatpush.msra.mxu0 0.0
    %2317 = vmatpush.msra.mxu0 0.0
    %2318 = vmatpush.msra.mxu0 0.0
    %2319 = vmatpush.msra.mxu0 0.0
    %2320 = vmatpush.msra.mxu0 0.0
    %2321 = vmatpush.msra.mxu0 0.0
    %2322 = vmatpush.msra.mxu0 0.0
    %2323 = vmatpush.msra.mxu0 0.0
    %2324 = vmatpush.msra.mxu0 0.0
    %2325 = vmatpush.msra.mxu0 0.0
    %2326 = vmatpush.msra.mxu0 0.0
    %2327 = vmatpush.msra.mxu0 %v2090
    %2328 = vmatpush.msra.mxu0 %v2089
    %2329 = vmatmul.f32.gmra.mxu0 %v2308
    %v2330 = vpop.f32.mrf.mxu0
    %v2331 = vadd.f32 0.0, %v2330
    %2332 = vmatmul.f32.gmra.mxu0 %v2311
    %v2333 = vpop.f32.mrf.mxu0
    %v2334 = vadd.f32 0.0, %v2333
    %2335 = vdwg.mxu0
    %v2336 = vadd.f32 %v2182, %v2331
    %v2337 = vadd.f32 %v2182, %v2334
    %2338 = vrot.lane.b32.xlu0 %v2122, 112
    %v2339 = vpop.permute.xlu0 %2338
    %2340 = vrot.lane.b32.xlu0 %v2148, 112
    %v2341 = vpop.permute.xlu0 %2340
    %v2342 = vsel %vm694, %v2339, 0
    %v2344 = vsel %vm694, %v2341, 0
    %2346 = vmatpush.xpose.msra.mxu0 0.0
    %2347 = vmatpush.xpose.msra.mxu0 0.0
    %2348 = vmatpush.xpose.msra.mxu0 0.0
    %2349 = vmatpush.xpose.msra.mxu0 0.0
    %2350 = vmatpush.xpose.msra.mxu0 0.0
    %2351 = vmatpush.xpose.msra.mxu0 0.0
    %2352 = vmatpush.xpose.msra.mxu0 0.0
    %2353 = vmatpush.xpose.msra.mxu0 0.0
    %2354 = vmatpush.xpose.msra.mxu0 0.0
    %2355 = vmatpush.xpose.msra.mxu0 0.0
    %2356 = vmatpush.xpose.msra.mxu0 0.0
    %2357 = vmatpush.xpose.msra.mxu0 0.0
    %2358 = vmatpush.xpose.msra.mxu0 0.0
    %2359 = vmatpush.xpose.msra.mxu0 0.0
    %2360 = vmatpush.xpose.msra.mxu0 0.0
    %2361 = vmatpush.xpose.msra.mxu0 %v2344
    %2362 = vmatmul.f32.gmra.mxu0 %v2342
    %v2363 = vpop.f32.mrf.mxu0
    %v2364 = vadd.f32 0.0, %v2363
    %2365 = vdwg.mxu0
    %2366 = vrot.lane.b32.xlu0 %v2125, 112
    %v2367 = vpop.permute.xlu0 %2366
    %2368 = vrot.lane.b32.xlu0 %v2151, 112
    %v2369 = vpop.permute.xlu0 %2368
    %v2370 = vsel %vm694, %v2367, 0
    %v2372 = vsel %vm694, %v2369, 0
    %2374 = vmatpush.xpose.msra.mxu0 0.0
    %2375 = vmatpush.xpose.msra.mxu0 0.0
    %2376 = vmatpush.xpose.msra.mxu0 0.0
    %2377 = vmatpush.xpose.msra.mxu0 0.0
    %2378 = vmatpush.xpose.msra.mxu0 0.0
    %2379 = vmatpush.xpose.msra.mxu0 0.0
    %2380 = vmatpush.xpose.msra.mxu0 0.0
    %2381 = vmatpush.xpose.msra.mxu0 0.0
    %2382 = vmatpush.xpose.msra.mxu0 0.0
    %2383 = vmatpush.xpose.msra.mxu0 0.0
    %2384 = vmatpush.xpose.msra.mxu0 0.0
    %2385 = vmatpush.xpose.msra.mxu0 0.0
    %2386 = vmatpush.xpose.msra.mxu0 0.0
    %2387 = vmatpush.xpose.msra.mxu0 0.0
    %2388 = vmatpush.xpose.msra.mxu0 0.0
    %2389 = vmatpush.xpose.msra.mxu0 %v2372
    %2390 = vmatmul.f32.gmra.mxu0 %v2370
    %v2391 = vpop.f32.mrf.mxu0
    %v2392 = vadd.f32 0.0, %v2391
    %2393 = vdwg.mxu0
    %v2394 = vmul.f32 %v2364, 0.25
    %v2395 = vmul.f32 %v2392, 0.25
    %v2396 = vadd.f32 %v2394, %v470
    %v2397 = vadd.f32 %v2395, %v471
    %v2398 = vsel %vm755, %v2396, -inf
    %2399 = vmax.xlane.f32.xlu0 %v2398
    %v2400 = vpop.xlane.xlu0 %2399
    %v2401 = vsel %vm755, %v2397, -inf
    %2402 = vmax.xlane.f32.xlu0 %v2401
    %v2403 = vpop.xlane.xlu0 %2402
    %v2404 = vsub.f32 %v2396, %v2400
    %v2405 = vsub.f32 %v2397, %v2403
    %v2406 = vmul.f32 %v2404, 1.442695
    %v2407 = vpow.pop %v2406
    %v2408 = vmul.f32 %v2405, 1.442695
    %v2409 = vpow.pop %v2408
    %v2410 = vsel %vm755, %v2407, 0.0
    %2411 = vadd.xlane.f32.xlu0 %v2410
    %v2412 = vpop.xlane.xlu0 %2411
    %v2413 = vsel %vm755, %v2409, 0.0
    %2414 = vadd.xlane.f32.xlu0 %v2413
    %v2415 = vpop.xlane.xlu0 %2414
    %v2416 = vrcp.pop %v2412
    %v2417 = vrcp.pop %v2415
    %v2418 = vmul.f32 %v2407, %v2416
    %v2419 = vmul.f32 %v2409, %v2417
    %2421 = vrot.lane.b32.xlu0 %v2174, 112
    %v2422 = vpop.permute.xlu0 %2421
    %v2425 = vsel %vm755, %v2418, 0
    %2427 = vmatpush.msra.mxu0 0.0
    %2428 = vmatpush.msra.mxu0 0.0
    %2429 = vmatpush.msra.mxu0 0.0
    %2430 = vmatpush.msra.mxu0 0.0
    %2431 = vmatpush.msra.mxu0 0.0
    %2432 = vmatpush.msra.mxu0 0.0
    %2433 = vmatpush.msra.mxu0 0.0
    %2434 = vmatpush.msra.mxu0 0.0
    %2435 = vmatpush.msra.mxu0 0.0
    %2436 = vmatpush.msra.mxu0 0.0
    %2437 = vmatpush.msra.mxu0 0.0
    %2438 = vmatpush.msra.mxu0 0.0
    %2439 = vmatpush.msra.mxu0 0.0
    %2440 = vmatpush.msra.mxu0 0.0
    %2441 = vmatpush.msra.mxu0 0.0
    %2442 = vmatpush.msra.mxu0 %v2422
    %2443 = vmatmul.f32.gmra.mxu0 %v2425
    %v2444 = vpop.f32.mrf.mxu0
    %v2445 = vadd.f32 0.0, %v2444
    %2446 = vdwg.mxu0
    %2448 = vrot.lane.b32.xlu0 %v2177, 112
    %v2449 = vpop.permute.xlu0 %2448
    %v2452 = vsel %vm755, %v2419, 0
    %2454 = vmatpush.msra.mxu0 0.0
    %2455 = vmatpush.msra.mxu0 0.0
    %2456 = vmatpush.msra.mxu0 0.0
    %2457 = vmatpush.msra.mxu0 0.0
    %2458 = vmatpush.msra.mxu0 0.0
    %2459 = vmatpush.msra.mxu0 0.0
    %2460 = vmatpush.msra.mxu0 0.0
    %2461 = vmatpush.msra.mxu0 0.0
    %2462 = vmatpush.msra.mxu0 0.0
    %2463 = vmatpush.msra.mxu0 0.0
    %2464 = vmatpush.msra.mxu0 0.0
    %2465 = vmatpush.msra.mxu0 0.0
    %2466 = vmatpush.msra.mxu0 0.0
    %2467 = vmatpush.msra.mxu0 0.0
    %2468 = vmatpush.msra.mxu0 0.0
    %2469 = vmatpush.msra.mxu0 %v2449
    %2470 = vmatmul.f32.gmra.mxu0 %v2452
    %v2471 = vpop.f32.mrf.mxu0
    %v2472 = vadd.f32 0.0, %v2471
    %2473 = vdwg.mxu0
    %v2475 = vsel %vm694, %v2445, 0
    %v2478 = vsel %vm694, %v2472, 0
    %2480 = vmatpush.msra.mxu0 0.0
    %2481 = vmatpush.msra.mxu0 0.0
    %2482 = vmatpush.msra.mxu0 0.0
    %2483 = vmatpush.msra.mxu0 0.0
    %2484 = vmatpush.msra.mxu0 0.0
    %2485 = vmatpush.msra.mxu0 0.0
    %2486 = vmatpush.msra.mxu0 0.0
    %2487 = vmatpush.msra.mxu0 0.0
    %2488 = vmatpush.msra.mxu0 0.0
    %2489 = vmatpush.msra.mxu0 0.0
    %2490 = vmatpush.msra.mxu0 0.0
    %2491 = vmatpush.msra.mxu0 0.0
    %2492 = vmatpush.msra.mxu0 0.0
    %2493 = vmatpush.msra.mxu0 0.0
    %2494 = vmatpush.msra.mxu0 %v2092
    %2495 = vmatpush.msra.mxu0 %v2091
    %2496 = vmatmul.f32.gmra.mxu0 %v2475
    %v2497 = vpop.f32.mrf.mxu0
    %v2498 = vadd.f32 0.0, %v2497
    %2499 = vmatmul.f32.gmra.mxu0 %v2478
    %v2500 = vpop.f32.mrf.mxu0
    %v2501 = vadd.f32 0.0, %v2500
    %2502 = vdwg.mxu0
    %v2503 = vadd.f32 %v2336, %v2498
    %v2504 = vadd.f32 %v2337, %v2501
    %v2505 = vadd.f32 %v2007, %v2503
    %v2506 = vadd.f32 %v2010, %v2504
    %s2507 = scalar_lea.vmem [#allocation22], 2
    %v2508 = vld [vmem:[%s2507] sm:$0x1]
    %s2509 = scalar_lea.vmem [#allocation22], 3
    %v2510 = vld [vmem:[%s2509] sm:$0x1]
    %v2511 = vsel %vm482, %v2505, 0.0
    %2512 = vadd.xlane.f32.xlu0 %v2511
    %v2513 = vpop.xlane.xlu0 %2512
    %v2514 = vsel %vm482, %v2506, 0.0
    %2515 = vadd.xlane.f32.xlu0 %v2514
    %v2516 = vpop.xlane.xlu0 %2515
    %v2517 = vmul.f32 %v2513, %v531
    %v2518 = vmul.f32 %v2516, %v531
    %v2519 = vsub.f32 %v2505, %v2517
    %v2520 = vsub.f32 %v2506, %v2518
    %v2521 = vmul.f32 %v2519, %v2519
    %v2522 = vmul.f32 %v2520, %v2520
    %v2523 = vsel %vm482, %v2521, 0.0
    %2524 = vadd.xlane.f32.xlu0 %v2523
    %v2525 = vpop.xlane.xlu0 %2524
    %v2526 = vsel %vm482, %v2522, 0.0
    %2527 = vadd.xlane.f32.xlu0 %v2526
    %v2528 = vpop.xlane.xlu0 %2527
    %v2529 = vmul.f32 %v2525, %v531
    %v2530 = vmul.f32 %v2528, %v531
    %v2531 = vadd.f32 %v2529, 1e-05
    %v2532 = vadd.f32 %v2530, 1e-05
    %v2533 = vrsqrt.pop %v2531
    %v2534 = vmul.f32 %v2533, %v2531
    %v2535 = vmul.f32 %v2534, %v2533
    %v2536 = vmul.f32 0.5, %v2535
    %v2537 = vsub.f32 1.5, %v2536
    %v2538 = vmul.f32 %v2533, %v2537
    %vm2539 = vweird.f32 %v2531
    %vm2540 = vweird.f32 %v2533
    %vm2541 = vmor %vm2539, %vm2540
    %v2542 = vsel %vm2541, %v2533, %v2538
    %v2543 = vrsqrt.pop %v2532
    %v2544 = vmul.f32 %v2543, %v2532
    %v2545 = vmul.f32 %v2544, %v2543
    %v2546 = vmul.f32 0.5, %v2545
    %v2547 = vsub.f32 1.5, %v2546
    %v2548 = vmul.f32 %v2543, %v2547
    %vm2549 = vweird.f32 %v2532
    %vm2550 = vweird.f32 %v2543
    %vm2551 = vmor %vm2549, %vm2550
    %v2552 = vsel %vm2551, %v2543, %v2548
    %v2553 = vmul.f32 %v2519, %v2542
    %v2554 = vmul.f32 %v2520, %v2552
    %v2556 = vperm.slane %v2508, 0
    %v2558 = vmul.f32 %v2553, %v2556
    %v2559 = vmul.f32 %v2554, %v2556
    %v2561 = vperm.slane %v2510, 0
    %v2563 = vadd.f32 %v2558, %v2561
    %v2564 = vadd.f32 %v2559, %v2561
    %v2565 = vld [vmem:[#allocation25] sm:$0xff]
    %v2566 = vld [vmem:[#allocation25 + $0x8] sm:$0xff]
    %v2567 = vld [vmem:[#allocation25 + $0x10] sm:$0xff]
    %v2568 = vld [vmem:[#allocation25 + $0x18] sm:$0xff]
    %v2569 = vld [vmem:[#allocation26] sm:$0x1]
    %s2570 = scalar_lea.vmem [#allocation25], 32
    %v2571 = vld [vmem:[%s2570] sm:$0xff]
    %v2572 = vld [vmem:[%s2570 + $0x8] sm:$0xff]
    %v2573 = vld [vmem:[%s2570 + $0x10] sm:$0xff]
    %v2574 = vld [vmem:[%s2570 + $0x18] sm:$0xff]
    %s2575 = scalar_lea.vmem [#allocation26], 1
    %v2576 = vld [vmem:[%s2575] sm:$0x1]
    %s2577 = scalar_lea.vmem [#allocation25], 64
    %v2578 = vld [vmem:[%s2577] sm:$0xff]
    %v2579 = vld [vmem:[%s2577 + $0x8] sm:$0xff]
    %v2580 = vld [vmem:[%s2577 + $0x10] sm:$0xff]
    %v2581 = vld [vmem:[%s2577 + $0x18] sm:$0xff]
    %s2582 = scalar_lea.vmem [#allocation26], 2
    %v2583 = vld [vmem:[%s2582] sm:$0x1]
    %s2584 = scalar_lea.vmem [#allocation25], 96
    %v2585 = vld [vmem:[%s2584] sm:$0xff]
    %v2586 = vld [vmem:[%s2584 + $0x8] sm:$0xff]
    %v2587 = vld [vmem:[%s2584 + $0x10] sm:$0xff]
    %v2588 = vld [vmem:[%s2584 + $0x18] sm:$0xff]
    %s2589 = scalar_lea.vmem [#allocation26], 3
    %v2590 = vld [vmem:[%s2589] sm:$0x1]
    %v2592 = vperm.slane %v2569, 0
    %v2595 = vsel %vm482, %v2563, 0
    %v2598 = vsel %vm482, %v2564, 0
    %2600 = vmatpush.msra.mxu0 0.0
    %2601 = vmatpush.msra.mxu0 0.0
    %2602 = vmatpush.msra.mxu0 0.0
    %2603 = vmatpush.msra.mxu0 0.0
    %2604 = vmatpush.msra.mxu0 0.0
    %2605 = vmatpush.msra.mxu0 0.0
    %2606 = vmatpush.msra.mxu0 0.0
    %2607 = vmatpush.msra.mxu0 0.0
    %2608 = vmatpush.msra.mxu0 0.0
    %2609 = vmatpush.msra.mxu0 0.0
    %2610 = vmatpush.msra.mxu0 0.0
    %2611 = vmatpush.msra.mxu0 0.0
    %2612 = vmatpush.msra.mxu0 %v2568
    %2613 = vmatpush.msra.mxu0 %v2567
    %2614 = vmatpush.msra.mxu0 %v2566
    %2615 = vmatpush.msra.mxu0 %v2565
    %2616 = vmatmul.f32.gmra.mxu0 %v2595
    %v2617 = vpop.f32.mrf.mxu0
    %v2618 = vadd.f32 %v2592, %v2617
    %2619 = vmatmul.f32.gmra.mxu0 %v2598
    %v2620 = vpop.f32.mrf.mxu0
    %v2621 = vadd.f32 %v2592, %v2620
    %2622 = vdwg.mxu0
    %v2624 = vperm.slane %v2576, 0
    %2626 = vmatpush.msra.mxu0 0.0
    %2627 = vmatpush.msra.mxu0 0.0
    %2628 = vmatpush.msra.mxu0 0.0
    %2629 = vmatpush.msra.mxu0 0.0
    %2630 = vmatpush.msra.mxu0 0.0
    %2631 = vmatpush.msra.mxu0 0.0
    %2632 = vmatpush.msra.mxu0 0.0
    %2633 = vmatpush.msra.mxu0 0.0
    %2634 = vmatpush.msra.mxu0 0.0
    %2635 = vmatpush.msra.mxu0 0.0
    %2636 = vmatpush.msra.mxu0 0.0
    %2637 = vmatpush.msra.mxu0 0.0
    %2638 = vmatpush.msra.mxu0 %v2574
    %2639 = vmatpush.msra.mxu0 %v2573
    %2640 = vmatpush.msra.mxu0 %v2572
    %2641 = vmatpush.msra.mxu0 %v2571
    %2642 = vmatmul.f32.gmra.mxu0 %v1909
    %v2643 = vpop.f32.mrf.mxu0
    %v2644 = vadd.f32 %v2624, %v2643
    %2645 = vmatmul.f32.gmra.mxu0 %v1912
    %v2646 = vpop.f32.mrf.mxu0
    %v2647 = vadd.f32 %v2624, %v2646
    %2648 = vdwg.mxu0
    %v2650 = vperm.slane %v2583, 0
    %2652 = vmatpush.msra.mxu0 0.0
    %2653 = vmatpush.msra.mxu0 0.0
    %2654 = vmatpush.msra.mxu0 0.0
    %2655 = vmatpush.msra.mxu0 0.0
    %2656 = vmatpush.msra.mxu0 0.0
    %2657 = vmatpush.msra.mxu0 0.0
    %2658 = vmatpush.msra.mxu0 0.0
    %2659 = vmatpush.msra.mxu0 0.0
    %2660 = vmatpush.msra.mxu0 0.0
    %2661 = vmatpush.msra.mxu0 0.0
    %2662 = vmatpush.msra.mxu0 0.0
    %2663 = vmatpush.msra.mxu0 0.0
    %2664 = vmatpush.msra.mxu0 %v2581
    %2665 = vmatpush.msra.mxu0 %v2580
    %2666 = vmatpush.msra.mxu0 %v2579
    %2667 = vmatpush.msra.mxu0 %v2578
    %2668 = vmatmul.f32.gmra.mxu0 %v1909
    %v2669 = vpop.f32.mrf.mxu0
    %v2670 = vadd.f32 %v2650, %v2669
    %2671 = vmatmul.f32.gmra.mxu0 %v1912
    %v2672 = vpop.f32.mrf.mxu0
    %v2673 = vadd.f32 %v2650, %v2672
    %2674 = vdwg.mxu0
    %v2676 = vperm.slane %v2590, 0
    %v2678 = vadd.f32 %v2676, 0.0
    %v2680 = vsel %vm694, %v2618, 0
    %v2683 = vsel %vm694, %v2644, 0
    %2685 = vmatpush.xpose.msra.mxu0 0.0
    %2686 = vmatpush.xpose.msra.mxu0 0.0
    %2687 = vmatpush.xpose.msra.mxu0 0.0
    %2688 = vmatpush.xpose.msra.mxu0 0.0
    %2689 = vmatpush.xpose.msra.mxu0 0.0
    %2690 = vmatpush.xpose.msra.mxu0 0.0
    %2691 = vmatpush.xpose.msra.mxu0 0.0
    %2692 = vmatpush.xpose.msra.mxu0 0.0
    %2693 = vmatpush.xpose.msra.mxu0 0.0
    %2694 = vmatpush.xpose.msra.mxu0 0.0
    %2695 = vmatpush.xpose.msra.mxu0 0.0
    %2696 = vmatpush.xpose.msra.mxu0 0.0
    %2697 = vmatpush.xpose.msra.mxu0 0.0
    %2698 = vmatpush.xpose.msra.mxu0 0.0
    %2699 = vmatpush.xpose.msra.mxu0 0.0
    %2700 = vmatpush.xpose.msra.mxu0 %v2683
    %2701 = vmatmul.f32.gmra.mxu0 %v2680
    %v2702 = vpop.f32.mrf.mxu0
    %v2703 = vadd.f32 0.0, %v2702
    %2704 = vdwg.mxu0
    %v2706 = vsel %vm694, %v2621, 0
    %v2709 = vsel %vm694, %v2647, 0
    %2711 = vmatpush.xpose.msra.mxu0 0.0
    %2712 = vmatpush.xpose.msra.mxu0 0.0
    %2713 = vmatpush.xpose.msra.mxu0 0.0
    %2714 = vmatpush.xpose.msra.mxu0 0.0
    %2715 = vmatpush.xpose.msra.mxu0 0.0
    %2716 = vmatpush.xpose.msra.mxu0 0.0
    %2717 = vmatpush.xpose.msra.mxu0 0.0
    %2718 = vmatpush.xpose.msra.mxu0 0.0
    %2719 = vmatpush.xpose.msra.mxu0 0.0
    %2720 = vmatpush.xpose.msra.mxu0 0.0
    %2721 = vmatpush.xpose.msra.mxu0 0.0
    %2722 = vmatpush.xpose.msra.mxu0 0.0
    %2723 = vmatpush.xpose.msra.mxu0 0.0
    %2724 = vmatpush.xpose.msra.mxu0 0.0
    %2725 = vmatpush.xpose.msra.mxu0 0.0
    %2726 = vmatpush.xpose.msra.mxu0 %v2709
    %2727 = vmatmul.f32.gmra.mxu0 %v2706
    %v2728 = vpop.f32.mrf.mxu0
    %v2729 = vadd.f32 0.0, %v2728
    %2730 = vdwg.mxu0
    %v2731 = vmul.f32 %v2703, 0.25
    %v2732 = vmul.f32 %v2729, 0.25
    %v2733 = vadd.f32 %v2731, %v749
    %v2734 = vadd.f32 %v2732, %v750
    %v2735 = vsel %vm755, %v2733, -inf
    %2736 = vmax.xlane.f32.xlu0 %v2735
    %v2737 = vpop.xlane.xlu0 %2736
    %v2738 = vsel %vm755, %v2734, -inf
    %2739 = vmax.xlane.f32.xlu0 %v2738
    %v2740 = vpop.xlane.xlu0 %2739
    %v2741 = vsub.f32 %v2733, %v2737
    %v2742 = vsub.f32 %v2734, %v2740
    %v2743 = vmul.f32 %v2741, 1.442695
    %v2744 = vpow.pop %v2743
    %v2745 = vmul.f32 %v2742, 1.442695
    %v2746 = vpow.pop %v2745
    %v2747 = vsel %vm755, %v2744, 0.0
    %2748 = vadd.xlane.f32.xlu0 %v2747
    %v2749 = vpop.xlane.xlu0 %2748
    %v2750 = vsel %vm755, %v2746, 0.0
    %2751 = vadd.xlane.f32.xlu0 %v2750
    %v2752 = vpop.xlane.xlu0 %2751
    %v2753 = vrcp.pop %v2749
    %v2754 = vrcp.pop %v2752
    %v2755 = vmul.f32 %v2744, %v2753
    %v2756 = vmul.f32 %v2746, %v2754
    %v2758 = vsel %vm755, %v2755, 0
    %2760 = vmatpush.msra.mxu0 0.0
    %2761 = vmatpush.msra.mxu0 0.0
    %2762 = vmatpush.msra.mxu0 0.0
    %2763 = vmatpush.msra.mxu0 0.0
    %2764 = vmatpush.msra.mxu0 0.0
    %2765 = vmatpush.msra.mxu0 0.0
    %2766 = vmatpush.msra.mxu0 0.0
    %2767 = vmatpush.msra.mxu0 0.0
    %2768 = vmatpush.msra.mxu0 0.0
    %2769 = vmatpush.msra.mxu0 0.0
    %2770 = vmatpush.msra.mxu0 0.0
    %2771 = vmatpush.msra.mxu0 0.0
    %2772 = vmatpush.msra.mxu0 0.0
    %2773 = vmatpush.msra.mxu0 0.0
    %2774 = vmatpush.msra.mxu0 0.0
    %2775 = vmatpush.msra.mxu0 %v2670
    %2776 = vmatmul.f32.gmra.mxu0 %v2758
    %v2777 = vpop.f32.mrf.mxu0
    %v2778 = vadd.f32 0.0, %v2777
    %2779 = vdwg.mxu0
    %v2781 = vsel %vm755, %v2756, 0
    %2783 = vmatpush.msra.mxu0 0.0
    %2784 = vmatpush.msra.mxu0 0.0
    %2785 = vmatpush.msra.mxu0 0.0
    %2786 = vmatpush.msra.mxu0 0.0
    %2787 = vmatpush.msra.mxu0 0.0
    %2788 = vmatpush.msra.mxu0 0.0
    %2789 = vmatpush.msra.mxu0 0.0
    %2790 = vmatpush.msra.mxu0 0.0
    %2791 = vmatpush.msra.mxu0 0.0
    %2792 = vmatpush.msra.mxu0 0.0
    %2793 = vmatpush.msra.mxu0 0.0
    %2794 = vmatpush.msra.mxu0 0.0
    %2795 = vmatpush.msra.mxu0 0.0
    %2796 = vmatpush.msra.mxu0 0.0
    %2797 = vmatpush.msra.mxu0 0.0
    %2798 = vmatpush.msra.mxu0 %v2673
    %2799 = vmatmul.f32.gmra.mxu0 %v2781
    %v2800 = vpop.f32.mrf.mxu0
    %v2801 = vadd.f32 0.0, %v2800
    %2802 = vdwg.mxu0
    %v2804 = vsel %vm694, %v2778, 0
    %v2807 = vsel %vm694, %v2801, 0
    %2809 = vmatpush.msra.mxu0 0.0
    %2810 = vmatpush.msra.mxu0 0.0
    %2811 = vmatpush.msra.mxu0 0.0
    %2812 = vmatpush.msra.mxu0 0.0
    %2813 = vmatpush.msra.mxu0 0.0
    %2814 = vmatpush.msra.mxu0 0.0
    %2815 = vmatpush.msra.mxu0 0.0
    %2816 = vmatpush.msra.mxu0 0.0
    %2817 = vmatpush.msra.mxu0 0.0
    %2818 = vmatpush.msra.mxu0 0.0
    %2819 = vmatpush.msra.mxu0 0.0
    %2820 = vmatpush.msra.mxu0 0.0
    %2821 = vmatpush.msra.mxu0 0.0
    %2822 = vmatpush.msra.mxu0 0.0
    %2823 = vmatpush.msra.mxu0 %v2586
    %2824 = vmatpush.msra.mxu0 %v2585
    %2825 = vmatmul.f32.gmra.mxu0 %v2804
    %v2826 = vpop.f32.mrf.mxu0
    %v2827 = vadd.f32 0.0, %v2826
    %2828 = vmatmul.f32.gmra.mxu0 %v2807
    %v2829 = vpop.f32.mrf.mxu0
    %v2830 = vadd.f32 0.0, %v2829
    %2831 = vdwg.mxu0
    %v2832 = vadd.f32 %v2678, %v2827
    %v2833 = vadd.f32 %v2678, %v2830
    %2834 = vrot.lane.b32.xlu0 %v2618, 112
    %v2835 = vpop.permute.xlu0 %2834
    %2836 = vrot.lane.b32.xlu0 %v2644, 112
    %v2837 = vpop.permute.xlu0 %2836
    %v2838 = vsel %vm694, %v2835, 0
    %v2840 = vsel %vm694, %v2837, 0
    %2842 = vmatpush.xpose.msra.mxu0 0.0
    %2843 = vmatpush.xpose.msra.mxu0 0.0
    %2844 = vmatpush.xpose.msra.mxu0 0.0
    %2845 = vmatpush.xpose.msra.mxu0 0.0
    %2846 = vmatpush.xpose.msra.mxu0 0.0
    %2847 = vmatpush.xpose.msra.mxu0 0.0
    %2848 = vmatpush.xpose.msra.mxu0 0.0
    %2849 = vmatpush.xpose.msra.mxu0 0.0
    %2850 = vmatpush.xpose.msra.mxu0 0.0
    %2851 = vmatpush.xpose.msra.mxu0 0.0
    %2852 = vmatpush.xpose.msra.mxu0 0.0
    %2853 = vmatpush.xpose.msra.mxu0 0.0
    %2854 = vmatpush.xpose.msra.mxu0 0.0
    %2855 = vmatpush.xpose.msra.mxu0 0.0
    %2856 = vmatpush.xpose.msra.mxu0 0.0
    %2857 = vmatpush.xpose.msra.mxu0 %v2840
    %2858 = vmatmul.f32.gmra.mxu0 %v2838
    %v2859 = vpop.f32.mrf.mxu0
    %v2860 = vadd.f32 0.0, %v2859
    %2861 = vdwg.mxu0
    %2862 = vrot.lane.b32.xlu0 %v2621, 112
    %v2863 = vpop.permute.xlu0 %2862
    %2864 = vrot.lane.b32.xlu0 %v2647, 112
    %v2865 = vpop.permute.xlu0 %2864
    %v2866 = vsel %vm694, %v2863, 0
    %v2868 = vsel %vm694, %v2865, 0
    %2870 = vmatpush.xpose.msra.mxu0 0.0
    %2871 = vmatpush.xpose.msra.mxu0 0.0
    %2872 = vmatpush.xpose.msra.mxu0 0.0
    %2873 = vmatpush.xpose.msra.mxu0 0.0
    %2874 = vmatpush.xpose.msra.mxu0 0.0
    %2875 = vmatpush.xpose.msra.mxu0 0.0
    %2876 = vmatpush.xpose.msra.mxu0 0.0
    %2877 = vmatpush.xpose.msra.mxu0 0.0
    %2878 = vmatpush.xpose.msra.mxu0 0.0
    %2879 = vmatpush.xpose.msra.mxu0 0.0
    %2880 = vmatpush.xpose.msra.mxu0 0.0
    %2881 = vmatpush.xpose.msra.mxu0 0.0
    %2882 = vmatpush.xpose.msra.mxu0 0.0
    %2883 = vmatpush.xpose.msra.mxu0 0.0
    %2884 = vmatpush.xpose.msra.mxu0 0.0
    %2885 = vmatpush.xpose.msra.mxu0 %v2868
    %2886 = vmatmul.f32.gmra.mxu0 %v2866
    %v2887 = vpop.f32.mrf.mxu0
    %v2888 = vadd.f32 0.0, %v2887
    %2889 = vdwg.mxu0
    %v2890 = vmul.f32 %v2860, 0.25
    %v2891 = vmul.f32 %v2888, 0.25
    %v2892 = vadd.f32 %v2890, %v749
    %v2893 = vadd.f32 %v2891, %v750
    %v2894 = vsel %vm755, %v2892, -inf
    %2895 = vmax.xlane.f32.xlu0 %v2894
    %v2896 = vpop.xlane.xlu0 %2895
    %v2897 = vsel %vm755, %v2893, -inf
    %2898 = vmax.xlane.f32.xlu0 %v2897
    %v2899 = vpop.xlane.xlu0 %2898
    %v2900 = vsub.f32 %v2892, %v2896
    %v2901 = vsub.f32 %v2893, %v2899
    %v2902 = vmul.f32 %v2900, 1.442695
    %v2903 = vpow.pop %v2902
    %v2904 = vmul.f32 %v2901, 1.442695
    %v2905 = vpow.pop %v2904
    %v2906 = vsel %vm755, %v2903, 0.0
    %2907 = vadd.xlane.f32.xlu0 %v2906
    %v2908 = vpop.xlane.xlu0 %2907
    %v2909 = vsel %vm755, %v2905, 0.0
    %2910 = vadd.xlane.f32.xlu0 %v2909
    %v2911 = vpop.xlane.xlu0 %2910
    %v2912 = vrcp.pop %v2908
    %v2913 = vrcp.pop %v2911
    %v2914 = vmul.f32 %v2903, %v2912
    %v2915 = vmul.f32 %v2905, %v2913
    %2917 = vrot.lane.b32.xlu0 %v2670, 112
    %v2918 = vpop.permute.xlu0 %2917
    %v2921 = vsel %vm755, %v2914, 0
    %2923 = vmatpush.msra.mxu0 0.0
    %2924 = vmatpush.msra.mxu0 0.0
    %2925 = vmatpush.msra.mxu0 0.0
    %2926 = vmatpush.msra.mxu0 0.0
    %2927 = vmatpush.msra.mxu0 0.0
    %2928 = vmatpush.msra.mxu0 0.0
    %2929 = vmatpush.msra.mxu0 0.0
    %2930 = vmatpush.msra.mxu0 0.0
    %2931 = vmatpush.msra.mxu0 0.0
    %2932 = vmatpush.msra.mxu0 0.0
    %2933 = vmatpush.msra.mxu0 0.0
    %2934 = vmatpush.msra.mxu0 0.0
    %2935 = vmatpush.msra.mxu0 0.0
    %2936 = vmatpush.msra.mxu0 0.0
    %2937 = vmatpush.msra.mxu0 0.0
    %2938 = vmatpush.msra.mxu0 %v2918
    %2939 = vmatmul.f32.gmra.mxu0 %v2921
    %v2940 = vpop.f32.mrf.mxu0
    %v2941 = vadd.f32 0.0, %v2940
    %2942 = vdwg.mxu0
    %2944 = vrot.lane.b32.xlu0 %v2673, 112
    %v2945 = vpop.permute.xlu0 %2944
    %v2948 = vsel %vm755, %v2915, 0
    %2950 = vmatpush.msra.mxu0 0.0
    %2951 = vmatpush.msra.mxu0 0.0
    %2952 = vmatpush.msra.mxu0 0.0
    %2953 = vmatpush.msra.mxu0 0.0
    %2954 = vmatpush.msra.mxu0 0.0
    %2955 = vmatpush.msra.mxu0 0.0
    %2956 = vmatpush.msra.mxu0 0.0
    %2957 = vmatpush.msra.mxu0 0.0
    %2958 = vmatpush.msra.mxu0 0.0
    %2959 = vmatpush.msra.mxu0 0.0
    %2960 = vmatpush.msra.mxu0 0.0
    %2961 = vmatpush.msra.mxu0 0.0
    %2962 = vmatpush.msra.mxu0 0.0
    %2963 = vmatpush.msra.mxu0 0.0
    %2964 = vmatpush.msra.mxu0 0.0
    %2965 = vmatpush.msra.mxu0 %v2945
    %2966 = vmatmul.f32.gmra.mxu0 %v2948
    %v2967 = vpop.f32.mrf.mxu0
    %v2968 = vadd.f32 0.0, %v2967
    %2969 = vdwg.mxu0
    %v2971 = vsel %vm694, %v2941, 0
    %v2974 = vsel %vm694, %v2968, 0
    %2976 = vmatpush.msra.mxu0 0.0
    %2977 = vmatpush.msra.mxu0 0.0
    %2978 = vmatpush.msra.mxu0 0.0
    %2979 = vmatpush.msra.mxu0 0.0
    %2980 = vmatpush.msra.mxu0 0.0
    %2981 = vmatpush.msra.mxu0 0.0
    %2982 = vmatpush.msra.mxu0 0.0
    %2983 = vmatpush.msra.mxu0 0.0
    %2984 = vmatpush.msra.mxu0 0.0
    %2985 = vmatpush.msra.mxu0 0.0
    %2986 = vmatpush.msra.mxu0 0.0
    %2987 = vmatpush.msra.mxu0 0.0
    %2988 = vmatpush.msra.mxu0 0.0
    %2989 = vmatpush.msra.mxu0 0.0
    %2990 = vmatpush.msra.mxu0 %v2588
    %2991 = vmatpush.msra.mxu0 %v2587
    %2992 = vmatmul.f32.gmra.mxu0 %v2971
    %v2993 = vpop.f32.mrf.mxu0
    %v2994 = vadd.f32 0.0, %v2993
    %2995 = vmatmul.f32.gmra.mxu0 %v2974
    %v2996 = vpop.f32.mrf.mxu0
    %v2997 = vadd.f32 0.0, %v2996
    %2998 = vdwg.mxu0
    %v2999 = vadd.f32 %v2832, %v2994
    %v3000 = vadd.f32 %v2833, %v2997
    %v3001 = vadd.f32 %v2505, %v2999
    %v3002 = vadd.f32 %v2506, %v3000
    %s3003 = scalar_lea.vmem [#allocation22], 4
    %v3004 = vld [vmem:[%s3003] sm:$0x1]
    %s3005 = scalar_lea.vmem [#allocation22], 5
    %v3006 = vld [vmem:[%s3005] sm:$0x1]
    %v3007 = vsel %vm482, %v3001, 0.0
    %3008 = vadd.xlane.f32.xlu0 %v3007
    %v3009 = vpop.xlane.xlu0 %3008
    %v3010 = vsel %vm482, %v3002, 0.0
    %3011 = vadd.xlane.f32.xlu0 %v3010
    %v3012 = vpop.xlane.xlu0 %3011
    %v3013 = vmul.f32 %v3009, %v531
    %v3014 = vmul.f32 %v3012, %v531
    %v3015 = vsub.f32 %v3001, %v3013
    %v3016 = vsub.f32 %v3002, %v3014
    %v3017 = vmul.f32 %v3015, %v3015
    %v3018 = vmul.f32 %v3016, %v3016
    %v3019 = vsel %vm482, %v3017, 0.0
    %3020 = vadd.xlane.f32.xlu0 %v3019
    %v3021 = vpop.xlane.xlu0 %3020
    %v3022 = vsel %vm482, %v3018, 0.0
    %3023 = vadd.xlane.f32.xlu0 %v3022
    %v3024 = vpop.xlane.xlu0 %3023
    %v3025 = vmul.f32 %v3021, %v531
    %v3026 = vmul.f32 %v3024, %v531
    %v3027 = vadd.f32 %v3025, 1e-05
    %v3028 = vadd.f32 %v3026, 1e-05
    %v3029 = vrsqrt.pop %v3027
    %v3030 = vmul.f32 %v3029, %v3027
    %v3031 = vmul.f32 %v3030, %v3029
    %v3032 = vmul.f32 0.5, %v3031
    %v3033 = vsub.f32 1.5, %v3032
    %v3034 = vmul.f32 %v3029, %v3033
    %vm3035 = vweird.f32 %v3027
    %vm3036 = vweird.f32 %v3029
    %vm3037 = vmor %vm3035, %vm3036
    %v3038 = vsel %vm3037, %v3029, %v3034
    %v3039 = vrsqrt.pop %v3028
    %v3040 = vmul.f32 %v3039, %v3028
    %v3041 = vmul.f32 %v3040, %v3039
    %v3042 = vmul.f32 0.5, %v3041
    %v3043 = vsub.f32 1.5, %v3042
    %v3044 = vmul.f32 %v3039, %v3043
    %vm3045 = vweird.f32 %v3028
    %vm3046 = vweird.f32 %v3039
    %vm3047 = vmor %vm3045, %vm3046
    %v3048 = vsel %vm3047, %v3039, %v3044
    %v3049 = vmul.f32 %v3015, %v3038
    %v3050 = vmul.f32 %v3016, %v3048
    %v3052 = vperm.slane %v3004, 0
    %v3054 = vmul.f32 %v3049, %v3052
    %v3055 = vmul.f32 %v3050, %v3052
    %v3057 = vperm.slane %v3006, 0
    %v3059 = vadd.f32 %v3054, %v3057
    %v3060 = vadd.f32 %v3055, %v3057
    %v3061 = vld [vmem:[#allocation28] sm:$0xff]
    %v3062 = vld [vmem:[#allocation28 + $0x8] sm:$0xff]
    %v3063 = vld [vmem:[#allocation28 + $0x10] sm:$0xff]
    %v3064 = vld [vmem:[#allocation28 + $0x18] sm:$0xff]
    %v3065 = vld [vmem:[#allocation29] sm:$0x1]
    %v3067 = vperm.slane %v3065, 0
    %v3070 = vsel %vm482, %v3059, 0
    %v3073 = vsel %vm482, %v3060, 0
    %3075 = vmatpush.msra.mxu0 0.0
    %3076 = vmatpush.msra.mxu0 0.0
    %3077 = vmatpush.msra.mxu0 0.0
    %3078 = vmatpush.msra.mxu0 0.0
    %3079 = vmatpush.msra.mxu0 0.0
    %3080 = vmatpush.msra.mxu0 0.0
    %3081 = vmatpush.msra.mxu0 0.0
    %3082 = vmatpush.msra.mxu0 0.0
    %3083 = vmatpush.msra.mxu0 0.0
    %3084 = vmatpush.msra.mxu0 0.0
    %3085 = vmatpush.msra.mxu0 0.0
    %3086 = vmatpush.msra.mxu0 0.0
    %3087 = vmatpush.msra.mxu0 %v3064
    %3088 = vmatpush.msra.mxu0 %v3063
    %3089 = vmatpush.msra.mxu0 %v3062
    %3090 = vmatpush.msra.mxu0 %v3061
    %3091 = vmatmul.f32.gmra.mxu0 %v3070
    %v3092 = vpop.f32.mrf.mxu0
    %v3093 = vadd.f32 %v3067, %v3092
    %3094 = vmatmul.f32.gmra.mxu0 %v3073
    %v3095 = vpop.f32.mrf.mxu0
    %v3096 = vadd.f32 %v3067, %v3095
    %3097 = vdwg.mxu0
    %v3098 = vmul.f32 %v3093, %v3093
    %v3099 = vmul.f32 %v3096, %v3096
    %v3100 = vmul.f32 %v3093, %v3098
    %v3101 = vmul.f32 %v3096, %v3099
    %v3102 = vmul.f32 %v3100, 0.044715
    %v3103 = vmul.f32 %v3101, 0.044715
    %v3104 = vadd.f32 %v3093, %v3102
    %v3105 = vadd.f32 %v3096, %v3103
    %v3106 = vmul.f32 %v3104, 0.7978846
    %v3107 = vmul.f32 %v3105, 0.7978846
    %v3108 = vtanh.pop %v3106
    %v3109 = vtanh.pop %v3107
    %v3110 = vadd.f32 %v3108, 1.0
    %v3111 = vadd.f32 %v3109, 1.0
    %v3112 = vmul.f32 %v3110, 0.5
    %v3113 = vmul.f32 %v3111, 0.5
    %v3114 = vmul.f32 %v3093, %v3112
    %v3115 = vmul.f32 %v3096, %v3113
    %v3116 = vld [vmem:[%s53] sm:$0xff]
    %v3117 = vld [vmem:[%s53 + $0x8] sm:$0xff]
    %v3118 = vld [vmem:[%s53 + $0x10] sm:$0xff]
    %v3119 = vld [vmem:[%s53 + $0x18] sm:$0xff]
    %v3120 = vld [vmem:[%s53 + $0x20] sm:$0xff]
    %v3121 = vld [vmem:[%s53 + $0x28] sm:$0xff]
    %v3122 = vld [vmem:[%s53 + $0x30] sm:$0xff]
    %v3123 = vld [vmem:[%s53 + $0x38] sm:$0xff]
    %v3125 = vsel %vm1145, %v3114, 0
    %v3128 = vsel %vm1145, %v3115, 0
    %3130 = vmatpush.msra.mxu0 0.0
    %3131 = vmatpush.msra.mxu0 0.0
    %3132 = vmatpush.msra.mxu0 0.0
    %3133 = vmatpush.msra.mxu0 0.0
    %3134 = vmatpush.msra.mxu0 0.0
    %3135 = vmatpush.msra.mxu0 0.0
    %3136 = vmatpush.msra.mxu0 0.0
    %3137 = vmatpush.msra.mxu0 0.0
    %3138 = vmatpush.msra.mxu0 %v3123
    %3139 = vmatpush.msra.mxu0 %v3122
    %3140 = vmatpush.msra.mxu0 %v3121
    %3141 = vmatpush.msra.mxu0 %v3120
    %3142 = vmatpush.msra.mxu0 %v3119
    %3143 = vmatpush.msra.mxu0 %v3118
    %3144 = vmatpush.msra.mxu0 %v3117
    %3145 = vmatpush.msra.mxu0 %v3116
    %3146 = vmatmul.f32.gmra.mxu0 %v3125
    %v3147 = vpop.f32.mrf.mxu0
    %v3148 = vadd.f32 0.0, %v3147
    %3149 = vmatmul.f32.gmra.mxu0 %v3128
    %v3150 = vpop.f32.mrf.mxu0
    %v3151 = vadd.f32 0.0, %v3150
    %3152 = vdwg.mxu0
    %v3153 = vadd.f32 %v3001, %v3148
    %v3154 = vadd.f32 %v3002, %v3151
    %v3155 = vld [vmem:[#allocation31] sm:$0x1]
    %v3157 = vperm.slane %v3155, 0
    %v3159 = vadd.f32 %v3153, %v3157
    %v3160 = vadd.f32 %v3154, %v3157
    %s3161 = scalar_lea.vmem [#allocation22], 6
    %v3162 = vld [vmem:[%s3161] sm:$0x1]
    %s3163 = scalar_lea.vmem [#allocation22], 7
    %v3164 = vld [vmem:[%s3163] sm:$0x1]
    %v3165 = vsel %vm482, %v3159, 0.0
    %3166 = vadd.xlane.f32.xlu0 %v3165
    %v3167 = vpop.xlane.xlu0 %3166
    %v3168 = vsel %vm482, %v3160, 0.0
    %3169 = vadd.xlane.f32.xlu0 %v3168
    %v3170 = vpop.xlane.xlu0 %3169
    %v3171 = vmul.f32 %v3167, %v531
    %v3172 = vmul.f32 %v3170, %v531
    %v3173 = vsub.f32 %v3159, %v3171
    %v3174 = vsub.f32 %v3160, %v3172
    %v3175 = vmul.f32 %v3173, %v3173
    %v3176 = vmul.f32 %v3174, %v3174
    %v3177 = vsel %vm482, %v3175, 0.0
    %3178 = vadd.xlane.f32.xlu0 %v3177
    %v3179 = vpop.xlane.xlu0 %3178
    %v3180 = vsel %vm482, %v3176, 0.0
    %3181 = vadd.xlane.f32.xlu0 %v3180
    %v3182 = vpop.xlane.xlu0 %3181
    %v3183 = vmul.f32 %v3179, %v531
    %v3184 = vmul.f32 %v3182, %v531
    %v3185 = vadd.f32 %v3183, 1e-05
    %v3186 = vadd.f32 %v3184, 1e-05
    %v3187 = vrsqrt.pop %v3185
    %v3188 = vmul.f32 %v3187, %v3185
    %v3189 = vmul.f32 %v3188, %v3187
    %v3190 = vmul.f32 0.5, %v3189
    %v3191 = vsub.f32 1.5, %v3190
    %v3192 = vmul.f32 %v3187, %v3191
    %vm3193 = vweird.f32 %v3185
    %vm3194 = vweird.f32 %v3187
    %vm3195 = vmor %vm3193, %vm3194
    %v3196 = vsel %vm3195, %v3187, %v3192
    %v3197 = vrsqrt.pop %v3186
    %v3198 = vmul.f32 %v3197, %v3186
    %v3199 = vmul.f32 %v3198, %v3197
    %v3200 = vmul.f32 0.5, %v3199
    %v3201 = vsub.f32 1.5, %v3200
    %v3202 = vmul.f32 %v3197, %v3201
    %vm3203 = vweird.f32 %v3186
    %vm3204 = vweird.f32 %v3197
    %vm3205 = vmor %vm3203, %vm3204
    %v3206 = vsel %vm3205, %v3197, %v3202
    %v3207 = vmul.f32 %v3173, %v3196
    %v3208 = vmul.f32 %v3174, %v3206
    %v3210 = vperm.slane %v3162, 0
    %v3212 = vmul.f32 %v3207, %v3210
    %v3213 = vmul.f32 %v3208, %v3210
    %v3215 = vperm.slane %v3164, 0
    %v3217 = vadd.f32 %v3212, %v3215
    %v3218 = vadd.f32 %v3213, %v3215
    %s3219 = scalar_lea.vmem %s41, 128
    %v3220 = vld [vmem:[%s3219] sm:$0xff]
    %v3221 = vld [vmem:[%s3219 + $0x8] sm:$0xff]
    %v3222 = vld [vmem:[%s3219 + $0x10] sm:$0xff]
    %v3223 = vld [vmem:[%s3219 + $0x18] sm:$0xff]
    %s3224 = scalar_lea.vmem [#allocation23], 4
    %v3225 = vld [vmem:[%s3224] sm:$0x1]
    %s3226 = scalar_lea.vmem %s41, 160
    %v3227 = vld [vmem:[%s3226] sm:$0xff]
    %v3228 = vld [vmem:[%s3226 + $0x8] sm:$0xff]
    %v3229 = vld [vmem:[%s3226 + $0x10] sm:$0xff]
    %v3230 = vld [vmem:[%s3226 + $0x18] sm:$0xff]
    %s3231 = scalar_lea.vmem [#allocation23], 5
    %v3232 = vld [vmem:[%s3231] sm:$0x1]
    %s3233 = scalar_lea.vmem %s41, 192
    %v3234 = vld [vmem:[%s3233] sm:$0xff]
    %v3235 = vld [vmem:[%s3233 + $0x8] sm:$0xff]
    %v3236 = vld [vmem:[%s3233 + $0x10] sm:$0xff]
    %v3237 = vld [vmem:[%s3233 + $0x18] sm:$0xff]
    %s3238 = scalar_lea.vmem [#allocation23], 6
    %v3239 = vld [vmem:[%s3238] sm:$0x1]
    %s3240 = scalar_lea.vmem %s41, 224
    %v3241 = vld [vmem:[%s3240] sm:$0xff]
    %v3242 = vld [vmem:[%s3240 + $0x8] sm:$0xff]
    %v3243 = vld [vmem:[%s3240 + $0x10] sm:$0xff]
    %v3244 = vld [vmem:[%s3240 + $0x18] sm:$0xff]
    %s3245 = scalar_lea.vmem [#allocation23], 7
    %v3246 = vld [vmem:[%s3245] sm:$0x1]
    %v3248 = vperm.slane %v3225, 0
    %v3251 = vsel %vm482, %v3217, 0
    %v3254 = vsel %vm482, %v3218, 0
    %3256 = vmatpush.msra.mxu0 0.0
    %3257 = vmatpush.msra.mxu0 0.0
    %3258 = vmatpush.msra.mxu0 0.0
    %3259 = vmatpush.msra.mxu0 0.0
    %3260 = vmatpush.msra.mxu0 0.0
    %3261 = vmatpush.msra.mxu0 0.0
    %3262 = vmatpush.msra.mxu0 0.0
    %3263 = vmatpush.msra.mxu0 0.0
    %3264 = vmatpush.msra.mxu0 0.0
    %3265 = vmatpush.msra.mxu0 0.0
    %3266 = vmatpush.msra.mxu0 0.0
    %3267 = vmatpush.msra.mxu0 0.0
    %3268 = vmatpush.msra.mxu0 %v3223
    %3269 = vmatpush.msra.mxu0 %v3222
    %3270 = vmatpush.msra.mxu0 %v3221
    %3271 = vmatpush.msra.mxu0 %v3220
    %3272 = vmatmul.f32.gmra.mxu0 %v3251
    %v3273 = vpop.f32.mrf.mxu0
    %v3274 = vadd.f32 %v3248, %v3273
    %3275 = vmatmul.f32.gmra.mxu0 %v3254
    %v3276 = vpop.f32.mrf.mxu0
    %v3277 = vadd.f32 %v3248, %v3276
    %3278 = vdwg.mxu0
    %v3280 = vperm.slane %v3232, 0
    %3282 = vmatpush.msra.mxu0 0.0
    %3283 = vmatpush.msra.mxu0 0.0
    %3284 = vmatpush.msra.mxu0 0.0
    %3285 = vmatpush.msra.mxu0 0.0
    %3286 = vmatpush.msra.mxu0 0.0
    %3287 = vmatpush.msra.mxu0 0.0
    %3288 = vmatpush.msra.mxu0 0.0
    %3289 = vmatpush.msra.mxu0 0.0
    %3290 = vmatpush.msra.mxu0 0.0
    %3291 = vmatpush.msra.mxu0 0.0
    %3292 = vmatpush.msra.mxu0 0.0
    %3293 = vmatpush.msra.mxu0 0.0
    %3294 = vmatpush.msra.mxu0 %v3230
    %3295 = vmatpush.msra.mxu0 %v3229
    %3296 = vmatpush.msra.mxu0 %v3228
    %3297 = vmatpush.msra.mxu0 %v3227
    %3298 = vmatmul.f32.gmra.mxu0 %v3251
    %v3299 = vpop.f32.mrf.mxu0
    %v3300 = vadd.f32 %v3280, %v3299
    %3301 = vmatmul.f32.gmra.mxu0 %v3254
    %v3302 = vpop.f32.mrf.mxu0
    %v3303 = vadd.f32 %v3280, %v3302
    %3304 = vdwg.mxu0
    %v3306 = vperm.slane %v3239, 0
    %3308 = vmatpush.msra.mxu0 0.0
    %3309 = vmatpush.msra.mxu0 0.0
    %3310 = vmatpush.msra.mxu0 0.0
    %3311 = vmatpush.msra.mxu0 0.0
    %3312 = vmatpush.msra.mxu0 0.0
    %3313 = vmatpush.msra.mxu0 0.0
    %3314 = vmatpush.msra.mxu0 0.0
    %3315 = vmatpush.msra.mxu0 0.0
    %3316 = vmatpush.msra.mxu0 0.0
    %3317 = vmatpush.msra.mxu0 0.0
    %3318 = vmatpush.msra.mxu0 0.0
    %3319 = vmatpush.msra.mxu0 0.0
    %3320 = vmatpush.msra.mxu0 %v3237
    %3321 = vmatpush.msra.mxu0 %v3236
    %3322 = vmatpush.msra.mxu0 %v3235
    %3323 = vmatpush.msra.mxu0 %v3234
    %3324 = vmatmul.f32.gmra.mxu0 %v3251
    %v3325 = vpop.f32.mrf.mxu0
    %v3326 = vadd.f32 %v3306, %v3325
    %3327 = vmatmul.f32.gmra.mxu0 %v3254
    %v3328 = vpop.f32.mrf.mxu0
    %v3329 = vadd.f32 %v3306, %v3328
    %3330 = vdwg.mxu0
    %v3332 = vperm.slane %v3246, 0
    %v3334 = vadd.f32 %v3332, 0.0
    %v3336 = vsel %vm694, %v3274, 0
    %v3339 = vsel %vm694, %v3300, 0
    %3341 = vmatpush.xpose.msra.mxu0 0.0
    %3342 = vmatpush.xpose.msra.mxu0 0.0
    %3343 = vmatpush.xpose.msra.mxu0 0.0
    %3344 = vmatpush.xpose.msra.mxu0 0.0
    %3345 = vmatpush.xpose.msra.mxu0 0.0
    %3346 = vmatpush.xpose.msra.mxu0 0.0
    %3347 = vmatpush.xpose.msra.mxu0 0.0
    %3348 = vmatpush.xpose.msra.mxu0 0.0
    %3349 = vmatpush.xpose.msra.mxu0 0.0
    %3350 = vmatpush.xpose.msra.mxu0 0.0
    %3351 = vmatpush.xpose.msra.mxu0 0.0
    %3352 = vmatpush.xpose.msra.mxu0 0.0
    %3353 = vmatpush.xpose.msra.mxu0 0.0
    %3354 = vmatpush.xpose.msra.mxu0 0.0
    %3355 = vmatpush.xpose.msra.mxu0 0.0
    %3356 = vmatpush.xpose.msra.mxu0 %v3339
    %3357 = vmatmul.f32.gmra.mxu0 %v3336
    %v3358 = vpop.f32.mrf.mxu0
    %v3359 = vadd.f32 0.0, %v3358
    %3360 = vdwg.mxu0
    %v3362 = vsel %vm694, %v3277, 0
    %v3365 = vsel %vm694, %v3303, 0
    %3367 = vmatpush.xpose.msra.mxu0 0.0
    %3368 = vmatpush.xpose.msra.mxu0 0.0
    %3369 = vmatpush.xpose.msra.mxu0 0.0
    %3370 = vmatpush.xpose.msra.mxu0 0.0
    %3371 = vmatpush.xpose.msra.mxu0 0.0
    %3372 = vmatpush.xpose.msra.mxu0 0.0
    %3373 = vmatpush.xpose.msra.mxu0 0.0
    %3374 = vmatpush.xpose.msra.mxu0 0.0
    %3375 = vmatpush.xpose.msra.mxu0 0.0
    %3376 = vmatpush.xpose.msra.mxu0 0.0
    %3377 = vmatpush.xpose.msra.mxu0 0.0
    %3378 = vmatpush.xpose.msra.mxu0 0.0
    %3379 = vmatpush.xpose.msra.mxu0 0.0
    %3380 = vmatpush.xpose.msra.mxu0 0.0
    %3381 = vmatpush.xpose.msra.mxu0 0.0
    %3382 = vmatpush.xpose.msra.mxu0 %v3365
    %3383 = vmatmul.f32.gmra.mxu0 %v3362
    %v3384 = vpop.f32.mrf.mxu0
    %v3385 = vadd.f32 0.0, %v3384
    %3386 = vdwg.mxu0
    %v3387 = vmul.f32 %v3359, 0.25
    %v3388 = vmul.f32 %v3385, 0.25
    %v3389 = vadd.f32 %v3387, %v470
    %v3390 = vadd.f32 %v3388, %v471
    %v3391 = vsel %vm755, %v3389, -inf
    %3392 = vmax.xlane.f32.xlu0 %v3391
    %v3393 = vpop.xlane.xlu0 %3392
    %v3394 = vsel %vm755, %v3390, -inf
    %3395 = vmax.xlane.f32.xlu0 %v3394
    %v3396 = vpop.xlane.xlu0 %3395
    %v3397 = vsub.f32 %v3389, %v3393
    %v3398 = vsub.f32 %v3390, %v3396
    %v3399 = vmul.f32 %v3397, 1.442695
    %v3400 = vpow.pop %v3399
    %v3401 = vmul.f32 %v3398, 1.442695
    %v3402 = vpow.pop %v3401
    %v3403 = vsel %vm755, %v3400, 0.0
    %3404 = vadd.xlane.f32.xlu0 %v3403
    %v3405 = vpop.xlane.xlu0 %3404
    %v3406 = vsel %vm755, %v3402, 0.0
    %3407 = vadd.xlane.f32.xlu0 %v3406
    %v3408 = vpop.xlane.xlu0 %3407
    %v3409 = vrcp.pop %v3405
    %v3410 = vrcp.pop %v3408
    %v3411 = vmul.f32 %v3400, %v3409
    %v3412 = vmul.f32 %v3402, %v3410
    %v3414 = vsel %vm755, %v3411, 0
    %3416 = vmatpush.msra.mxu0 0.0
    %3417 = vmatpush.msra.mxu0 0.0
    %3418 = vmatpush.msra.mxu0 0.0
    %3419 = vmatpush.msra.mxu0 0.0
    %3420 = vmatpush.msra.mxu0 0.0
    %3421 = vmatpush.msra.mxu0 0.0
    %3422 = vmatpush.msra.mxu0 0.0
    %3423 = vmatpush.msra.mxu0 0.0
    %3424 = vmatpush.msra.mxu0 0.0
    %3425 = vmatpush.msra.mxu0 0.0
    %3426 = vmatpush.msra.mxu0 0.0
    %3427 = vmatpush.msra.mxu0 0.0
    %3428 = vmatpush.msra.mxu0 0.0
    %3429 = vmatpush.msra.mxu0 0.0
    %3430 = vmatpush.msra.mxu0 0.0
    %3431 = vmatpush.msra.mxu0 %v3326
    %3432 = vmatmul.f32.gmra.mxu0 %v3414
    %v3433 = vpop.f32.mrf.mxu0
    %v3434 = vadd.f32 0.0, %v3433
    %3435 = vdwg.mxu0
    %v3437 = vsel %vm755, %v3412, 0
    %3439 = vmatpush.msra.mxu0 0.0
    %3440 = vmatpush.msra.mxu0 0.0
    %3441 = vmatpush.msra.mxu0 0.0
    %3442 = vmatpush.msra.mxu0 0.0
    %3443 = vmatpush.msra.mxu0 0.0
    %3444 = vmatpush.msra.mxu0 0.0
    %3445 = vmatpush.msra.mxu0 0.0
    %3446 = vmatpush.msra.mxu0 0.0
    %3447 = vmatpush.msra.mxu0 0.0
    %3448 = vmatpush.msra.mxu0 0.0
    %3449 = vmatpush.msra.mxu0 0.0
    %3450 = vmatpush.msra.mxu0 0.0
    %3451 = vmatpush.msra.mxu0 0.0
    %3452 = vmatpush.msra.mxu0 0.0
    %3453 = vmatpush.msra.mxu0 0.0
    %3454 = vmatpush.msra.mxu0 %v3329
    %3455 = vmatmul.f32.gmra.mxu0 %v3437
    %v3456 = vpop.f32.mrf.mxu0
    %v3457 = vadd.f32 0.0, %v3456
    %3458 = vdwg.mxu0
    %v3460 = vsel %vm694, %v3434, 0
    %v3463 = vsel %vm694, %v3457, 0
    %3465 = vmatpush.msra.mxu0 0.0
    %3466 = vmatpush.msra.mxu0 0.0
    %3467 = vmatpush.msra.mxu0 0.0
    %3468 = vmatpush.msra.mxu0 0.0
    %3469 = vmatpush.msra.mxu0 0.0
    %3470 = vmatpush.msra.mxu0 0.0
    %3471 = vmatpush.msra.mxu0 0.0
    %3472 = vmatpush.msra.mxu0 0.0
    %3473 = vmatpush.msra.mxu0 0.0
    %3474 = vmatpush.msra.mxu0 0.0
    %3475 = vmatpush.msra.mxu0 0.0
    %3476 = vmatpush.msra.mxu0 0.0
    %3477 = vmatpush.msra.mxu0 0.0
    %3478 = vmatpush.msra.mxu0 0.0
    %3479 = vmatpush.msra.mxu0 %v3242
    %3480 = vmatpush.msra.mxu0 %v3241
    %3481 = vmatmul.f32.gmra.mxu0 %v3460
    %v3482 = vpop.f32.mrf.mxu0
    %v3483 = vadd.f32 0.0, %v3482
    %3484 = vmatmul.f32.gmra.mxu0 %v3463
    %v3485 = vpop.f32.mrf.mxu0
    %v3486 = vadd.f32 0.0, %v3485
    %3487 = vdwg.mxu0
    %v3488 = vadd.f32 %v3334, %v3483
    %v3489 = vadd.f32 %v3334, %v3486
    %3490 = vrot.lane.b32.xlu0 %v3274, 112
    %v3491 = vpop.permute.xlu0 %3490
    %3492 = vrot.lane.b32.xlu0 %v3300, 112
    %v3493 = vpop.permute.xlu0 %3492
    %v3494 = vsel %vm694, %v3491, 0
    %v3496 = vsel %vm694, %v3493, 0
    %3498 = vmatpush.xpose.msra.mxu0 0.0
    %3499 = vmatpush.xpose.msra.mxu0 0.0
    %3500 = vmatpush.xpose.msra.mxu0 0.0
    %3501 = vmatpush.xpose.msra.mxu0 0.0
    %3502 = vmatpush.xpose.msra.mxu0 0.0
    %3503 = vmatpush.xpose.msra.mxu0 0.0
    %3504 = vmatpush.xpose.msra.mxu0 0.0
    %3505 = vmatpush.xpose.msra.mxu0 0.0
    %3506 = vmatpush.xpose.msra.mxu0 0.0
    %3507 = vmatpush.xpose.msra.mxu0 0.0
    %3508 = vmatpush.xpose.msra.mxu0 0.0
    %3509 = vmatpush.xpose.msra.mxu0 0.0
    %3510 = vmatpush.xpose.msra.mxu0 0.0
    %3511 = vmatpush.xpose.msra.mxu0 0.0
    %3512 = vmatpush.xpose.msra.mxu0 0.0
    %3513 = vmatpush.xpose.msra.mxu0 %v3496
    %3514 = vmatmul.f32.gmra.mxu0 %v3494
    %v3515 = vpop.f32.mrf.mxu0
    %v3516 = vadd.f32 0.0, %v3515
    %3517 = vdwg.mxu0
    %3518 = vrot.lane.b32.xlu0 %v3277, 112
    %v3519 = vpop.permute.xlu0 %3518
    %3520 = vrot.lane.b32.xlu0 %v3303, 112
    %v3521 = vpop.permute.xlu0 %3520
    %v3522 = vsel %vm694, %v3519, 0
    %v3524 = vsel %vm694, %v3521, 0
    %3526 = vmatpush.xpose.msra.mxu0 0.0
    %3527 = vmatpush.xpose.msra.mxu0 0.0
    %3528 = vmatpush.xpose.msra.mxu0 0.0
    %3529 = vmatpush.xpose.msra.mxu0 0.0
    %3530 = vmatpush.xpose.msra.mxu0 0.0
    %3531 = vmatpush.xpose.msra.mxu0 0.0
    %3532 = vmatpush.xpose.msra.mxu0 0.0
    %3533 = vmatpush.xpose.msra.mxu0 0.0
    %3534 = vmatpush.xpose.msra.mxu0 0.0
    %3535 = vmatpush.xpose.msra.mxu0 0.0
    %3536 = vmatpush.xpose.msra.mxu0 0.0
    %3537 = vmatpush.xpose.msra.mxu0 0.0
    %3538 = vmatpush.xpose.msra.mxu0 0.0
    %3539 = vmatpush.xpose.msra.mxu0 0.0
    %3540 = vmatpush.xpose.msra.mxu0 0.0
    %3541 = vmatpush.xpose.msra.mxu0 %v3524
    %3542 = vmatmul.f32.gmra.mxu0 %v3522
    %v3543 = vpop.f32.mrf.mxu0
    %v3544 = vadd.f32 0.0, %v3543
    %3545 = vdwg.mxu0
    %v3546 = vmul.f32 %v3516, 0.25
    %v3547 = vmul.f32 %v3544, 0.25
    %v3548 = vadd.f32 %v3546, %v470
    %v3549 = vadd.f32 %v3547, %v471
    %v3550 = vsel %vm755, %v3548, -inf
    %3551 = vmax.xlane.f32.xlu0 %v3550
    %v3552 = vpop.xlane.xlu0 %3551
    %v3553 = vsel %vm755, %v3549, -inf
    %3554 = vmax.xlane.f32.xlu0 %v3553
    %v3555 = vpop.xlane.xlu0 %3554
    %v3556 = vsub.f32 %v3548, %v3552
    %v3557 = vsub.f32 %v3549, %v3555
    %v3558 = vmul.f32 %v3556, 1.442695
    %v3559 = vpow.pop %v3558
    %v3560 = vmul.f32 %v3557, 1.442695
    %v3561 = vpow.pop %v3560
    %v3562 = vsel %vm755, %v3559, 0.0
    %3563 = vadd.xlane.f32.xlu0 %v3562
    %v3564 = vpop.xlane.xlu0 %3563
    %v3565 = vsel %vm755, %v3561, 0.0
    %3566 = vadd.xlane.f32.xlu0 %v3565
    %v3567 = vpop.xlane.xlu0 %3566
    %v3568 = vrcp.pop %v3564
    %v3569 = vrcp.pop %v3567
    %v3570 = vmul.f32 %v3559, %v3568
    %v3571 = vmul.f32 %v3561, %v3569
    %3573 = vrot.lane.b32.xlu0 %v3326, 112
    %v3574 = vpop.permute.xlu0 %3573
    %v3577 = vsel %vm755, %v3570, 0
    %3579 = vmatpush.msra.mxu0 0.0
    %3580 = vmatpush.msra.mxu0 0.0
    %3581 = vmatpush.msra.mxu0 0.0
    %3582 = vmatpush.msra.mxu0 0.0
    %3583 = vmatpush.msra.mxu0 0.0
    %3584 = vmatpush.msra.mxu0 0.0
    %3585 = vmatpush.msra.mxu0 0.0
    %3586 = vmatpush.msra.mxu0 0.0
    %3587 = vmatpush.msra.mxu0 0.0
    %3588 = vmatpush.msra.mxu0 0.0
    %3589 = vmatpush.msra.mxu0 0.0
    %3590 = vmatpush.msra.mxu0 0.0
    %3591 = vmatpush.msra.mxu0 0.0
    %3592 = vmatpush.msra.mxu0 0.0
    %3593 = vmatpush.msra.mxu0 0.0
    %3594 = vmatpush.msra.mxu0 %v3574
    %3595 = vmatmul.f32.gmra.mxu0 %v3577
    %v3596 = vpop.f32.mrf.mxu0
    %v3597 = vadd.f32 0.0, %v3596
    %3598 = vdwg.mxu0
    %3600 = vrot.lane.b32.xlu0 %v3329, 112
    %v3601 = vpop.permute.xlu0 %3600
    %v3604 = vsel %vm755, %v3571, 0
    %3606 = vmatpush.msra.mxu0 0.0
    %3607 = vmatpush.msra.mxu0 0.0
    %3608 = vmatpush.msra.mxu0 0.0
    %3609 = vmatpush.msra.mxu0 0.0
    %3610 = vmatpush.msra.mxu0 0.0
    %3611 = vmatpush.msra.mxu0 0.0
    %3612 = vmatpush.msra.mxu0 0.0
    %3613 = vmatpush.msra.mxu0 0.0
    %3614 = vmatpush.msra.mxu0 0.0
    %3615 = vmatpush.msra.mxu0 0.0
    %3616 = vmatpush.msra.mxu0 0.0
    %3617 = vmatpush.msra.mxu0 0.0
    %3618 = vmatpush.msra.mxu0 0.0
    %3619 = vmatpush.msra.mxu0 0.0
    %3620 = vmatpush.msra.mxu0 0.0
    %3621 = vmatpush.msra.mxu0 %v3601
    %3622 = vmatmul.f32.gmra.mxu0 %v3604
    %v3623 = vpop.f32.mrf.mxu0
    %v3624 = vadd.f32 0.0, %v3623
    %3625 = vdwg.mxu0
    %v3627 = vsel %vm694, %v3597, 0
    %v3630 = vsel %vm694, %v3624, 0
    %3632 = vmatpush.msra.mxu0 0.0
    %3633 = vmatpush.msra.mxu0 0.0
    %3634 = vmatpush.msra.mxu0 0.0
    %3635 = vmatpush.msra.mxu0 0.0
    %3636 = vmatpush.msra.mxu0 0.0
    %3637 = vmatpush.msra.mxu0 0.0
    %3638 = vmatpush.msra.mxu0 0.0
    %3639 = vmatpush.msra.mxu0 0.0
    %3640 = vmatpush.msra.mxu0 0.0
    %3641 = vmatpush.msra.mxu0 0.0
    %3642 = vmatpush.msra.mxu0 0.0
    %3643 = vmatpush.msra.mxu0 0.0
    %3644 = vmatpush.msra.mxu0 0.0
    %3645 = vmatpush.msra.mxu0 0.0
    %3646 = vmatpush.msra.mxu0 %v3244
    %3647 = vmatpush.msra.mxu0 %v3243
    %3648 = vmatmul.f32.gmra.mxu0 %v3627
    %v3649 = vpop.f32.mrf.mxu0
    %v3650 = vadd.f32 0.0, %v3649
    %3651 = vmatmul.f32.gmra.mxu0 %v3630
    %v3652 = vpop.f32.mrf.mxu0
    %v3653 = vadd.f32 0.0, %v3652
    %3654 = vdwg.mxu0
    %v3655 = vadd.f32 %v3488, %v3650
    %v3656 = vadd.f32 %v3489, %v3653
    %v3657 = vadd.f32 %v3159, %v3655
    %v3658 = vadd.f32 %v3160, %v3656
    %s3659 = scalar_lea.vmem [#allocation22], 8
    %v3660 = vld [vmem:[%s3659] sm:$0x1]
    %s3661 = scalar_lea.vmem [#allocation22], 9
    %v3662 = vld [vmem:[%s3661] sm:$0x1]
    %v3663 = vsel %vm482, %v3657, 0.0
    %3664 = vadd.xlane.f32.xlu0 %v3663
    %v3665 = vpop.xlane.xlu0 %3664
    %v3666 = vsel %vm482, %v3658, 0.0
    %3667 = vadd.xlane.f32.xlu0 %v3666
    %v3668 = vpop.xlane.xlu0 %3667
    %v3669 = vmul.f32 %v3665, %v531
    %v3670 = vmul.f32 %v3668, %v531
    %v3671 = vsub.f32 %v3657, %v3669
    %v3672 = vsub.f32 %v3658, %v3670
    %v3673 = vmul.f32 %v3671, %v3671
    %v3674 = vmul.f32 %v3672, %v3672
    %v3675 = vsel %vm482, %v3673, 0.0
    %3676 = vadd.xlane.f32.xlu0 %v3675
    %v3677 = vpop.xlane.xlu0 %3676
    %v3678 = vsel %vm482, %v3674, 0.0
    %3679 = vadd.xlane.f32.xlu0 %v3678
    %v3680 = vpop.xlane.xlu0 %3679
    %v3681 = vmul.f32 %v3677, %v531
    %v3682 = vmul.f32 %v3680, %v531
    %v3683 = vadd.f32 %v3681, 1e-05
    %v3684 = vadd.f32 %v3682, 1e-05
    %v3685 = vrsqrt.pop %v3683
    %v3686 = vmul.f32 %v3685, %v3683
    %v3687 = vmul.f32 %v3686, %v3685
    %v3688 = vmul.f32 0.5, %v3687
    %v3689 = vsub.f32 1.5, %v3688
    %v3690 = vmul.f32 %v3685, %v3689
    %vm3691 = vweird.f32 %v3683
    %vm3692 = vweird.f32 %v3685
    %vm3693 = vmor %vm3691, %vm3692
    %v3694 = vsel %vm3693, %v3685, %v3690
    %v3695 = vrsqrt.pop %v3684
    %v3696 = vmul.f32 %v3695, %v3684
    %v3697 = vmul.f32 %v3696, %v3695
    %v3698 = vmul.f32 0.5, %v3697
    %v3699 = vsub.f32 1.5, %v3698
    %v3700 = vmul.f32 %v3695, %v3699
    %vm3701 = vweird.f32 %v3684
    %vm3702 = vweird.f32 %v3695
    %vm3703 = vmor %vm3701, %vm3702
    %v3704 = vsel %vm3703, %v3695, %v3700
    %v3705 = vmul.f32 %v3671, %v3694
    %v3706 = vmul.f32 %v3672, %v3704
    %v3708 = vperm.slane %v3660, 0
    %v3710 = vmul.f32 %v3705, %v3708
    %v3711 = vmul.f32 %v3706, %v3708
    %v3713 = vperm.slane %v3662, 0
    %v3715 = vadd.f32 %v3710, %v3713
    %v3716 = vadd.f32 %v3711, %v3713
    %s3717 = scalar_lea.vmem [#allocation25], 128
    %v3718 = vld [vmem:[%s3717] sm:$0xff]
    %v3719 = vld [vmem:[%s3717 + $0x8] sm:$0xff]
    %v3720 = vld [vmem:[%s3717 + $0x10] sm:$0xff]
    %v3721 = vld [vmem:[%s3717 + $0x18] sm:$0xff]
    %s3722 = scalar_lea.vmem [#allocation26], 4
    %v3723 = vld [vmem:[%s3722] sm:$0x1]
    %s3724 = scalar_lea.vmem [#allocation25], 160
    %v3725 = vld [vmem:[%s3724] sm:$0xff]
    %v3726 = vld [vmem:[%s3724 + $0x8] sm:$0xff]
    %v3727 = vld [vmem:[%s3724 + $0x10] sm:$0xff]
    %v3728 = vld [vmem:[%s3724 + $0x18] sm:$0xff]
    %s3729 = scalar_lea.vmem [#allocation26], 5
    %v3730 = vld [vmem:[%s3729] sm:$0x1]
    %s3731 = scalar_lea.vmem [#allocation25], 192
    %v3732 = vld [vmem:[%s3731] sm:$0xff]
    %v3733 = vld [vmem:[%s3731 + $0x8] sm:$0xff]
    %v3734 = vld [vmem:[%s3731 + $0x10] sm:$0xff]
    %v3735 = vld [vmem:[%s3731 + $0x18] sm:$0xff]
    %s3736 = scalar_lea.vmem [#allocation26], 6
    %v3737 = vld [vmem:[%s3736] sm:$0x1]
    %s3738 = scalar_lea.vmem [#allocation25], 224
    %v3739 = vld [vmem:[%s3738] sm:$0xff]
    %v3740 = vld [vmem:[%s3738 + $0x8] sm:$0xff]
    %v3741 = vld [vmem:[%s3738 + $0x10] sm:$0xff]
    %v3742 = vld [vmem:[%s3738 + $0x18] sm:$0xff]
    %s3743 = scalar_lea.vmem [#allocation26], 7
    %v3744 = vld [vmem:[%s3743] sm:$0x1]
    %v3746 = vperm.slane %v3723, 0
    %v3749 = vsel %vm482, %v3715, 0
    %v3752 = vsel %vm482, %v3716, 0
    %3754 = vmatpush.msra.mxu0 0.0
    %3755 = vmatpush.msra.mxu0 0.0
    %3756 = vmatpush.msra.mxu0 0.0
    %3757 = vmatpush.msra.mxu0 0.0
    %3758 = vmatpush.msra.mxu0 0.0
    %3759 = vmatpush.msra.mxu0 0.0
    %3760 = vmatpush.msra.mxu0 0.0
    %3761 = vmatpush.msra.mxu0 0.0
    %3762 = vmatpush.msra.mxu0 0.0
    %3763 = vmatpush.msra.mxu0 0.0
    %3764 = vmatpush.msra.mxu0 0.0
    %3765 = vmatpush.msra.mxu0 0.0
    %3766 = vmatpush.msra.mxu0 %v3721
    %3767 = vmatpush.msra.mxu0 %v3720
    %3768 = vmatpush.msra.mxu0 %v3719
    %3769 = vmatpush.msra.mxu0 %v3718
    %3770 = vmatmul.f32.gmra.mxu0 %v3749
    %v3771 = vpop.f32.mrf.mxu0
    %v3772 = vadd.f32 %v3746, %v3771
    %3773 = vmatmul.f32.gmra.mxu0 %v3752
    %v3774 = vpop.f32.mrf.mxu0
    %v3775 = vadd.f32 %v3746, %v3774
    %3776 = vdwg.mxu0
    %v3778 = vperm.slane %v3730, 0
    %3780 = vmatpush.msra.mxu0 0.0
    %3781 = vmatpush.msra.mxu0 0.0
    %3782 = vmatpush.msra.mxu0 0.0
    %3783 = vmatpush.msra.mxu0 0.0
    %3784 = vmatpush.msra.mxu0 0.0
    %3785 = vmatpush.msra.mxu0 0.0
    %3786 = vmatpush.msra.mxu0 0.0
    %3787 = vmatpush.msra.mxu0 0.0
    %3788 = vmatpush.msra.mxu0 0.0
    %3789 = vmatpush.msra.mxu0 0.0
    %3790 = vmatpush.msra.mxu0 0.0
    %3791 = vmatpush.msra.mxu0 0.0
    %3792 = vmatpush.msra.mxu0 %v3728
    %3793 = vmatpush.msra.mxu0 %v3727
    %3794 = vmatpush.msra.mxu0 %v3726
    %3795 = vmatpush.msra.mxu0 %v3725
    %3796 = vmatmul.f32.gmra.mxu0 %v1909
    %v3797 = vpop.f32.mrf.mxu0
    %v3798 = vadd.f32 %v3778, %v3797
    %3799 = vmatmul.f32.gmra.mxu0 %v1912
    %v3800 = vpop.f32.mrf.mxu0
    %v3801 = vadd.f32 %v3778, %v3800
    %3802 = vdwg.mxu0
    %v3804 = vperm.slane %v3737, 0
    %3806 = vmatpush.msra.mxu0 0.0
    %3807 = vmatpush.msra.mxu0 0.0
    %3808 = vmatpush.msra.mxu0 0.0
    %3809 = vmatpush.msra.mxu0 0.0
    %3810 = vmatpush.msra.mxu0 0.0
    %3811 = vmatpush.msra.mxu0 0.0
    %3812 = vmatpush.msra.mxu0 0.0
    %3813 = vmatpush.msra.mxu0 0.0
    %3814 = vmatpush.msra.mxu0 0.0
    %3815 = vmatpush.msra.mxu0 0.0
    %3816 = vmatpush.msra.mxu0 0.0
    %3817 = vmatpush.msra.mxu0 0.0
    %3818 = vmatpush.msra.mxu0 %v3735
    %3819 = vmatpush.msra.mxu0 %v3734
    %3820 = vmatpush.msra.mxu0 %v3733
    %3821 = vmatpush.msra.mxu0 %v3732
    %3822 = vmatmul.f32.gmra.mxu0 %v1909
    %v3823 = vpop.f32.mrf.mxu0
    %v3824 = vadd.f32 %v3804, %v3823
    %3825 = vmatmul.f32.gmra.mxu0 %v1912
    %v3826 = vpop.f32.mrf.mxu0
    %v3827 = vadd.f32 %v3804, %v3826
    %3828 = vdwg.mxu0
    %v3830 = vperm.slane %v3744, 0
    %v3832 = vadd.f32 %v3830, 0.0
    %v3834 = vsel %vm694, %v3772, 0
    %v3837 = vsel %vm694, %v3798, 0
    %3839 = vmatpush.xpose.msra.mxu0 0.0
    %3840 = vmatpush.xpose.msra.mxu0 0.0
    %3841 = vmatpush.xpose.msra.mxu0 0.0
    %3842 = vmatpush.xpose.msra.mxu0 0.0
    %3843 = vmatpush.xpose.msra.mxu0 0.0
    %3844 = vmatpush.xpose.msra.mxu0 0.0
    %3845 = vmatpush.xpose.msra.mxu0 0.0
    %3846 = vmatpush.xpose.msra.mxu0 0.0
    %3847 = vmatpush.xpose.msra.mxu0 0.0
    %3848 = vmatpush.xpose.msra.mxu0 0.0
    %3849 = vmatpush.xpose.msra.mxu0 0.0
    %3850 = vmatpush.xpose.msra.mxu0 0.0
    %3851 = vmatpush.xpose.msra.mxu0 0.0
    %3852 = vmatpush.xpose.msra.mxu0 0.0
    %3853 = vmatpush.xpose.msra.mxu0 0.0
    %3854 = vmatpush.xpose.msra.mxu0 %v3837
    %3855 = vmatmul.f32.gmra.mxu0 %v3834
    %v3856 = vpop.f32.mrf.mxu0
    %v3857 = vadd.f32 0.0, %v3856
    %3858 = vdwg.mxu0
    %v3860 = vsel %vm694, %v3775, 0
    %v3863 = vsel %vm694, %v3801, 0
    %3865 = vmatpush.xpose.msra.mxu0 0.0
    %3866 = vmatpush.xpose.msra.mxu0 0.0
    %3867 = vmatpush.xpose.msra.mxu0 0.0
    %3868 = vmatpush.xpose.msra.mxu0 0.0
    %3869 = vmatpush.xpose.msra.mxu0 0.0
    %3870 = vmatpush.xpose.msra.mxu0 0.0
    %3871 = vmatpush.xpose.msra.mxu0 0.0
    %3872 = vmatpush.xpose.msra.mxu0 0.0
    %3873 = vmatpush.xpose.msra.mxu0 0.0
    %3874 = vmatpush.xpose.msra.mxu0 0.0
    %3875 = vmatpush.xpose.msra.mxu0 0.0
    %3876 = vmatpush.xpose.msra.mxu0 0.0
    %3877 = vmatpush.xpose.msra.mxu0 0.0
    %3878 = vmatpush.xpose.msra.mxu0 0.0
    %3879 = vmatpush.xpose.msra.mxu0 0.0
    %3880 = vmatpush.xpose.msra.mxu0 %v3863
    %3881 = vmatmul.f32.gmra.mxu0 %v3860
    %v3882 = vpop.f32.mrf.mxu0
    %v3883 = vadd.f32 0.0, %v3882
    %3884 = vdwg.mxu0
    %v3885 = vmul.f32 %v3857, 0.25
    %v3886 = vmul.f32 %v3883, 0.25
    %v3887 = vadd.f32 %v3885, %v749
    %v3888 = vadd.f32 %v3886, %v750
    %v3889 = vsel %vm755, %v3887, -inf
    %3890 = vmax.xlane.f32.xlu0 %v3889
    %v3891 = vpop.xlane.xlu0 %3890
    %v3892 = vsel %vm755, %v3888, -inf
    %3893 = vmax.xlane.f32.xlu0 %v3892
    %v3894 = vpop.xlane.xlu0 %3893
    %v3895 = vsub.f32 %v3887, %v3891
    %v3896 = vsub.f32 %v3888, %v3894
    %v3897 = vmul.f32 %v3895, 1.442695
    %v3898 = vpow.pop %v3897
    %v3899 = vmul.f32 %v3896, 1.442695
    %v3900 = vpow.pop %v3899
    %v3901 = vsel %vm755, %v3898, 0.0
    %3902 = vadd.xlane.f32.xlu0 %v3901
    %v3903 = vpop.xlane.xlu0 %3902
    %v3904 = vsel %vm755, %v3900, 0.0
    %3905 = vadd.xlane.f32.xlu0 %v3904
    %v3906 = vpop.xlane.xlu0 %3905
    %v3907 = vrcp.pop %v3903
    %v3908 = vrcp.pop %v3906
    %v3909 = vmul.f32 %v3898, %v3907
    %v3910 = vmul.f32 %v3900, %v3908
    %v3912 = vsel %vm755, %v3909, 0
    %3914 = vmatpush.msra.mxu0 0.0
    %3915 = vmatpush.msra.mxu0 0.0
    %3916 = vmatpush.msra.mxu0 0.0
    %3917 = vmatpush.msra.mxu0 0.0
    %3918 = vmatpush.msra.mxu0 0.0
    %3919 = vmatpush.msra.mxu0 0.0
    %3920 = vmatpush.msra.mxu0 0.0
    %3921 = vmatpush.msra.mxu0 0.0
    %3922 = vmatpush.msra.mxu0 0.0
    %3923 = vmatpush.msra.mxu0 0.0
    %3924 = vmatpush.msra.mxu0 0.0
    %3925 = vmatpush.msra.mxu0 0.0
    %3926 = vmatpush.msra.mxu0 0.0
    %3927 = vmatpush.msra.mxu0 0.0
    %3928 = vmatpush.msra.mxu0 0.0
    %3929 = vmatpush.msra.mxu0 %v3824
    %3930 = vmatmul.f32.gmra.mxu0 %v3912
    %v3931 = vpop.f32.mrf.mxu0
    %v3932 = vadd.f32 0.0, %v3931
    %3933 = vdwg.mxu0
    %v3935 = vsel %vm755, %v3910, 0
    %3937 = vmatpush.msra.mxu0 0.0
    %3938 = vmatpush.msra.mxu0 0.0
    %3939 = vmatpush.msra.mxu0 0.0
    %3940 = vmatpush.msra.mxu0 0.0
    %3941 = vmatpush.msra.mxu0 0.0
    %3942 = vmatpush.msra.mxu0 0.0
    %3943 = vmatpush.msra.mxu0 0.0
    %3944 = vmatpush.msra.mxu0 0.0
    %3945 = vmatpush.msra.mxu0 0.0
    %3946 = vmatpush.msra.mxu0 0.0
    %3947 = vmatpush.msra.mxu0 0.0
    %3948 = vmatpush.msra.mxu0 0.0
    %3949 = vmatpush.msra.mxu0 0.0
    %3950 = vmatpush.msra.mxu0 0.0
    %3951 = vmatpush.msra.mxu0 0.0
    %3952 = vmatpush.msra.mxu0 %v3827
    %3953 = vmatmul.f32.gmra.mxu0 %v3935
    %v3954 = vpop.f32.mrf.mxu0
    %v3955 = vadd.f32 0.0, %v3954
    %3956 = vdwg.mxu0
    %v3958 = vsel %vm694, %v3932, 0
    %v3961 = vsel %vm694, %v3955, 0
    %3963 = vmatpush.msra.mxu0 0.0
    %3964 = vmatpush.msra.mxu0 0.0
    %3965 = vmatpush.msra.mxu0 0.0
    %3966 = vmatpush.msra.mxu0 0.0
    %3967 = vmatpush.msra.mxu0 0.0
    %3968 = vmatpush.msra.mxu0 0.0
    %3969 = vmatpush.msra.mxu0 0.0
    %3970 = vmatpush.msra.mxu0 0.0
    %3971 = vmatpush.msra.mxu0 0.0
    %3972 = vmatpush.msra.mxu0 0.0
    %3973 = vmatpush.msra.mxu0 0.0
    %3974 = vmatpush.msra.mxu0 0.0
    %3975 = vmatpush.msra.mxu0 0.0
    %3976 = vmatpush.msra.mxu0 0.0
    %3977 = vmatpush.msra.mxu0 %v3740
    %3978 = vmatpush.msra.mxu0 %v3739
    %3979 = vmatmul.f32.gmra.mxu0 %v3958
    %v3980 = vpop.f32.mrf.mxu0
    %v3981 = vadd.f32 0.0, %v3980
    %3982 = vmatmul.f32.gmra.mxu0 %v3961
    %v3983 = vpop.f32.mrf.mxu0
    %v3984 = vadd.f32 0.0, %v3983
    %3985 = vdwg.mxu0
    %v3986 = vadd.f32 %v3832, %v3981
    %v3987 = vadd.f32 %v3832, %v3984
    %3988 = vrot.lane.b32.xlu0 %v3772, 112
    %v3989 = vpop.permute.xlu0 %3988
    %3990 = vrot.lane.b32.xlu0 %v3798, 112
    %v3991 = vpop.permute.xlu0 %3990
    %v3992 = vsel %vm694, %v3989, 0
    %v3994 = vsel %vm694, %v3991, 0
    %3996 = vmatpush.xpose.msra.mxu0 0.0
    %3997 = vmatpush.xpose.msra.mxu0 0.0
    %3998 = vmatpush.xpose.msra.mxu0 0.0
    %3999 = vmatpush.xpose.msra.mxu0 0.0
    %4000 = vmatpush.xpose.msra.mxu0 0.0
    %4001 = vmatpush.xpose.msra.mxu0 0.0
    %4002 = vmatpush.xpose.msra.mxu0 0.0
    %4003 = vmatpush.xpose.msra.mxu0 0.0
    %4004 = vmatpush.xpose.msra.mxu0 0.0
    %4005 = vmatpush.xpose.msra.mxu0 0.0
    %4006 = vmatpush.xpose.msra.mxu0 0.0
    %4007 = vmatpush.xpose.msra.mxu0 0.0
    %4008 = vmatpush.xpose.msra.mxu0 0.0
    %4009 = vmatpush.xpose.msra.mxu0 0.0
    %4010 = vmatpush.xpose.msra.mxu0 0.0
    %4011 = vmatpush.xpose.msra.mxu0 %v3994
    %4012 = vmatmul.f32.gmra.mxu0 %v3992
    %v4013 = vpop.f32.mrf.mxu0
    %v4014 = vadd.f32 0.0, %v4013
    %4015 = vdwg.mxu0
    %4016 = vrot.lane.b32.xlu0 %v3775, 112
    %v4017 = vpop.permute.xlu0 %4016
    %4018 = vrot.lane.b32.xlu0 %v3801, 112
    %v4019 = vpop.permute.xlu0 %4018
    %v4020 = vsel %vm694, %v4017, 0
    %v4022 = vsel %vm694, %v4019, 0
    %4024 = vmatpush.xpose.msra.mxu0 0.0
    %4025 = vmatpush.xpose.msra.mxu0 0.0
    %4026 = vmatpush.xpose.msra.mxu0 0.0
    %4027 = vmatpush.xpose.msra.mxu0 0.0
    %4028 = vmatpush.xpose.msra.mxu0 0.0
    %4029 = vmatpush.xpose.msra.mxu0 0.0
    %4030 = vmatpush.xpose.msra.mxu0 0.0
    %4031 = vmatpush.xpose.msra.mxu0 0.0
    %4032 = vmatpush.xpose.msra.mxu0 0.0
    %4033 = vmatpush.xpose.msra.mxu0 0.0
    %4034 = vmatpush.xpose.msra.mxu0 0.0
    %4035 = vmatpush.xpose.msra.mxu0 0.0
    %4036 = vmatpush.xpose.msra.mxu0 0.0
    %4037 = vmatpush.xpose.msra.mxu0 0.0
    %4038 = vmatpush.xpose.msra.mxu0 0.0
    %4039 = vmatpush.xpose.msra.mxu0 %v4022
    %4040 = vmatmul.f32.gmra.mxu0 %v4020
    %v4041 = vpop.f32.mrf.mxu0
    %v4042 = vadd.f32 0.0, %v4041
    %4043 = vdwg.mxu0
    %v4044 = vmul.f32 %v4014, 0.25
    %v4045 = vmul.f32 %v4042, 0.25
    %v4046 = vadd.f32 %v4044, %v749
    %v4047 = vadd.f32 %v4045, %v750
    %v4048 = vsel %vm755, %v4046, -inf
    %4049 = vmax.xlane.f32.xlu0 %v4048
    %v4050 = vpop.xlane.xlu0 %4049
    %v4051 = vsel %vm755, %v4047, -inf
    %4052 = vmax.xlane.f32.xlu0 %v4051
    %v4053 = vpop.xlane.xlu0 %4052
    %v4054 = vsub.f32 %v4046, %v4050
    %v4055 = vsub.f32 %v4047, %v4053
    %v4056 = vmul.f32 %v4054, 1.442695
    %v4057 = vpow.pop %v4056
    %v4058 = vmul.f32 %v4055, 1.442695
    %v4059 = vpow.pop %v4058
    %v4060 = vsel %vm755, %v4057, 0.0
    %4061 = vadd.xlane.f32.xlu0 %v4060
    %v4062 = vpop.xlane.xlu0 %4061
    %v4063 = vsel %vm755, %v4059, 0.0
    %4064 = vadd.xlane.f32.xlu0 %v4063
    %v4065 = vpop.xlane.xlu0 %4064
    %v4066 = vrcp.pop %v4062
    %v4067 = vrcp.pop %v4065
    %v4068 = vmul.f32 %v4057, %v4066
    %v4069 = vmul.f32 %v4059, %v4067
    %4071 = vrot.lane.b32.xlu0 %v3824, 112
    %v4072 = vpop.permute.xlu0 %4071
    %v4075 = vsel %vm755, %v4068, 0
    %4077 = vmatpush.msra.mxu0 0.0
    %4078 = vmatpush.msra.mxu0 0.0
    %4079 = vmatpush.msra.mxu0 0.0
    %4080 = vmatpush.msra.mxu0 0.0
    %4081 = vmatpush.msra.mxu0 0.0
    %4082 = vmatpush.msra.mxu0 0.0
    %4083 = vmatpush.msra.mxu0 0.0
    %4084 = vmatpush.msra.mxu0 0.0
    %4085 = vmatpush.msra.mxu0 0.0
    %4086 = vmatpush.msra.mxu0 0.0
    %4087 = vmatpush.msra.mxu0 0.0
    %4088 = vmatpush.msra.mxu0 0.0
    %4089 = vmatpush.msra.mxu0 0.0
    %4090 = vmatpush.msra.mxu0 0.0
    %4091 = vmatpush.msra.mxu0 0.0
    %4092 = vmatpush.msra.mxu0 %v4072
    %4093 = vmatmul.f32.gmra.mxu0 %v4075
    %v4094 = vpop.f32.mrf.mxu0
    %v4095 = vadd.f32 0.0, %v4094
    %4096 = vdwg.mxu0
    %4098 = vrot.lane.b32.xlu0 %v3827, 112
    %v4099 = vpop.permute.xlu0 %4098
    %v4102 = vsel %vm755, %v4069, 0
    %4104 = vmatpush.msra.mxu0 0.0
    %4105 = vmatpush.msra.mxu0 0.0
    %4106 = vmatpush.msra.mxu0 0.0
    %4107 = vmatpush.msra.mxu0 0.0
    %4108 = vmatpush.msra.mxu0 0.0
    %4109 = vmatpush.msra.mxu0 0.0
    %4110 = vmatpush.msra.mxu0 0.0
    %4111 = vmatpush.msra.mxu0 0.0
    %4112 = vmatpush.msra.mxu0 0.0
    %4113 = vmatpush.msra.mxu0 0.0
    %4114 = vmatpush.msra.mxu0 0.0
    %4115 = vmatpush.msra.mxu0 0.0
    %4116 = vmatpush.msra.mxu0 0.0
    %4117 = vmatpush.msra.mxu0 0.0
    %4118 = vmatpush.msra.mxu0 0.0
    %4119 = vmatpush.msra.mxu0 %v4099
    %4120 = vmatmul.f32.gmra.mxu0 %v4102
    %v4121 = vpop.f32.mrf.mxu0
    %v4122 = vadd.f32 0.0, %v4121
    %4123 = vdwg.mxu0
    %v4125 = vsel %vm694, %v4095, 0
    %v4128 = vsel %vm694, %v4122, 0
    %4130 = vmatpush.msra.mxu0 0.0
    %4131 = vmatpush.msra.mxu0 0.0
    %4132 = vmatpush.msra.mxu0 0.0
    %4133 = vmatpush.msra.mxu0 0.0
    %4134 = vmatpush.msra.mxu0 0.0
    %4135 = vmatpush.msra.mxu0 0.0
    %4136 = vmatpush.msra.mxu0 0.0
    %4137 = vmatpush.msra.mxu0 0.0
    %4138 = vmatpush.msra.mxu0 0.0
    %4139 = vmatpush.msra.mxu0 0.0
    %4140 = vmatpush.msra.mxu0 0.0
    %4141 = vmatpush.msra.mxu0 0.0
    %4142 = vmatpush.msra.mxu0 0.0
    %4143 = vmatpush.msra.mxu0 0.0
    %4144 = vmatpush.msra.mxu0 %v3742
    %4145 = vmatpush.msra.mxu0 %v3741
    %4146 = vmatmul.f32.gmra.mxu0 %v4125
    %v4147 = vpop.f32.mrf.mxu0
    %v4148 = vadd.f32 0.0, %v4147
    %4149 = vmatmul.f32.gmra.mxu0 %v4128
    %v4150 = vpop.f32.mrf.mxu0
    %v4151 = vadd.f32 0.0, %v4150
    %4152 = vdwg.mxu0
    %v4153 = vadd.f32 %v3986, %v4148
    %v4154 = vadd.f32 %v3987, %v4151
    %v4155 = vadd.f32 %v3657, %v4153
    %v4156 = vadd.f32 %v3658, %v4154
    %s4157 = scalar_lea.vmem [#allocation22], 10
    %v4158 = vld [vmem:[%s4157] sm:$0x1]
    %s4159 = scalar_lea.vmem [#allocation22], 11
    %v4160 = vld [vmem:[%s4159] sm:$0x1]
    %v4161 = vsel %vm482, %v4155, 0.0
    %4162 = vadd.xlane.f32.xlu0 %v4161
    %v4163 = vpop.xlane.xlu0 %4162
    %v4164 = vsel %vm482, %v4156, 0.0
    %4165 = vadd.xlane.f32.xlu0 %v4164
    %v4166 = vpop.xlane.xlu0 %4165
    %v4167 = vmul.f32 %v4163, %v531
    %v4168 = vmul.f32 %v4166, %v531
    %v4169 = vsub.f32 %v4155, %v4167
    %v4170 = vsub.f32 %v4156, %v4168
    %v4171 = vmul.f32 %v4169, %v4169
    %v4172 = vmul.f32 %v4170, %v4170
    %v4173 = vsel %vm482, %v4171, 0.0
    %4174 = vadd.xlane.f32.xlu0 %v4173
    %v4175 = vpop.xlane.xlu0 %4174
    %v4176 = vsel %vm482, %v4172, 0.0
    %4177 = vadd.xlane.f32.xlu0 %v4176
    %v4178 = vpop.xlane.xlu0 %4177
    %v4179 = vmul.f32 %v4175, %v531
    %v4180 = vmul.f32 %v4178, %v531
    %v4181 = vadd.f32 %v4179, 1e-05
    %v4182 = vadd.f32 %v4180, 1e-05
    %v4183 = vrsqrt.pop %v4181
    %v4184 = vmul.f32 %v4183, %v4181
    %v4185 = vmul.f32 %v4184, %v4183
    %v4186 = vmul.f32 0.5, %v4185
    %v4187 = vsub.f32 1.5, %v4186
    %v4188 = vmul.f32 %v4183, %v4187
    %vm4189 = vweird.f32 %v4181
    %vm4190 = vweird.f32 %v4183
    %vm4191 = vmor %vm4189, %vm4190
    %v4192 = vsel %vm4191, %v4183, %v4188
    %v4193 = vrsqrt.pop %v4182
    %v4194 = vmul.f32 %v4193, %v4182
    %v4195 = vmul.f32 %v4194, %v4193
    %v4196 = vmul.f32 0.5, %v4195
    %v4197 = vsub.f32 1.5, %v4196
    %v4198 = vmul.f32 %v4193, %v4197
    %vm4199 = vweird.f32 %v4182
    %vm4200 = vweird.f32 %v4193
    %vm4201 = vmor %vm4199, %vm4200
    %v4202 = vsel %vm4201, %v4193, %v4198
    %v4203 = vmul.f32 %v4169, %v4192
    %v4204 = vmul.f32 %v4170, %v4202
    %v4206 = vperm.slane %v4158, 0
    %v4208 = vmul.f32 %v4203, %v4206
    %v4209 = vmul.f32 %v4204, %v4206
    %v4211 = vperm.slane %v4160, 0
    %v4213 = vadd.f32 %v4208, %v4211
    %v4214 = vadd.f32 %v4209, %v4211
    %s4215 = scalar_lea.vmem [#allocation28], 32
    %v4216 = vld [vmem:[%s4215] sm:$0xff]
    %v4217 = vld [vmem:[%s4215 + $0x8] sm:$0xff]
    %v4218 = vld [vmem:[%s4215 + $0x10] sm:$0xff]
    %v4219 = vld [vmem:[%s4215 + $0x18] sm:$0xff]
    %s4220 = scalar_lea.vmem [#allocation29], 1
    %v4221 = vld [vmem:[%s4220] sm:$0x1]
    %v4223 = vperm.slane %v4221, 0
    %v4226 = vsel %vm482, %v4213, 0
    %v4229 = vsel %vm482, %v4214, 0
    %4231 = vmatpush.msra.mxu0 0.0
    %4232 = vmatpush.msra.mxu0 0.0
    %4233 = vmatpush.msra.mxu0 0.0
    %4234 = vmatpush.msra.mxu0 0.0
    %4235 = vmatpush.msra.mxu0 0.0
    %4236 = vmatpush.msra.mxu0 0.0
    %4237 = vmatpush.msra.mxu0 0.0
    %4238 = vmatpush.msra.mxu0 0.0
    %4239 = vmatpush.msra.mxu0 0.0
    %4240 = vmatpush.msra.mxu0 0.0
    %4241 = vmatpush.msra.mxu0 0.0
    %4242 = vmatpush.msra.mxu0 0.0
    %4243 = vmatpush.msra.mxu0 %v4219
    %4244 = vmatpush.msra.mxu0 %v4218
    %4245 = vmatpush.msra.mxu0 %v4217
    %4246 = vmatpush.msra.mxu0 %v4216
    %4247 = vmatmul.f32.gmra.mxu0 %v4226
    %v4248 = vpop.f32.mrf.mxu0
    %v4249 = vadd.f32 %v4223, %v4248
    %4250 = vmatmul.f32.gmra.mxu0 %v4229
    %v4251 = vpop.f32.mrf.mxu0
    %v4252 = vadd.f32 %v4223, %v4251
    %4253 = vdwg.mxu0
    %v4254 = vmul.f32 %v4249, %v4249
    %v4255 = vmul.f32 %v4252, %v4252
    %v4256 = vmul.f32 %v4249, %v4254
    %v4257 = vmul.f32 %v4252, %v4255
    %v4258 = vmul.f32 %v4256, 0.044715
    %v4259 = vmul.f32 %v4257, 0.044715
    %v4260 = vadd.f32 %v4249, %v4258
    %v4261 = vadd.f32 %v4252, %v4259
    %v4262 = vmul.f32 %v4260, 0.7978846
    %v4263 = vmul.f32 %v4261, 0.7978846
    %v4264 = vtanh.pop %v4262
    %v4265 = vtanh.pop %v4263
    %v4266 = vadd.f32 %v4264, 1.0
    %v4267 = vadd.f32 %v4265, 1.0
    %v4268 = vmul.f32 %v4266, 0.5
    %v4269 = vmul.f32 %v4267, 0.5
    %v4270 = vmul.f32 %v4249, %v4268
    %v4271 = vmul.f32 %v4252, %v4269
    %s4272 = scalar_lea.vmem %s53, 64
    %v4273 = vld [vmem:[%s4272] sm:$0xff]
    %v4274 = vld [vmem:[%s4272 + $0x8] sm:$0xff]
    %v4275 = vld [vmem:[%s4272 + $0x10] sm:$0xff]
    %v4276 = vld [vmem:[%s4272 + $0x18] sm:$0xff]
    %v4277 = vld [vmem:[%s4272 + $0x20] sm:$0xff]
    %v4278 = vld [vmem:[%s4272 + $0x28] sm:$0xff]
    %v4279 = vld [vmem:[%s4272 + $0x30] sm:$0xff]
    %v4280 = vld [vmem:[%s4272 + $0x38] sm:$0xff]
    %v4282 = vsel %vm1145, %v4270, 0
    %v4285 = vsel %vm1145, %v4271, 0
    %4287 = vmatpush.msra.mxu0 0.0
    %4288 = vmatpush.msra.mxu0 0.0
    %4289 = vmatpush.msra.mxu0 0.0
    %4290 = vmatpush.msra.mxu0 0.0
    %4291 = vmatpush.msra.mxu0 0.0
    %4292 = vmatpush.msra.mxu0 0.0
    %4293 = vmatpush.msra.mxu0 0.0
    %4294 = vmatpush.msra.mxu0 0.0
    %4295 = vmatpush.msra.mxu0 %v4280
    %4296 = vmatpush.msra.mxu0 %v4279
    %4297 = vmatpush.msra.mxu0 %v4278
    %4298 = vmatpush.msra.mxu0 %v4277
    %4299 = vmatpush.msra.mxu0 %v4276
    %4300 = vmatpush.msra.mxu0 %v4275
    %4301 = vmatpush.msra.mxu0 %v4274
    %4302 = vmatpush.msra.mxu0 %v4273
    %4303 = vmatmul.f32.gmra.mxu0 %v4282
    %v4304 = vpop.f32.mrf.mxu0
    %v4305 = vadd.f32 0.0, %v4304
    %4306 = vmatmul.f32.gmra.mxu0 %v4285
    %v4307 = vpop.f32.mrf.mxu0
    %v4308 = vadd.f32 0.0, %v4307
    %4309 = vdwg.mxu0
    %v4310 = vadd.f32 %v4155, %v4305
    %v4311 = vadd.f32 %v4156, %v4308
    %s4312 = scalar_lea.vmem [#allocation31], 1
    %v4313 = vld [vmem:[%s4312] sm:$0x1]
    %v4315 = vperm.slane %v4313, 0
    %v4317 = vadd.f32 %v4310, %v4315
    %v4318 = vadd.f32 %v4311, %v4315
    %v4319 = vld [vmem:[#allocation32] sm:$0x1]
    %s4320 = scalar_lea.vmem [#allocation32], 1
    %v4321 = vld [vmem:[%s4320] sm:$0x1]
    %v4322 = vsel %vm482, %v4317, 0.0
    %4323 = vadd.xlane.f32.xlu0 %v4322
    %v4324 = vpop.xlane.xlu0 %4323
    %v4325 = vsel %vm482, %v4318, 0.0
    %4326 = vadd.xlane.f32.xlu0 %v4325
    %v4327 = vpop.xlane.xlu0 %4326
    %v4328 = vmul.f32 %v4324, %v531
    %v4329 = vmul.f32 %v4327, %v531
    %v4330 = vsub.f32 %v4317, %v4328
    %v4331 = vsub.f32 %v4318, %v4329
    %v4332 = vmul.f32 %v4330, %v4330
    %v4333 = vmul.f32 %v4331, %v4331
    %v4334 = vsel %vm482, %v4332, 0.0
    %4335 = vadd.xlane.f32.xlu0 %v4334
    %v4336 = vpop.xlane.xlu0 %4335
    %v4337 = vsel %vm482, %v4333, 0.0
    %4338 = vadd.xlane.f32.xlu0 %v4337
    %v4339 = vpop.xlane.xlu0 %4338
    %v4340 = vmul.f32 %v4336, %v531
    %v4341 = vmul.f32 %v4339, %v531
    %v4342 = vadd.f32 %v4340, 1e-05
    %v4343 = vadd.f32 %v4341, 1e-05
    %v4344 = vrsqrt.pop %v4342
    %v4345 = vmul.f32 %v4344, %v4342
    %v4346 = vmul.f32 %v4345, %v4344
    %v4347 = vmul.f32 0.5, %v4346
    %v4348 = vsub.f32 1.5, %v4347
    %v4349 = vmul.f32 %v4344, %v4348
    %vm4350 = vweird.f32 %v4342
    %vm4351 = vweird.f32 %v4344
    %vm4352 = vmor %vm4350, %vm4351
    %v4353 = vsel %vm4352, %v4344, %v4349
    %v4354 = vrsqrt.pop %v4343
    %v4355 = vmul.f32 %v4354, %v4343
    %v4356 = vmul.f32 %v4355, %v4354
    %v4357 = vmul.f32 0.5, %v4356
    %v4358 = vsub.f32 1.5, %v4357
    %v4359 = vmul.f32 %v4354, %v4358
    %vm4360 = vweird.f32 %v4343
    %vm4361 = vweird.f32 %v4354
    %vm4362 = vmor %vm4360, %vm4361
    %v4363 = vsel %vm4362, %v4354, %v4359
    %v4364 = vmul.f32 %v4330, %v4353
    %v4365 = vmul.f32 %v4331, %v4363
    %v4367 = vperm.slane %v4319, 0
    %v4369 = vmul.f32 %v4364, %v4367
    %v4370 = vmul.f32 %v4365, %v4367
    %v4372 = vperm.slane %v4321, 0
    %v4374 = vadd.f32 %v4369, %v4372
    %v4375 = vadd.f32 %v4370, %v4372
    %v4376 = vld [vmem:[%s59] sm:$0xff]
    %v4377 = vld [vmem:[%s59 + $0x8] sm:$0xff]
    %v4378 = vld [vmem:[%s59 + $0x10] sm:$0xff]
    %v4379 = vld [vmem:[%s59 + $0x18] sm:$0xff]
    %v4380 = vld [vmem:[%s61] sm:$0x1]
    %v4382 = vperm.slane %v4380, 0
    %v4385 = vsel %vm482, %v4374, 0
    %v4388 = vsel %vm482, %v4375, 0
    %4390 = vmatpush.msra.mxu0 0.0
    %4391 = vmatpush.msra.mxu0 0.0
    %4392 = vmatpush.msra.mxu0 0.0
    %4393 = vmatpush.msra.mxu0 0.0
    %4394 = vmatpush.msra.mxu0 0.0
    %4395 = vmatpush.msra.mxu0 0.0
    %4396 = vmatpush.msra.mxu0 0.0
    %4397 = vmatpush.msra.mxu0 0.0
    %4398 = vmatpush.msra.mxu0 0.0
    %4399 = vmatpush.msra.mxu0 0.0
    %4400 = vmatpush.msra.mxu0 0.0
    %4401 = vmatpush.msra.mxu0 0.0
    %4402 = vmatpush.msra.mxu0 %v4379
    %4403 = vmatpush.msra.mxu0 %v4378
    %4404 = vmatpush.msra.mxu0 %v4377
    %4405 = vmatpush.msra.mxu0 %v4376
    %4406 = vmatmul.f32.gmra.mxu0 %v4385
    %v4407 = vpop.f32.mrf.mxu0
    %v4408 = vadd.f32 %v4382, %v4407
    %4409 = vmatmul.f32.gmra.mxu0 %v4388
    %v4410 = vpop.f32.mrf.mxu0
    %v4411 = vadd.f32 %v4382, %v4410
    %4412 = vdwg.mxu0
    %4413 = vst.msk [vmem:[#allocation34] sm:$0xff] %vm694, %v4408
    %4414 = vst.msk [vmem:[#allocation34 + $0x8] sm:$0xff] %vm694, %v4411
    // Predicated region
    $region206: #{tpu_custom_call.1} parent=1 // pred_check
      _
    $region207: #{tpu_custom_call.1} parent=1 // pred_check_branch
      %4416 = sbr.rel (0) target = $region209
    $region208: #{tpu_custom_call.1} parent=1 // pred_region
      %4418 = vsyncadd [#allocation4], 0
      %s4419 = sshll.u32 [#allocation34], 4
      %s4420 = int_to_ptr.vmem [resolvable:$true] %s4419
      %s4421 = sshll.u32 %s63, 4
      %s4422 = int_to_ptr.hbm [resolvable:$true] %s4421
      %4427 = dma.vmem_to_hbm [thread:$0]  %s4420, 256, %s4422, [#allocation4], 128, 128, 8
    $region209: #{tpu_custom_call.1} parent=1 // pred_fallthru
      _
    // Predicated region
    $region210: #{tpu_custom_call.1} parent=1 // pred_check
      _
    $region211: #{tpu_custom_call.1} parent=1 // pred_check_branch
      %4429 = sbr.rel (0) target = $region213
    $region212: #{tpu_custom_call.1} parent=1 // pred_region
      %4431 = vsyncadd [#allocation36], 0
      %s4432 = sshll.u32 [#allocation35], 4
      %s4433 = int_to_ptr.vmem [resolvable:$true] %s4432
      %s4434 = sshll.u32 %s65, 4
      %s4435 = int_to_ptr.hbm [resolvable:$true] %s4434
      %4440 = dma.vmem_to_hbm [thread:$0]  %s4433, 256, %s4435, [#allocation36], 128, 128, 8
    $region213: #{tpu_custom_call.1} parent=1 // pred_fallthru
      _
    // Predicated region
    $region214: #{tpu_custom_call.1} parent=1 // pred_check
      _
    $region215: #{tpu_custom_call.1} parent=1 // pred_check_branch
      %4442 = sbr.rel (0) target = $region217
    $region216: #{tpu_custom_call.1} parent=1 // pred_region
      %4444 = dma.done [#allocation4], 256
    $region217: #{tpu_custom_call.1} parent=1 // pred_fallthru
      _
    // Predicated region
    $region218: #{tpu_custom_call.1} parent=1 // pred_check
      _
    $region219: #{tpu_custom_call.1} parent=1 // pred_check_branch
      %4446 = sbr.rel (0) target = $region221
    $region220: #{tpu_custom_call.1} parent=1 // pred_region
      %4448 = dma.done [#allocation36], 256
    $region221: #{tpu_custom_call.1} parent=1 // pred_fallthru
      _
    %4449 = vsyncpa [#allocation3], 1
    %4450 = vsyncpa [#allocation6], 1
    %4451 = vsyncpa [#allocation9], 1
    %4452 = vsyncpa [#allocation12], 1
    %4453 = vsyncpa [#allocation15], 1
    %4454 = vsyncpa [#allocation18], 1
    %4455 = vsyncpa [#allocation21], 1
    %4456 = vsyncpa [#allocation24], 1
    %4457 = vsyncpa [#allocation27], 1
    %4458 = vsyncpa [#allocation30], 1
    %4459 = vsyncpa [#allocation33], 1
    %4460 = vsyncpa [#allocation4], 1
    %4461 = vsyncpa [#allocation36], 1

</llo_original>
